<compile_context>
chip_gen: v6e
topology: v6e:2x2x1
jax: 0.10.0
libtpu: 0.0.40
codegen_flags: <defaults>
</compile_context>

<pallas_src>
import jax
import jax.numpy as jnp
from jax.experimental import pallas as pl
from jax.experimental.pallas import tpu as pltpu

H, W, C = 16, 16, 64          # spatial size is free; channels fixed at 64 by the module
HW = H * W
K9 = 9 * C
EPS = 1e-5
NEG_SLOPE = 0.2

# Static lane-rotation amount per tap (pltpu.roll follows jnp.roll convention:
# out[q] = in[(q - shift) mod HW]; we want out[q] = in[q + s]  =>  shift = -s).
_TAP_SHIFTS = tuple(
    (-((ky - 1) * W + (kx - 1))) % HW for ky in range(3) for kx in range(3)
)


def _tap_masks():
    """(K9, HW) f32 multiplicative masks: 1.0 where tap (ky,kx) is in-bounds."""
    p = jnp.arange(HW, dtype=jnp.int32)
    hh, ww = p // W, p % W
    rows = []
    for ky in range(3):
        for kx in range(3):
            valid = ((hh + (ky - 1) >= 0) & (hh + (ky - 1) < H) &
                     (ww + (kx - 1) >= 0) & (ww + (kx - 1) < W))
            rows.append(jnp.broadcast_to(
                valid.astype(jnp.float32)[None, :], (C, HW)))
    return jnp.concatenate(rows, axis=0)


def residual_block_kernel(x_ref, w1_ref, w2_ref, g1_ref, b1_ref,
                          g2_ref, b2_ref, mask_ref, o_ref,
                          patch_ref, mid_ref):
    nb = x_ref.shape[0]                       # images per grid step
    inv_hw = 1.0 / HW

    def build_patch(img, b):
        # img: (C, HW) f32 for image b.  Writes the 9 rotated+masked taps as
        # bf16 into patch columns [b*HW, (b+1)*HW).  The mask zeroes every
        # wrapped lane, so the rotate is semantically identical to a
        # zero-padded shift.
        for t, sh in enumerate(_TAP_SHIFTS):
            tap = img if sh == 0 else pltpu.roll(img, shift=sh, axis=1)
            patch_ref[t * C:(t + 1) * C, b * HW:(b + 1) * HW] = (
                tap * mask_ref[t * C:(t + 1) * C, :]).astype(jnp.bfloat16)

    def inorm(y, gamma, beta):
        # one-pass biased variance, clamped against f32 cancellation
        mean = jnp.sum(y, axis=1, keepdims=True) * inv_hw
        var = jnp.sum(y * y, axis=1, keepdims=True) * inv_hw - mean * mean
        var = jnp.maximum(var, 0.0)
        return (y - mean) * jax.lax.rsqrt(var + EPS) * gamma + beta

    g1 = g1_ref[...]; b1 = b1_ref[...]
    g2 = g2_ref[...]; b2 = b2_ref[...]

    # ---- conv1: batched im2col patch over the whole block, one fused matmul ----
    for b in range(nb):
        build_patch(x_ref[b].astype(jnp.float32), b)
    mid_ref[...] = jnp.dot(w1_ref[...], patch_ref[...],
                           preferred_element_type=jnp.float32)

    # ---- IN1 + LeakyReLU(0.2) per image, then the second im2col patch ----
    for b in range(nb):
        y = inorm(mid_ref[:, b * HW:(b + 1) * HW], g1, b1)
        y = jnp.where(y >= 0, y, NEG_SLOPE * y)
        build_patch(y, b)
    mid_ref[...] = jnp.dot(w2_ref[...], patch_ref[...],
                           preferred_element_type=jnp.float32)

    # ---- IN2 + residual add (x re-read here, not kept live across convs) ----
    for b in range(nb):
        z = inorm(mid_ref[:, b * HW:(b + 1) * HW], g2, b2)
        o_ref[b] = (z + x_ref[b].astype(jnp.float32)).astype(o_ref.dtype)


def residual_block(x_nchw, w1, w2, g1, b1, g2, b2, block_b=2):
    """x_nchw: (N, 64, H, W); w*: (3,3,64,64) HWIO; g*/b*: (64,). Returns NCHW."""
    N = x_nchw.shape[0]
    assert x_nchw.shape[1:] == (C, H, W)
    if N % block_b != 0:
        block_b = 1

    x_flat = x_nchw.reshape(N, C, HW)                 # free reshape, no pad/transpose
    # Weights pre-packed as (Cout, 9*Cin) bf16 for the fused K=576 contraction.
    # (In production these would be packed/cast once, outside the hot path.)
    w1m = w1.reshape(K9, C).T.astype(jnp.bfloat16)
    w2m = w2.reshape(K9, C).T.astype(jnp.bfloat16)
    g1c = g1.reshape(C, 1); b1c = b1.reshape(C, 1)
    g2c = g2.reshape(C, 1); b2c = b2.reshape(C, 1)
    masks = _tap_masks()                              # (K9, HW) f32, constant block

    blk_hw = block_b * HW
    out = pl.pallas_call(
        residual_block_kernel,
        out_shape=jax.ShapeDtypeStruct((N, C, HW), x_nchw.dtype),
        grid_spec=pltpu.PrefetchScalarGridSpec(
            num_scalar_prefetch=0,
            grid=(N // block_b,),
            in_specs=[
                pl.BlockSpec((block_b, C, HW), lambda n: (n, 0, 0)),  # x (lane-dense)
                pl.BlockSpec((C, K9), lambda n: (0, 0)),              # conv1 W (bf16)
                pl.BlockSpec((C, K9), lambda n: (0, 0)),              # conv2 W (bf16)
                pl.BlockSpec((C, 1), lambda n: (0, 0)),               # IN1 gamma
                pl.BlockSpec((C, 1), lambda n: (0, 0)),               # IN1 beta
                pl.BlockSpec((C, 1), lambda n: (0, 0)),               # IN2 gamma
                pl.BlockSpec((C, 1), lambda n: (0, 0)),               # IN2 beta
                pl.BlockSpec((K9, HW), lambda n: (0, 0)),             # tap masks
            ],
            out_specs=pl.BlockSpec((block_b, C, HW), lambda n: (n, 0, 0)),
            scratch_shapes=[
                pltpu.VMEM((K9, blk_hw), jnp.bfloat16),   # batched im2col patch
                pltpu.VMEM((C, blk_hw), jnp.float32),     # conv output (f32 acc)
            ],
        ),
        compiler_params=pltpu.CompilerParams(
            dimension_semantics=("parallel",)),
    )(x_flat, w1m, w2m, g1c, b1c, g2c, b2c, masks)
    return out.reshape(N, C, H, W)


def reference(x_nchw, w1, w2, g1, b1, g2, b2):
    """Pure-JAX f32 reference mirroring the PyTorch module."""
    def conv(x, w):
        w_oihw = jnp.transpose(w, (3, 2, 0, 1))
        return jax.lax.conv_general_dilated(
            x, w_oihw, (1, 1), ((1, 1), (1, 1)),
            dimension_numbers=("NCHW", "OIHW", "NCHW"))

    def inorm(x, g, b):
        mean = jnp.mean(x, axis=(2, 3), keepdims=True)
        var = jnp.mean((x - mean) ** 2, axis=(2, 3), keepdims=True)
        return ((x - mean) * jax.lax.rsqrt(var + EPS)
                * g.reshape(1, C, 1, 1) + b.reshape(1, C, 1, 1))

    y = conv(x_nchw, w1)
    y = inorm(y, g1, b1)
    y = jnp.where(y >= 0, y, NEG_SLOPE * y)
    z = conv(y, w2)
    z = inorm(z, g2, b2)
    return z + x_nchw


if __name__ == "__main__":
    key = jax.random.PRNGKey(0)
    k_x, k_w1, k_w2, k_g1, k_b1, k_g2, k_b2 = jax.random.split(key, 7)

    N = 4
    x = jax.random.normal(k_x, (N, C, H, W), jnp.float32)

    # Deterministic synthetic parameters (shapes from the module's __init__).
    fan_in = C * 3 * 3
    bound = 1.0 / (fan_in ** 0.5)
    w1 = jax.random.uniform(k_w1, (3, 3, C, C), jnp.float32, -bound, bound)
    w2 = jax.random.uniform(k_w2, (3, 3, C, C), jnp.float32, -bound, bound)
    # affine params perturbed from the ones/zeros init to exercise the affine path
    g1 = 1.0 + 0.1 * jax.random.normal(k_g1, (C,), jnp.float32)
    b1 = 0.1 * jax.random.normal(k_b1, (C,), jnp.float32)
    g2 = 1.0 + 0.1 * jax.random.normal(k_g2, (C,), jnp.float32)
    b2 = 0.1 * jax.random.normal(k_b2, (C,), jnp.float32)

    out = residual_block(x, w1, w2, g1, b1, g2, b2, block_b=2)
    out = jax.block_until_ready(out)

    ref = reference(x, w1, w2, g1, b1, g2, b2)
    max_err = float(jnp.max(jnp.abs(out - ref)))
    # Tolerance reflects bf16 matmul inputs (f32 accumulation) vs the f32 reference.
    assert jnp.allclose(out, ref, atol=5e-2, rtol=5e-2), f"max abs err {max_err}"

    print("KERNEL_OK")
</pallas_src>

<mosaic_0001>
module attributes {stable_mosaic.version = 11 : i64} {
  func.func @residual_block_kernel(%arg0: i32, %arg1: memref<2x64x256xf32, #tpu.memory_space<vmem>>, %arg2: memref<64x576xbf16, #tpu.memory_space<vmem>>, %arg3: memref<64x576xbf16, #tpu.memory_space<vmem>>, %arg4: memref<64x1xf32, #tpu.memory_space<vmem>>, %arg5: memref<64x1xf32, #tpu.memory_space<vmem>>, %arg6: memref<64x1xf32, #tpu.memory_space<vmem>>, %arg7: memref<64x1xf32, #tpu.memory_space<vmem>>, %arg8: memref<576x256xf32, #tpu.memory_space<vmem>>, %arg9: memref<2x64x256xf32, #tpu.memory_space<vmem>>, %arg10: memref<576x512xbf16, #tpu.memory_space<vmem>>, %arg11: memref<64x512xf32, #tpu.memory_space<vmem>>) attributes {dimension_semantics = [#tpu.dimension_semantics<parallel>], iteration_bounds = array<i64: 2>, scalar_prefetch = 0 : i64, scratch_operands = 2 : i64, tpu.core_type = #tpu.core_type<tc>, window_params = [{transform_indices = @transform_0, window_bounds = array<i64: 2, 64, 256>}, {pipeline_mode = #tpu.pipeline_mode<synchronous>, transform_indices = @transform_1, window_bounds = array<i64: 64, 576>}, {pipeline_mode = #tpu.pipeline_mode<synchronous>, transform_indices = @transform_2, window_bounds = array<i64: 64, 576>}, {pipeline_mode = #tpu.pipeline_mode<synchronous>, transform_indices = @transform_3, window_bounds = array<i64: 64, 1>}, {pipeline_mode = #tpu.pipeline_mode<synchronous>, transform_indices = @transform_4, window_bounds = array<i64: 64, 1>}, {pipeline_mode = #tpu.pipeline_mode<synchronous>, transform_indices = @transform_5, window_bounds = array<i64: 64, 1>}, {pipeline_mode = #tpu.pipeline_mode<synchronous>, transform_indices = @transform_6, window_bounds = array<i64: 64, 1>}, {pipeline_mode = #tpu.pipeline_mode<synchronous>, transform_indices = @transform_7, window_bounds = array<i64: 576, 256>}, {transform_indices = @transform_8, window_bounds = array<i64: 2, 64, 256>}]} {
    %c0 = arith.constant 0 : index
    %c0_0 = arith.constant 0 : index
    %0 = vector.load %arg4[%c0, %c0_0] : memref<64x1xf32, #tpu.memory_space<vmem>>, vector<64x1xf32>
    %c0_1 = arith.constant 0 : index
    %c0_2 = arith.constant 0 : index
    %1 = vector.load %arg5[%c0_1, %c0_2] : memref<64x1xf32, #tpu.memory_space<vmem>>, vector<64x1xf32>
    %c0_3 = arith.constant 0 : index
    %c0_4 = arith.constant 0 : index
    %2 = vector.load %arg6[%c0_3, %c0_4] : memref<64x1xf32, #tpu.memory_space<vmem>>, vector<64x1xf32>
    %c0_5 = arith.constant 0 : index
    %c0_6 = arith.constant 0 : index
    %3 = vector.load %arg7[%c0_5, %c0_6] : memref<64x1xf32, #tpu.memory_space<vmem>>, vector<64x1xf32>
    %c0_7 = arith.constant 0 : index
    %c0_8 = arith.constant 0 : index
    %c0_9 = arith.constant 0 : index
    %4 = vector.load %arg1[%c0_7, %c0_8, %c0_9] : memref<2x64x256xf32, #tpu.memory_space<vmem>>, vector<1x64x256xf32>
    %5 = vector.shape_cast %4 : vector<1x64x256xf32> to vector<64x256xf32>
    %c17_i32 = arith.constant 17 : i32
    %6 = tpu.dynamic_rotate %5 by %c17_i32 dim 1 : vector<64x256xf32>, i32 -> vector<64x256xf32>
    %c0_10 = arith.constant 0 : index
    %c0_11 = arith.constant 0 : index
    %7 = vector.load %arg8[%c0_10, %c0_11] : memref<576x256xf32, #tpu.memory_space<vmem>>, vector<64x256xf32>
    %8 = arith.mulf %6, %7 : vector<64x256xf32>
    %9 = arith.truncf %8 : vector<64x256xf32> to vector<64x256xbf16>
    %c0_12 = arith.constant 0 : index
    %c0_13 = arith.constant 0 : index
    %10 = vector.load %arg10[%c0_12, %c0_13] : memref<576x512xbf16, #tpu.memory_space<vmem>>, vector<64x256xbf16>
    tpu.vector_store %arg10[%c0_12, %c0_13], %9 {strides = array<i32>} : memref<576x512xbf16, #tpu.memory_space<vmem>>, vector<64x256xbf16>,
    %c16_i32 = arith.constant 16 : i32
    %11 = tpu.dynamic_rotate %5 by %c16_i32 dim 1 : vector<64x256xf32>, i32 -> vector<64x256xf32>
    %c64 = arith.constant 64 : index
    %c0_14 = arith.constant 0 : index
    %12 = vector.load %arg8[%c64, %c0_14] : memref<576x256xf32, #tpu.memory_space<vmem>>, vector<64x256xf32>
    %13 = arith.mulf %11, %12 : vector<64x256xf32>
    %14 = arith.truncf %13 : vector<64x256xf32> to vector<64x256xbf16>
    %c64_15 = arith.constant 64 : index
    %c0_16 = arith.constant 0 : index
    %15 = vector.load %arg10[%c64_15, %c0_16] : memref<576x512xbf16, #tpu.memory_space<vmem>>, vector<64x256xbf16>
    tpu.vector_store %arg10[%c64_15, %c0_16], %14 {strides = array<i32>} : memref<576x512xbf16, #tpu.memory_space<vmem>>, vector<64x256xbf16>,
    %c15_i32 = arith.constant 15 : i32
    %16 = tpu.dynamic_rotate %5 by %c15_i32 dim 1 : vector<64x256xf32>, i32 -> vector<64x256xf32>
    %c128 = arith.constant 128 : index
    %c0_17 = arith.constant 0 : index
    %17 = vector.load %arg8[%c128, %c0_17] : memref<576x256xf32, #tpu.memory_space<vmem>>, vector<64x256xf32>
    %18 = arith.mulf %16, %17 : vector<64x256xf32>
    %19 = arith.truncf %18 : vector<64x256xf32> to vector<64x256xbf16>
    %c128_18 = arith.constant 128 : index
    %c0_19 = arith.constant 0 : index
    %20 = vector.load %arg10[%c128_18, %c0_19] : memref<576x512xbf16, #tpu.memory_space<vmem>>, vector<64x256xbf16>
    tpu.vector_store %arg10[%c128_18, %c0_19], %19 {strides = array<i32>} : memref<576x512xbf16, #tpu.memory_space<vmem>>, vector<64x256xbf16>,
    %c1_i32 = arith.constant 1 : i32
    %21 = tpu.dynamic_rotate %5 by %c1_i32 dim 1 : vector<64x256xf32>, i32 -> vector<64x256xf32>
    %c192 = arith.constant 192 : index
    %c0_20 = arith.constant 0 : index
    %22 = vector.load %arg8[%c192, %c0_20] : memref<576x256xf32, #tpu.memory_space<vmem>>, vector<64x256xf32>
    %23 = arith.mulf %21, %22 : vector<64x256xf32>
    %24 = arith.truncf %23 : vector<64x256xf32> to vector<64x256xbf16>
    %c192_21 = arith.constant 192 : index
    %c0_22 = arith.constant 0 : index
    %25 = vector.load %arg10[%c192_21, %c0_22] : memref<576x512xbf16, #tpu.memory_space<vmem>>, vector<64x256xbf16>
    tpu.vector_store %arg10[%c192_21, %c0_22], %24 {strides = array<i32>} : memref<576x512xbf16, #tpu.memory_space<vmem>>, vector<64x256xbf16>,
    %c256 = arith.constant 256 : index
    %c0_23 = arith.constant 0 : index
    %26 = vector.load %arg8[%c256, %c0_23] : memref<576x256xf32, #tpu.memory_space<vmem>>, vector<64x256xf32>
    %27 = arith.mulf %5, %26 : vector<64x256xf32>
    %28 = arith.truncf %27 : vector<64x256xf32> to vector<64x256xbf16>
    %c256_24 = arith.constant 256 : index
    %c0_25 = arith.constant 0 : index
    %29 = vector.load %arg10[%c256_24, %c0_25] : memref<576x512xbf16, #tpu.memory_space<vmem>>, vector<64x256xbf16>
    tpu.vector_store %arg10[%c256_24, %c0_25], %28 {strides = array<i32>} : memref<576x512xbf16, #tpu.memory_space<vmem>>, vector<64x256xbf16>,
    %c255_i32 = arith.constant 255 : i32
    %30 = tpu.dynamic_rotate %5 by %c255_i32 dim 1 : vector<64x256xf32>, i32 -> vector<64x256xf32>
    %c320 = arith.constant 320 : index
    %c0_26 = arith.constant 0 : index
    %31 = vector.load %arg8[%c320, %c0_26] : memref<576x256xf32, #tpu.memory_space<vmem>>, vector<64x256xf32>
    %32 = arith.mulf %30, %31 : vector<64x256xf32>
    %33 = arith.truncf %32 : vector<64x256xf32> to vector<64x256xbf16>
    %c320_27 = arith.constant 320 : index
    %c0_28 = arith.constant 0 : index
    %34 = vector.load %arg10[%c320_27, %c0_28] : memref<576x512xbf16, #tpu.memory_space<vmem>>, vector<64x256xbf16>
    tpu.vector_store %arg10[%c320_27, %c0_28], %33 {strides = array<i32>} : memref<576x512xbf16, #tpu.memory_space<vmem>>, vector<64x256xbf16>,
    %c241_i32 = arith.constant 241 : i32
    %35 = tpu.dynamic_rotate %5 by %c241_i32 dim 1 : vector<64x256xf32>, i32 -> vector<64x256xf32>
    %c384 = arith.constant 384 : index
    %c0_29 = arith.constant 0 : index
    %36 = vector.load %arg8[%c384, %c0_29] : memref<576x256xf32, #tpu.memory_space<vmem>>, vector<64x256xf32>
    %37 = arith.mulf %35, %36 : vector<64x256xf32>
    %38 = arith.truncf %37 : vector<64x256xf32> to vector<64x256xbf16>
    %c384_30 = arith.constant 384 : index
    %c0_31 = arith.constant 0 : index
    %39 = vector.load %arg10[%c384_30, %c0_31] : memref<576x512xbf16, #tpu.memory_space<vmem>>, vector<64x256xbf16>
    tpu.vector_store %arg10[%c384_30, %c0_31], %38 {strides = array<i32>} : memref<576x512xbf16, #tpu.memory_space<vmem>>, vector<64x256xbf16>,
    %c240_i32 = arith.constant 240 : i32
    %40 = tpu.dynamic_rotate %5 by %c240_i32 dim 1 : vector<64x256xf32>, i32 -> vector<64x256xf32>
    %c448 = arith.constant 448 : index
    %c0_32 = arith.constant 0 : index
    %41 = vector.load %arg8[%c448, %c0_32] : memref<576x256xf32, #tpu.memory_space<vmem>>, vector<64x256xf32>
    %42 = arith.mulf %40, %41 : vector<64x256xf32>
    %43 = arith.truncf %42 : vector<64x256xf32> to vector<64x256xbf16>
    %c448_33 = arith.constant 448 : index
    %c0_34 = arith.constant 0 : index
    %44 = vector.load %arg10[%c448_33, %c0_34] : memref<576x512xbf16, #tpu.memory_space<vmem>>, vector<64x256xbf16>
    tpu.vector_store %arg10[%c448_33, %c0_34], %43 {strides = array<i32>} : memref<576x512xbf16, #tpu.memory_space<vmem>>, vector<64x256xbf16>,
    %c239_i32 = arith.constant 239 : i32
    %45 = tpu.dynamic_rotate %5 by %c239_i32 dim 1 : vector<64x256xf32>, i32 -> vector<64x256xf32>
    %c512 = arith.constant 512 : index
    %c0_35 = arith.constant 0 : index
    %46 = vector.load %arg8[%c512, %c0_35] : memref<576x256xf32, #tpu.memory_space<vmem>>, vector<64x256xf32>
    %47 = arith.mulf %45, %46 : vector<64x256xf32>
    %48 = arith.truncf %47 : vector<64x256xf32> to vector<64x256xbf16>
    %c512_36 = arith.constant 512 : index
    %c0_37 = arith.constant 0 : index
    %49 = vector.load %arg10[%c512_36, %c0_37] : memref<576x512xbf16, #tpu.memory_space<vmem>>, vector<64x256xbf16>
    tpu.vector_store %arg10[%c512_36, %c0_37], %48 {strides = array<i32>} : memref<576x512xbf16, #tpu.memory_space<vmem>>, vector<64x256xbf16>,
    %c1 = arith.constant 1 : index
    %c0_38 = arith.constant 0 : index
    %c0_39 = arith.constant 0 : index
    %50 = vector.load %arg1[%c1, %c0_38, %c0_39] : memref<2x64x256xf32, #tpu.memory_space<vmem>>, vector<1x64x256xf32>
    %51 = vector.shape_cast %50 : vector<1x64x256xf32> to vector<64x256xf32>
    %c17_i32_40 = arith.constant 17 : i32
    %52 = tpu.dynamic_rotate %51 by %c17_i32_40 dim 1 : vector<64x256xf32>, i32 -> vector<64x256xf32>
    %c0_41 = arith.constant 0 : index
    %c0_42 = arith.constant 0 : index
    %53 = vector.load %arg8[%c0_41, %c0_42] : memref<576x256xf32, #tpu.memory_space<vmem>>, vector<64x256xf32>
    %54 = arith.mulf %52, %53 : vector<64x256xf32>
    %55 = arith.truncf %54 : vector<64x256xf32> to vector<64x256xbf16>
    %c0_43 = arith.constant 0 : index
    %c256_44 = arith.constant 256 : index
    %56 = vector.load %arg10[%c0_43, %c256_44] : memref<576x512xbf16, #tpu.memory_space<vmem>>, vector<64x256xbf16>
    tpu.vector_store %arg10[%c0_43, %c256_44], %55 {strides = array<i32>} : memref<576x512xbf16, #tpu.memory_space<vmem>>, vector<64x256xbf16>,
    %c16_i32_45 = arith.constant 16 : i32
    %57 = tpu.dynamic_rotate %51 by %c16_i32_45 dim 1 : vector<64x256xf32>, i32 -> vector<64x256xf32>
    %c64_46 = arith.constant 64 : index
    %c0_47 = arith.constant 0 : index
    %58 = vector.load %arg8[%c64_46, %c0_47] : memref<576x256xf32, #tpu.memory_space<vmem>>, vector<64x256xf32>
    %59 = arith.mulf %57, %58 : vector<64x256xf32>
    %60 = arith.truncf %59 : vector<64x256xf32> to vector<64x256xbf16>
    %c64_48 = arith.constant 64 : index
    %c256_49 = arith.constant 256 : index
    %61 = vector.load %arg10[%c64_48, %c256_49] : memref<576x512xbf16, #tpu.memory_space<vmem>>, vector<64x256xbf16>
    tpu.vector_store %arg10[%c64_48, %c256_49], %60 {strides = array<i32>} : memref<576x512xbf16, #tpu.memory_space<vmem>>, vector<64x256xbf16>,
    %c15_i32_50 = arith.constant 15 : i32
    %62 = tpu.dynamic_rotate %51 by %c15_i32_50 dim 1 : vector<64x256xf32>, i32 -> vector<64x256xf32>
    %c128_51 = arith.constant 128 : index
    %c0_52 = arith.constant 0 : index
    %63 = vector.load %arg8[%c128_51, %c0_52] : memref<576x256xf32, #tpu.memory_space<vmem>>, vector<64x256xf32>
    %64 = arith.mulf %62, %63 : vector<64x256xf32>
    %65 = arith.truncf %64 : vector<64x256xf32> to vector<64x256xbf16>
    %c128_53 = arith.constant 128 : index
    %c256_54 = arith.constant 256 : index
    %66 = vector.load %arg10[%c128_53, %c256_54] : memref<576x512xbf16, #tpu.memory_space<vmem>>, vector<64x256xbf16>
    tpu.vector_store %arg10[%c128_53, %c256_54], %65 {strides = array<i32>} : memref<576x512xbf16, #tpu.memory_space<vmem>>, vector<64x256xbf16>,
    %c1_i32_55 = arith.constant 1 : i32
    %67 = tpu.dynamic_rotate %51 by %c1_i32_55 dim 1 : vector<64x256xf32>, i32 -> vector<64x256xf32>
    %c192_56 = arith.constant 192 : index
    %c0_57 = arith.constant 0 : index
    %68 = vector.load %arg8[%c192_56, %c0_57] : memref<576x256xf32, #tpu.memory_space<vmem>>, vector<64x256xf32>
    %69 = arith.mulf %67, %68 : vector<64x256xf32>
    %70 = arith.truncf %69 : vector<64x256xf32> to vector<64x256xbf16>
    %c192_58 = arith.constant 192 : index
    %c256_59 = arith.constant 256 : index
    %71 = vector.load %arg10[%c192_58, %c256_59] : memref<576x512xbf16, #tpu.memory_space<vmem>>, vector<64x256xbf16>
    tpu.vector_store %arg10[%c192_58, %c256_59], %70 {strides = array<i32>} : memref<576x512xbf16, #tpu.memory_space<vmem>>, vector<64x256xbf16>,
    %c256_60 = arith.constant 256 : index
    %c0_61 = arith.constant 0 : index
    %72 = vector.load %arg8[%c256_60, %c0_61] : memref<576x256xf32, #tpu.memory_space<vmem>>, vector<64x256xf32>
    %73 = arith.mulf %51, %72 : vector<64x256xf32>
    %74 = arith.truncf %73 : vector<64x256xf32> to vector<64x256xbf16>
    %c256_62 = arith.constant 256 : index
    %c256_63 = arith.constant 256 : index
    %75 = vector.load %arg10[%c256_62, %c256_63] : memref<576x512xbf16, #tpu.memory_space<vmem>>, vector<64x256xbf16>
    tpu.vector_store %arg10[%c256_62, %c256_63], %74 {strides = array<i32>} : memref<576x512xbf16, #tpu.memory_space<vmem>>, vector<64x256xbf16>,
    %c255_i32_64 = arith.constant 255 : i32
    %76 = tpu.dynamic_rotate %51 by %c255_i32_64 dim 1 : vector<64x256xf32>, i32 -> vector<64x256xf32>
    %c320_65 = arith.constant 320 : index
    %c0_66 = arith.constant 0 : index
    %77 = vector.load %arg8[%c320_65, %c0_66] : memref<576x256xf32, #tpu.memory_space<vmem>>, vector<64x256xf32>
    %78 = arith.mulf %76, %77 : vector<64x256xf32>
    %79 = arith.truncf %78 : vector<64x256xf32> to vector<64x256xbf16>
    %c320_67 = arith.constant 320 : index
    %c256_68 = arith.constant 256 : index
    %80 = vector.load %arg10[%c320_67, %c256_68] : memref<576x512xbf16, #tpu.memory_space<vmem>>, vector<64x256xbf16>
    tpu.vector_store %arg10[%c320_67, %c256_68], %79 {strides = array<i32>} : memref<576x512xbf16, #tpu.memory_space<vmem>>, vector<64x256xbf16>,
    %c241_i32_69 = arith.constant 241 : i32
    %81 = tpu.dynamic_rotate %51 by %c241_i32_69 dim 1 : vector<64x256xf32>, i32 -> vector<64x256xf32>
    %c384_70 = arith.constant 384 : index
    %c0_71 = arith.constant 0 : index
    %82 = vector.load %arg8[%c384_70, %c0_71] : memref<576x256xf32, #tpu.memory_space<vmem>>, vector<64x256xf32>
    %83 = arith.mulf %81, %82 : vector<64x256xf32>
    %84 = arith.truncf %83 : vector<64x256xf32> to vector<64x256xbf16>
    %c384_72 = arith.constant 384 : index
    %c256_73 = arith.constant 256 : index
    %85 = vector.load %arg10[%c384_72, %c256_73] : memref<576x512xbf16, #tpu.memory_space<vmem>>, vector<64x256xbf16>
    tpu.vector_store %arg10[%c384_72, %c256_73], %84 {strides = array<i32>} : memref<576x512xbf16, #tpu.memory_space<vmem>>, vector<64x256xbf16>,
    %c240_i32_74 = arith.constant 240 : i32
    %86 = tpu.dynamic_rotate %51 by %c240_i32_74 dim 1 : vector<64x256xf32>, i32 -> vector<64x256xf32>
    %c448_75 = arith.constant 448 : index
    %c0_76 = arith.constant 0 : index
    %87 = vector.load %arg8[%c448_75, %c0_76] : memref<576x256xf32, #tpu.memory_space<vmem>>, vector<64x256xf32>
    %88 = arith.mulf %86, %87 : vector<64x256xf32>
    %89 = arith.truncf %88 : vector<64x256xf32> to vector<64x256xbf16>
    %c448_77 = arith.constant 448 : index
    %c256_78 = arith.constant 256 : index
    %90 = vector.load %arg10[%c448_77, %c256_78] : memref<576x512xbf16, #tpu.memory_space<vmem>>, vector<64x256xbf16>
    tpu.vector_store %arg10[%c448_77, %c256_78], %89 {strides = array<i32>} : memref<576x512xbf16, #tpu.memory_space<vmem>>, vector<64x256xbf16>,
    %c239_i32_79 = arith.constant 239 : i32
    %91 = tpu.dynamic_rotate %51 by %c239_i32_79 dim 1 : vector<64x256xf32>, i32 -> vector<64x256xf32>
    %c512_80 = arith.constant 512 : index
    %c0_81 = arith.constant 0 : index
    %92 = vector.load %arg8[%c512_80, %c0_81] : memref<576x256xf32, #tpu.memory_space<vmem>>, vector<64x256xf32>
    %93 = arith.mulf %91, %92 : vector<64x256xf32>
    %94 = arith.truncf %93 : vector<64x256xf32> to vector<64x256xbf16>
    %c512_82 = arith.constant 512 : index
    %c256_83 = arith.constant 256 : index
    %95 = vector.load %arg10[%c512_82, %c256_83] : memref<576x512xbf16, #tpu.memory_space<vmem>>, vector<64x256xbf16>
    tpu.vector_store %arg10[%c512_82, %c256_83], %94 {strides = array<i32>} : memref<576x512xbf16, #tpu.memory_space<vmem>>, vector<64x256xbf16>,
    %c0_84 = arith.constant 0 : index
    %c0_85 = arith.constant 0 : index
    %96 = vector.load %arg2[%c0_84, %c0_85] : memref<64x576xbf16, #tpu.memory_space<vmem>>, vector<64x576xbf16>
    %c0_86 = arith.constant 0 : index
    %c0_87 = arith.constant 0 : index
    %97 = vector.load %arg10[%c0_86, %c0_87] : memref<576x512xbf16, #tpu.memory_space<vmem>>, vector<576x512xbf16>
    %cst = arith.constant dense<0.000000e+00> : vector<64x512xf32>
    %98 = tpu.matmul %96, %97, %cst {dimension_numbers = #tpu.dot_dimension_numbers<[1], [0], [0], [1], [0, 0, 1, 1], [], []>} : vector<64x576xbf16>, vector<576x512xbf16>, vector<64x512xf32> -> vector<64x512xf32>
    %c0_88 = arith.constant 0 : index
    %c0_89 = arith.constant 0 : index
    %99 = vector.load %arg11[%c0_88, %c0_89] : memref<64x512xf32, #tpu.memory_space<vmem>>, vector<64x512xf32>
    tpu.vector_store %arg11[%c0_88, %c0_89], %98 {strides = array<i32>} : memref<64x512xf32, #tpu.memory_space<vmem>>, vector<64x512xf32>,
    %c0_90 = arith.constant 0 : index
    %c0_91 = arith.constant 0 : index
    %100 = vector.load %arg11[%c0_90, %c0_91] : memref<64x512xf32, #tpu.memory_space<vmem>>, vector<64x256xf32>
    %cst_92 = arith.constant dense<0.000000e+00> : vector<64xf32>
    %101 = vector.multi_reduction <add>, %100, %cst_92 [1] : vector<64x256xf32> to vector<64xf32>
    %102 = vector.shape_cast %101 : vector<64xf32> to vector<64x1xf32>
    %cst_93 = arith.constant 3.906250e-03 : f32
    %103 = vector.broadcast %cst_93 : f32 to vector<64x1xf32>
    %104 = arith.mulf %102, %103 : vector<64x1xf32>
    %105 = arith.mulf %100, %100 : vector<64x256xf32>
    %cst_94 = arith.constant dense<0.000000e+00> : vector<64xf32>
    %106 = vector.multi_reduction <add>, %105, %cst_94 [1] : vector<64x256xf32> to vector<64xf32>
    %107 = vector.shape_cast %106 : vector<64xf32> to vector<64x1xf32>
    %cst_95 = arith.constant 3.906250e-03 : f32
    %108 = vector.broadcast %cst_95 : f32 to vector<64x1xf32>
    %109 = arith.mulf %107, %108 : vector<64x1xf32>
    %110 = arith.mulf %104, %104 : vector<64x1xf32>
    %111 = arith.subf %109, %110 : vector<64x1xf32>
    %cst_96 = arith.constant 0.000000e+00 : f32
    %112 = vector.broadcast %cst_96 : f32 to vector<64x1xf32>
    %113 = arith.maximumf %111, %112 : vector<64x1xf32>
    %114 = vector.broadcast %104 : vector<64x1xf32> to vector<64x256xf32>
    %115 = arith.subf %100, %114 : vector<64x256xf32>
    %cst_97 = arith.constant 9.99999974E-6 : f32
    %116 = vector.broadcast %cst_97 : f32 to vector<64x1xf32>
    %117 = arith.addf %113, %116 : vector<64x1xf32>
    %118 = math.rsqrt %117 : vector<64x1xf32>
    %119 = vector.broadcast %118 : vector<64x1xf32> to vector<64x256xf32>
    %120 = arith.mulf %115, %119 : vector<64x256xf32>
    %121 = vector.broadcast %0 : vector<64x1xf32> to vector<64x256xf32>
    %122 = arith.mulf %120, %121 : vector<64x256xf32>
    %123 = vector.broadcast %1 : vector<64x1xf32> to vector<64x256xf32>
    %124 = arith.addf %122, %123 : vector<64x256xf32>
    %cst_98 = arith.constant 0.000000e+00 : f32
    %125 = vector.broadcast %cst_98 : f32 to vector<64x256xf32>
    %126 = arith.cmpf oge, %124, %125 : vector<64x256xf32>
    %cst_99 = arith.constant 2.000000e-01 : f32
    %127 = vector.broadcast %cst_99 : f32 to vector<64x256xf32>
    %128 = arith.mulf %127, %124 : vector<64x256xf32>
    %129 = arith.select %126, %124, %128 : vector<64x256xi1>, vector<64x256xf32>
    %c17_i32_100 = arith.constant 17 : i32
    %130 = tpu.dynamic_rotate %129 by %c17_i32_100 dim 1 : vector<64x256xf32>, i32 -> vector<64x256xf32>
    %c0_101 = arith.constant 0 : index
    %c0_102 = arith.constant 0 : index
    %131 = vector.load %arg8[%c0_101, %c0_102] : memref<576x256xf32, #tpu.memory_space<vmem>>, vector<64x256xf32>
    %132 = arith.mulf %130, %131 : vector<64x256xf32>
    %133 = arith.truncf %132 : vector<64x256xf32> to vector<64x256xbf16>
    %c0_103 = arith.constant 0 : index
    %c0_104 = arith.constant 0 : index
    %134 = vector.load %arg10[%c0_103, %c0_104] : memref<576x512xbf16, #tpu.memory_space<vmem>>, vector<64x256xbf16>
    tpu.vector_store %arg10[%c0_103, %c0_104], %133 {strides = array<i32>} : memref<576x512xbf16, #tpu.memory_space<vmem>>, vector<64x256xbf16>,
    %c16_i32_105 = arith.constant 16 : i32
    %135 = tpu.dynamic_rotate %129 by %c16_i32_105 dim 1 : vector<64x256xf32>, i32 -> vector<64x256xf32>
    %c64_106 = arith.constant 64 : index
    %c0_107 = arith.constant 0 : index
    %136 = vector.load %arg8[%c64_106, %c0_107] : memref<576x256xf32, #tpu.memory_space<vmem>>, vector<64x256xf32>
    %137 = arith.mulf %135, %136 : vector<64x256xf32>
    %138 = arith.truncf %137 : vector<64x256xf32> to vector<64x256xbf16>
    %c64_108 = arith.constant 64 : index
    %c0_109 = arith.constant 0 : index
    %139 = vector.load %arg10[%c64_108, %c0_109] : memref<576x512xbf16, #tpu.memory_space<vmem>>, vector<64x256xbf16>
    tpu.vector_store %arg10[%c64_108, %c0_109], %138 {strides = array<i32>} : memref<576x512xbf16, #tpu.memory_space<vmem>>, vector<64x256xbf16>,
    %c15_i32_110 = arith.constant 15 : i32
    %140 = tpu.dynamic_rotate %129 by %c15_i32_110 dim 1 : vector<64x256xf32>, i32 -> vector<64x256xf32>
    %c128_111 = arith.constant 128 : index
    %c0_112 = arith.constant 0 : index
    %141 = vector.load %arg8[%c128_111, %c0_112] : memref<576x256xf32, #tpu.memory_space<vmem>>, vector<64x256xf32>
    %142 = arith.mulf %140, %141 : vector<64x256xf32>
    %143 = arith.truncf %142 : vector<64x256xf32> to vector<64x256xbf16>
    %c128_113 = arith.constant 128 : index
    %c0_114 = arith.constant 0 : index
    %144 = vector.load %arg10[%c128_113, %c0_114] : memref<576x512xbf16, #tpu.memory_space<vmem>>, vector<64x256xbf16>
    tpu.vector_store %arg10[%c128_113, %c0_114], %143 {strides = array<i32>} : memref<576x512xbf16, #tpu.memory_space<vmem>>, vector<64x256xbf16>,
    %c1_i32_115 = arith.constant 1 : i32
    %145 = tpu.dynamic_rotate %129 by %c1_i32_115 dim 1 : vector<64x256xf32>, i32 -> vector<64x256xf32>
    %c192_116 = arith.constant 192 : index
    %c0_117 = arith.constant 0 : index
    %146 = vector.load %arg8[%c192_116, %c0_117] : memref<576x256xf32, #tpu.memory_space<vmem>>, vector<64x256xf32>
    %147 = arith.mulf %145, %146 : vector<64x256xf32>
    %148 = arith.truncf %147 : vector<64x256xf32> to vector<64x256xbf16>
    %c192_118 = arith.constant 192 : index
    %c0_119 = arith.constant 0 : index
    %149 = vector.load %arg10[%c192_118, %c0_119] : memref<576x512xbf16, #tpu.memory_space<vmem>>, vector<64x256xbf16>
    tpu.vector_store %arg10[%c192_118, %c0_119], %148 {strides = array<i32>} : memref<576x512xbf16, #tpu.memory_space<vmem>>, vector<64x256xbf16>,
    %c256_120 = arith.constant 256 : index
    %c0_121 = arith.constant 0 : index
    %150 = vector.load %arg8[%c256_120, %c0_121] : memref<576x256xf32, #tpu.memory_space<vmem>>, vector<64x256xf32>
    %151 = arith.mulf %129, %150 : vector<64x256xf32>
    %152 = arith.truncf %151 : vector<64x256xf32> to vector<64x256xbf16>
    %c256_122 = arith.constant 256 : index
    %c0_123 = arith.constant 0 : index
    %153 = vector.load %arg10[%c256_122, %c0_123] : memref<576x512xbf16, #tpu.memory_space<vmem>>, vector<64x256xbf16>
    tpu.vector_store %arg10[%c256_122, %c0_123], %152 {strides = array<i32>} : memref<576x512xbf16, #tpu.memory_space<vmem>>, vector<64x256xbf16>,
    %c255_i32_124 = arith.constant 255 : i32
    %154 = tpu.dynamic_rotate %129 by %c255_i32_124 dim 1 : vector<64x256xf32>, i32 -> vector<64x256xf32>
    %c320_125 = arith.constant 320 : index
    %c0_126 = arith.constant 0 : index
    %155 = vector.load %arg8[%c320_125, %c0_126] : memref<576x256xf32, #tpu.memory_space<vmem>>, vector<64x256xf32>
    %156 = arith.mulf %154, %155 : vector<64x256xf32>
    %157 = arith.truncf %156 : vector<64x256xf32> to vector<64x256xbf16>
    %c320_127 = arith.constant 320 : index
    %c0_128 = arith.constant 0 : index
    %158 = vector.load %arg10[%c320_127, %c0_128] : memref<576x512xbf16, #tpu.memory_space<vmem>>, vector<64x256xbf16>
    tpu.vector_store %arg10[%c320_127, %c0_128], %157 {strides = array<i32>} : memref<576x512xbf16, #tpu.memory_space<vmem>>, vector<64x256xbf16>,
    %c241_i32_129 = arith.constant 241 : i32
    %159 = tpu.dynamic_rotate %129 by %c241_i32_129 dim 1 : vector<64x256xf32>, i32 -> vector<64x256xf32>
    %c384_130 = arith.constant 384 : index
    %c0_131 = arith.constant 0 : index
    %160 = vector.load %arg8[%c384_130, %c0_131] : memref<576x256xf32, #tpu.memory_space<vmem>>, vector<64x256xf32>
    %161 = arith.mulf %159, %160 : vector<64x256xf32>
    %162 = arith.truncf %161 : vector<64x256xf32> to vector<64x256xbf16>
    %c384_132 = arith.constant 384 : index
    %c0_133 = arith.constant 0 : index
    %163 = vector.load %arg10[%c384_132, %c0_133] : memref<576x512xbf16, #tpu.memory_space<vmem>>, vector<64x256xbf16>
    tpu.vector_store %arg10[%c384_132, %c0_133], %162 {strides = array<i32>} : memref<576x512xbf16, #tpu.memory_space<vmem>>, vector<64x256xbf16>,
    %c240_i32_134 = arith.constant 240 : i32
    %164 = tpu.dynamic_rotate %129 by %c240_i32_134 dim 1 : vector<64x256xf32>, i32 -> vector<64x256xf32>
    %c448_135 = arith.constant 448 : index
    %c0_136 = arith.constant 0 : index
    %165 = vector.load %arg8[%c448_135, %c0_136] : memref<576x256xf32, #tpu.memory_space<vmem>>, vector<64x256xf32>
    %166 = arith.mulf %164, %165 : vector<64x256xf32>
    %167 = arith.truncf %166 : vector<64x256xf32> to vector<64x256xbf16>
    %c448_137 = arith.constant 448 : index
    %c0_138 = arith.constant 0 : index
    %168 = vector.load %arg10[%c448_137, %c0_138] : memref<576x512xbf16, #tpu.memory_space<vmem>>, vector<64x256xbf16>
    tpu.vector_store %arg10[%c448_137, %c0_138], %167 {strides = array<i32>} : memref<576x512xbf16, #tpu.memory_space<vmem>>, vector<64x256xbf16>,
    %c239_i32_139 = arith.constant 239 : i32
    %169 = tpu.dynamic_rotate %129 by %c239_i32_139 dim 1 : vector<64x256xf32>, i32 -> vector<64x256xf32>
    %c512_140 = arith.constant 512 : index
    %c0_141 = arith.constant 0 : index
    %170 = vector.load %arg8[%c512_140, %c0_141] : memref<576x256xf32, #tpu.memory_space<vmem>>, vector<64x256xf32>
    %171 = arith.mulf %169, %170 : vector<64x256xf32>
    %172 = arith.truncf %171 : vector<64x256xf32> to vector<64x256xbf16>
    %c512_142 = arith.constant 512 : index
    %c0_143 = arith.constant 0 : index
    %173 = vector.load %arg10[%c512_142, %c0_143] : memref<576x512xbf16, #tpu.memory_space<vmem>>, vector<64x256xbf16>
    tpu.vector_store %arg10[%c512_142, %c0_143], %172 {strides = array<i32>} : memref<576x512xbf16, #tpu.memory_space<vmem>>, vector<64x256xbf16>,
    %c0_144 = arith.constant 0 : index
    %c256_145 = arith.constant 256 : index
    %174 = vector.load %arg11[%c0_144, %c256_145] : memref<64x512xf32, #tpu.memory_space<vmem>>, vector<64x256xf32>
    %cst_146 = arith.constant dense<0.000000e+00> : vector<64xf32>
    %175 = vector.multi_reduction <add>, %174, %cst_146 [1] : vector<64x256xf32> to vector<64xf32>
    %176 = vector.shape_cast %175 : vector<64xf32> to vector<64x1xf32>
    %cst_147 = arith.constant 3.906250e-03 : f32
    %177 = vector.broadcast %cst_147 : f32 to vector<64x1xf32>
    %178 = arith.mulf %176, %177 : vector<64x1xf32>
    %179 = arith.mulf %174, %174 : vector<64x256xf32>
    %cst_148 = arith.constant dense<0.000000e+00> : vector<64xf32>
    %180 = vector.multi_reduction <add>, %179, %cst_148 [1] : vector<64x256xf32> to vector<64xf32>
    %181 = vector.shape_cast %180 : vector<64xf32> to vector<64x1xf32>
    %cst_149 = arith.constant 3.906250e-03 : f32
    %182 = vector.broadcast %cst_149 : f32 to vector<64x1xf32>
    %183 = arith.mulf %181, %182 : vector<64x1xf32>
    %184 = arith.mulf %178, %178 : vector<64x1xf32>
    %185 = arith.subf %183, %184 : vector<64x1xf32>
    %cst_150 = arith.constant 0.000000e+00 : f32
    %186 = vector.broadcast %cst_150 : f32 to vector<64x1xf32>
    %187 = arith.maximumf %185, %186 : vector<64x1xf32>
    %188 = vector.broadcast %178 : vector<64x1xf32> to vector<64x256xf32>
    %189 = arith.subf %174, %188 : vector<64x256xf32>
    %cst_151 = arith.constant 9.99999974E-6 : f32
    %190 = vector.broadcast %cst_151 : f32 to vector<64x1xf32>
    %191 = arith.addf %187, %190 : vector<64x1xf32>
    %192 = math.rsqrt %191 : vector<64x1xf32>
    %193 = vector.broadcast %192 : vector<64x1xf32> to vector<64x256xf32>
    %194 = arith.mulf %189, %193 : vector<64x256xf32>
    %195 = vector.broadcast %0 : vector<64x1xf32> to vector<64x256xf32>
    %196 = arith.mulf %194, %195 : vector<64x256xf32>
    %197 = vector.broadcast %1 : vector<64x1xf32> to vector<64x256xf32>
    %198 = arith.addf %196, %197 : vector<64x256xf32>
    %cst_152 = arith.constant 0.000000e+00 : f32
    %199 = vector.broadcast %cst_152 : f32 to vector<64x256xf32>
    %200 = arith.cmpf oge, %198, %199 : vector<64x256xf32>
    %cst_153 = arith.constant 2.000000e-01 : f32
    %201 = vector.broadcast %cst_153 : f32 to vector<64x256xf32>
    %202 = arith.mulf %201, %198 : vector<64x256xf32>
    %203 = arith.select %200, %198, %202 : vector<64x256xi1>, vector<64x256xf32>
    %c17_i32_154 = arith.constant 17 : i32
    %204 = tpu.dynamic_rotate %203 by %c17_i32_154 dim 1 : vector<64x256xf32>, i32 -> vector<64x256xf32>
    %c0_155 = arith.constant 0 : index
    %c0_156 = arith.constant 0 : index
    %205 = vector.load %arg8[%c0_155, %c0_156] : memref<576x256xf32, #tpu.memory_space<vmem>>, vector<64x256xf32>
    %206 = arith.mulf %204, %205 : vector<64x256xf32>
    %207 = arith.truncf %206 : vector<64x256xf32> to vector<64x256xbf16>
    %c0_157 = arith.constant 0 : index
    %c256_158 = arith.constant 256 : index
    %208 = vector.load %arg10[%c0_157, %c256_158] : memref<576x512xbf16, #tpu.memory_space<vmem>>, vector<64x256xbf16>
    tpu.vector_store %arg10[%c0_157, %c256_158], %207 {strides = array<i32>} : memref<576x512xbf16, #tpu.memory_space<vmem>>, vector<64x256xbf16>,
    %c16_i32_159 = arith.constant 16 : i32
    %209 = tpu.dynamic_rotate %203 by %c16_i32_159 dim 1 : vector<64x256xf32>, i32 -> vector<64x256xf32>
    %c64_160 = arith.constant 64 : index
    %c0_161 = arith.constant 0 : index
    %210 = vector.load %arg8[%c64_160, %c0_161] : memref<576x256xf32, #tpu.memory_space<vmem>>, vector<64x256xf32>
    %211 = arith.mulf %209, %210 : vector<64x256xf32>
    %212 = arith.truncf %211 : vector<64x256xf32> to vector<64x256xbf16>
    %c64_162 = arith.constant 64 : index
    %c256_163 = arith.constant 256 : index
    %213 = vector.load %arg10[%c64_162, %c256_163] : memref<576x512xbf16, #tpu.memory_space<vmem>>, vector<64x256xbf16>
    tpu.vector_store %arg10[%c64_162, %c256_163], %212 {strides = array<i32>} : memref<576x512xbf16, #tpu.memory_space<vmem>>, vector<64x256xbf16>,
    %c15_i32_164 = arith.constant 15 : i32
    %214 = tpu.dynamic_rotate %203 by %c15_i32_164 dim 1 : vector<64x256xf32>, i32 -> vector<64x256xf32>
    %c128_165 = arith.constant 128 : index
    %c0_166 = arith.constant 0 : index
    %215 = vector.load %arg8[%c128_165, %c0_166] : memref<576x256xf32, #tpu.memory_space<vmem>>, vector<64x256xf32>
    %216 = arith.mulf %214, %215 : vector<64x256xf32>
    %217 = arith.truncf %216 : vector<64x256xf32> to vector<64x256xbf16>
    %c128_167 = arith.constant 128 : index
    %c256_168 = arith.constant 256 : index
    %218 = vector.load %arg10[%c128_167, %c256_168] : memref<576x512xbf16, #tpu.memory_space<vmem>>, vector<64x256xbf16>
    tpu.vector_store %arg10[%c128_167, %c256_168], %217 {strides = array<i32>} : memref<576x512xbf16, #tpu.memory_space<vmem>>, vector<64x256xbf16>,
    %c1_i32_169 = arith.constant 1 : i32
    %219 = tpu.dynamic_rotate %203 by %c1_i32_169 dim 1 : vector<64x256xf32>, i32 -> vector<64x256xf32>
    %c192_170 = arith.constant 192 : index
    %c0_171 = arith.constant 0 : index
    %220 = vector.load %arg8[%c192_170, %c0_171] : memref<576x256xf32, #tpu.memory_space<vmem>>, vector<64x256xf32>
    %221 = arith.mulf %219, %220 : vector<64x256xf32>
    %222 = arith.truncf %221 : vector<64x256xf32> to vector<64x256xbf16>
    %c192_172 = arith.constant 192 : index
    %c256_173 = arith.constant 256 : index
    %223 = vector.load %arg10[%c192_172, %c256_173] : memref<576x512xbf16, #tpu.memory_space<vmem>>, vector<64x256xbf16>
    tpu.vector_store %arg10[%c192_172, %c256_173], %222 {strides = array<i32>} : memref<576x512xbf16, #tpu.memory_space<vmem>>, vector<64x256xbf16>,
    %c256_174 = arith.constant 256 : index
    %c0_175 = arith.constant 0 : index
    %224 = vector.load %arg8[%c256_174, %c0_175] : memref<576x256xf32, #tpu.memory_space<vmem>>, vector<64x256xf32>
    %225 = arith.mulf %203, %224 : vector<64x256xf32>
    %226 = arith.truncf %225 : vector<64x256xf32> to vector<64x256xbf16>
    %c256_176 = arith.constant 256 : index
    %c256_177 = arith.constant 256 : index
    %227 = vector.load %arg10[%c256_176, %c256_177] : memref<576x512xbf16, #tpu.memory_space<vmem>>, vector<64x256xbf16>
    tpu.vector_store %arg10[%c256_176, %c256_177], %226 {strides = array<i32>} : memref<576x512xbf16, #tpu.memory_space<vmem>>, vector<64x256xbf16>,
    %c255_i32_178 = arith.constant 255 : i32
    %228 = tpu.dynamic_rotate %203 by %c255_i32_178 dim 1 : vector<64x256xf32>, i32 -> vector<64x256xf32>
    %c320_179 = arith.constant 320 : index
    %c0_180 = arith.constant 0 : index
    %229 = vector.load %arg8[%c320_179, %c0_180] : memref<576x256xf32, #tpu.memory_space<vmem>>, vector<64x256xf32>
    %230 = arith.mulf %228, %229 : vector<64x256xf32>
    %231 = arith.truncf %230 : vector<64x256xf32> to vector<64x256xbf16>
    %c320_181 = arith.constant 320 : index
    %c256_182 = arith.constant 256 : index
    %232 = vector.load %arg10[%c320_181, %c256_182] : memref<576x512xbf16, #tpu.memory_space<vmem>>, vector<64x256xbf16>
    tpu.vector_store %arg10[%c320_181, %c256_182], %231 {strides = array<i32>} : memref<576x512xbf16, #tpu.memory_space<vmem>>, vector<64x256xbf16>,
    %c241_i32_183 = arith.constant 241 : i32
    %233 = tpu.dynamic_rotate %203 by %c241_i32_183 dim 1 : vector<64x256xf32>, i32 -> vector<64x256xf32>
    %c384_184 = arith.constant 384 : index
    %c0_185 = arith.constant 0 : index
    %234 = vector.load %arg8[%c384_184, %c0_185] : memref<576x256xf32, #tpu.memory_space<vmem>>, vector<64x256xf32>
    %235 = arith.mulf %233, %234 : vector<64x256xf32>
    %236 = arith.truncf %235 : vector<64x256xf32> to vector<64x256xbf16>
    %c384_186 = arith.constant 384 : index
    %c256_187 = arith.constant 256 : index
    %237 = vector.load %arg10[%c384_186, %c256_187] : memref<576x512xbf16, #tpu.memory_space<vmem>>, vector<64x256xbf16>
    tpu.vector_store %arg10[%c384_186, %c256_187], %236 {strides = array<i32>} : memref<576x512xbf16, #tpu.memory_space<vmem>>, vector<64x256xbf16>,
    %c240_i32_188 = arith.constant 240 : i32
    %238 = tpu.dynamic_rotate %203 by %c240_i32_188 dim 1 : vector<64x256xf32>, i32 -> vector<64x256xf32>
    %c448_189 = arith.constant 448 : index
    %c0_190 = arith.constant 0 : index
    %239 = vector.load %arg8[%c448_189, %c0_190] : memref<576x256xf32, #tpu.memory_space<vmem>>, vector<64x256xf32>
    %240 = arith.mulf %238, %239 : vector<64x256xf32>
    %241 = arith.truncf %240 : vector<64x256xf32> to vector<64x256xbf16>
    %c448_191 = arith.constant 448 : index
    %c256_192 = arith.constant 256 : index
    %242 = vector.load %arg10[%c448_191, %c256_192] : memref<576x512xbf16, #tpu.memory_space<vmem>>, vector<64x256xbf16>
    tpu.vector_store %arg10[%c448_191, %c256_192], %241 {strides = array<i32>} : memref<576x512xbf16, #tpu.memory_space<vmem>>, vector<64x256xbf16>,
    %c239_i32_193 = arith.constant 239 : i32
    %243 = tpu.dynamic_rotate %203 by %c239_i32_193 dim 1 : vector<64x256xf32>, i32 -> vector<64x256xf32>
    %c512_194 = arith.constant 512 : index
    %c0_195 = arith.constant 0 : index
    %244 = vector.load %arg8[%c512_194, %c0_195] : memref<576x256xf32, #tpu.memory_space<vmem>>, vector<64x256xf32>
    %245 = arith.mulf %243, %244 : vector<64x256xf32>
    %246 = arith.truncf %245 : vector<64x256xf32> to vector<64x256xbf16>
    %c512_196 = arith.constant 512 : index
    %c256_197 = arith.constant 256 : index
    %247 = vector.load %arg10[%c512_196, %c256_197] : memref<576x512xbf16, #tpu.memory_space<vmem>>, vector<64x256xbf16>
    tpu.vector_store %arg10[%c512_196, %c256_197], %246 {strides = array<i32>} : memref<576x512xbf16, #tpu.memory_space<vmem>>, vector<64x256xbf16>,
    %c0_198 = arith.constant 0 : index
    %c0_199 = arith.constant 0 : index
    %248 = vector.load %arg3[%c0_198, %c0_199] : memref<64x576xbf16, #tpu.memory_space<vmem>>, vector<64x576xbf16>
    %c0_200 = arith.constant 0 : index
    %c0_201 = arith.constant 0 : index
    %249 = vector.load %arg10[%c0_200, %c0_201] : memref<576x512xbf16, #tpu.memory_space<vmem>>, vector<576x512xbf16>
    %cst_202 = arith.constant dense<0.000000e+00> : vector<64x512xf32>
    %250 = tpu.matmul %248, %249, %cst_202 {dimension_numbers = #tpu.dot_dimension_numbers<[1], [0], [0], [1], [0, 0, 1, 1], [], []>} : vector<64x576xbf16>, vector<576x512xbf16>, vector<64x512xf32> -> vector<64x512xf32>
    %c0_203 = arith.constant 0 : index
    %c0_204 = arith.constant 0 : index
    %251 = vector.load %arg11[%c0_203, %c0_204] : memref<64x512xf32, #tpu.memory_space<vmem>>, vector<64x512xf32>
    tpu.vector_store %arg11[%c0_203, %c0_204], %250 {strides = array<i32>} : memref<64x512xf32, #tpu.memory_space<vmem>>, vector<64x512xf32>,
    %c0_205 = arith.constant 0 : index
    %c0_206 = arith.constant 0 : index
    %252 = vector.load %arg11[%c0_205, %c0_206] : memref<64x512xf32, #tpu.memory_space<vmem>>, vector<64x256xf32>
    %cst_207 = arith.constant dense<0.000000e+00> : vector<64xf32>
    %253 = vector.multi_reduction <add>, %252, %cst_207 [1] : vector<64x256xf32> to vector<64xf32>
    %254 = vector.shape_cast %253 : vector<64xf32> to vector<64x1xf32>
    %cst_208 = arith.constant 3.906250e-03 : f32
    %255 = vector.broadcast %cst_208 : f32 to vector<64x1xf32>
    %256 = arith.mulf %254, %255 : vector<64x1xf32>
    %257 = arith.mulf %252, %252 : vector<64x256xf32>
    %cst_209 = arith.constant dense<0.000000e+00> : vector<64xf32>
    %258 = vector.multi_reduction <add>, %257, %cst_209 [1] : vector<64x256xf32> to vector<64xf32>
    %259 = vector.shape_cast %258 : vector<64xf32> to vector<64x1xf32>
    %cst_210 = arith.constant 3.906250e-03 : f32
    %260 = vector.broadcast %cst_210 : f32 to vector<64x1xf32>
    %261 = arith.mulf %259, %260 : vector<64x1xf32>
    %262 = arith.mulf %256, %256 : vector<64x1xf32>
    %263 = arith.subf %261, %262 : vector<64x1xf32>
    %cst_211 = arith.constant 0.000000e+00 : f32
    %264 = vector.broadcast %cst_211 : f32 to vector<64x1xf32>
    %265 = arith.maximumf %263, %264 : vector<64x1xf32>
    %266 = vector.broadcast %256 : vector<64x1xf32> to vector<64x256xf32>
    %267 = arith.subf %252, %266 : vector<64x256xf32>
    %cst_212 = arith.constant 9.99999974E-6 : f32
    %268 = vector.broadcast %cst_212 : f32 to vector<64x1xf32>
    %269 = arith.addf %265, %268 : vector<64x1xf32>
    %270 = math.rsqrt %269 : vector<64x1xf32>
    %271 = vector.broadcast %270 : vector<64x1xf32> to vector<64x256xf32>
    %272 = arith.mulf %267, %271 : vector<64x256xf32>
    %273 = vector.broadcast %2 : vector<64x1xf32> to vector<64x256xf32>
    %274 = arith.mulf %272, %273 : vector<64x256xf32>
    %275 = vector.broadcast %3 : vector<64x1xf32> to vector<64x256xf32>
    %276 = arith.addf %274, %275 : vector<64x256xf32>
    %c0_213 = arith.constant 0 : index
    %c0_214 = arith.constant 0 : index
    %c0_215 = arith.constant 0 : index
    %277 = vector.load %arg1[%c0_213, %c0_214, %c0_215] : memref<2x64x256xf32, #tpu.memory_space<vmem>>, vector<1x64x256xf32>
    %278 = vector.shape_cast %277 : vector<1x64x256xf32> to vector<64x256xf32>
    %279 = arith.addf %276, %278 : vector<64x256xf32>
    %c0_216 = arith.constant 0 : index
    %c0_217 = arith.constant 0 : index
    %c0_218 = arith.constant 0 : index
    %280 = vector.load %arg9[%c0_216, %c0_217, %c0_218] : memref<2x64x256xf32, #tpu.memory_space<vmem>>, vector<1x64x256xf32>
    %281 = vector.shape_cast %280 : vector<1x64x256xf32> to vector<64x256xf32>
    %282 = vector.shape_cast %279 : vector<64x256xf32> to vector<1x64x256xf32>
    tpu.vector_store %arg9[%c0_216, %c0_217, %c0_218], %282 {strides = array<i32>} : memref<2x64x256xf32, #tpu.memory_space<vmem>>, vector<1x64x256xf32>,
    %c0_219 = arith.constant 0 : index
    %c256_220 = arith.constant 256 : index
    %283 = vector.load %arg11[%c0_219, %c256_220] : memref<64x512xf32, #tpu.memory_space<vmem>>, vector<64x256xf32>
    %cst_221 = arith.constant dense<0.000000e+00> : vector<64xf32>
    %284 = vector.multi_reduction <add>, %283, %cst_221 [1] : vector<64x256xf32> to vector<64xf32>
    %285 = vector.shape_cast %284 : vector<64xf32> to vector<64x1xf32>
    %cst_222 = arith.constant 3.906250e-03 : f32
    %286 = vector.broadcast %cst_222 : f32 to vector<64x1xf32>
    %287 = arith.mulf %285, %286 : vector<64x1xf32>
    %288 = arith.mulf %283, %283 : vector<64x256xf32>
    %cst_223 = arith.constant dense<0.000000e+00> : vector<64xf32>
    %289 = vector.multi_reduction <add>, %288, %cst_223 [1] : vector<64x256xf32> to vector<64xf32>
    %290 = vector.shape_cast %289 : vector<64xf32> to vector<64x1xf32>
    %cst_224 = arith.constant 3.906250e-03 : f32
    %291 = vector.broadcast %cst_224 : f32 to vector<64x1xf32>
    %292 = arith.mulf %290, %291 : vector<64x1xf32>
    %293 = arith.mulf %287, %287 : vector<64x1xf32>
    %294 = arith.subf %292, %293 : vector<64x1xf32>
    %cst_225 = arith.constant 0.000000e+00 : f32
    %295 = vector.broadcast %cst_225 : f32 to vector<64x1xf32>
    %296 = arith.maximumf %294, %295 : vector<64x1xf32>
    %297 = vector.broadcast %287 : vector<64x1xf32> to vector<64x256xf32>
    %298 = arith.subf %283, %297 : vector<64x256xf32>
    %cst_226 = arith.constant 9.99999974E-6 : f32
    %299 = vector.broadcast %cst_226 : f32 to vector<64x1xf32>
    %300 = arith.addf %296, %299 : vector<64x1xf32>
    %301 = math.rsqrt %300 : vector<64x1xf32>
    %302 = vector.broadcast %301 : vector<64x1xf32> to vector<64x256xf32>
    %303 = arith.mulf %298, %302 : vector<64x256xf32>
    %304 = vector.broadcast %2 : vector<64x1xf32> to vector<64x256xf32>
    %305 = arith.mulf %303, %304 : vector<64x256xf32>
    %306 = vector.broadcast %3 : vector<64x1xf32> to vector<64x256xf32>
    %307 = arith.addf %305, %306 : vector<64x256xf32>
    %c1_227 = arith.constant 1 : index
    %c0_228 = arith.constant 0 : index
    %c0_229 = arith.constant 0 : index
    %308 = vector.load %arg1[%c1_227, %c0_228, %c0_229] : memref<2x64x256xf32, #tpu.memory_space<vmem>>, vector<1x64x256xf32>
    %309 = vector.shape_cast %308 : vector<1x64x256xf32> to vector<64x256xf32>
    %310 = arith.addf %307, %309 : vector<64x256xf32>
    %c1_230 = arith.constant 1 : index
    %c0_231 = arith.constant 0 : index
    %c0_232 = arith.constant 0 : index
    %311 = vector.load %arg9[%c1_230, %c0_231, %c0_232] : memref<2x64x256xf32, #tpu.memory_space<vmem>>, vector<1x64x256xf32>
    %312 = vector.shape_cast %311 : vector<1x64x256xf32> to vector<64x256xf32>
    %313 = vector.shape_cast %310 : vector<64x256xf32> to vector<1x64x256xf32>
    tpu.vector_store %arg9[%c1_230, %c0_231, %c0_232], %313 {strides = array<i32>} : memref<2x64x256xf32, #tpu.memory_space<vmem>>, vector<1x64x256xf32>,
    return
  }
  func.func @transform_0(%arg0: i32) -> (i32, i32, i32) {
    %c0_i32 = arith.constant 0 : i32
    %c0_i32_0 = arith.constant 0 : i32
    %c0_i32_1 = arith.constant 0 : i32
    return %arg0, %c0_i32, %c0_i32_0 : i32, i32, i32
  }
  func.func @transform_1(%arg0: i32) -> (i32, i32) {
    %c0_i32 = arith.constant 0 : i32
    %c0_i32_0 = arith.constant 0 : i32
    %c0_i32_1 = arith.constant 0 : i32
    return %c0_i32, %c0_i32_0 : i32, i32
  }
  func.func @transform_2(%arg0: i32) -> (i32, i32) {
    %c0_i32 = arith.constant 0 : i32
    %c0_i32_0 = arith.constant 0 : i32
    %c0_i32_1 = arith.constant 0 : i32
    return %c0_i32, %c0_i32_0 : i32, i32
  }
  func.func @transform_3(%arg0: i32) -> (i32, i32) {
    %c0_i32 = arith.constant 0 : i32
    %c0_i32_0 = arith.constant 0 : i32
    %c0_i32_1 = arith.constant 0 : i32
    return %c0_i32, %c0_i32_0 : i32, i32
  }
  func.func @transform_4(%arg0: i32) -> (i32, i32) {
    %c0_i32 = arith.constant 0 : i32
    %c0_i32_0 = arith.constant 0 : i32
    %c0_i32_1 = arith.constant 0 : i32
    return %c0_i32, %c0_i32_0 : i32, i32
  }
  func.func @transform_5(%arg0: i32) -> (i32, i32) {
    %c0_i32 = arith.constant 0 : i32
    %c0_i32_0 = arith.constant 0 : i32
    %c0_i32_1 = arith.constant 0 : i32
    return %c0_i32, %c0_i32_0 : i32, i32
  }
  func.func @transform_6(%arg0: i32) -> (i32, i32) {
    %c0_i32 = arith.constant 0 : i32
    %c0_i32_0 = arith.constant 0 : i32
    %c0_i32_1 = arith.constant 0 : i32
    return %c0_i32, %c0_i32_0 : i32, i32
  }
  func.func @transform_7(%arg0: i32) -> (i32, i32) {
    %c0_i32 = arith.constant 0 : i32
    %c0_i32_0 = arith.constant 0 : i32
    %c0_i32_1 = arith.constant 0 : i32
    return %c0_i32, %c0_i32_0 : i32, i32
  }
  func.func @transform_8(%arg0: i32) -> (i32, i32, i32) {
    %c0_i32 = arith.constant 0 : i32
    %c0_i32_0 = arith.constant 0 : i32
    %c0_i32_1 = arith.constant 0 : i32
    return %arg0, %c0_i32, %c0_i32_0 : i32, i32, i32
  }
}

</mosaic_0001>

<llo_original>
// kernel: tpu_custom_call.1
$region0: #{tpu_custom_call.1}
  #allocation0 [shape = 'u32[]', space=smem, size = 0x4, offset = 0x4, fixed_abs, tag = 'smem constant byte address 0x4 - core index']
  #allocation1 [shape = 'u32[144,128]{1,0:T(1,128)}', space=vmem, size = 0x12000, scoped, tag = 'internal scratch']
  #allocation2 [shape = 'bf16[576,512]{1,0:T(8,128)(2,1)}', space=vmem, size = 0x90000, scoped, tag = 'scratch operand']
  #allocation3 [shape = 'f32[64,512]{1,0:T(8,128)}', space=vmem, size = 0x20000, scoped, tag = 'scratch operand']
  %s0 = inlined_call_operand.hbm [shape: f32[4,64,256], index: 0, kind: input, shape index: {}]
  %s1 = inlined_call_operand.vmem [shape: bf16[64,576], index: 1, kind: input, shape index: {}]
  %s2 = inlined_call_operand.hbm [shape: bf16[64,576], index: 2, kind: input, shape index: {}]
  %s3 = inlined_call_operand.vmem [shape: f32[64,1], index: 3, kind: input, shape index: {}]
  %s4 = inlined_call_operand.vmem [shape: f32[64,1], index: 4, kind: input, shape index: {}]
  %s5 = inlined_call_operand.vmem [shape: f32[64,1], index: 5, kind: input, shape index: {}]
  %s6 = inlined_call_operand.vmem [shape: f32[64,1], index: 6, kind: input, shape index: {}]
  %s7 = inlined_call_operand.hbm [shape: f32[576,256], index: 7, kind: input, shape index: {}]
  %s8 = inlined_call_operand.hbm [shape: f32[4,64,256], index: 8, kind: output, shape index: {}]
  %s9 = sld [smem:[#allocation0]]
  $region77: #{tpu_custom_call.1} parent=0
    _
  %s11 = ssub.s32 1, %s9
  %s12 = scalar_select 0, %s11, %s9
  $region1: #{tpu_custom_call.1} parent=0
    #allocation4 [shape = 'u8[262144]{0}', space=vmem, size = 0x40000, scoped, tag = 'input window, operand 0']
    #allocation5 [shape = 's32[2]{0}', space=sflag, size = 0x8, scoped, tag = 'scoped memory for tpu_custom_call.1']
    #allocation6 [shape = 's32[2]{0}', space=sflag, size = 0x8, scoped, tag = 'scoped memory for tpu_custom_call.1']
    #allocation7 [shape = 'u8[81920]{0}', space=vmem, size = 0x14000, scoped, tag = 'input window, operand 2, single buffered']
    #allocation8 [shape = 's32[1]{0}', space=sflag, size = 0x4, scoped, tag = 'scoped memory for tpu_custom_call.1']
    #allocation9 [shape = 'u8[589824]{0}', space=vmem, size = 0x90000, scoped, tag = 'input window, operand 7, single buffered']
    #allocation10 [shape = 'u8[262144]{0}', space=vmem, size = 0x40000, scoped, tag = 'output window, operand 0']
    %13 = vsyncpa [#allocation5], 0
    %s14 = scalar_lea.sflag [#allocation5], 1
    %15 = vsyncpa %s14, 0
    %16 = vsyncpa [#allocation8], 0
    %17 = vsyncpa [#allocation6], 0
    %s18 = scalar_lea.sflag [#allocation6], 1
    %19 = vsyncpa %s18, 0
    loop: start=0, step=1, limit=4
    $region2: #{tpu_custom_call.1} parent=1 // loop_pre_header
      _
    $region3: #{tpu_custom_call.1} parent=1 // loop_header
      %s21 = sphi 0, %s25
      %p22 = scmp.ge.s32.totalorder %s21, 4
      %s31 = sphi 0, %s33
      %s34 = sphi 0, %s31
      %s35 = sphi 0, %s34
      %s51 = sphi 0, %s35
      %s55 = sphi 0, %s55
      %s57 = sphi 0, %s55
      %s58 = sphi 0, %s57
      %s72 = sphi 0, %s58
      %s76 = sphi 0, %s76
      %s78 = sphi 0, %s76
      %s79 = sphi 0, %s78
      %s93 = sphi 0, %s79
      %s97 = sphi 0, %s97
      %s99 = sphi 0, %s97
      %s100 = sphi 0, %s99
      %s114 = sphi 0, %s100
      %s118 = sphi 0, %s118
      %s120 = sphi 0, %s118
      %s121 = sphi 0, %s120
      %s135 = sphi 0, %s121
      %s139 = sphi 0, %s139
      %s141 = sphi 0, %s139
      %s142 = sphi 0, %s141
      %s156 = sphi 0, %s142
      %s160 = sphi 0, %s160
      %s162 = sphi 0, %s160
      %s163 = sphi 0, %s162
      %s177 = sphi 0, %s163
      %s181 = sphi 0, %s181
      %s183 = sphi 0, %s181
      %s184 = sphi 0, %s183
      %s198 = sphi 0, %s184
      %s204 = sphi 0, %s206
      %s207 = sphi 0, %s204
      %s208 = sphi 0, %s207
      %s224 = sphi 0, %s208
    $region4: #{tpu_custom_call.1} parent=1 // loop_header_branch
      %24 = sbr.rel (%p22) target = $region8
    $region5: #{tpu_custom_call.1} parent=1 // loop_body
      %s26 = ssub.s32 %s21, 1
      %s27 = ssub.s32 %s21, 2
      %s28 = sadd.s32 %s21, 1
      %s29 = ssub.s32 %s21, %s28
      %p30 = scmp.eq.s32.totalorder %s29, 0
      %s32 = sadd.s32 %s31, 1
      %s33 = scalar_select %p30, %s31, %s32
      %p36 = pneg %p30
      %p37 = scmp.eq.s32.totalorder %s21, 1
      %p38 = por %p36, %p37
      %p39 = scmp.ne.s32.totalorder %s31, %s34
      %p40 = scmp.eq.s32.totalorder %s21, 0
      %p41 = por %p39, %p40
      %p42 = scmp.ne.s32.totalorder %s31, %s34
      %p43 = scmp.eq.s32.totalorder %s26, 1
      %p44 = por %p42, %p43
      %p45 = scmp.ne.s32.totalorder %s34, %s35
      %p46 = scmp.eq.s32.totalorder %s26, 0
      %p47 = por %p45, %p46
      %p48 = scmp.ne.s32.totalorder %s34, %s35
      %p49 = scmp.eq.s32.totalorder %s27, 1
      %p50 = por %p48, %p49
      %p52 = scmp.ne.s32.totalorder %s35, %s51
      %p53 = scmp.eq.s32.totalorder %s27, 0
      %p54 = por %p52, %p53
      %s56 = sadd.s32 %s55, 1
      %p59 = scmp.eq.s32.totalorder %s21, 1
      %p60 = scmp.ne.s32.totalorder %s55, %s57
      %p61 = scmp.eq.s32.totalorder %s21, 0
      %p62 = por %p60, %p61
      %p63 = scmp.ne.s32.totalorder %s55, %s57
      %p64 = scmp.eq.s32.totalorder %s26, 1
      %p65 = por %p63, %p64
      %p66 = scmp.ne.s32.totalorder %s57, %s58
      %p67 = scmp.eq.s32.totalorder %s26, 0
      %p68 = por %p66, %p67
      %p69 = scmp.ne.s32.totalorder %s57, %s58
      %p70 = scmp.eq.s32.totalorder %s27, 1
      %p71 = por %p69, %p70
      %p73 = scmp.ne.s32.totalorder %s58, %s72
      %p74 = scmp.eq.s32.totalorder %s27, 0
      %p75 = por %p73, %p74
      %s77 = sadd.s32 %s76, 1
      %p80 = scmp.eq.s32.totalorder %s21, 1
      %p81 = scmp.ne.s32.totalorder %s76, %s78
      %p82 = scmp.eq.s32.totalorder %s21, 0
      %p83 = por %p81, %p82
      %p84 = scmp.ne.s32.totalorder %s76, %s78
      %p85 = scmp.eq.s32.totalorder %s26, 1
      %p86 = por %p84, %p85
      %p87 = scmp.ne.s32.totalorder %s78, %s79
      %p88 = scmp.eq.s32.totalorder %s26, 0
      %p89 = por %p87, %p88
      %p90 = scmp.ne.s32.totalorder %s78, %s79
      %p91 = scmp.eq.s32.totalorder %s27, 1
      %p92 = por %p90, %p91
      %p94 = scmp.ne.s32.totalorder %s79, %s93
      %p95 = scmp.eq.s32.totalorder %s27, 0
      %p96 = por %p94, %p95
      %s98 = sadd.s32 %s97, 1
      %p101 = scmp.eq.s32.totalorder %s21, 1
      %p102 = scmp.ne.s32.totalorder %s97, %s99
      %p103 = scmp.eq.s32.totalorder %s21, 0
      %p104 = por %p102, %p103
      %p105 = scmp.ne.s32.totalorder %s97, %s99
      %p106 = scmp.eq.s32.totalorder %s26, 1
      %p107 = por %p105, %p106
      %p108 = scmp.ne.s32.totalorder %s99, %s100
      %p109 = scmp.eq.s32.totalorder %s26, 0
      %p110 = por %p108, %p109
      %p111 = scmp.ne.s32.totalorder %s99, %s100
      %p112 = scmp.eq.s32.totalorder %s27, 1
      %p113 = por %p111, %p112
      %p115 = scmp.ne.s32.totalorder %s100, %s114
      %p116 = scmp.eq.s32.totalorder %s27, 0
      %p117 = por %p115, %p116
      %s119 = sadd.s32 %s118, 1
      %p122 = scmp.eq.s32.totalorder %s21, 1
      %p123 = scmp.ne.s32.totalorder %s118, %s120
      %p124 = scmp.eq.s32.totalorder %s21, 0
      %p125 = por %p123, %p124
      %p126 = scmp.ne.s32.totalorder %s118, %s120
      %p127 = scmp.eq.s32.totalorder %s26, 1
      %p128 = por %p126, %p127
      %p129 = scmp.ne.s32.totalorder %s120, %s121
      %p130 = scmp.eq.s32.totalorder %s26, 0
      %p131 = por %p129, %p130
      %p132 = scmp.ne.s32.totalorder %s120, %s121
      %p133 = scmp.eq.s32.totalorder %s27, 1
      %p134 = por %p132, %p133
      %p136 = scmp.ne.s32.totalorder %s121, %s135
      %p137 = scmp.eq.s32.totalorder %s27, 0
      %p138 = por %p136, %p137
      %s140 = sadd.s32 %s139, 1
      %p143 = scmp.eq.s32.totalorder %s21, 1
      %p144 = scmp.ne.s32.totalorder %s139, %s141
      %p145 = scmp.eq.s32.totalorder %s21, 0
      %p146 = por %p144, %p145
      %p147 = scmp.ne.s32.totalorder %s139, %s141
      %p148 = scmp.eq.s32.totalorder %s26, 1
      %p149 = por %p147, %p148
      %p150 = scmp.ne.s32.totalorder %s141, %s142
      %p151 = scmp.eq.s32.totalorder %s26, 0
      %p152 = por %p150, %p151
      %p153 = scmp.ne.s32.totalorder %s141, %s142
      %p154 = scmp.eq.s32.totalorder %s27, 1
      %p155 = por %p153, %p154
      %p157 = scmp.ne.s32.totalorder %s142, %s156
      %p158 = scmp.eq.s32.totalorder %s27, 0
      %p159 = por %p157, %p158
      %s161 = sadd.s32 %s160, 1
      %p164 = scmp.eq.s32.totalorder %s21, 1
      %p165 = scmp.ne.s32.totalorder %s160, %s162
      %p166 = scmp.eq.s32.totalorder %s21, 0
      %p167 = por %p165, %p166
      %p168 = scmp.ne.s32.totalorder %s160, %s162
      %p169 = scmp.eq.s32.totalorder %s26, 1
      %p170 = por %p168, %p169
      %p171 = scmp.ne.s32.totalorder %s162, %s163
      %p172 = scmp.eq.s32.totalorder %s26, 0
      %p173 = por %p171, %p172
      %p174 = scmp.ne.s32.totalorder %s162, %s163
      %p175 = scmp.eq.s32.totalorder %s27, 1
      %p176 = por %p174, %p175
      %p178 = scmp.ne.s32.totalorder %s163, %s177
      %p179 = scmp.eq.s32.totalorder %s27, 0
      %p180 = por %p178, %p179
      %s182 = sadd.s32 %s181, 1
      %p185 = scmp.eq.s32.totalorder %s21, 1
      %p186 = scmp.ne.s32.totalorder %s181, %s183
      %p187 = scmp.eq.s32.totalorder %s21, 0
      %p188 = por %p186, %p187
      %p189 = scmp.ne.s32.totalorder %s181, %s183
      %p190 = scmp.eq.s32.totalorder %s26, 1
      %p191 = por %p189, %p190
      %p192 = scmp.ne.s32.totalorder %s183, %s184
      %p193 = scmp.eq.s32.totalorder %s26, 0
      %p194 = por %p192, %p193
      %p195 = scmp.ne.s32.totalorder %s183, %s184
      %p196 = scmp.eq.s32.totalorder %s27, 1
      %p197 = por %p195, %p196
      %p199 = scmp.ne.s32.totalorder %s184, %s198
      %p200 = scmp.eq.s32.totalorder %s27, 0
      %p201 = por %p199, %p200
      %s202 = ssub.s32 %s21, %s28
      %p203 = scmp.eq.s32.totalorder %s202, 0
      %s205 = sadd.s32 %s204, 1
      %s206 = scalar_select %p203, %s204, %s205
      %p209 = pneg %p203
      %p210 = scmp.eq.s32.totalorder %s21, 1
      %p211 = por %p209, %p210
      %p212 = scmp.ne.s32.totalorder %s204, %s207
      %p213 = scmp.eq.s32.totalorder %s21, 0
      %p214 = por %p212, %p213
      %p215 = scmp.ne.s32.totalorder %s204, %s207
      %p216 = scmp.eq.s32.totalorder %s26, 1
      %p217 = por %p215, %p216
      %p218 = scmp.ne.s32.totalorder %s207, %s208
      %p219 = scmp.eq.s32.totalorder %s26, 0
      %p220 = por %p218, %p219
      %p221 = scmp.ne.s32.totalorder %s207, %s208
      %p222 = scmp.eq.s32.totalorder %s27, 1
      %p223 = por %p221, %p222
      %p225 = scmp.ne.s32.totalorder %s208, %s224
      %p226 = scmp.eq.s32.totalorder %s27, 0
      %p227 = por %p225, %p226
      %p228 = scmp.le.s32.totalorder 1, %s21
      %p229 = scmp.lt.s32.totalorder %s21, 3
      %p230 = pnand %p228, %p229
      %p231 = pneg %p230
      // Predicated region
      $region9: #{tpu_custom_call.1} parent=5 // pred_check
        _
      $region10: #{tpu_custom_call.1} parent=5 // pred_check_branch
        %233 = sbr.rel (%p230) target = $region12
      $region11: #{tpu_custom_call.1} parent=5 // pred_region
        %s234 = ssub.s32 %s21, 1
        // Predicated region
        $region13: #{tpu_custom_call.1} parent=11 // pred_check
          %p235 = pneg %p68
        $region14: #{tpu_custom_call.1} parent=11 // pred_check_branch
          %237 = sbr.rel (%p235) target = $region16
        $region15: #{tpu_custom_call.1} parent=11 // pred_region
          _
        $region16: #{tpu_custom_call.1} parent=11 // pred_fallthru
          _
        // Predicated region
        $region17: #{tpu_custom_call.1} parent=11 // pred_check
          %p238 = pneg %p89
        $region18: #{tpu_custom_call.1} parent=11 // pred_check_branch
          %240 = sbr.rel (%p238) target = $region20
        $region19: #{tpu_custom_call.1} parent=11 // pred_region
          %s242 = ssub.s32 2560, 2560
          %243 = vsyncadd [#allocation8], %s242
          %s244 = sshll.u32 [#allocation7], 4
          %s245 = int_to_ptr.vmem [resolvable:$true] %s244
          %250 = dma.hbm_to_vmem [thread:$0]  %s2, 2560, %s245, [#allocation8], 320, 320, 20
        $region20: #{tpu_custom_call.1} parent=11 // pred_fallthru
          _
        // Predicated region
        $region21: #{tpu_custom_call.1} parent=11 // pred_check
          %p251 = pneg %p110
        $region22: #{tpu_custom_call.1} parent=11 // pred_check_branch
          %253 = sbr.rel (%p251) target = $region24
        $region23: #{tpu_custom_call.1} parent=11 // pred_region
          _
        $region24: #{tpu_custom_call.1} parent=11 // pred_fallthru
          _
        // Predicated region
        $region25: #{tpu_custom_call.1} parent=11 // pred_check
          %p254 = pneg %p131
        $region26: #{tpu_custom_call.1} parent=11 // pred_check_branch
          %256 = sbr.rel (%p254) target = $region28
        $region27: #{tpu_custom_call.1} parent=11 // pred_region
          _
        $region28: #{tpu_custom_call.1} parent=11 // pred_fallthru
          _
        // Predicated region
        $region29: #{tpu_custom_call.1} parent=11 // pred_check
          %p257 = pneg %p152
        $region30: #{tpu_custom_call.1} parent=11 // pred_check_branch
          %259 = sbr.rel (%p257) target = $region32
        $region31: #{tpu_custom_call.1} parent=11 // pred_region
          _
        $region32: #{tpu_custom_call.1} parent=11 // pred_fallthru
          _
        // Predicated region
        $region33: #{tpu_custom_call.1} parent=11 // pred_check
          %p260 = pneg %p173
        $region34: #{tpu_custom_call.1} parent=11 // pred_check_branch
          %262 = sbr.rel (%p260) target = $region36
        $region35: #{tpu_custom_call.1} parent=11 // pred_region
          _
        $region36: #{tpu_custom_call.1} parent=11 // pred_fallthru
          _
        // Predicated region
        $region37: #{tpu_custom_call.1} parent=11 // pred_check
          %p263 = pneg %p194
        $region38: #{tpu_custom_call.1} parent=11 // pred_check_branch
          %265 = sbr.rel (%p263) target = $region40
        $region39: #{tpu_custom_call.1} parent=11 // pred_region
          %s267 = ssub.s32 18432, 18432
          %268 = vsyncadd [#allocation8], %s267
          %s269 = sshll.u32 [#allocation9], 4
          %s270 = int_to_ptr.vmem [resolvable:$true] %s269
          %275 = dma.hbm_to_vmem [thread:$0]  %s7, 18432, %s270, [#allocation8], 256, 256, 16
        $region40: #{tpu_custom_call.1} parent=11 // pred_fallthru
          _
      $region12: #{tpu_custom_call.1} parent=5 // pred_fallthru
        _
      %p276 = scmp.lt.s32.totalorder %s21, 2
      // Predicated region
      $region41: #{tpu_custom_call.1} parent=5 // pred_check
        %p277 = pneg %p276
      $region42: #{tpu_custom_call.1} parent=5 // pred_check_branch
        %279 = sbr.rel (%p277) target = $region44
      $region43: #{tpu_custom_call.1} parent=5 // pred_region
        // Predicated region
        $region45: #{tpu_custom_call.1} parent=43 // pred_check
          %p280 = pneg %p41
        $region46: #{tpu_custom_call.1} parent=43 // pred_check_branch
          %282 = sbr.rel (%p280) target = $region48
        $region47: #{tpu_custom_call.1} parent=43 // pred_region
          %s283 = sand.u32 %s31, 1
          %s284 = scalar_lea.sflag [#allocation5], %s283
          %s285 = sand.u32 %s31, 1
          %s286 = smul.addr %s285, 256
          %s287 = scalar_lea.vmem [#allocation4], %s286
          %s288 = smul.u32 2, %s21
          %s290 = ssub.s32 4096, 4096
          %291 = vsyncadd %s284, %s290
          %s292 = smul.addr %s288, 16
          %s293 = smul.addr %s292, 128
          %s294 = scalar_lea.hbm %s0, %s293
          %s295 = sshll.u32 %s287, 4
          %s296 = int_to_ptr.vmem [resolvable:$true] %s295
          %301 = dma.hbm_to_vmem [thread:$0]  %s294, 4096, %s296, %s284, 256, 256, 16
        $region48: #{tpu_custom_call.1} parent=43 // pred_fallthru
          _
      $region44: #{tpu_custom_call.1} parent=5 // pred_fallthru
        _
      %p302 = scmp.le.s32.totalorder 1, %s21
      %p303 = scmp.lt.s32.totalorder %s21, 3
      %p304 = pnand %p302, %p303
      %p305 = pneg %p304
      // Predicated region
      $region49: #{tpu_custom_call.1} parent=5 // pred_check
        _
      $region50: #{tpu_custom_call.1} parent=5 // pred_check_branch
        %307 = sbr.rel (%p304) target = $region52
      $region51: #{tpu_custom_call.1} parent=5 // pred_region
        %s308 = ssub.s32 %s21, 1
        %s309 = sand.u32 %s34, 1
        %s310 = scalar_lea.sflag [#allocation5], %s309
        %s311 = sand.u32 %s34, 1
        %s312 = smul.addr %s311, 256
        %s313 = scalar_lea.vmem [#allocation4], %s312
        // Predicated region
        $region53: #{tpu_custom_call.1} parent=51 // pred_check
          %p314 = pneg %p47
        $region54: #{tpu_custom_call.1} parent=51 // pred_check_branch
          %316 = sbr.rel (%p314) target = $region56
        $region55: #{tpu_custom_call.1} parent=51 // pred_region
          %317 = dma.done %s310, 4096
        $region56: #{tpu_custom_call.1} parent=51 // pred_fallthru
          _
        // Predicated region
        $region57: #{tpu_custom_call.1} parent=51 // pred_check
          %p318 = pneg %p89
        $region58: #{tpu_custom_call.1} parent=51 // pred_check_branch
          %320 = sbr.rel (%p318) target = $region60
        $region59: #{tpu_custom_call.1} parent=51 // pred_region
          %321 = dma.done [#allocation8], 2560
        $region60: #{tpu_custom_call.1} parent=51 // pred_fallthru
          _
        // Predicated region
        $region61: #{tpu_custom_call.1} parent=51 // pred_check
          %p322 = pneg %p194
        $region62: #{tpu_custom_call.1} parent=51 // pred_check_branch
          %324 = sbr.rel (%p322) target = $region64
        $region63: #{tpu_custom_call.1} parent=51 // pred_region
          %325 = dma.done [#allocation8], 18432
        $region64: #{tpu_custom_call.1} parent=51 // pred_fallthru
          _
        %s326 = sand.u32 %s34, 1
        %s327 = scalar_lea.sflag [#allocation5], %s326
        %s328 = sand.u32 %s34, 1
        %s329 = smul.addr %s328, 256
        %s330 = scalar_lea.vmem [#allocation4], %s329
        %p331 = pneg %p47
        %p332 = pneg %p44
        %p333 = pneg %p68
        %p334 = pneg %p65
        %p335 = pneg %p89
        %p336 = pneg %p86
        %p337 = pneg %p110
        %p338 = pneg %p107
        %p339 = pneg %p131
        %p340 = pneg %p128
        %p341 = pneg %p152
        %p342 = pneg %p149
        %p343 = pneg %p173
        %p344 = pneg %p170
        %p345 = pneg %p194
        %p346 = pneg %p191
        %p347 = pneg %p220
        %p348 = pneg %p217
        %s349 = sand.u32 %s207, 1
        %s350 = scalar_lea.sflag [#allocation6], %s349
        %s351 = sand.u32 %s207, 1
        %s352 = smul.addr %s351, 256
        %s353 = scalar_lea.vmem [#allocation10], %s352
        %s354 = smul.u32 2, %s26
        %s355 = smul.u32 2, %s26
        %v357 = vld [vmem:[%s3] sm:$0xff]
        %v358 = vld [vmem:[%s3 + $0x8] sm:$0xff]
        %v359 = vld [vmem:[%s3 + $0x10] sm:$0xff]
        %v360 = vld [vmem:[%s3 + $0x18] sm:$0xff]
        %v361 = vld [vmem:[%s3 + $0x20] sm:$0xff]
        %v362 = vld [vmem:[%s3 + $0x28] sm:$0xff]
        %v363 = vld [vmem:[%s3 + $0x30] sm:$0xff]
        %v364 = vld [vmem:[%s3 + $0x38] sm:$0xff]
        %v365 = vld [vmem:[%s4] sm:$0xff]
        %v366 = vld [vmem:[%s4 + $0x8] sm:$0xff]
        %v367 = vld [vmem:[%s4 + $0x10] sm:$0xff]
        %v368 = vld [vmem:[%s4 + $0x18] sm:$0xff]
        %v369 = vld [vmem:[%s4 + $0x20] sm:$0xff]
        %v370 = vld [vmem:[%s4 + $0x28] sm:$0xff]
        %v371 = vld [vmem:[%s4 + $0x30] sm:$0xff]
        %v372 = vld [vmem:[%s4 + $0x38] sm:$0xff]
        %v373 = vld [vmem:[%s5] sm:$0xff]
        %v374 = vld [vmem:[%s5 + $0x8] sm:$0xff]
        %v375 = vld [vmem:[%s5 + $0x10] sm:$0xff]
        %v376 = vld [vmem:[%s5 + $0x18] sm:$0xff]
        %v377 = vld [vmem:[%s5 + $0x20] sm:$0xff]
        %v378 = vld [vmem:[%s5 + $0x28] sm:$0xff]
        %v379 = vld [vmem:[%s5 + $0x30] sm:$0xff]
        %v380 = vld [vmem:[%s5 + $0x38] sm:$0xff]
        %v381 = vld [vmem:[%s6] sm:$0xff]
        %v382 = vld [vmem:[%s6 + $0x8] sm:$0xff]
        %v383 = vld [vmem:[%s6 + $0x10] sm:$0xff]
        %v384 = vld [vmem:[%s6 + $0x18] sm:$0xff]
        %v385 = vld [vmem:[%s6 + $0x20] sm:$0xff]
        %v386 = vld [vmem:[%s6 + $0x28] sm:$0xff]
        %v387 = vld [vmem:[%s6 + $0x30] sm:$0xff]
        %v388 = vld [vmem:[%s6 + $0x38] sm:$0xff]
        %v389 = vld [vmem:[%s313] sm:$0xff]
        %v390 = vld [vmem:[%s313 + $0x8] sm:$0xff]
        %v391 = vld [vmem:[%s313 + $0x10] sm:$0xff]
        %v392 = vld [vmem:[%s313 + $0x18] sm:$0xff]
        %v393 = vld [vmem:[%s313 + $0x20] sm:$0xff]
        %v394 = vld [vmem:[%s313 + $0x28] sm:$0xff]
        %v395 = vld [vmem:[%s313 + $0x30] sm:$0xff]
        %v396 = vld [vmem:[%s313 + $0x38] sm:$0xff]
        %v397 = vld [vmem:[%s313 + $0x40] sm:$0xff]
        %v398 = vld [vmem:[%s313 + $0x48] sm:$0xff]
        %v399 = vld [vmem:[%s313 + $0x50] sm:$0xff]
        %v400 = vld [vmem:[%s313 + $0x58] sm:$0xff]
        %v401 = vld [vmem:[%s313 + $0x60] sm:$0xff]
        %v402 = vld [vmem:[%s313 + $0x68] sm:$0xff]
        %v403 = vld [vmem:[%s313 + $0x70] sm:$0xff]
        %v404 = vld [vmem:[%s313 + $0x78] sm:$0xff]
        %405 = vrot.lane.b32.xlu0 %v389, 17
        %v406 = vpop.permute.xlu0 %405
        %407 = vrot.lane.b32.xlu0 %v391, 17
        %v408 = vpop.permute.xlu0 %407
        %409 = vrot.lane.b32.xlu0 %v393, 17
        %v410 = vpop.permute.xlu0 %409
        %411 = vrot.lane.b32.xlu0 %v395, 17
        %v412 = vpop.permute.xlu0 %411
        %413 = vrot.lane.b32.xlu0 %v397, 17
        %v414 = vpop.permute.xlu0 %413
        %415 = vrot.lane.b32.xlu0 %v399, 17
        %v416 = vpop.permute.xlu0 %415
        %417 = vrot.lane.b32.xlu0 %v401, 17
        %v418 = vpop.permute.xlu0 %417
        %419 = vrot.lane.b32.xlu0 %v403, 17
        %v420 = vpop.permute.xlu0 %419
        %421 = vrot.lane.b32.xlu0 %v390, 17
        %v422 = vpop.permute.xlu0 %421
        %423 = vrot.lane.b32.xlu0 %v392, 17
        %v424 = vpop.permute.xlu0 %423
        %425 = vrot.lane.b32.xlu0 %v394, 17
        %v426 = vpop.permute.xlu0 %425
        %427 = vrot.lane.b32.xlu0 %v396, 17
        %v428 = vpop.permute.xlu0 %427
        %429 = vrot.lane.b32.xlu0 %v398, 17
        %v430 = vpop.permute.xlu0 %429
        %431 = vrot.lane.b32.xlu0 %v400, 17
        %v432 = vpop.permute.xlu0 %431
        %433 = vrot.lane.b32.xlu0 %v402, 17
        %v434 = vpop.permute.xlu0 %433
        %435 = vrot.lane.b32.xlu0 %v404, 17
        %v436 = vpop.permute.xlu0 %435
        %v437 = vlaneseq
        %v438 = vand.u32 %v437, 127
        %vm439 = vcmp.lt.s32.totalorder %v438, 17
        %v440 = vsel %vm439, %v406, %v422
        %v441 = vsel %vm439, %v408, %v424
        %v442 = vsel %vm439, %v410, %v426
        %v443 = vsel %vm439, %v412, %v428
        %v444 = vsel %vm439, %v414, %v430
        %v445 = vsel %vm439, %v416, %v432
        %v446 = vsel %vm439, %v418, %v434
        %v447 = vsel %vm439, %v420, %v436
        %v448 = vsel %vm439, %v422, %v406
        %v449 = vsel %vm439, %v424, %v408
        %v450 = vsel %vm439, %v426, %v410
        %v451 = vsel %vm439, %v428, %v412
        %v452 = vsel %vm439, %v430, %v414
        %v453 = vsel %vm439, %v432, %v416
        %v454 = vsel %vm439, %v434, %v418
        %v455 = vsel %vm439, %v436, %v420
        %v456 = vld [vmem:[#allocation9] sm:$0xff]
        %v457 = vld [vmem:[#allocation9 + $0x8] sm:$0xff]
        %v458 = vld [vmem:[#allocation9 + $0x10] sm:$0xff]
        %v459 = vld [vmem:[#allocation9 + $0x18] sm:$0xff]
        %v460 = vld [vmem:[#allocation9 + $0x20] sm:$0xff]
        %v461 = vld [vmem:[#allocation9 + $0x28] sm:$0xff]
        %v462 = vld [vmem:[#allocation9 + $0x30] sm:$0xff]
        %v463 = vld [vmem:[#allocation9 + $0x38] sm:$0xff]
        %v464 = vld [vmem:[#allocation9 + $0x40] sm:$0xff]
        %v465 = vld [vmem:[#allocation9 + $0x48] sm:$0xff]
        %v466 = vld [vmem:[#allocation9 + $0x50] sm:$0xff]
        %v467 = vld [vmem:[#allocation9 + $0x58] sm:$0xff]
        %v468 = vld [vmem:[#allocation9 + $0x60] sm:$0xff]
        %v469 = vld [vmem:[#allocation9 + $0x68] sm:$0xff]
        %v470 = vld [vmem:[#allocation9 + $0x70] sm:$0xff]
        %v471 = vld [vmem:[#allocation9 + $0x78] sm:$0xff]
        %v472 = vmul.f32 %v448, %v456
        %v473 = vmul.f32 %v440, %v457
        %v474 = vmul.f32 %v449, %v458
        %v475 = vmul.f32 %v441, %v459
        %v476 = vmul.f32 %v450, %v460
        %v477 = vmul.f32 %v442, %v461
        %v478 = vmul.f32 %v451, %v462
        %v479 = vmul.f32 %v443, %v463
        %v480 = vmul.f32 %v452, %v464
        %v481 = vmul.f32 %v444, %v465
        %v482 = vmul.f32 %v453, %v466
        %v483 = vmul.f32 %v445, %v467
        %v484 = vmul.f32 %v454, %v468
        %v485 = vmul.f32 %v446, %v469
        %v486 = vmul.f32 %v455, %v470
        %v487 = vmul.f32 %v447, %v471
        %v488 = vpack.c.bf16 %v474, %v472
        %v489 = vpack.c.bf16 %v475, %v473
        %v490 = vpack.c.bf16 %v478, %v476
        %v491 = vpack.c.bf16 %v479, %v477
        %v492 = vpack.c.bf16 %v482, %v480
        %v493 = vpack.c.bf16 %v483, %v481
        %v494 = vpack.c.bf16 %v486, %v484
        %v495 = vpack.c.bf16 %v487, %v485
        %v504 = vunpack.c.l.b16 %v488
        %v505 = vunpack.c.l.b16 %v489
        %v506 = vunpack.c.h.b16 %v488
        %v507 = vunpack.c.h.b16 %v489
        %v508 = vunpack.c.l.b16 %v490
        %v509 = vunpack.c.l.b16 %v491
        %v510 = vunpack.c.h.b16 %v490
        %v511 = vunpack.c.h.b16 %v491
        %v512 = vunpack.c.l.b16 %v492
        %v513 = vunpack.c.l.b16 %v493
        %v514 = vunpack.c.h.b16 %v492
        %v515 = vunpack.c.h.b16 %v493
        %v516 = vunpack.c.l.b16 %v494
        %v517 = vunpack.c.l.b16 %v495
        %v518 = vunpack.c.h.b16 %v494
        %v519 = vunpack.c.h.b16 %v495
        %v520 = vpack.c.b16 %v505, %v504
        %v521 = vpack.c.b16 %v507, %v506
        %v522 = vpack.c.b16 %v509, %v508
        %v523 = vpack.c.b16 %v511, %v510
        %v524 = vpack.c.b16 %v513, %v512
        %v525 = vpack.c.b16 %v515, %v514
        %v526 = vpack.c.b16 %v517, %v516
        %v527 = vpack.c.b16 %v519, %v518
        %536 = vst [vmem:[#allocation2] sm:$0xff] %v520
        %537 = vst [vmem:[#allocation2 + $0x10] sm:$0xff] %v521
        %538 = vst [vmem:[#allocation2 + $0x20] sm:$0xff] %v522
        %539 = vst [vmem:[#allocation2 + $0x30] sm:$0xff] %v523
        %540 = vst [vmem:[#allocation2 + $0x40] sm:$0xff] %v524
        %541 = vst [vmem:[#allocation2 + $0x50] sm:$0xff] %v525
        %542 = vst [vmem:[#allocation2 + $0x60] sm:$0xff] %v526
        %543 = vst [vmem:[#allocation2 + $0x70] sm:$0xff] %v527
        %544 = vrot.lane.b32.xlu0 %v389, 16
        %v545 = vpop.permute.xlu0 %544
        %546 = vrot.lane.b32.xlu0 %v391, 16
        %v547 = vpop.permute.xlu0 %546
        %548 = vrot.lane.b32.xlu0 %v393, 16
        %v549 = vpop.permute.xlu0 %548
        %550 = vrot.lane.b32.xlu0 %v395, 16
        %v551 = vpop.permute.xlu0 %550
        %552 = vrot.lane.b32.xlu0 %v397, 16
        %v553 = vpop.permute.xlu0 %552
        %554 = vrot.lane.b32.xlu0 %v399, 16
        %v555 = vpop.permute.xlu0 %554
        %556 = vrot.lane.b32.xlu0 %v401, 16
        %v557 = vpop.permute.xlu0 %556
        %558 = vrot.lane.b32.xlu0 %v403, 16
        %v559 = vpop.permute.xlu0 %558
        %560 = vrot.lane.b32.xlu0 %v390, 16
        %v561 = vpop.permute.xlu0 %560
        %562 = vrot.lane.b32.xlu0 %v392, 16
        %v563 = vpop.permute.xlu0 %562
        %564 = vrot.lane.b32.xlu0 %v394, 16
        %v565 = vpop.permute.xlu0 %564
        %566 = vrot.lane.b32.xlu0 %v396, 16
        %v567 = vpop.permute.xlu0 %566
        %568 = vrot.lane.b32.xlu0 %v398, 16
        %v569 = vpop.permute.xlu0 %568
        %570 = vrot.lane.b32.xlu0 %v400, 16
        %v571 = vpop.permute.xlu0 %570
        %572 = vrot.lane.b32.xlu0 %v402, 16
        %v573 = vpop.permute.xlu0 %572
        %574 = vrot.lane.b32.xlu0 %v404, 16
        %v575 = vpop.permute.xlu0 %574
        %vm576 = vcmp.lt.s32.totalorder %v438, 16
        %v577 = vsel %vm576, %v545, %v561
        %v578 = vsel %vm576, %v547, %v563
        %v579 = vsel %vm576, %v549, %v565
        %v580 = vsel %vm576, %v551, %v567
        %v581 = vsel %vm576, %v553, %v569
        %v582 = vsel %vm576, %v555, %v571
        %v583 = vsel %vm576, %v557, %v573
        %v584 = vsel %vm576, %v559, %v575
        %v585 = vsel %vm576, %v561, %v545
        %v586 = vsel %vm576, %v563, %v547
        %v587 = vsel %vm576, %v565, %v549
        %v588 = vsel %vm576, %v567, %v551
        %v589 = vsel %vm576, %v569, %v553
        %v590 = vsel %vm576, %v571, %v555
        %v591 = vsel %vm576, %v573, %v557
        %v592 = vsel %vm576, %v575, %v559
        %v593 = vld [vmem:[#allocation9 + $0x80] sm:$0xff]
        %v594 = vld [vmem:[#allocation9 + $0x88] sm:$0xff]
        %v595 = vld [vmem:[#allocation9 + $0x90] sm:$0xff]
        %v596 = vld [vmem:[#allocation9 + $0x98] sm:$0xff]
        %v597 = vld [vmem:[#allocation9 + $0xa0] sm:$0xff]
        %v598 = vld [vmem:[#allocation9 + $0xa8] sm:$0xff]
        %v599 = vld [vmem:[#allocation9 + $0xb0] sm:$0xff]
        %v600 = vld [vmem:[#allocation9 + $0xb8] sm:$0xff]
        %v601 = vld [vmem:[#allocation9 + $0xc0] sm:$0xff]
        %v602 = vld [vmem:[#allocation9 + $0xc8] sm:$0xff]
        %v603 = vld [vmem:[#allocation9 + $0xd0] sm:$0xff]
        %v604 = vld [vmem:[#allocation9 + $0xd8] sm:$0xff]
        %v605 = vld [vmem:[#allocation9 + $0xe0] sm:$0xff]
        %v606 = vld [vmem:[#allocation9 + $0xe8] sm:$0xff]
        %v607 = vld [vmem:[#allocation9 + $0xf0] sm:$0xff]
        %v608 = vld [vmem:[#allocation9 + $0xf8] sm:$0xff]
        %v609 = vmul.f32 %v585, %v593
        %v610 = vmul.f32 %v577, %v594
        %v611 = vmul.f32 %v586, %v595
        %v612 = vmul.f32 %v578, %v596
        %v613 = vmul.f32 %v587, %v597
        %v614 = vmul.f32 %v579, %v598
        %v615 = vmul.f32 %v588, %v599
        %v616 = vmul.f32 %v580, %v600
        %v617 = vmul.f32 %v589, %v601
        %v618 = vmul.f32 %v581, %v602
        %v619 = vmul.f32 %v590, %v603
        %v620 = vmul.f32 %v582, %v604
        %v621 = vmul.f32 %v591, %v605
        %v622 = vmul.f32 %v583, %v606
        %v623 = vmul.f32 %v592, %v607
        %v624 = vmul.f32 %v584, %v608
        %v625 = vpack.c.bf16 %v611, %v609
        %v626 = vpack.c.bf16 %v612, %v610
        %v627 = vpack.c.bf16 %v615, %v613
        %v628 = vpack.c.bf16 %v616, %v614
        %v629 = vpack.c.bf16 %v619, %v617
        %v630 = vpack.c.bf16 %v620, %v618
        %v631 = vpack.c.bf16 %v623, %v621
        %v632 = vpack.c.bf16 %v624, %v622
        %v641 = vunpack.c.l.b16 %v625
        %v642 = vunpack.c.l.b16 %v626
        %v643 = vunpack.c.h.b16 %v625
        %v644 = vunpack.c.h.b16 %v626
        %v645 = vunpack.c.l.b16 %v627
        %v646 = vunpack.c.l.b16 %v628
        %v647 = vunpack.c.h.b16 %v627
        %v648 = vunpack.c.h.b16 %v628
        %v649 = vunpack.c.l.b16 %v629
        %v650 = vunpack.c.l.b16 %v630
        %v651 = vunpack.c.h.b16 %v629
        %v652 = vunpack.c.h.b16 %v630
        %v653 = vunpack.c.l.b16 %v631
        %v654 = vunpack.c.l.b16 %v632
        %v655 = vunpack.c.h.b16 %v631
        %v656 = vunpack.c.h.b16 %v632
        %v657 = vpack.c.b16 %v642, %v641
        %v658 = vpack.c.b16 %v644, %v643
        %v659 = vpack.c.b16 %v646, %v645
        %v660 = vpack.c.b16 %v648, %v647
        %v661 = vpack.c.b16 %v650, %v649
        %v662 = vpack.c.b16 %v652, %v651
        %v663 = vpack.c.b16 %v654, %v653
        %v664 = vpack.c.b16 %v656, %v655
        %673 = vst [vmem:[#allocation2 + $0x80] sm:$0xff] %v657
        %674 = vst [vmem:[#allocation2 + $0x90] sm:$0xff] %v658
        %675 = vst [vmem:[#allocation2 + $0xa0] sm:$0xff] %v659
        %676 = vst [vmem:[#allocation2 + $0xb0] sm:$0xff] %v660
        %677 = vst [vmem:[#allocation2 + $0xc0] sm:$0xff] %v661
        %678 = vst [vmem:[#allocation2 + $0xd0] sm:$0xff] %v662
        %679 = vst [vmem:[#allocation2 + $0xe0] sm:$0xff] %v663
        %680 = vst [vmem:[#allocation2 + $0xf0] sm:$0xff] %v664
        %681 = vrot.lane.b32.xlu0 %v389, 15
        %v682 = vpop.permute.xlu0 %681
        %683 = vrot.lane.b32.xlu0 %v391, 15
        %v684 = vpop.permute.xlu0 %683
        %685 = vrot.lane.b32.xlu0 %v393, 15
        %v686 = vpop.permute.xlu0 %685
        %687 = vrot.lane.b32.xlu0 %v395, 15
        %v688 = vpop.permute.xlu0 %687
        %689 = vrot.lane.b32.xlu0 %v397, 15
        %v690 = vpop.permute.xlu0 %689
        %691 = vrot.lane.b32.xlu0 %v399, 15
        %v692 = vpop.permute.xlu0 %691
        %693 = vrot.lane.b32.xlu0 %v401, 15
        %v694 = vpop.permute.xlu0 %693
        %695 = vrot.lane.b32.xlu0 %v403, 15
        %v696 = vpop.permute.xlu0 %695
        %697 = vrot.lane.b32.xlu0 %v390, 15
        %v698 = vpop.permute.xlu0 %697
        %699 = vrot.lane.b32.xlu0 %v392, 15
        %v700 = vpop.permute.xlu0 %699
        %701 = vrot.lane.b32.xlu0 %v394, 15
        %v702 = vpop.permute.xlu0 %701
        %703 = vrot.lane.b32.xlu0 %v396, 15
        %v704 = vpop.permute.xlu0 %703
        %705 = vrot.lane.b32.xlu0 %v398, 15
        %v706 = vpop.permute.xlu0 %705
        %707 = vrot.lane.b32.xlu0 %v400, 15
        %v708 = vpop.permute.xlu0 %707
        %709 = vrot.lane.b32.xlu0 %v402, 15
        %v710 = vpop.permute.xlu0 %709
        %711 = vrot.lane.b32.xlu0 %v404, 15
        %v712 = vpop.permute.xlu0 %711
        %vm713 = vcmp.lt.s32.totalorder %v438, 15
        %v714 = vsel %vm713, %v682, %v698
        %v715 = vsel %vm713, %v684, %v700
        %v716 = vsel %vm713, %v686, %v702
        %v717 = vsel %vm713, %v688, %v704
        %v718 = vsel %vm713, %v690, %v706
        %v719 = vsel %vm713, %v692, %v708
        %v720 = vsel %vm713, %v694, %v710
        %v721 = vsel %vm713, %v696, %v712
        %v722 = vsel %vm713, %v698, %v682
        %v723 = vsel %vm713, %v700, %v684
        %v724 = vsel %vm713, %v702, %v686
        %v725 = vsel %vm713, %v704, %v688
        %v726 = vsel %vm713, %v706, %v690
        %v727 = vsel %vm713, %v708, %v692
        %v728 = vsel %vm713, %v710, %v694
        %v729 = vsel %vm713, %v712, %v696
        %v730 = vld [vmem:[#allocation9 + $0x100] sm:$0xff]
        %v731 = vld [vmem:[#allocation9 + $0x108] sm:$0xff]
        %v732 = vld [vmem:[#allocation9 + $0x110] sm:$0xff]
        %v733 = vld [vmem:[#allocation9 + $0x118] sm:$0xff]
        %v734 = vld [vmem:[#allocation9 + $0x120] sm:$0xff]
        %v735 = vld [vmem:[#allocation9 + $0x128] sm:$0xff]
        %v736 = vld [vmem:[#allocation9 + $0x130] sm:$0xff]
        %v737 = vld [vmem:[#allocation9 + $0x138] sm:$0xff]
        %v738 = vld [vmem:[#allocation9 + $0x140] sm:$0xff]
        %v739 = vld [vmem:[#allocation9 + $0x148] sm:$0xff]
        %v740 = vld [vmem:[#allocation9 + $0x150] sm:$0xff]
        %v741 = vld [vmem:[#allocation9 + $0x158] sm:$0xff]
        %v742 = vld [vmem:[#allocation9 + $0x160] sm:$0xff]
        %v743 = vld [vmem:[#allocation9 + $0x168] sm:$0xff]
        %v744 = vld [vmem:[#allocation9 + $0x170] sm:$0xff]
        %v745 = vld [vmem:[#allocation9 + $0x178] sm:$0xff]
        %v746 = vmul.f32 %v722, %v730
        %v747 = vmul.f32 %v714, %v731
        %v748 = vmul.f32 %v723, %v732
        %v749 = vmul.f32 %v715, %v733
        %v750 = vmul.f32 %v724, %v734
        %v751 = vmul.f32 %v716, %v735
        %v752 = vmul.f32 %v725, %v736
        %v753 = vmul.f32 %v717, %v737
        %v754 = vmul.f32 %v726, %v738
        %v755 = vmul.f32 %v718, %v739
        %v756 = vmul.f32 %v727, %v740
        %v757 = vmul.f32 %v719, %v741
        %v758 = vmul.f32 %v728, %v742
        %v759 = vmul.f32 %v720, %v743
        %v760 = vmul.f32 %v729, %v744
        %v761 = vmul.f32 %v721, %v745
        %v762 = vpack.c.bf16 %v748, %v746
        %v763 = vpack.c.bf16 %v749, %v747
        %v764 = vpack.c.bf16 %v752, %v750
        %v765 = vpack.c.bf16 %v753, %v751
        %v766 = vpack.c.bf16 %v756, %v754
        %v767 = vpack.c.bf16 %v757, %v755
        %v768 = vpack.c.bf16 %v760, %v758
        %v769 = vpack.c.bf16 %v761, %v759
        %v778 = vunpack.c.l.b16 %v762
        %v779 = vunpack.c.l.b16 %v763
        %v780 = vunpack.c.h.b16 %v762
        %v781 = vunpack.c.h.b16 %v763
        %v782 = vunpack.c.l.b16 %v764
        %v783 = vunpack.c.l.b16 %v765
        %v784 = vunpack.c.h.b16 %v764
        %v785 = vunpack.c.h.b16 %v765
        %v786 = vunpack.c.l.b16 %v766
        %v787 = vunpack.c.l.b16 %v767
        %v788 = vunpack.c.h.b16 %v766
        %v789 = vunpack.c.h.b16 %v767
        %v790 = vunpack.c.l.b16 %v768
        %v791 = vunpack.c.l.b16 %v769
        %v792 = vunpack.c.h.b16 %v768
        %v793 = vunpack.c.h.b16 %v769
        %v794 = vpack.c.b16 %v779, %v778
        %v795 = vpack.c.b16 %v781, %v780
        %v796 = vpack.c.b16 %v783, %v782
        %v797 = vpack.c.b16 %v785, %v784
        %v798 = vpack.c.b16 %v787, %v786
        %v799 = vpack.c.b16 %v789, %v788
        %v800 = vpack.c.b16 %v791, %v790
        %v801 = vpack.c.b16 %v793, %v792
        %810 = vst [vmem:[#allocation2 + $0x100] sm:$0xff] %v794
        %811 = vst [vmem:[#allocation2 + $0x110] sm:$0xff] %v795
        %812 = vst [vmem:[#allocation2 + $0x120] sm:$0xff] %v796
        %813 = vst [vmem:[#allocation2 + $0x130] sm:$0xff] %v797
        %814 = vst [vmem:[#allocation2 + $0x140] sm:$0xff] %v798
        %815 = vst [vmem:[#allocation2 + $0x150] sm:$0xff] %v799
        %816 = vst [vmem:[#allocation2 + $0x160] sm:$0xff] %v800
        %817 = vst [vmem:[#allocation2 + $0x170] sm:$0xff] %v801
        %818 = vrot.lane.b32.xlu0 %v389, 1
        %v819 = vpop.permute.xlu0 %818
        %820 = vrot.lane.b32.xlu0 %v391, 1
        %v821 = vpop.permute.xlu0 %820
        %822 = vrot.lane.b32.xlu0 %v393, 1
        %v823 = vpop.permute.xlu0 %822
        %824 = vrot.lane.b32.xlu0 %v395, 1
        %v825 = vpop.permute.xlu0 %824
        %826 = vrot.lane.b32.xlu0 %v397, 1
        %v827 = vpop.permute.xlu0 %826
        %828 = vrot.lane.b32.xlu0 %v399, 1
        %v829 = vpop.permute.xlu0 %828
        %830 = vrot.lane.b32.xlu0 %v401, 1
        %v831 = vpop.permute.xlu0 %830
        %832 = vrot.lane.b32.xlu0 %v403, 1
        %v833 = vpop.permute.xlu0 %832
        %834 = vrot.lane.b32.xlu0 %v390, 1
        %v835 = vpop.permute.xlu0 %834
        %836 = vrot.lane.b32.xlu0 %v392, 1
        %v837 = vpop.permute.xlu0 %836
        %838 = vrot.lane.b32.xlu0 %v394, 1
        %v839 = vpop.permute.xlu0 %838
        %840 = vrot.lane.b32.xlu0 %v396, 1
        %v841 = vpop.permute.xlu0 %840
        %842 = vrot.lane.b32.xlu0 %v398, 1
        %v843 = vpop.permute.xlu0 %842
        %844 = vrot.lane.b32.xlu0 %v400, 1
        %v845 = vpop.permute.xlu0 %844
        %846 = vrot.lane.b32.xlu0 %v402, 1
        %v847 = vpop.permute.xlu0 %846
        %848 = vrot.lane.b32.xlu0 %v404, 1
        %v849 = vpop.permute.xlu0 %848
        %vm850 = vcmp.lt.s32.totalorder %v438, 1
        %v851 = vsel %vm850, %v819, %v835
        %v852 = vsel %vm850, %v821, %v837
        %v853 = vsel %vm850, %v823, %v839
        %v854 = vsel %vm850, %v825, %v841
        %v855 = vsel %vm850, %v827, %v843
        %v856 = vsel %vm850, %v829, %v845
        %v857 = vsel %vm850, %v831, %v847
        %v858 = vsel %vm850, %v833, %v849
        %v859 = vsel %vm850, %v835, %v819
        %v860 = vsel %vm850, %v837, %v821
        %v861 = vsel %vm850, %v839, %v823
        %v862 = vsel %vm850, %v841, %v825
        %v863 = vsel %vm850, %v843, %v827
        %v864 = vsel %vm850, %v845, %v829
        %v865 = vsel %vm850, %v847, %v831
        %v866 = vsel %vm850, %v849, %v833
        %v867 = vld [vmem:[#allocation9 + $0x180] sm:$0xff]
        %v868 = vld [vmem:[#allocation9 + $0x188] sm:$0xff]
        %v869 = vld [vmem:[#allocation9 + $0x190] sm:$0xff]
        %v870 = vld [vmem:[#allocation9 + $0x198] sm:$0xff]
        %v871 = vld [vmem:[#allocation9 + $0x1a0] sm:$0xff]
        %v872 = vld [vmem:[#allocation9 + $0x1a8] sm:$0xff]
        %v873 = vld [vmem:[#allocation9 + $0x1b0] sm:$0xff]
        %v874 = vld [vmem:[#allocation9 + $0x1b8] sm:$0xff]
        %v875 = vld [vmem:[#allocation9 + $0x1c0] sm:$0xff]
        %v876 = vld [vmem:[#allocation9 + $0x1c8] sm:$0xff]
        %v877 = vld [vmem:[#allocation9 + $0x1d0] sm:$0xff]
        %v878 = vld [vmem:[#allocation9 + $0x1d8] sm:$0xff]
        %v879 = vld [vmem:[#allocation9 + $0x1e0] sm:$0xff]
        %v880 = vld [vmem:[#allocation9 + $0x1e8] sm:$0xff]
        %v881 = vld [vmem:[#allocation9 + $0x1f0] sm:$0xff]
        %v882 = vld [vmem:[#allocation9 + $0x1f8] sm:$0xff]
        %v883 = vmul.f32 %v859, %v867
        %v884 = vmul.f32 %v851, %v868
        %v885 = vmul.f32 %v860, %v869
        %v886 = vmul.f32 %v852, %v870
        %v887 = vmul.f32 %v861, %v871
        %v888 = vmul.f32 %v853, %v872
        %v889 = vmul.f32 %v862, %v873
        %v890 = vmul.f32 %v854, %v874
        %v891 = vmul.f32 %v863, %v875
        %v892 = vmul.f32 %v855, %v876
        %v893 = vmul.f32 %v864, %v877
        %v894 = vmul.f32 %v856, %v878
        %v895 = vmul.f32 %v865, %v879
        %v896 = vmul.f32 %v857, %v880
        %v897 = vmul.f32 %v866, %v881
        %v898 = vmul.f32 %v858, %v882
        %v899 = vpack.c.bf16 %v885, %v883
        %v900 = vpack.c.bf16 %v886, %v884
        %v901 = vpack.c.bf16 %v889, %v887
        %v902 = vpack.c.bf16 %v890, %v888
        %v903 = vpack.c.bf16 %v893, %v891
        %v904 = vpack.c.bf16 %v894, %v892
        %v905 = vpack.c.bf16 %v897, %v895
        %v906 = vpack.c.bf16 %v898, %v896
        %v915 = vunpack.c.l.b16 %v899
        %v916 = vunpack.c.l.b16 %v900
        %v917 = vunpack.c.h.b16 %v899
        %v918 = vunpack.c.h.b16 %v900
        %v919 = vunpack.c.l.b16 %v901
        %v920 = vunpack.c.l.b16 %v902
        %v921 = vunpack.c.h.b16 %v901
        %v922 = vunpack.c.h.b16 %v902
        %v923 = vunpack.c.l.b16 %v903
        %v924 = vunpack.c.l.b16 %v904
        %v925 = vunpack.c.h.b16 %v903
        %v926 = vunpack.c.h.b16 %v904
        %v927 = vunpack.c.l.b16 %v905
        %v928 = vunpack.c.l.b16 %v906
        %v929 = vunpack.c.h.b16 %v905
        %v930 = vunpack.c.h.b16 %v906
        %v931 = vpack.c.b16 %v916, %v915
        %v932 = vpack.c.b16 %v918, %v917
        %v933 = vpack.c.b16 %v920, %v919
        %v934 = vpack.c.b16 %v922, %v921
        %v935 = vpack.c.b16 %v924, %v923
        %v936 = vpack.c.b16 %v926, %v925
        %v937 = vpack.c.b16 %v928, %v927
        %v938 = vpack.c.b16 %v930, %v929
        %947 = vst [vmem:[#allocation2 + $0x180] sm:$0xff] %v931
        %948 = vst [vmem:[#allocation2 + $0x190] sm:$0xff] %v932
        %949 = vst [vmem:[#allocation2 + $0x1a0] sm:$0xff] %v933
        %950 = vst [vmem:[#allocation2 + $0x1b0] sm:$0xff] %v934
        %951 = vst [vmem:[#allocation2 + $0x1c0] sm:$0xff] %v935
        %952 = vst [vmem:[#allocation2 + $0x1d0] sm:$0xff] %v936
        %953 = vst [vmem:[#allocation2 + $0x1e0] sm:$0xff] %v937
        %954 = vst [vmem:[#allocation2 + $0x1f0] sm:$0xff] %v938
        %v955 = vld [vmem:[#allocation9 + $0x200] sm:$0xff]
        %v956 = vld [vmem:[#allocation9 + $0x208] sm:$0xff]
        %v957 = vld [vmem:[#allocation9 + $0x210] sm:$0xff]
        %v958 = vld [vmem:[#allocation9 + $0x218] sm:$0xff]
        %v959 = vld [vmem:[#allocation9 + $0x220] sm:$0xff]
        %v960 = vld [vmem:[#allocation9 + $0x228] sm:$0xff]
        %v961 = vld [vmem:[#allocation9 + $0x230] sm:$0xff]
        %v962 = vld [vmem:[#allocation9 + $0x238] sm:$0xff]
        %v963 = vld [vmem:[#allocation9 + $0x240] sm:$0xff]
        %v964 = vld [vmem:[#allocation9 + $0x248] sm:$0xff]
        %v965 = vld [vmem:[#allocation9 + $0x250] sm:$0xff]
        %v966 = vld [vmem:[#allocation9 + $0x258] sm:$0xff]
        %v967 = vld [vmem:[#allocation9 + $0x260] sm:$0xff]
        %v968 = vld [vmem:[#allocation9 + $0x268] sm:$0xff]
        %v969 = vld [vmem:[#allocation9 + $0x270] sm:$0xff]
        %v970 = vld [vmem:[#allocation9 + $0x278] sm:$0xff]
        %v971 = vmul.f32 %v389, %v955
        %v972 = vmul.f32 %v390, %v956
        %v973 = vmul.f32 %v391, %v957
        %v974 = vmul.f32 %v392, %v958
        %v975 = vmul.f32 %v393, %v959
        %v976 = vmul.f32 %v394, %v960
        %v977 = vmul.f32 %v395, %v961
        %v978 = vmul.f32 %v396, %v962
        %v979 = vmul.f32 %v397, %v963
        %v980 = vmul.f32 %v398, %v964
        %v981 = vmul.f32 %v399, %v965
        %v982 = vmul.f32 %v400, %v966
        %v983 = vmul.f32 %v401, %v967
        %v984 = vmul.f32 %v402, %v968
        %v985 = vmul.f32 %v403, %v969
        %v986 = vmul.f32 %v404, %v970
        %v987 = vpack.c.bf16 %v973, %v971
        %v988 = vpack.c.bf16 %v974, %v972
        %v989 = vpack.c.bf16 %v977, %v975
        %v990 = vpack.c.bf16 %v978, %v976
        %v991 = vpack.c.bf16 %v981, %v979
        %v992 = vpack.c.bf16 %v982, %v980
        %v993 = vpack.c.bf16 %v985, %v983
        %v994 = vpack.c.bf16 %v986, %v984
        %v1003 = vunpack.c.l.b16 %v987
        %v1004 = vunpack.c.l.b16 %v988
        %v1005 = vunpack.c.h.b16 %v987
        %v1006 = vunpack.c.h.b16 %v988
        %v1007 = vunpack.c.l.b16 %v989
        %v1008 = vunpack.c.l.b16 %v990
        %v1009 = vunpack.c.h.b16 %v989
        %v1010 = vunpack.c.h.b16 %v990
        %v1011 = vunpack.c.l.b16 %v991
        %v1012 = vunpack.c.l.b16 %v992
        %v1013 = vunpack.c.h.b16 %v991
        %v1014 = vunpack.c.h.b16 %v992
        %v1015 = vunpack.c.l.b16 %v993
        %v1016 = vunpack.c.l.b16 %v994
        %v1017 = vunpack.c.h.b16 %v993
        %v1018 = vunpack.c.h.b16 %v994
        %v1019 = vpack.c.b16 %v1004, %v1003
        %v1020 = vpack.c.b16 %v1006, %v1005
        %v1021 = vpack.c.b16 %v1008, %v1007
        %v1022 = vpack.c.b16 %v1010, %v1009
        %v1023 = vpack.c.b16 %v1012, %v1011
        %v1024 = vpack.c.b16 %v1014, %v1013
        %v1025 = vpack.c.b16 %v1016, %v1015
        %v1026 = vpack.c.b16 %v1018, %v1017
        %1035 = vst [vmem:[#allocation2 + $0x200] sm:$0xff] %v1019
        %1036 = vst [vmem:[#allocation2 + $0x210] sm:$0xff] %v1020
        %1037 = vst [vmem:[#allocation2 + $0x220] sm:$0xff] %v1021
        %1038 = vst [vmem:[#allocation2 + $0x230] sm:$0xff] %v1022
        %1039 = vst [vmem:[#allocation2 + $0x240] sm:$0xff] %v1023
        %1040 = vst [vmem:[#allocation2 + $0x250] sm:$0xff] %v1024
        %1041 = vst [vmem:[#allocation2 + $0x260] sm:$0xff] %v1025
        %1042 = vst [vmem:[#allocation2 + $0x270] sm:$0xff] %v1026
        %1043 = vrot.lane.b32.xlu0 %v389, 127
        %v1044 = vpop.permute.xlu0 %1043
        %1045 = vrot.lane.b32.xlu0 %v391, 127
        %v1046 = vpop.permute.xlu0 %1045
        %1047 = vrot.lane.b32.xlu0 %v393, 127
        %v1048 = vpop.permute.xlu0 %1047
        %1049 = vrot.lane.b32.xlu0 %v395, 127
        %v1050 = vpop.permute.xlu0 %1049
        %1051 = vrot.lane.b32.xlu0 %v397, 127
        %v1052 = vpop.permute.xlu0 %1051
        %1053 = vrot.lane.b32.xlu0 %v399, 127
        %v1054 = vpop.permute.xlu0 %1053
        %1055 = vrot.lane.b32.xlu0 %v401, 127
        %v1056 = vpop.permute.xlu0 %1055
        %1057 = vrot.lane.b32.xlu0 %v403, 127
        %v1058 = vpop.permute.xlu0 %1057
        %1059 = vrot.lane.b32.xlu0 %v390, 127
        %v1060 = vpop.permute.xlu0 %1059
        %1061 = vrot.lane.b32.xlu0 %v392, 127
        %v1062 = vpop.permute.xlu0 %1061
        %1063 = vrot.lane.b32.xlu0 %v394, 127
        %v1064 = vpop.permute.xlu0 %1063
        %1065 = vrot.lane.b32.xlu0 %v396, 127
        %v1066 = vpop.permute.xlu0 %1065
        %1067 = vrot.lane.b32.xlu0 %v398, 127
        %v1068 = vpop.permute.xlu0 %1067
        %1069 = vrot.lane.b32.xlu0 %v400, 127
        %v1070 = vpop.permute.xlu0 %1069
        %1071 = vrot.lane.b32.xlu0 %v402, 127
        %v1072 = vpop.permute.xlu0 %1071
        %1073 = vrot.lane.b32.xlu0 %v404, 127
        %v1074 = vpop.permute.xlu0 %1073
        %vm1075 = vcmp.lt.s32.totalorder %v438, 127
        %v1076 = vsel %vm1075, %v1044, %v1060
        %v1077 = vsel %vm1075, %v1046, %v1062
        %v1078 = vsel %vm1075, %v1048, %v1064
        %v1079 = vsel %vm1075, %v1050, %v1066
        %v1080 = vsel %vm1075, %v1052, %v1068
        %v1081 = vsel %vm1075, %v1054, %v1070
        %v1082 = vsel %vm1075, %v1056, %v1072
        %v1083 = vsel %vm1075, %v1058, %v1074
        %v1084 = vsel %vm1075, %v1060, %v1044
        %v1085 = vsel %vm1075, %v1062, %v1046
        %v1086 = vsel %vm1075, %v1064, %v1048
        %v1087 = vsel %vm1075, %v1066, %v1050
        %v1088 = vsel %vm1075, %v1068, %v1052
        %v1089 = vsel %vm1075, %v1070, %v1054
        %v1090 = vsel %vm1075, %v1072, %v1056
        %v1091 = vsel %vm1075, %v1074, %v1058
        %v1092 = vld [vmem:[#allocation9 + $0x280] sm:$0xff]
        %v1093 = vld [vmem:[#allocation9 + $0x288] sm:$0xff]
        %v1094 = vld [vmem:[#allocation9 + $0x290] sm:$0xff]
        %v1095 = vld [vmem:[#allocation9 + $0x298] sm:$0xff]
        %v1096 = vld [vmem:[#allocation9 + $0x2a0] sm:$0xff]
        %v1097 = vld [vmem:[#allocation9 + $0x2a8] sm:$0xff]
        %v1098 = vld [vmem:[#allocation9 + $0x2b0] sm:$0xff]
        %v1099 = vld [vmem:[#allocation9 + $0x2b8] sm:$0xff]
        %v1100 = vld [vmem:[#allocation9 + $0x2c0] sm:$0xff]
        %v1101 = vld [vmem:[#allocation9 + $0x2c8] sm:$0xff]
        %v1102 = vld [vmem:[#allocation9 + $0x2d0] sm:$0xff]
        %v1103 = vld [vmem:[#allocation9 + $0x2d8] sm:$0xff]
        %v1104 = vld [vmem:[#allocation9 + $0x2e0] sm:$0xff]
        %v1105 = vld [vmem:[#allocation9 + $0x2e8] sm:$0xff]
        %v1106 = vld [vmem:[#allocation9 + $0x2f0] sm:$0xff]
        %v1107 = vld [vmem:[#allocation9 + $0x2f8] sm:$0xff]
        %v1108 = vmul.f32 %v1076, %v1092
        %v1109 = vmul.f32 %v1084, %v1093
        %v1110 = vmul.f32 %v1077, %v1094
        %v1111 = vmul.f32 %v1085, %v1095
        %v1112 = vmul.f32 %v1078, %v1096
        %v1113 = vmul.f32 %v1086, %v1097
        %v1114 = vmul.f32 %v1079, %v1098
        %v1115 = vmul.f32 %v1087, %v1099
        %v1116 = vmul.f32 %v1080, %v1100
        %v1117 = vmul.f32 %v1088, %v1101
        %v1118 = vmul.f32 %v1081, %v1102
        %v1119 = vmul.f32 %v1089, %v1103
        %v1120 = vmul.f32 %v1082, %v1104
        %v1121 = vmul.f32 %v1090, %v1105
        %v1122 = vmul.f32 %v1083, %v1106
        %v1123 = vmul.f32 %v1091, %v1107
        %v1124 = vpack.c.bf16 %v1110, %v1108
        %v1125 = vpack.c.bf16 %v1111, %v1109
        %v1126 = vpack.c.bf16 %v1114, %v1112
        %v1127 = vpack.c.bf16 %v1115, %v1113
        %v1128 = vpack.c.bf16 %v1118, %v1116
        %v1129 = vpack.c.bf16 %v1119, %v1117
        %v1130 = vpack.c.bf16 %v1122, %v1120
        %v1131 = vpack.c.bf16 %v1123, %v1121
        %v1140 = vunpack.c.l.b16 %v1124
        %v1141 = vunpack.c.l.b16 %v1125
        %v1142 = vunpack.c.h.b16 %v1124
        %v1143 = vunpack.c.h.b16 %v1125
        %v1144 = vunpack.c.l.b16 %v1126
        %v1145 = vunpack.c.l.b16 %v1127
        %v1146 = vunpack.c.h.b16 %v1126
        %v1147 = vunpack.c.h.b16 %v1127
        %v1148 = vunpack.c.l.b16 %v1128
        %v1149 = vunpack.c.l.b16 %v1129
        %v1150 = vunpack.c.h.b16 %v1128
        %v1151 = vunpack.c.h.b16 %v1129
        %v1152 = vunpack.c.l.b16 %v1130
        %v1153 = vunpack.c.l.b16 %v1131
        %v1154 = vunpack.c.h.b16 %v1130
        %v1155 = vunpack.c.h.b16 %v1131
        %v1156 = vpack.c.b16 %v1141, %v1140
        %v1157 = vpack.c.b16 %v1143, %v1142
        %v1158 = vpack.c.b16 %v1145, %v1144
        %v1159 = vpack.c.b16 %v1147, %v1146
        %v1160 = vpack.c.b16 %v1149, %v1148
        %v1161 = vpack.c.b16 %v1151, %v1150
        %v1162 = vpack.c.b16 %v1153, %v1152
        %v1163 = vpack.c.b16 %v1155, %v1154
        %1172 = vst [vmem:[#allocation2 + $0x280] sm:$0xff] %v1156
        %1173 = vst [vmem:[#allocation2 + $0x290] sm:$0xff] %v1157
        %1174 = vst [vmem:[#allocation2 + $0x2a0] sm:$0xff] %v1158
        %1175 = vst [vmem:[#allocation2 + $0x2b0] sm:$0xff] %v1159
        %1176 = vst [vmem:[#allocation2 + $0x2c0] sm:$0xff] %v1160
        %1177 = vst [vmem:[#allocation2 + $0x2d0] sm:$0xff] %v1161
        %1178 = vst [vmem:[#allocation2 + $0x2e0] sm:$0xff] %v1162
        %1179 = vst [vmem:[#allocation2 + $0x2f0] sm:$0xff] %v1163
        %1180 = vrot.lane.b32.xlu0 %v389, 113
        %v1181 = vpop.permute.xlu0 %1180
        %1182 = vrot.lane.b32.xlu0 %v391, 113
        %v1183 = vpop.permute.xlu0 %1182
        %1184 = vrot.lane.b32.xlu0 %v393, 113
        %v1185 = vpop.permute.xlu0 %1184
        %1186 = vrot.lane.b32.xlu0 %v395, 113
        %v1187 = vpop.permute.xlu0 %1186
        %1188 = vrot.lane.b32.xlu0 %v397, 113
        %v1189 = vpop.permute.xlu0 %1188
        %1190 = vrot.lane.b32.xlu0 %v399, 113
        %v1191 = vpop.permute.xlu0 %1190
        %1192 = vrot.lane.b32.xlu0 %v401, 113
        %v1193 = vpop.permute.xlu0 %1192
        %1194 = vrot.lane.b32.xlu0 %v403, 113
        %v1195 = vpop.permute.xlu0 %1194
        %1196 = vrot.lane.b32.xlu0 %v390, 113
        %v1197 = vpop.permute.xlu0 %1196
        %1198 = vrot.lane.b32.xlu0 %v392, 113
        %v1199 = vpop.permute.xlu0 %1198
        %1200 = vrot.lane.b32.xlu0 %v394, 113
        %v1201 = vpop.permute.xlu0 %1200
        %1202 = vrot.lane.b32.xlu0 %v396, 113
        %v1203 = vpop.permute.xlu0 %1202
        %1204 = vrot.lane.b32.xlu0 %v398, 113
        %v1205 = vpop.permute.xlu0 %1204
        %1206 = vrot.lane.b32.xlu0 %v400, 113
        %v1207 = vpop.permute.xlu0 %1206
        %1208 = vrot.lane.b32.xlu0 %v402, 113
        %v1209 = vpop.permute.xlu0 %1208
        %1210 = vrot.lane.b32.xlu0 %v404, 113
        %v1211 = vpop.permute.xlu0 %1210
        %vm1212 = vcmp.lt.s32.totalorder %v438, 113
        %v1213 = vsel %vm1212, %v1181, %v1197
        %v1214 = vsel %vm1212, %v1183, %v1199
        %v1215 = vsel %vm1212, %v1185, %v1201
        %v1216 = vsel %vm1212, %v1187, %v1203
        %v1217 = vsel %vm1212, %v1189, %v1205
        %v1218 = vsel %vm1212, %v1191, %v1207
        %v1219 = vsel %vm1212, %v1193, %v1209
        %v1220 = vsel %vm1212, %v1195, %v1211
        %v1221 = vsel %vm1212, %v1197, %v1181
        %v1222 = vsel %vm1212, %v1199, %v1183
        %v1223 = vsel %vm1212, %v1201, %v1185
        %v1224 = vsel %vm1212, %v1203, %v1187
        %v1225 = vsel %vm1212, %v1205, %v1189
        %v1226 = vsel %vm1212, %v1207, %v1191
        %v1227 = vsel %vm1212, %v1209, %v1193
        %v1228 = vsel %vm1212, %v1211, %v1195
        %v1229 = vld [vmem:[#allocation9 + $0x300] sm:$0xff]
        %v1230 = vld [vmem:[#allocation9 + $0x308] sm:$0xff]
        %v1231 = vld [vmem:[#allocation9 + $0x310] sm:$0xff]
        %v1232 = vld [vmem:[#allocation9 + $0x318] sm:$0xff]
        %v1233 = vld [vmem:[#allocation9 + $0x320] sm:$0xff]
        %v1234 = vld [vmem:[#allocation9 + $0x328] sm:$0xff]
        %v1235 = vld [vmem:[#allocation9 + $0x330] sm:$0xff]
        %v1236 = vld [vmem:[#allocation9 + $0x338] sm:$0xff]
        %v1237 = vld [vmem:[#allocation9 + $0x340] sm:$0xff]
        %v1238 = vld [vmem:[#allocation9 + $0x348] sm:$0xff]
        %v1239 = vld [vmem:[#allocation9 + $0x350] sm:$0xff]
        %v1240 = vld [vmem:[#allocation9 + $0x358] sm:$0xff]
        %v1241 = vld [vmem:[#allocation9 + $0x360] sm:$0xff]
        %v1242 = vld [vmem:[#allocation9 + $0x368] sm:$0xff]
        %v1243 = vld [vmem:[#allocation9 + $0x370] sm:$0xff]
        %v1244 = vld [vmem:[#allocation9 + $0x378] sm:$0xff]
        %v1245 = vmul.f32 %v1213, %v1229
        %v1246 = vmul.f32 %v1221, %v1230
        %v1247 = vmul.f32 %v1214, %v1231
        %v1248 = vmul.f32 %v1222, %v1232
        %v1249 = vmul.f32 %v1215, %v1233
        %v1250 = vmul.f32 %v1223, %v1234
        %v1251 = vmul.f32 %v1216, %v1235
        %v1252 = vmul.f32 %v1224, %v1236
        %v1253 = vmul.f32 %v1217, %v1237
        %v1254 = vmul.f32 %v1225, %v1238
        %v1255 = vmul.f32 %v1218, %v1239
        %v1256 = vmul.f32 %v1226, %v1240
        %v1257 = vmul.f32 %v1219, %v1241
        %v1258 = vmul.f32 %v1227, %v1242
        %v1259 = vmul.f32 %v1220, %v1243
        %v1260 = vmul.f32 %v1228, %v1244
        %v1261 = vpack.c.bf16 %v1247, %v1245
        %v1262 = vpack.c.bf16 %v1248, %v1246
        %v1263 = vpack.c.bf16 %v1251, %v1249
        %v1264 = vpack.c.bf16 %v1252, %v1250
        %v1265 = vpack.c.bf16 %v1255, %v1253
        %v1266 = vpack.c.bf16 %v1256, %v1254
        %v1267 = vpack.c.bf16 %v1259, %v1257
        %v1268 = vpack.c.bf16 %v1260, %v1258
        %v1277 = vunpack.c.l.b16 %v1261
        %v1278 = vunpack.c.l.b16 %v1262
        %v1279 = vunpack.c.h.b16 %v1261
        %v1280 = vunpack.c.h.b16 %v1262
        %v1281 = vunpack.c.l.b16 %v1263
        %v1282 = vunpack.c.l.b16 %v1264
        %v1283 = vunpack.c.h.b16 %v1263
        %v1284 = vunpack.c.h.b16 %v1264
        %v1285 = vunpack.c.l.b16 %v1265
        %v1286 = vunpack.c.l.b16 %v1266
        %v1287 = vunpack.c.h.b16 %v1265
        %v1288 = vunpack.c.h.b16 %v1266
        %v1289 = vunpack.c.l.b16 %v1267
        %v1290 = vunpack.c.l.b16 %v1268
        %v1291 = vunpack.c.h.b16 %v1267
        %v1292 = vunpack.c.h.b16 %v1268
        %v1293 = vpack.c.b16 %v1278, %v1277
        %v1294 = vpack.c.b16 %v1280, %v1279
        %v1295 = vpack.c.b16 %v1282, %v1281
        %v1296 = vpack.c.b16 %v1284, %v1283
        %v1297 = vpack.c.b16 %v1286, %v1285
        %v1298 = vpack.c.b16 %v1288, %v1287
        %v1299 = vpack.c.b16 %v1290, %v1289
        %v1300 = vpack.c.b16 %v1292, %v1291
        %1309 = vst [vmem:[#allocation2 + $0x300] sm:$0xff] %v1293
        %1310 = vst [vmem:[#allocation2 + $0x310] sm:$0xff] %v1294
        %1311 = vst [vmem:[#allocation2 + $0x320] sm:$0xff] %v1295
        %1312 = vst [vmem:[#allocation2 + $0x330] sm:$0xff] %v1296
        %1313 = vst [vmem:[#allocation2 + $0x340] sm:$0xff] %v1297
        %1314 = vst [vmem:[#allocation2 + $0x350] sm:$0xff] %v1298
        %1315 = vst [vmem:[#allocation2 + $0x360] sm:$0xff] %v1299
        %1316 = vst [vmem:[#allocation2 + $0x370] sm:$0xff] %v1300
        %1317 = vrot.lane.b32.xlu0 %v389, 112
        %v1318 = vpop.permute.xlu0 %1317
        %1319 = vrot.lane.b32.xlu0 %v391, 112
        %v1320 = vpop.permute.xlu0 %1319
        %1321 = vrot.lane.b32.xlu0 %v393, 112
        %v1322 = vpop.permute.xlu0 %1321
        %1323 = vrot.lane.b32.xlu0 %v395, 112
        %v1324 = vpop.permute.xlu0 %1323
        %1325 = vrot.lane.b32.xlu0 %v397, 112
        %v1326 = vpop.permute.xlu0 %1325
        %1327 = vrot.lane.b32.xlu0 %v399, 112
        %v1328 = vpop.permute.xlu0 %1327
        %1329 = vrot.lane.b32.xlu0 %v401, 112
        %v1330 = vpop.permute.xlu0 %1329
        %1331 = vrot.lane.b32.xlu0 %v403, 112
        %v1332 = vpop.permute.xlu0 %1331
        %1333 = vrot.lane.b32.xlu0 %v390, 112
        %v1334 = vpop.permute.xlu0 %1333
        %1335 = vrot.lane.b32.xlu0 %v392, 112
        %v1336 = vpop.permute.xlu0 %1335
        %1337 = vrot.lane.b32.xlu0 %v394, 112
        %v1338 = vpop.permute.xlu0 %1337
        %1339 = vrot.lane.b32.xlu0 %v396, 112
        %v1340 = vpop.permute.xlu0 %1339
        %1341 = vrot.lane.b32.xlu0 %v398, 112
        %v1342 = vpop.permute.xlu0 %1341
        %1343 = vrot.lane.b32.xlu0 %v400, 112
        %v1344 = vpop.permute.xlu0 %1343
        %1345 = vrot.lane.b32.xlu0 %v402, 112
        %v1346 = vpop.permute.xlu0 %1345
        %1347 = vrot.lane.b32.xlu0 %v404, 112
        %v1348 = vpop.permute.xlu0 %1347
        %vm1349 = vcmp.lt.s32.totalorder %v438, 112
        %v1350 = vsel %vm1349, %v1318, %v1334
        %v1351 = vsel %vm1349, %v1320, %v1336
        %v1352 = vsel %vm1349, %v1322, %v1338
        %v1353 = vsel %vm1349, %v1324, %v1340
        %v1354 = vsel %vm1349, %v1326, %v1342
        %v1355 = vsel %vm1349, %v1328, %v1344
        %v1356 = vsel %vm1349, %v1330, %v1346
        %v1357 = vsel %vm1349, %v1332, %v1348
        %v1358 = vsel %vm1349, %v1334, %v1318
        %v1359 = vsel %vm1349, %v1336, %v1320
        %v1360 = vsel %vm1349, %v1338, %v1322
        %v1361 = vsel %vm1349, %v1340, %v1324
        %v1362 = vsel %vm1349, %v1342, %v1326
        %v1363 = vsel %vm1349, %v1344, %v1328
        %v1364 = vsel %vm1349, %v1346, %v1330
        %v1365 = vsel %vm1349, %v1348, %v1332
        %v1366 = vld [vmem:[#allocation9 + $0x380] sm:$0xff]
        %v1367 = vld [vmem:[#allocation9 + $0x388] sm:$0xff]
        %v1368 = vld [vmem:[#allocation9 + $0x390] sm:$0xff]
        %v1369 = vld [vmem:[#allocation9 + $0x398] sm:$0xff]
        %v1370 = vld [vmem:[#allocation9 + $0x3a0] sm:$0xff]
        %v1371 = vld [vmem:[#allocation9 + $0x3a8] sm:$0xff]
        %v1372 = vld [vmem:[#allocation9 + $0x3b0] sm:$0xff]
        %v1373 = vld [vmem:[#allocation9 + $0x3b8] sm:$0xff]
        %v1374 = vld [vmem:[#allocation9 + $0x3c0] sm:$0xff]
        %v1375 = vld [vmem:[#allocation9 + $0x3c8] sm:$0xff]
        %v1376 = vld [vmem:[#allocation9 + $0x3d0] sm:$0xff]
        %v1377 = vld [vmem:[#allocation9 + $0x3d8] sm:$0xff]
        %v1378 = vld [vmem:[#allocation9 + $0x3e0] sm:$0xff]
        %v1379 = vld [vmem:[#allocation9 + $0x3e8] sm:$0xff]
        %v1380 = vld [vmem:[#allocation9 + $0x3f0] sm:$0xff]
        %v1381 = vld [vmem:[#allocation9 + $0x3f8] sm:$0xff]
        %v1382 = vmul.f32 %v1350, %v1366
        %v1383 = vmul.f32 %v1358, %v1367
        %v1384 = vmul.f32 %v1351, %v1368
        %v1385 = vmul.f32 %v1359, %v1369
        %v1386 = vmul.f32 %v1352, %v1370
        %v1387 = vmul.f32 %v1360, %v1371
        %v1388 = vmul.f32 %v1353, %v1372
        %v1389 = vmul.f32 %v1361, %v1373
        %v1390 = vmul.f32 %v1354, %v1374
        %v1391 = vmul.f32 %v1362, %v1375
        %v1392 = vmul.f32 %v1355, %v1376
        %v1393 = vmul.f32 %v1363, %v1377
        %v1394 = vmul.f32 %v1356, %v1378
        %v1395 = vmul.f32 %v1364, %v1379
        %v1396 = vmul.f32 %v1357, %v1380
        %v1397 = vmul.f32 %v1365, %v1381
        %v1398 = vpack.c.bf16 %v1384, %v1382
        %v1399 = vpack.c.bf16 %v1385, %v1383
        %v1400 = vpack.c.bf16 %v1388, %v1386
        %v1401 = vpack.c.bf16 %v1389, %v1387
        %v1402 = vpack.c.bf16 %v1392, %v1390
        %v1403 = vpack.c.bf16 %v1393, %v1391
        %v1404 = vpack.c.bf16 %v1396, %v1394
        %v1405 = vpack.c.bf16 %v1397, %v1395
        %v1414 = vunpack.c.l.b16 %v1398
        %v1415 = vunpack.c.l.b16 %v1399
        %v1416 = vunpack.c.h.b16 %v1398
        %v1417 = vunpack.c.h.b16 %v1399
        %v1418 = vunpack.c.l.b16 %v1400
        %v1419 = vunpack.c.l.b16 %v1401
        %v1420 = vunpack.c.h.b16 %v1400
        %v1421 = vunpack.c.h.b16 %v1401
        %v1422 = vunpack.c.l.b16 %v1402
        %v1423 = vunpack.c.l.b16 %v1403
        %v1424 = vunpack.c.h.b16 %v1402
        %v1425 = vunpack.c.h.b16 %v1403
        %v1426 = vunpack.c.l.b16 %v1404
        %v1427 = vunpack.c.l.b16 %v1405
        %v1428 = vunpack.c.h.b16 %v1404
        %v1429 = vunpack.c.h.b16 %v1405
        %v1430 = vpack.c.b16 %v1415, %v1414
        %v1431 = vpack.c.b16 %v1417, %v1416
        %v1432 = vpack.c.b16 %v1419, %v1418
        %v1433 = vpack.c.b16 %v1421, %v1420
        %v1434 = vpack.c.b16 %v1423, %v1422
        %v1435 = vpack.c.b16 %v1425, %v1424
        %v1436 = vpack.c.b16 %v1427, %v1426
        %v1437 = vpack.c.b16 %v1429, %v1428
        %1446 = vst [vmem:[#allocation2 + $0x380] sm:$0xff] %v1430
        %1447 = vst [vmem:[#allocation2 + $0x390] sm:$0xff] %v1431
        %1448 = vst [vmem:[#allocation2 + $0x3a0] sm:$0xff] %v1432
        %1449 = vst [vmem:[#allocation2 + $0x3b0] sm:$0xff] %v1433
        %1450 = vst [vmem:[#allocation2 + $0x3c0] sm:$0xff] %v1434
        %1451 = vst [vmem:[#allocation2 + $0x3d0] sm:$0xff] %v1435
        %1452 = vst [vmem:[#allocation2 + $0x3e0] sm:$0xff] %v1436
        %1453 = vst [vmem:[#allocation2 + $0x3f0] sm:$0xff] %v1437
        %1454 = vrot.lane.b32.xlu0 %v389, 111
        %v1455 = vpop.permute.xlu0 %1454
        %1456 = vrot.lane.b32.xlu0 %v391, 111
        %v1457 = vpop.permute.xlu0 %1456
        %1458 = vrot.lane.b32.xlu0 %v393, 111
        %v1459 = vpop.permute.xlu0 %1458
        %1460 = vrot.lane.b32.xlu0 %v395, 111
        %v1461 = vpop.permute.xlu0 %1460
        %1462 = vrot.lane.b32.xlu0 %v397, 111
        %v1463 = vpop.permute.xlu0 %1462
        %1464 = vrot.lane.b32.xlu0 %v399, 111
        %v1465 = vpop.permute.xlu0 %1464
        %1466 = vrot.lane.b32.xlu0 %v401, 111
        %v1467 = vpop.permute.xlu0 %1466
        %1468 = vrot.lane.b32.xlu0 %v403, 111
        %v1469 = vpop.permute.xlu0 %1468
        %1470 = vrot.lane.b32.xlu0 %v390, 111
        %v1471 = vpop.permute.xlu0 %1470
        %1472 = vrot.lane.b32.xlu0 %v392, 111
        %v1473 = vpop.permute.xlu0 %1472
        %1474 = vrot.lane.b32.xlu0 %v394, 111
        %v1475 = vpop.permute.xlu0 %1474
        %1476 = vrot.lane.b32.xlu0 %v396, 111
        %v1477 = vpop.permute.xlu0 %1476
        %1478 = vrot.lane.b32.xlu0 %v398, 111
        %v1479 = vpop.permute.xlu0 %1478
        %1480 = vrot.lane.b32.xlu0 %v400, 111
        %v1481 = vpop.permute.xlu0 %1480
        %1482 = vrot.lane.b32.xlu0 %v402, 111
        %v1483 = vpop.permute.xlu0 %1482
        %1484 = vrot.lane.b32.xlu0 %v404, 111
        %v1485 = vpop.permute.xlu0 %1484
        %vm1486 = vcmp.lt.s32.totalorder %v438, 111
        %v1487 = vsel %vm1486, %v1455, %v1471
        %v1488 = vsel %vm1486, %v1457, %v1473
        %v1489 = vsel %vm1486, %v1459, %v1475
        %v1490 = vsel %vm1486, %v1461, %v1477
        %v1491 = vsel %vm1486, %v1463, %v1479
        %v1492 = vsel %vm1486, %v1465, %v1481
        %v1493 = vsel %vm1486, %v1467, %v1483
        %v1494 = vsel %vm1486, %v1469, %v1485
        %v1495 = vsel %vm1486, %v1471, %v1455
        %v1496 = vsel %vm1486, %v1473, %v1457
        %v1497 = vsel %vm1486, %v1475, %v1459
        %v1498 = vsel %vm1486, %v1477, %v1461
        %v1499 = vsel %vm1486, %v1479, %v1463
        %v1500 = vsel %vm1486, %v1481, %v1465
        %v1501 = vsel %vm1486, %v1483, %v1467
        %v1502 = vsel %vm1486, %v1485, %v1469
        %v1503 = vld [vmem:[#allocation9 + $0x400] sm:$0xff]
        %v1504 = vld [vmem:[#allocation9 + $0x408] sm:$0xff]
        %v1505 = vld [vmem:[#allocation9 + $0x410] sm:$0xff]
        %v1506 = vld [vmem:[#allocation9 + $0x418] sm:$0xff]
        %v1507 = vld [vmem:[#allocation9 + $0x420] sm:$0xff]
        %v1508 = vld [vmem:[#allocation9 + $0x428] sm:$0xff]
        %v1509 = vld [vmem:[#allocation9 + $0x430] sm:$0xff]
        %v1510 = vld [vmem:[#allocation9 + $0x438] sm:$0xff]
        %v1511 = vld [vmem:[#allocation9 + $0x440] sm:$0xff]
        %v1512 = vld [vmem:[#allocation9 + $0x448] sm:$0xff]
        %v1513 = vld [vmem:[#allocation9 + $0x450] sm:$0xff]
        %v1514 = vld [vmem:[#allocation9 + $0x458] sm:$0xff]
        %v1515 = vld [vmem:[#allocation9 + $0x460] sm:$0xff]
        %v1516 = vld [vmem:[#allocation9 + $0x468] sm:$0xff]
        %v1517 = vld [vmem:[#allocation9 + $0x470] sm:$0xff]
        %v1518 = vld [vmem:[#allocation9 + $0x478] sm:$0xff]
        %v1519 = vmul.f32 %v1487, %v1503
        %v1520 = vmul.f32 %v1495, %v1504
        %v1521 = vmul.f32 %v1488, %v1505
        %v1522 = vmul.f32 %v1496, %v1506
        %v1523 = vmul.f32 %v1489, %v1507
        %v1524 = vmul.f32 %v1497, %v1508
        %v1525 = vmul.f32 %v1490, %v1509
        %v1526 = vmul.f32 %v1498, %v1510
        %v1527 = vmul.f32 %v1491, %v1511
        %v1528 = vmul.f32 %v1499, %v1512
        %v1529 = vmul.f32 %v1492, %v1513
        %v1530 = vmul.f32 %v1500, %v1514
        %v1531 = vmul.f32 %v1493, %v1515
        %v1532 = vmul.f32 %v1501, %v1516
        %v1533 = vmul.f32 %v1494, %v1517
        %v1534 = vmul.f32 %v1502, %v1518
        %v1535 = vpack.c.bf16 %v1521, %v1519
        %v1536 = vpack.c.bf16 %v1522, %v1520
        %v1537 = vpack.c.bf16 %v1525, %v1523
        %v1538 = vpack.c.bf16 %v1526, %v1524
        %v1539 = vpack.c.bf16 %v1529, %v1527
        %v1540 = vpack.c.bf16 %v1530, %v1528
        %v1541 = vpack.c.bf16 %v1533, %v1531
        %v1542 = vpack.c.bf16 %v1534, %v1532
        %v1551 = vunpack.c.l.b16 %v1535
        %v1552 = vunpack.c.l.b16 %v1536
        %v1553 = vunpack.c.h.b16 %v1535
        %v1554 = vunpack.c.h.b16 %v1536
        %v1555 = vunpack.c.l.b16 %v1537
        %v1556 = vunpack.c.l.b16 %v1538
        %v1557 = vunpack.c.h.b16 %v1537
        %v1558 = vunpack.c.h.b16 %v1538
        %v1559 = vunpack.c.l.b16 %v1539
        %v1560 = vunpack.c.l.b16 %v1540
        %v1561 = vunpack.c.h.b16 %v1539
        %v1562 = vunpack.c.h.b16 %v1540
        %v1563 = vunpack.c.l.b16 %v1541
        %v1564 = vunpack.c.l.b16 %v1542
        %v1565 = vunpack.c.h.b16 %v1541
        %v1566 = vunpack.c.h.b16 %v1542
        %v1567 = vpack.c.b16 %v1552, %v1551
        %v1568 = vpack.c.b16 %v1554, %v1553
        %v1569 = vpack.c.b16 %v1556, %v1555
        %v1570 = vpack.c.b16 %v1558, %v1557
        %v1571 = vpack.c.b16 %v1560, %v1559
        %v1572 = vpack.c.b16 %v1562, %v1561
        %v1573 = vpack.c.b16 %v1564, %v1563
        %v1574 = vpack.c.b16 %v1566, %v1565
        %1583 = vst [vmem:[#allocation2 + $0x400] sm:$0xff] %v1567
        %1584 = vst [vmem:[#allocation2 + $0x410] sm:$0xff] %v1568
        %1585 = vst [vmem:[#allocation2 + $0x420] sm:$0xff] %v1569
        %1586 = vst [vmem:[#allocation2 + $0x430] sm:$0xff] %v1570
        %1587 = vst [vmem:[#allocation2 + $0x440] sm:$0xff] %v1571
        %1588 = vst [vmem:[#allocation2 + $0x450] sm:$0xff] %v1572
        %1589 = vst [vmem:[#allocation2 + $0x460] sm:$0xff] %v1573
        %1590 = vst [vmem:[#allocation2 + $0x470] sm:$0xff] %v1574
        %s1591 = scalar_lea.vmem %s313, 128 [#allocation4]
        %v1592 = vld [vmem:[%s1591] sm:$0xff]
        %v1593 = vld [vmem:[%s1591 + $0x8] sm:$0xff]
        %v1594 = vld [vmem:[%s1591 + $0x10] sm:$0xff]
        %v1595 = vld [vmem:[%s1591 + $0x18] sm:$0xff]
        %v1596 = vld [vmem:[%s1591 + $0x20] sm:$0xff]
        %v1597 = vld [vmem:[%s1591 + $0x28] sm:$0xff]
        %v1598 = vld [vmem:[%s1591 + $0x30] sm:$0xff]
        %v1599 = vld [vmem:[%s1591 + $0x38] sm:$0xff]
        %v1600 = vld [vmem:[%s1591 + $0x40] sm:$0xff]
        %v1601 = vld [vmem:[%s1591 + $0x48] sm:$0xff]
        %v1602 = vld [vmem:[%s1591 + $0x50] sm:$0xff]
        %v1603 = vld [vmem:[%s1591 + $0x58] sm:$0xff]
        %v1604 = vld [vmem:[%s1591 + $0x60] sm:$0xff]
        %v1605 = vld [vmem:[%s1591 + $0x68] sm:$0xff]
        %v1606 = vld [vmem:[%s1591 + $0x70] sm:$0xff]
        %v1607 = vld [vmem:[%s1591 + $0x78] sm:$0xff]
        %1608 = vrot.lane.b32.xlu0 %v1592, 17
        %v1609 = vpop.permute.xlu0 %1608
        %1610 = vrot.lane.b32.xlu0 %v1594, 17
        %v1611 = vpop.permute.xlu0 %1610
        %1612 = vrot.lane.b32.xlu0 %v1596, 17
        %v1613 = vpop.permute.xlu0 %1612
        %1614 = vrot.lane.b32.xlu0 %v1598, 17
        %v1615 = vpop.permute.xlu0 %1614
        %1616 = vrot.lane.b32.xlu0 %v1600, 17
        %v1617 = vpop.permute.xlu0 %1616
        %1618 = vrot.lane.b32.xlu0 %v1602, 17
        %v1619 = vpop.permute.xlu0 %1618
        %1620 = vrot.lane.b32.xlu0 %v1604, 17
        %v1621 = vpop.permute.xlu0 %1620
        %1622 = vrot.lane.b32.xlu0 %v1606, 17
        %v1623 = vpop.permute.xlu0 %1622
        %1624 = vrot.lane.b32.xlu0 %v1593, 17
        %v1625 = vpop.permute.xlu0 %1624
        %1626 = vrot.lane.b32.xlu0 %v1595, 17
        %v1627 = vpop.permute.xlu0 %1626
        %1628 = vrot.lane.b32.xlu0 %v1597, 17
        %v1629 = vpop.permute.xlu0 %1628
        %1630 = vrot.lane.b32.xlu0 %v1599, 17
        %v1631 = vpop.permute.xlu0 %1630
        %1632 = vrot.lane.b32.xlu0 %v1601, 17
        %v1633 = vpop.permute.xlu0 %1632
        %1634 = vrot.lane.b32.xlu0 %v1603, 17
        %v1635 = vpop.permute.xlu0 %1634
        %1636 = vrot.lane.b32.xlu0 %v1605, 17
        %v1637 = vpop.permute.xlu0 %1636
        %1638 = vrot.lane.b32.xlu0 %v1607, 17
        %v1639 = vpop.permute.xlu0 %1638
        %v1640 = vsel %vm439, %v1609, %v1625
        %v1641 = vsel %vm439, %v1611, %v1627
        %v1642 = vsel %vm439, %v1613, %v1629
        %v1643 = vsel %vm439, %v1615, %v1631
        %v1644 = vsel %vm439, %v1617, %v1633
        %v1645 = vsel %vm439, %v1619, %v1635
        %v1646 = vsel %vm439, %v1621, %v1637
        %v1647 = vsel %vm439, %v1623, %v1639
        %v1648 = vsel %vm439, %v1625, %v1609
        %v1649 = vsel %vm439, %v1627, %v1611
        %v1650 = vsel %vm439, %v1629, %v1613
        %v1651 = vsel %vm439, %v1631, %v1615
        %v1652 = vsel %vm439, %v1633, %v1617
        %v1653 = vsel %vm439, %v1635, %v1619
        %v1654 = vsel %vm439, %v1637, %v1621
        %v1655 = vsel %vm439, %v1639, %v1623
        %v1656 = vld [vmem:[#allocation9] sm:$0xff]
        %v1657 = vld [vmem:[#allocation9 + $0x8] sm:$0xff]
        %v1658 = vld [vmem:[#allocation9 + $0x10] sm:$0xff]
        %v1659 = vld [vmem:[#allocation9 + $0x18] sm:$0xff]
        %v1660 = vld [vmem:[#allocation9 + $0x20] sm:$0xff]
        %v1661 = vld [vmem:[#allocation9 + $0x28] sm:$0xff]
        %v1662 = vld [vmem:[#allocation9 + $0x30] sm:$0xff]
        %v1663 = vld [vmem:[#allocation9 + $0x38] sm:$0xff]
        %v1664 = vld [vmem:[#allocation9 + $0x40] sm:$0xff]
        %v1665 = vld [vmem:[#allocation9 + $0x48] sm:$0xff]
        %v1666 = vld [vmem:[#allocation9 + $0x50] sm:$0xff]
        %v1667 = vld [vmem:[#allocation9 + $0x58] sm:$0xff]
        %v1668 = vld [vmem:[#allocation9 + $0x60] sm:$0xff]
        %v1669 = vld [vmem:[#allocation9 + $0x68] sm:$0xff]
        %v1670 = vld [vmem:[#allocation9 + $0x70] sm:$0xff]
        %v1671 = vld [vmem:[#allocation9 + $0x78] sm:$0xff]
        %v1672 = vmul.f32 %v1648, %v1656
        %v1673 = vmul.f32 %v1640, %v1657
        %v1674 = vmul.f32 %v1649, %v1658
        %v1675 = vmul.f32 %v1641, %v1659
        %v1676 = vmul.f32 %v1650, %v1660
        %v1677 = vmul.f32 %v1642, %v1661
        %v1678 = vmul.f32 %v1651, %v1662
        %v1679 = vmul.f32 %v1643, %v1663
        %v1680 = vmul.f32 %v1652, %v1664
        %v1681 = vmul.f32 %v1644, %v1665
        %v1682 = vmul.f32 %v1653, %v1666
        %v1683 = vmul.f32 %v1645, %v1667
        %v1684 = vmul.f32 %v1654, %v1668
        %v1685 = vmul.f32 %v1646, %v1669
        %v1686 = vmul.f32 %v1655, %v1670
        %v1687 = vmul.f32 %v1647, %v1671
        %v1688 = vpack.c.bf16 %v1674, %v1672
        %v1689 = vpack.c.bf16 %v1675, %v1673
        %v1690 = vpack.c.bf16 %v1678, %v1676
        %v1691 = vpack.c.bf16 %v1679, %v1677
        %v1692 = vpack.c.bf16 %v1682, %v1680
        %v1693 = vpack.c.bf16 %v1683, %v1681
        %v1694 = vpack.c.bf16 %v1686, %v1684
        %v1695 = vpack.c.bf16 %v1687, %v1685
        %v1704 = vunpack.c.l.b16 %v1688
        %v1705 = vunpack.c.l.b16 %v1689
        %v1706 = vunpack.c.h.b16 %v1688
        %v1707 = vunpack.c.h.b16 %v1689
        %v1708 = vunpack.c.l.b16 %v1690
        %v1709 = vunpack.c.l.b16 %v1691
        %v1710 = vunpack.c.h.b16 %v1690
        %v1711 = vunpack.c.h.b16 %v1691
        %v1712 = vunpack.c.l.b16 %v1692
        %v1713 = vunpack.c.l.b16 %v1693
        %v1714 = vunpack.c.h.b16 %v1692
        %v1715 = vunpack.c.h.b16 %v1693
        %v1716 = vunpack.c.l.b16 %v1694
        %v1717 = vunpack.c.l.b16 %v1695
        %v1718 = vunpack.c.h.b16 %v1694
        %v1719 = vunpack.c.h.b16 %v1695
        %v1720 = vpack.c.b16 %v1705, %v1704
        %v1721 = vpack.c.b16 %v1707, %v1706
        %v1722 = vpack.c.b16 %v1709, %v1708
        %v1723 = vpack.c.b16 %v1711, %v1710
        %v1724 = vpack.c.b16 %v1713, %v1712
        %v1725 = vpack.c.b16 %v1715, %v1714
        %v1726 = vpack.c.b16 %v1717, %v1716
        %v1727 = vpack.c.b16 %v1719, %v1718
        %1736 = vst [vmem:[#allocation2 + $0x8] sm:$0xff] %v1720
        %1737 = vst [vmem:[#allocation2 + $0x18] sm:$0xff] %v1721
        %1738 = vst [vmem:[#allocation2 + $0x28] sm:$0xff] %v1722
        %1739 = vst [vmem:[#allocation2 + $0x38] sm:$0xff] %v1723
        %1740 = vst [vmem:[#allocation2 + $0x48] sm:$0xff] %v1724
        %1741 = vst [vmem:[#allocation2 + $0x58] sm:$0xff] %v1725
        %1742 = vst [vmem:[#allocation2 + $0x68] sm:$0xff] %v1726
        %1743 = vst [vmem:[#allocation2 + $0x78] sm:$0xff] %v1727
        %1744 = vrot.lane.b32.xlu0 %v1592, 16
        %v1745 = vpop.permute.xlu0 %1744
        %1746 = vrot.lane.b32.xlu0 %v1594, 16
        %v1747 = vpop.permute.xlu0 %1746
        %1748 = vrot.lane.b32.xlu0 %v1596, 16
        %v1749 = vpop.permute.xlu0 %1748
        %1750 = vrot.lane.b32.xlu0 %v1598, 16
        %v1751 = vpop.permute.xlu0 %1750
        %1752 = vrot.lane.b32.xlu0 %v1600, 16
        %v1753 = vpop.permute.xlu0 %1752
        %1754 = vrot.lane.b32.xlu0 %v1602, 16
        %v1755 = vpop.permute.xlu0 %1754
        %1756 = vrot.lane.b32.xlu0 %v1604, 16
        %v1757 = vpop.permute.xlu0 %1756
        %1758 = vrot.lane.b32.xlu0 %v1606, 16
        %v1759 = vpop.permute.xlu0 %1758
        %1760 = vrot.lane.b32.xlu0 %v1593, 16
        %v1761 = vpop.permute.xlu0 %1760
        %1762 = vrot.lane.b32.xlu0 %v1595, 16
        %v1763 = vpop.permute.xlu0 %1762
        %1764 = vrot.lane.b32.xlu0 %v1597, 16
        %v1765 = vpop.permute.xlu0 %1764
        %1766 = vrot.lane.b32.xlu0 %v1599, 16
        %v1767 = vpop.permute.xlu0 %1766
        %1768 = vrot.lane.b32.xlu0 %v1601, 16
        %v1769 = vpop.permute.xlu0 %1768
        %1770 = vrot.lane.b32.xlu0 %v1603, 16
        %v1771 = vpop.permute.xlu0 %1770
        %1772 = vrot.lane.b32.xlu0 %v1605, 16
        %v1773 = vpop.permute.xlu0 %1772
        %1774 = vrot.lane.b32.xlu0 %v1607, 16
        %v1775 = vpop.permute.xlu0 %1774
        %v1776 = vsel %vm576, %v1745, %v1761
        %v1777 = vsel %vm576, %v1747, %v1763
        %v1778 = vsel %vm576, %v1749, %v1765
        %v1779 = vsel %vm576, %v1751, %v1767
        %v1780 = vsel %vm576, %v1753, %v1769
        %v1781 = vsel %vm576, %v1755, %v1771
        %v1782 = vsel %vm576, %v1757, %v1773
        %v1783 = vsel %vm576, %v1759, %v1775
        %v1784 = vsel %vm576, %v1761, %v1745
        %v1785 = vsel %vm576, %v1763, %v1747
        %v1786 = vsel %vm576, %v1765, %v1749
        %v1787 = vsel %vm576, %v1767, %v1751
        %v1788 = vsel %vm576, %v1769, %v1753
        %v1789 = vsel %vm576, %v1771, %v1755
        %v1790 = vsel %vm576, %v1773, %v1757
        %v1791 = vsel %vm576, %v1775, %v1759
        %v1792 = vld [vmem:[#allocation9 + $0x80] sm:$0xff]
        %v1793 = vld [vmem:[#allocation9 + $0x88] sm:$0xff]
        %v1794 = vld [vmem:[#allocation9 + $0x90] sm:$0xff]
        %v1795 = vld [vmem:[#allocation9 + $0x98] sm:$0xff]
        %v1796 = vld [vmem:[#allocation9 + $0xa0] sm:$0xff]
        %v1797 = vld [vmem:[#allocation9 + $0xa8] sm:$0xff]
        %v1798 = vld [vmem:[#allocation9 + $0xb0] sm:$0xff]
        %v1799 = vld [vmem:[#allocation9 + $0xb8] sm:$0xff]
        %v1800 = vld [vmem:[#allocation9 + $0xc0] sm:$0xff]
        %v1801 = vld [vmem:[#allocation9 + $0xc8] sm:$0xff]
        %v1802 = vld [vmem:[#allocation9 + $0xd0] sm:$0xff]
        %v1803 = vld [vmem:[#allocation9 + $0xd8] sm:$0xff]
        %v1804 = vld [vmem:[#allocation9 + $0xe0] sm:$0xff]
        %v1805 = vld [vmem:[#allocation9 + $0xe8] sm:$0xff]
        %v1806 = vld [vmem:[#allocation9 + $0xf0] sm:$0xff]
        %v1807 = vld [vmem:[#allocation9 + $0xf8] sm:$0xff]
        %v1808 = vmul.f32 %v1784, %v1792
        %v1809 = vmul.f32 %v1776, %v1793
        %v1810 = vmul.f32 %v1785, %v1794
        %v1811 = vmul.f32 %v1777, %v1795
        %v1812 = vmul.f32 %v1786, %v1796
        %v1813 = vmul.f32 %v1778, %v1797
        %v1814 = vmul.f32 %v1787, %v1798
        %v1815 = vmul.f32 %v1779, %v1799
        %v1816 = vmul.f32 %v1788, %v1800
        %v1817 = vmul.f32 %v1780, %v1801
        %v1818 = vmul.f32 %v1789, %v1802
        %v1819 = vmul.f32 %v1781, %v1803
        %v1820 = vmul.f32 %v1790, %v1804
        %v1821 = vmul.f32 %v1782, %v1805
        %v1822 = vmul.f32 %v1791, %v1806
        %v1823 = vmul.f32 %v1783, %v1807
        %v1824 = vpack.c.bf16 %v1810, %v1808
        %v1825 = vpack.c.bf16 %v1811, %v1809
        %v1826 = vpack.c.bf16 %v1814, %v1812
        %v1827 = vpack.c.bf16 %v1815, %v1813
        %v1828 = vpack.c.bf16 %v1818, %v1816
        %v1829 = vpack.c.bf16 %v1819, %v1817
        %v1830 = vpack.c.bf16 %v1822, %v1820
        %v1831 = vpack.c.bf16 %v1823, %v1821
        %v1840 = vunpack.c.l.b16 %v1824
        %v1841 = vunpack.c.l.b16 %v1825
        %v1842 = vunpack.c.h.b16 %v1824
        %v1843 = vunpack.c.h.b16 %v1825
        %v1844 = vunpack.c.l.b16 %v1826
        %v1845 = vunpack.c.l.b16 %v1827
        %v1846 = vunpack.c.h.b16 %v1826
        %v1847 = vunpack.c.h.b16 %v1827
        %v1848 = vunpack.c.l.b16 %v1828
        %v1849 = vunpack.c.l.b16 %v1829
        %v1850 = vunpack.c.h.b16 %v1828
        %v1851 = vunpack.c.h.b16 %v1829
        %v1852 = vunpack.c.l.b16 %v1830
        %v1853 = vunpack.c.l.b16 %v1831
        %v1854 = vunpack.c.h.b16 %v1830
        %v1855 = vunpack.c.h.b16 %v1831
        %v1856 = vpack.c.b16 %v1841, %v1840
        %v1857 = vpack.c.b16 %v1843, %v1842
        %v1858 = vpack.c.b16 %v1845, %v1844
        %v1859 = vpack.c.b16 %v1847, %v1846
        %v1860 = vpack.c.b16 %v1849, %v1848
        %v1861 = vpack.c.b16 %v1851, %v1850
        %v1862 = vpack.c.b16 %v1853, %v1852
        %v1863 = vpack.c.b16 %v1855, %v1854
        %1872 = vst [vmem:[#allocation2 + $0x88] sm:$0xff] %v1856
        %1873 = vst [vmem:[#allocation2 + $0x98] sm:$0xff] %v1857
        %1874 = vst [vmem:[#allocation2 + $0xa8] sm:$0xff] %v1858
        %1875 = vst [vmem:[#allocation2 + $0xb8] sm:$0xff] %v1859
        %1876 = vst [vmem:[#allocation2 + $0xc8] sm:$0xff] %v1860
        %1877 = vst [vmem:[#allocation2 + $0xd8] sm:$0xff] %v1861
        %1878 = vst [vmem:[#allocation2 + $0xe8] sm:$0xff] %v1862
        %1879 = vst [vmem:[#allocation2 + $0xf8] sm:$0xff] %v1863
        %1880 = vrot.lane.b32.xlu0 %v1592, 15
        %v1881 = vpop.permute.xlu0 %1880
        %1882 = vrot.lane.b32.xlu0 %v1594, 15
        %v1883 = vpop.permute.xlu0 %1882
        %1884 = vrot.lane.b32.xlu0 %v1596, 15
        %v1885 = vpop.permute.xlu0 %1884
        %1886 = vrot.lane.b32.xlu0 %v1598, 15
        %v1887 = vpop.permute.xlu0 %1886
        %1888 = vrot.lane.b32.xlu0 %v1600, 15
        %v1889 = vpop.permute.xlu0 %1888
        %1890 = vrot.lane.b32.xlu0 %v1602, 15
        %v1891 = vpop.permute.xlu0 %1890
        %1892 = vrot.lane.b32.xlu0 %v1604, 15
        %v1893 = vpop.permute.xlu0 %1892
        %1894 = vrot.lane.b32.xlu0 %v1606, 15
        %v1895 = vpop.permute.xlu0 %1894
        %1896 = vrot.lane.b32.xlu0 %v1593, 15
        %v1897 = vpop.permute.xlu0 %1896
        %1898 = vrot.lane.b32.xlu0 %v1595, 15
        %v1899 = vpop.permute.xlu0 %1898
        %1900 = vrot.lane.b32.xlu0 %v1597, 15
        %v1901 = vpop.permute.xlu0 %1900
        %1902 = vrot.lane.b32.xlu0 %v1599, 15
        %v1903 = vpop.permute.xlu0 %1902
        %1904 = vrot.lane.b32.xlu0 %v1601, 15
        %v1905 = vpop.permute.xlu0 %1904
        %1906 = vrot.lane.b32.xlu0 %v1603, 15
        %v1907 = vpop.permute.xlu0 %1906
        %1908 = vrot.lane.b32.xlu0 %v1605, 15
        %v1909 = vpop.permute.xlu0 %1908
        %1910 = vrot.lane.b32.xlu0 %v1607, 15
        %v1911 = vpop.permute.xlu0 %1910
        %v1912 = vsel %vm713, %v1881, %v1897
        %v1913 = vsel %vm713, %v1883, %v1899
        %v1914 = vsel %vm713, %v1885, %v1901
        %v1915 = vsel %vm713, %v1887, %v1903
        %v1916 = vsel %vm713, %v1889, %v1905
        %v1917 = vsel %vm713, %v1891, %v1907
        %v1918 = vsel %vm713, %v1893, %v1909
        %v1919 = vsel %vm713, %v1895, %v1911
        %v1920 = vsel %vm713, %v1897, %v1881
        %v1921 = vsel %vm713, %v1899, %v1883
        %v1922 = vsel %vm713, %v1901, %v1885
        %v1923 = vsel %vm713, %v1903, %v1887
        %v1924 = vsel %vm713, %v1905, %v1889
        %v1925 = vsel %vm713, %v1907, %v1891
        %v1926 = vsel %vm713, %v1909, %v1893
        %v1927 = vsel %vm713, %v1911, %v1895
        %v1928 = vld [vmem:[#allocation9 + $0x100] sm:$0xff]
        %v1929 = vld [vmem:[#allocation9 + $0x108] sm:$0xff]
        %v1930 = vld [vmem:[#allocation9 + $0x110] sm:$0xff]
        %v1931 = vld [vmem:[#allocation9 + $0x118] sm:$0xff]
        %v1932 = vld [vmem:[#allocation9 + $0x120] sm:$0xff]
        %v1933 = vld [vmem:[#allocation9 + $0x128] sm:$0xff]
        %v1934 = vld [vmem:[#allocation9 + $0x130] sm:$0xff]
        %v1935 = vld [vmem:[#allocation9 + $0x138] sm:$0xff]
        %v1936 = vld [vmem:[#allocation9 + $0x140] sm:$0xff]
        %v1937 = vld [vmem:[#allocation9 + $0x148] sm:$0xff]
        %v1938 = vld [vmem:[#allocation9 + $0x150] sm:$0xff]
        %v1939 = vld [vmem:[#allocation9 + $0x158] sm:$0xff]
        %v1940 = vld [vmem:[#allocation9 + $0x160] sm:$0xff]
        %v1941 = vld [vmem:[#allocation9 + $0x168] sm:$0xff]
        %v1942 = vld [vmem:[#allocation9 + $0x170] sm:$0xff]
        %v1943 = vld [vmem:[#allocation9 + $0x178] sm:$0xff]
        %v1944 = vmul.f32 %v1920, %v1928
        %v1945 = vmul.f32 %v1912, %v1929
        %v1946 = vmul.f32 %v1921, %v1930
        %v1947 = vmul.f32 %v1913, %v1931
        %v1948 = vmul.f32 %v1922, %v1932
        %v1949 = vmul.f32 %v1914, %v1933
        %v1950 = vmul.f32 %v1923, %v1934
        %v1951 = vmul.f32 %v1915, %v1935
        %v1952 = vmul.f32 %v1924, %v1936
        %v1953 = vmul.f32 %v1916, %v1937
        %v1954 = vmul.f32 %v1925, %v1938
        %v1955 = vmul.f32 %v1917, %v1939
        %v1956 = vmul.f32 %v1926, %v1940
        %v1957 = vmul.f32 %v1918, %v1941
        %v1958 = vmul.f32 %v1927, %v1942
        %v1959 = vmul.f32 %v1919, %v1943
        %v1960 = vpack.c.bf16 %v1946, %v1944
        %v1961 = vpack.c.bf16 %v1947, %v1945
        %v1962 = vpack.c.bf16 %v1950, %v1948
        %v1963 = vpack.c.bf16 %v1951, %v1949
        %v1964 = vpack.c.bf16 %v1954, %v1952
        %v1965 = vpack.c.bf16 %v1955, %v1953
        %v1966 = vpack.c.bf16 %v1958, %v1956
        %v1967 = vpack.c.bf16 %v1959, %v1957
        %v1976 = vunpack.c.l.b16 %v1960
        %v1977 = vunpack.c.l.b16 %v1961
        %v1978 = vunpack.c.h.b16 %v1960
        %v1979 = vunpack.c.h.b16 %v1961
        %v1980 = vunpack.c.l.b16 %v1962
        %v1981 = vunpack.c.l.b16 %v1963
        %v1982 = vunpack.c.h.b16 %v1962
        %v1983 = vunpack.c.h.b16 %v1963
        %v1984 = vunpack.c.l.b16 %v1964
        %v1985 = vunpack.c.l.b16 %v1965
        %v1986 = vunpack.c.h.b16 %v1964
        %v1987 = vunpack.c.h.b16 %v1965
        %v1988 = vunpack.c.l.b16 %v1966
        %v1989 = vunpack.c.l.b16 %v1967
        %v1990 = vunpack.c.h.b16 %v1966
        %v1991 = vunpack.c.h.b16 %v1967
        %v1992 = vpack.c.b16 %v1977, %v1976
        %v1993 = vpack.c.b16 %v1979, %v1978
        %v1994 = vpack.c.b16 %v1981, %v1980
        %v1995 = vpack.c.b16 %v1983, %v1982
        %v1996 = vpack.c.b16 %v1985, %v1984
        %v1997 = vpack.c.b16 %v1987, %v1986
        %v1998 = vpack.c.b16 %v1989, %v1988
        %v1999 = vpack.c.b16 %v1991, %v1990
        %2008 = vst [vmem:[#allocation2 + $0x108] sm:$0xff] %v1992
        %2009 = vst [vmem:[#allocation2 + $0x118] sm:$0xff] %v1993
        %2010 = vst [vmem:[#allocation2 + $0x128] sm:$0xff] %v1994
        %2011 = vst [vmem:[#allocation2 + $0x138] sm:$0xff] %v1995
        %2012 = vst [vmem:[#allocation2 + $0x148] sm:$0xff] %v1996
        %2013 = vst [vmem:[#allocation2 + $0x158] sm:$0xff] %v1997
        %2014 = vst [vmem:[#allocation2 + $0x168] sm:$0xff] %v1998
        %2015 = vst [vmem:[#allocation2 + $0x178] sm:$0xff] %v1999
        %2016 = vrot.lane.b32.xlu0 %v1592, 1
        %v2017 = vpop.permute.xlu0 %2016
        %2018 = vrot.lane.b32.xlu0 %v1594, 1
        %v2019 = vpop.permute.xlu0 %2018
        %2020 = vrot.lane.b32.xlu0 %v1596, 1
        %v2021 = vpop.permute.xlu0 %2020
        %2022 = vrot.lane.b32.xlu0 %v1598, 1
        %v2023 = vpop.permute.xlu0 %2022
        %2024 = vrot.lane.b32.xlu0 %v1600, 1
        %v2025 = vpop.permute.xlu0 %2024
        %2026 = vrot.lane.b32.xlu0 %v1602, 1
        %v2027 = vpop.permute.xlu0 %2026
        %2028 = vrot.lane.b32.xlu0 %v1604, 1
        %v2029 = vpop.permute.xlu0 %2028
        %2030 = vrot.lane.b32.xlu0 %v1606, 1
        %v2031 = vpop.permute.xlu0 %2030
        %2032 = vrot.lane.b32.xlu0 %v1593, 1
        %v2033 = vpop.permute.xlu0 %2032
        %2034 = vrot.lane.b32.xlu0 %v1595, 1
        %v2035 = vpop.permute.xlu0 %2034
        %2036 = vrot.lane.b32.xlu0 %v1597, 1
        %v2037 = vpop.permute.xlu0 %2036
        %2038 = vrot.lane.b32.xlu0 %v1599, 1
        %v2039 = vpop.permute.xlu0 %2038
        %2040 = vrot.lane.b32.xlu0 %v1601, 1
        %v2041 = vpop.permute.xlu0 %2040
        %2042 = vrot.lane.b32.xlu0 %v1603, 1
        %v2043 = vpop.permute.xlu0 %2042
        %2044 = vrot.lane.b32.xlu0 %v1605, 1
        %v2045 = vpop.permute.xlu0 %2044
        %2046 = vrot.lane.b32.xlu0 %v1607, 1
        %v2047 = vpop.permute.xlu0 %2046
        %v2048 = vsel %vm850, %v2017, %v2033
        %v2049 = vsel %vm850, %v2019, %v2035
        %v2050 = vsel %vm850, %v2021, %v2037
        %v2051 = vsel %vm850, %v2023, %v2039
        %v2052 = vsel %vm850, %v2025, %v2041
        %v2053 = vsel %vm850, %v2027, %v2043
        %v2054 = vsel %vm850, %v2029, %v2045
        %v2055 = vsel %vm850, %v2031, %v2047
        %v2056 = vsel %vm850, %v2033, %v2017
        %v2057 = vsel %vm850, %v2035, %v2019
        %v2058 = vsel %vm850, %v2037, %v2021
        %v2059 = vsel %vm850, %v2039, %v2023
        %v2060 = vsel %vm850, %v2041, %v2025
        %v2061 = vsel %vm850, %v2043, %v2027
        %v2062 = vsel %vm850, %v2045, %v2029
        %v2063 = vsel %vm850, %v2047, %v2031
        %v2064 = vld [vmem:[#allocation9 + $0x180] sm:$0xff]
        %v2065 = vld [vmem:[#allocation9 + $0x188] sm:$0xff]
        %v2066 = vld [vmem:[#allocation9 + $0x190] sm:$0xff]
        %v2067 = vld [vmem:[#allocation9 + $0x198] sm:$0xff]
        %v2068 = vld [vmem:[#allocation9 + $0x1a0] sm:$0xff]
        %v2069 = vld [vmem:[#allocation9 + $0x1a8] sm:$0xff]
        %v2070 = vld [vmem:[#allocation9 + $0x1b0] sm:$0xff]
        %v2071 = vld [vmem:[#allocation9 + $0x1b8] sm:$0xff]
        %v2072 = vld [vmem:[#allocation9 + $0x1c0] sm:$0xff]
        %v2073 = vld [vmem:[#allocation9 + $0x1c8] sm:$0xff]
        %v2074 = vld [vmem:[#allocation9 + $0x1d0] sm:$0xff]
        %v2075 = vld [vmem:[#allocation9 + $0x1d8] sm:$0xff]
        %v2076 = vld [vmem:[#allocation9 + $0x1e0] sm:$0xff]
        %v2077 = vld [vmem:[#allocation9 + $0x1e8] sm:$0xff]
        %v2078 = vld [vmem:[#allocation9 + $0x1f0] sm:$0xff]
        %v2079 = vld [vmem:[#allocation9 + $0x1f8] sm:$0xff]
        %v2080 = vmul.f32 %v2056, %v2064
        %v2081 = vmul.f32 %v2048, %v2065
        %v2082 = vmul.f32 %v2057, %v2066
        %v2083 = vmul.f32 %v2049, %v2067
        %v2084 = vmul.f32 %v2058, %v2068
        %v2085 = vmul.f32 %v2050, %v2069
        %v2086 = vmul.f32 %v2059, %v2070
        %v2087 = vmul.f32 %v2051, %v2071
        %v2088 = vmul.f32 %v2060, %v2072
        %v2089 = vmul.f32 %v2052, %v2073
        %v2090 = vmul.f32 %v2061, %v2074
        %v2091 = vmul.f32 %v2053, %v2075
        %v2092 = vmul.f32 %v2062, %v2076
        %v2093 = vmul.f32 %v2054, %v2077
        %v2094 = vmul.f32 %v2063, %v2078
        %v2095 = vmul.f32 %v2055, %v2079
        %v2096 = vpack.c.bf16 %v2082, %v2080
        %v2097 = vpack.c.bf16 %v2083, %v2081
        %v2098 = vpack.c.bf16 %v2086, %v2084
        %v2099 = vpack.c.bf16 %v2087, %v2085
        %v2100 = vpack.c.bf16 %v2090, %v2088
        %v2101 = vpack.c.bf16 %v2091, %v2089
        %v2102 = vpack.c.bf16 %v2094, %v2092
        %v2103 = vpack.c.bf16 %v2095, %v2093
        %v2112 = vunpack.c.l.b16 %v2096
        %v2113 = vunpack.c.l.b16 %v2097
        %v2114 = vunpack.c.h.b16 %v2096
        %v2115 = vunpack.c.h.b16 %v2097
        %v2116 = vunpack.c.l.b16 %v2098
        %v2117 = vunpack.c.l.b16 %v2099
        %v2118 = vunpack.c.h.b16 %v2098
        %v2119 = vunpack.c.h.b16 %v2099
        %v2120 = vunpack.c.l.b16 %v2100
        %v2121 = vunpack.c.l.b16 %v2101
        %v2122 = vunpack.c.h.b16 %v2100
        %v2123 = vunpack.c.h.b16 %v2101
        %v2124 = vunpack.c.l.b16 %v2102
        %v2125 = vunpack.c.l.b16 %v2103
        %v2126 = vunpack.c.h.b16 %v2102
        %v2127 = vunpack.c.h.b16 %v2103
        %v2128 = vpack.c.b16 %v2113, %v2112
        %v2129 = vpack.c.b16 %v2115, %v2114
        %v2130 = vpack.c.b16 %v2117, %v2116
        %v2131 = vpack.c.b16 %v2119, %v2118
        %v2132 = vpack.c.b16 %v2121, %v2120
        %v2133 = vpack.c.b16 %v2123, %v2122
        %v2134 = vpack.c.b16 %v2125, %v2124
        %v2135 = vpack.c.b16 %v2127, %v2126
        %2144 = vst [vmem:[#allocation2 + $0x188] sm:$0xff] %v2128
        %2145 = vst [vmem:[#allocation2 + $0x198] sm:$0xff] %v2129
        %2146 = vst [vmem:[#allocation2 + $0x1a8] sm:$0xff] %v2130
        %2147 = vst [vmem:[#allocation2 + $0x1b8] sm:$0xff] %v2131
        %2148 = vst [vmem:[#allocation2 + $0x1c8] sm:$0xff] %v2132
        %2149 = vst [vmem:[#allocation2 + $0x1d8] sm:$0xff] %v2133
        %2150 = vst [vmem:[#allocation2 + $0x1e8] sm:$0xff] %v2134
        %2151 = vst [vmem:[#allocation2 + $0x1f8] sm:$0xff] %v2135
        %v2152 = vld [vmem:[#allocation9 + $0x200] sm:$0xff]
        %v2153 = vld [vmem:[#allocation9 + $0x208] sm:$0xff]
        %v2154 = vld [vmem:[#allocation9 + $0x210] sm:$0xff]
        %v2155 = vld [vmem:[#allocation9 + $0x218] sm:$0xff]
        %v2156 = vld [vmem:[#allocation9 + $0x220] sm:$0xff]
        %v2157 = vld [vmem:[#allocation9 + $0x228] sm:$0xff]
        %v2158 = vld [vmem:[#allocation9 + $0x230] sm:$0xff]
        %v2159 = vld [vmem:[#allocation9 + $0x238] sm:$0xff]
        %v2160 = vld [vmem:[#allocation9 + $0x240] sm:$0xff]
        %v2161 = vld [vmem:[#allocation9 + $0x248] sm:$0xff]
        %v2162 = vld [vmem:[#allocation9 + $0x250] sm:$0xff]
        %v2163 = vld [vmem:[#allocation9 + $0x258] sm:$0xff]
        %v2164 = vld [vmem:[#allocation9 + $0x260] sm:$0xff]
        %v2165 = vld [vmem:[#allocation9 + $0x268] sm:$0xff]
        %v2166 = vld [vmem:[#allocation9 + $0x270] sm:$0xff]
        %v2167 = vld [vmem:[#allocation9 + $0x278] sm:$0xff]
        %v2168 = vmul.f32 %v1592, %v2152
        %v2169 = vmul.f32 %v1593, %v2153
        %v2170 = vmul.f32 %v1594, %v2154
        %v2171 = vmul.f32 %v1595, %v2155
        %v2172 = vmul.f32 %v1596, %v2156
        %v2173 = vmul.f32 %v1597, %v2157
        %v2174 = vmul.f32 %v1598, %v2158
        %v2175 = vmul.f32 %v1599, %v2159
        %v2176 = vmul.f32 %v1600, %v2160
        %v2177 = vmul.f32 %v1601, %v2161
        %v2178 = vmul.f32 %v1602, %v2162
        %v2179 = vmul.f32 %v1603, %v2163
        %v2180 = vmul.f32 %v1604, %v2164
        %v2181 = vmul.f32 %v1605, %v2165
        %v2182 = vmul.f32 %v1606, %v2166
        %v2183 = vmul.f32 %v1607, %v2167
        %v2184 = vpack.c.bf16 %v2170, %v2168
        %v2185 = vpack.c.bf16 %v2171, %v2169
        %v2186 = vpack.c.bf16 %v2174, %v2172
        %v2187 = vpack.c.bf16 %v2175, %v2173
        %v2188 = vpack.c.bf16 %v2178, %v2176
        %v2189 = vpack.c.bf16 %v2179, %v2177
        %v2190 = vpack.c.bf16 %v2182, %v2180
        %v2191 = vpack.c.bf16 %v2183, %v2181
        %v2200 = vunpack.c.l.b16 %v2184
        %v2201 = vunpack.c.l.b16 %v2185
        %v2202 = vunpack.c.h.b16 %v2184
        %v2203 = vunpack.c.h.b16 %v2185
        %v2204 = vunpack.c.l.b16 %v2186
        %v2205 = vunpack.c.l.b16 %v2187
        %v2206 = vunpack.c.h.b16 %v2186
        %v2207 = vunpack.c.h.b16 %v2187
        %v2208 = vunpack.c.l.b16 %v2188
        %v2209 = vunpack.c.l.b16 %v2189
        %v2210 = vunpack.c.h.b16 %v2188
        %v2211 = vunpack.c.h.b16 %v2189
        %v2212 = vunpack.c.l.b16 %v2190
        %v2213 = vunpack.c.l.b16 %v2191
        %v2214 = vunpack.c.h.b16 %v2190
        %v2215 = vunpack.c.h.b16 %v2191
        %v2216 = vpack.c.b16 %v2201, %v2200
        %v2217 = vpack.c.b16 %v2203, %v2202
        %v2218 = vpack.c.b16 %v2205, %v2204
        %v2219 = vpack.c.b16 %v2207, %v2206
        %v2220 = vpack.c.b16 %v2209, %v2208
        %v2221 = vpack.c.b16 %v2211, %v2210
        %v2222 = vpack.c.b16 %v2213, %v2212
        %v2223 = vpack.c.b16 %v2215, %v2214
        %2232 = vst [vmem:[#allocation2 + $0x208] sm:$0xff] %v2216
        %2233 = vst [vmem:[#allocation2 + $0x218] sm:$0xff] %v2217
        %2234 = vst [vmem:[#allocation2 + $0x228] sm:$0xff] %v2218
        %2235 = vst [vmem:[#allocation2 + $0x238] sm:$0xff] %v2219
        %2236 = vst [vmem:[#allocation2 + $0x248] sm:$0xff] %v2220
        %2237 = vst [vmem:[#allocation2 + $0x258] sm:$0xff] %v2221
        %2238 = vst [vmem:[#allocation2 + $0x268] sm:$0xff] %v2222
        %2239 = vst [vmem:[#allocation2 + $0x278] sm:$0xff] %v2223
        %2240 = vrot.lane.b32.xlu0 %v1592, 127
        %v2241 = vpop.permute.xlu0 %2240
        %2242 = vrot.lane.b32.xlu0 %v1594, 127
        %v2243 = vpop.permute.xlu0 %2242
        %2244 = vrot.lane.b32.xlu0 %v1596, 127
        %v2245 = vpop.permute.xlu0 %2244
        %2246 = vrot.lane.b32.xlu0 %v1598, 127
        %v2247 = vpop.permute.xlu0 %2246
        %2248 = vrot.lane.b32.xlu0 %v1600, 127
        %v2249 = vpop.permute.xlu0 %2248
        %2250 = vrot.lane.b32.xlu0 %v1602, 127
        %v2251 = vpop.permute.xlu0 %2250
        %2252 = vrot.lane.b32.xlu0 %v1604, 127
        %v2253 = vpop.permute.xlu0 %2252
        %2254 = vrot.lane.b32.xlu0 %v1606, 127
        %v2255 = vpop.permute.xlu0 %2254
        %2256 = vrot.lane.b32.xlu0 %v1593, 127
        %v2257 = vpop.permute.xlu0 %2256
        %2258 = vrot.lane.b32.xlu0 %v1595, 127
        %v2259 = vpop.permute.xlu0 %2258
        %2260 = vrot.lane.b32.xlu0 %v1597, 127
        %v2261 = vpop.permute.xlu0 %2260
        %2262 = vrot.lane.b32.xlu0 %v1599, 127
        %v2263 = vpop.permute.xlu0 %2262
        %2264 = vrot.lane.b32.xlu0 %v1601, 127
        %v2265 = vpop.permute.xlu0 %2264
        %2266 = vrot.lane.b32.xlu0 %v1603, 127
        %v2267 = vpop.permute.xlu0 %2266
        %2268 = vrot.lane.b32.xlu0 %v1605, 127
        %v2269 = vpop.permute.xlu0 %2268
        %2270 = vrot.lane.b32.xlu0 %v1607, 127
        %v2271 = vpop.permute.xlu0 %2270
        %v2272 = vsel %vm1075, %v2241, %v2257
        %v2273 = vsel %vm1075, %v2243, %v2259
        %v2274 = vsel %vm1075, %v2245, %v2261
        %v2275 = vsel %vm1075, %v2247, %v2263
        %v2276 = vsel %vm1075, %v2249, %v2265
        %v2277 = vsel %vm1075, %v2251, %v2267
        %v2278 = vsel %vm1075, %v2253, %v2269
        %v2279 = vsel %vm1075, %v2255, %v2271
        %v2280 = vsel %vm1075, %v2257, %v2241
        %v2281 = vsel %vm1075, %v2259, %v2243
        %v2282 = vsel %vm1075, %v2261, %v2245
        %v2283 = vsel %vm1075, %v2263, %v2247
        %v2284 = vsel %vm1075, %v2265, %v2249
        %v2285 = vsel %vm1075, %v2267, %v2251
        %v2286 = vsel %vm1075, %v2269, %v2253
        %v2287 = vsel %vm1075, %v2271, %v2255
        %v2288 = vld [vmem:[#allocation9 + $0x280] sm:$0xff]
        %v2289 = vld [vmem:[#allocation9 + $0x288] sm:$0xff]
        %v2290 = vld [vmem:[#allocation9 + $0x290] sm:$0xff]
        %v2291 = vld [vmem:[#allocation9 + $0x298] sm:$0xff]
        %v2292 = vld [vmem:[#allocation9 + $0x2a0] sm:$0xff]
        %v2293 = vld [vmem:[#allocation9 + $0x2a8] sm:$0xff]
        %v2294 = vld [vmem:[#allocation9 + $0x2b0] sm:$0xff]
        %v2295 = vld [vmem:[#allocation9 + $0x2b8] sm:$0xff]
        %v2296 = vld [vmem:[#allocation9 + $0x2c0] sm:$0xff]
        %v2297 = vld [vmem:[#allocation9 + $0x2c8] sm:$0xff]
        %v2298 = vld [vmem:[#allocation9 + $0x2d0] sm:$0xff]
        %v2299 = vld [vmem:[#allocation9 + $0x2d8] sm:$0xff]
        %v2300 = vld [vmem:[#allocation9 + $0x2e0] sm:$0xff]
        %v2301 = vld [vmem:[#allocation9 + $0x2e8] sm:$0xff]
        %v2302 = vld [vmem:[#allocation9 + $0x2f0] sm:$0xff]
        %v2303 = vld [vmem:[#allocation9 + $0x2f8] sm:$0xff]
        %v2304 = vmul.f32 %v2272, %v2288
        %v2305 = vmul.f32 %v2280, %v2289
        %v2306 = vmul.f32 %v2273, %v2290
        %v2307 = vmul.f32 %v2281, %v2291
        %v2308 = vmul.f32 %v2274, %v2292
        %v2309 = vmul.f32 %v2282, %v2293
        %v2310 = vmul.f32 %v2275, %v2294
        %v2311 = vmul.f32 %v2283, %v2295
        %v2312 = vmul.f32 %v2276, %v2296
        %v2313 = vmul.f32 %v2284, %v2297
        %v2314 = vmul.f32 %v2277, %v2298
        %v2315 = vmul.f32 %v2285, %v2299
        %v2316 = vmul.f32 %v2278, %v2300
        %v2317 = vmul.f32 %v2286, %v2301
        %v2318 = vmul.f32 %v2279, %v2302
        %v2319 = vmul.f32 %v2287, %v2303
        %v2320 = vpack.c.bf16 %v2306, %v2304
        %v2321 = vpack.c.bf16 %v2307, %v2305
        %v2322 = vpack.c.bf16 %v2310, %v2308
        %v2323 = vpack.c.bf16 %v2311, %v2309
        %v2324 = vpack.c.bf16 %v2314, %v2312
        %v2325 = vpack.c.bf16 %v2315, %v2313
        %v2326 = vpack.c.bf16 %v2318, %v2316
        %v2327 = vpack.c.bf16 %v2319, %v2317
        %v2336 = vunpack.c.l.b16 %v2320
        %v2337 = vunpack.c.l.b16 %v2321
        %v2338 = vunpack.c.h.b16 %v2320
        %v2339 = vunpack.c.h.b16 %v2321
        %v2340 = vunpack.c.l.b16 %v2322
        %v2341 = vunpack.c.l.b16 %v2323
        %v2342 = vunpack.c.h.b16 %v2322
        %v2343 = vunpack.c.h.b16 %v2323
        %v2344 = vunpack.c.l.b16 %v2324
        %v2345 = vunpack.c.l.b16 %v2325
        %v2346 = vunpack.c.h.b16 %v2324
        %v2347 = vunpack.c.h.b16 %v2325
        %v2348 = vunpack.c.l.b16 %v2326
        %v2349 = vunpack.c.l.b16 %v2327
        %v2350 = vunpack.c.h.b16 %v2326
        %v2351 = vunpack.c.h.b16 %v2327
        %v2352 = vpack.c.b16 %v2337, %v2336
        %v2353 = vpack.c.b16 %v2339, %v2338
        %v2354 = vpack.c.b16 %v2341, %v2340
        %v2355 = vpack.c.b16 %v2343, %v2342
        %v2356 = vpack.c.b16 %v2345, %v2344
        %v2357 = vpack.c.b16 %v2347, %v2346
        %v2358 = vpack.c.b16 %v2349, %v2348
        %v2359 = vpack.c.b16 %v2351, %v2350
        %2368 = vst [vmem:[#allocation2 + $0x288] sm:$0xff] %v2352
        %2369 = vst [vmem:[#allocation2 + $0x298] sm:$0xff] %v2353
        %2370 = vst [vmem:[#allocation2 + $0x2a8] sm:$0xff] %v2354
        %2371 = vst [vmem:[#allocation2 + $0x2b8] sm:$0xff] %v2355
        %2372 = vst [vmem:[#allocation2 + $0x2c8] sm:$0xff] %v2356
        %2373 = vst [vmem:[#allocation2 + $0x2d8] sm:$0xff] %v2357
        %2374 = vst [vmem:[#allocation2 + $0x2e8] sm:$0xff] %v2358
        %2375 = vst [vmem:[#allocation2 + $0x2f8] sm:$0xff] %v2359
        %2376 = vrot.lane.b32.xlu0 %v1592, 113
        %v2377 = vpop.permute.xlu0 %2376
        %2378 = vrot.lane.b32.xlu0 %v1594, 113
        %v2379 = vpop.permute.xlu0 %2378
        %2380 = vrot.lane.b32.xlu0 %v1596, 113
        %v2381 = vpop.permute.xlu0 %2380
        %2382 = vrot.lane.b32.xlu0 %v1598, 113
        %v2383 = vpop.permute.xlu0 %2382
        %2384 = vrot.lane.b32.xlu0 %v1600, 113
        %v2385 = vpop.permute.xlu0 %2384
        %2386 = vrot.lane.b32.xlu0 %v1602, 113
        %v2387 = vpop.permute.xlu0 %2386
        %2388 = vrot.lane.b32.xlu0 %v1604, 113
        %v2389 = vpop.permute.xlu0 %2388
        %2390 = vrot.lane.b32.xlu0 %v1606, 113
        %v2391 = vpop.permute.xlu0 %2390
        %2392 = vrot.lane.b32.xlu0 %v1593, 113
        %v2393 = vpop.permute.xlu0 %2392
        %2394 = vrot.lane.b32.xlu0 %v1595, 113
        %v2395 = vpop.permute.xlu0 %2394
        %2396 = vrot.lane.b32.xlu0 %v1597, 113
        %v2397 = vpop.permute.xlu0 %2396
        %2398 = vrot.lane.b32.xlu0 %v1599, 113
        %v2399 = vpop.permute.xlu0 %2398
        %2400 = vrot.lane.b32.xlu0 %v1601, 113
        %v2401 = vpop.permute.xlu0 %2400
        %2402 = vrot.lane.b32.xlu0 %v1603, 113
        %v2403 = vpop.permute.xlu0 %2402
        %2404 = vrot.lane.b32.xlu0 %v1605, 113
        %v2405 = vpop.permute.xlu0 %2404
        %2406 = vrot.lane.b32.xlu0 %v1607, 113
        %v2407 = vpop.permute.xlu0 %2406
        %v2408 = vsel %vm1212, %v2377, %v2393
        %v2409 = vsel %vm1212, %v2379, %v2395
        %v2410 = vsel %vm1212, %v2381, %v2397
        %v2411 = vsel %vm1212, %v2383, %v2399
        %v2412 = vsel %vm1212, %v2385, %v2401
        %v2413 = vsel %vm1212, %v2387, %v2403
        %v2414 = vsel %vm1212, %v2389, %v2405
        %v2415 = vsel %vm1212, %v2391, %v2407
        %v2416 = vsel %vm1212, %v2393, %v2377
        %v2417 = vsel %vm1212, %v2395, %v2379
        %v2418 = vsel %vm1212, %v2397, %v2381
        %v2419 = vsel %vm1212, %v2399, %v2383
        %v2420 = vsel %vm1212, %v2401, %v2385
        %v2421 = vsel %vm1212, %v2403, %v2387
        %v2422 = vsel %vm1212, %v2405, %v2389
        %v2423 = vsel %vm1212, %v2407, %v2391
        %v2424 = vld [vmem:[#allocation9 + $0x300] sm:$0xff]
        %v2425 = vld [vmem:[#allocation9 + $0x308] sm:$0xff]
        %v2426 = vld [vmem:[#allocation9 + $0x310] sm:$0xff]
        %v2427 = vld [vmem:[#allocation9 + $0x318] sm:$0xff]
        %v2428 = vld [vmem:[#allocation9 + $0x320] sm:$0xff]
        %v2429 = vld [vmem:[#allocation9 + $0x328] sm:$0xff]
        %v2430 = vld [vmem:[#allocation9 + $0x330] sm:$0xff]
        %v2431 = vld [vmem:[#allocation9 + $0x338] sm:$0xff]
        %v2432 = vld [vmem:[#allocation9 + $0x340] sm:$0xff]
        %v2433 = vld [vmem:[#allocation9 + $0x348] sm:$0xff]
        %v2434 = vld [vmem:[#allocation9 + $0x350] sm:$0xff]
        %v2435 = vld [vmem:[#allocation9 + $0x358] sm:$0xff]
        %v2436 = vld [vmem:[#allocation9 + $0x360] sm:$0xff]
        %v2437 = vld [vmem:[#allocation9 + $0x368] sm:$0xff]
        %v2438 = vld [vmem:[#allocation9 + $0x370] sm:$0xff]
        %v2439 = vld [vmem:[#allocation9 + $0x378] sm:$0xff]
        %v2440 = vmul.f32 %v2408, %v2424
        %v2441 = vmul.f32 %v2416, %v2425
        %v2442 = vmul.f32 %v2409, %v2426
        %v2443 = vmul.f32 %v2417, %v2427
        %v2444 = vmul.f32 %v2410, %v2428
        %v2445 = vmul.f32 %v2418, %v2429
        %v2446 = vmul.f32 %v2411, %v2430
        %v2447 = vmul.f32 %v2419, %v2431
        %v2448 = vmul.f32 %v2412, %v2432
        %v2449 = vmul.f32 %v2420, %v2433
        %v2450 = vmul.f32 %v2413, %v2434
        %v2451 = vmul.f32 %v2421, %v2435
        %v2452 = vmul.f32 %v2414, %v2436
        %v2453 = vmul.f32 %v2422, %v2437
        %v2454 = vmul.f32 %v2415, %v2438
        %v2455 = vmul.f32 %v2423, %v2439
        %v2456 = vpack.c.bf16 %v2442, %v2440
        %v2457 = vpack.c.bf16 %v2443, %v2441
        %v2458 = vpack.c.bf16 %v2446, %v2444
        %v2459 = vpack.c.bf16 %v2447, %v2445
        %v2460 = vpack.c.bf16 %v2450, %v2448
        %v2461 = vpack.c.bf16 %v2451, %v2449
        %v2462 = vpack.c.bf16 %v2454, %v2452
        %v2463 = vpack.c.bf16 %v2455, %v2453
        %v2472 = vunpack.c.l.b16 %v2456
        %v2473 = vunpack.c.l.b16 %v2457
        %v2474 = vunpack.c.h.b16 %v2456
        %v2475 = vunpack.c.h.b16 %v2457
        %v2476 = vunpack.c.l.b16 %v2458
        %v2477 = vunpack.c.l.b16 %v2459
        %v2478 = vunpack.c.h.b16 %v2458
        %v2479 = vunpack.c.h.b16 %v2459
        %v2480 = vunpack.c.l.b16 %v2460
        %v2481 = vunpack.c.l.b16 %v2461
        %v2482 = vunpack.c.h.b16 %v2460
        %v2483 = vunpack.c.h.b16 %v2461
        %v2484 = vunpack.c.l.b16 %v2462
        %v2485 = vunpack.c.l.b16 %v2463
        %v2486 = vunpack.c.h.b16 %v2462
        %v2487 = vunpack.c.h.b16 %v2463
        %v2488 = vpack.c.b16 %v2473, %v2472
        %v2489 = vpack.c.b16 %v2475, %v2474
        %v2490 = vpack.c.b16 %v2477, %v2476
        %v2491 = vpack.c.b16 %v2479, %v2478
        %v2492 = vpack.c.b16 %v2481, %v2480
        %v2493 = vpack.c.b16 %v2483, %v2482
        %v2494 = vpack.c.b16 %v2485, %v2484
        %v2495 = vpack.c.b16 %v2487, %v2486
        %2504 = vst [vmem:[#allocation2 + $0x308] sm:$0xff] %v2488
        %2505 = vst [vmem:[#allocation2 + $0x318] sm:$0xff] %v2489
        %2506 = vst [vmem:[#allocation2 + $0x328] sm:$0xff] %v2490
        %2507 = vst [vmem:[#allocation2 + $0x338] sm:$0xff] %v2491
        %2508 = vst [vmem:[#allocation2 + $0x348] sm:$0xff] %v2492
        %2509 = vst [vmem:[#allocation2 + $0x358] sm:$0xff] %v2493
        %2510 = vst [vmem:[#allocation2 + $0x368] sm:$0xff] %v2494
        %2511 = vst [vmem:[#allocation2 + $0x378] sm:$0xff] %v2495
        %2512 = vrot.lane.b32.xlu0 %v1592, 112
        %v2513 = vpop.permute.xlu0 %2512
        %2514 = vrot.lane.b32.xlu0 %v1594, 112
        %v2515 = vpop.permute.xlu0 %2514
        %2516 = vrot.lane.b32.xlu0 %v1596, 112
        %v2517 = vpop.permute.xlu0 %2516
        %2518 = vrot.lane.b32.xlu0 %v1598, 112
        %v2519 = vpop.permute.xlu0 %2518
        %2520 = vrot.lane.b32.xlu0 %v1600, 112
        %v2521 = vpop.permute.xlu0 %2520
        %2522 = vrot.lane.b32.xlu0 %v1602, 112
        %v2523 = vpop.permute.xlu0 %2522
        %2524 = vrot.lane.b32.xlu0 %v1604, 112
        %v2525 = vpop.permute.xlu0 %2524
        %2526 = vrot.lane.b32.xlu0 %v1606, 112
        %v2527 = vpop.permute.xlu0 %2526
        %2528 = vrot.lane.b32.xlu0 %v1593, 112
        %v2529 = vpop.permute.xlu0 %2528
        %2530 = vrot.lane.b32.xlu0 %v1595, 112
        %v2531 = vpop.permute.xlu0 %2530
        %2532 = vrot.lane.b32.xlu0 %v1597, 112
        %v2533 = vpop.permute.xlu0 %2532
        %2534 = vrot.lane.b32.xlu0 %v1599, 112
        %v2535 = vpop.permute.xlu0 %2534
        %2536 = vrot.lane.b32.xlu0 %v1601, 112
        %v2537 = vpop.permute.xlu0 %2536
        %2538 = vrot.lane.b32.xlu0 %v1603, 112
        %v2539 = vpop.permute.xlu0 %2538
        %2540 = vrot.lane.b32.xlu0 %v1605, 112
        %v2541 = vpop.permute.xlu0 %2540
        %2542 = vrot.lane.b32.xlu0 %v1607, 112
        %v2543 = vpop.permute.xlu0 %2542
        %v2544 = vsel %vm1349, %v2513, %v2529
        %v2545 = vsel %vm1349, %v2515, %v2531
        %v2546 = vsel %vm1349, %v2517, %v2533
        %v2547 = vsel %vm1349, %v2519, %v2535
        %v2548 = vsel %vm1349, %v2521, %v2537
        %v2549 = vsel %vm1349, %v2523, %v2539
        %v2550 = vsel %vm1349, %v2525, %v2541
        %v2551 = vsel %vm1349, %v2527, %v2543
        %v2552 = vsel %vm1349, %v2529, %v2513
        %v2553 = vsel %vm1349, %v2531, %v2515
        %v2554 = vsel %vm1349, %v2533, %v2517
        %v2555 = vsel %vm1349, %v2535, %v2519
        %v2556 = vsel %vm1349, %v2537, %v2521
        %v2557 = vsel %vm1349, %v2539, %v2523
        %v2558 = vsel %vm1349, %v2541, %v2525
        %v2559 = vsel %vm1349, %v2543, %v2527
        %v2560 = vld [vmem:[#allocation9 + $0x380] sm:$0xff]
        %v2561 = vld [vmem:[#allocation9 + $0x388] sm:$0xff]
        %v2562 = vld [vmem:[#allocation9 + $0x390] sm:$0xff]
        %v2563 = vld [vmem:[#allocation9 + $0x398] sm:$0xff]
        %v2564 = vld [vmem:[#allocation9 + $0x3a0] sm:$0xff]
        %v2565 = vld [vmem:[#allocation9 + $0x3a8] sm:$0xff]
        %v2566 = vld [vmem:[#allocation9 + $0x3b0] sm:$0xff]
        %v2567 = vld [vmem:[#allocation9 + $0x3b8] sm:$0xff]
        %v2568 = vld [vmem:[#allocation9 + $0x3c0] sm:$0xff]
        %v2569 = vld [vmem:[#allocation9 + $0x3c8] sm:$0xff]
        %v2570 = vld [vmem:[#allocation9 + $0x3d0] sm:$0xff]
        %v2571 = vld [vmem:[#allocation9 + $0x3d8] sm:$0xff]
        %v2572 = vld [vmem:[#allocation9 + $0x3e0] sm:$0xff]
        %v2573 = vld [vmem:[#allocation9 + $0x3e8] sm:$0xff]
        %v2574 = vld [vmem:[#allocation9 + $0x3f0] sm:$0xff]
        %v2575 = vld [vmem:[#allocation9 + $0x3f8] sm:$0xff]
        %v2576 = vmul.f32 %v2544, %v2560
        %v2577 = vmul.f32 %v2552, %v2561
        %v2578 = vmul.f32 %v2545, %v2562
        %v2579 = vmul.f32 %v2553, %v2563
        %v2580 = vmul.f32 %v2546, %v2564
        %v2581 = vmul.f32 %v2554, %v2565
        %v2582 = vmul.f32 %v2547, %v2566
        %v2583 = vmul.f32 %v2555, %v2567
        %v2584 = vmul.f32 %v2548, %v2568
        %v2585 = vmul.f32 %v2556, %v2569
        %v2586 = vmul.f32 %v2549, %v2570
        %v2587 = vmul.f32 %v2557, %v2571
        %v2588 = vmul.f32 %v2550, %v2572
        %v2589 = vmul.f32 %v2558, %v2573
        %v2590 = vmul.f32 %v2551, %v2574
        %v2591 = vmul.f32 %v2559, %v2575
        %v2592 = vpack.c.bf16 %v2578, %v2576
        %v2593 = vpack.c.bf16 %v2579, %v2577
        %v2594 = vpack.c.bf16 %v2582, %v2580
        %v2595 = vpack.c.bf16 %v2583, %v2581
        %v2596 = vpack.c.bf16 %v2586, %v2584
        %v2597 = vpack.c.bf16 %v2587, %v2585
        %v2598 = vpack.c.bf16 %v2590, %v2588
        %v2599 = vpack.c.bf16 %v2591, %v2589
        %v2608 = vunpack.c.l.b16 %v2592
        %v2609 = vunpack.c.l.b16 %v2593
        %v2610 = vunpack.c.h.b16 %v2592
        %v2611 = vunpack.c.h.b16 %v2593
        %v2612 = vunpack.c.l.b16 %v2594
        %v2613 = vunpack.c.l.b16 %v2595
        %v2614 = vunpack.c.h.b16 %v2594
        %v2615 = vunpack.c.h.b16 %v2595
        %v2616 = vunpack.c.l.b16 %v2596
        %v2617 = vunpack.c.l.b16 %v2597
        %v2618 = vunpack.c.h.b16 %v2596
        %v2619 = vunpack.c.h.b16 %v2597
        %v2620 = vunpack.c.l.b16 %v2598
        %v2621 = vunpack.c.l.b16 %v2599
        %v2622 = vunpack.c.h.b16 %v2598
        %v2623 = vunpack.c.h.b16 %v2599
        %v2624 = vpack.c.b16 %v2609, %v2608
        %v2625 = vpack.c.b16 %v2611, %v2610
        %v2626 = vpack.c.b16 %v2613, %v2612
        %v2627 = vpack.c.b16 %v2615, %v2614
        %v2628 = vpack.c.b16 %v2617, %v2616
        %v2629 = vpack.c.b16 %v2619, %v2618
        %v2630 = vpack.c.b16 %v2621, %v2620
        %v2631 = vpack.c.b16 %v2623, %v2622
        %2640 = vst [vmem:[#allocation2 + $0x388] sm:$0xff] %v2624
        %2641 = vst [vmem:[#allocation2 + $0x398] sm:$0xff] %v2625
        %2642 = vst [vmem:[#allocation2 + $0x3a8] sm:$0xff] %v2626
        %2643 = vst [vmem:[#allocation2 + $0x3b8] sm:$0xff] %v2627
        %2644 = vst [vmem:[#allocation2 + $0x3c8] sm:$0xff] %v2628
        %2645 = vst [vmem:[#allocation2 + $0x3d8] sm:$0xff] %v2629
        %2646 = vst [vmem:[#allocation2 + $0x3e8] sm:$0xff] %v2630
        %2647 = vst [vmem:[#allocation2 + $0x3f8] sm:$0xff] %v2631
        %2648 = vrot.lane.b32.xlu0 %v1592, 111
        %v2649 = vpop.permute.xlu0 %2648
        %2650 = vrot.lane.b32.xlu0 %v1594, 111
        %v2651 = vpop.permute.xlu0 %2650
        %2652 = vrot.lane.b32.xlu0 %v1596, 111
        %v2653 = vpop.permute.xlu0 %2652
        %2654 = vrot.lane.b32.xlu0 %v1598, 111
        %v2655 = vpop.permute.xlu0 %2654
        %2656 = vrot.lane.b32.xlu0 %v1600, 111
        %v2657 = vpop.permute.xlu0 %2656
        %2658 = vrot.lane.b32.xlu0 %v1602, 111
        %v2659 = vpop.permute.xlu0 %2658
        %2660 = vrot.lane.b32.xlu0 %v1604, 111
        %v2661 = vpop.permute.xlu0 %2660
        %2662 = vrot.lane.b32.xlu0 %v1606, 111
        %v2663 = vpop.permute.xlu0 %2662
        %2664 = vrot.lane.b32.xlu0 %v1593, 111
        %v2665 = vpop.permute.xlu0 %2664
        %2666 = vrot.lane.b32.xlu0 %v1595, 111
        %v2667 = vpop.permute.xlu0 %2666
        %2668 = vrot.lane.b32.xlu0 %v1597, 111
        %v2669 = vpop.permute.xlu0 %2668
        %2670 = vrot.lane.b32.xlu0 %v1599, 111
        %v2671 = vpop.permute.xlu0 %2670
        %2672 = vrot.lane.b32.xlu0 %v1601, 111
        %v2673 = vpop.permute.xlu0 %2672
        %2674 = vrot.lane.b32.xlu0 %v1603, 111
        %v2675 = vpop.permute.xlu0 %2674
        %2676 = vrot.lane.b32.xlu0 %v1605, 111
        %v2677 = vpop.permute.xlu0 %2676
        %2678 = vrot.lane.b32.xlu0 %v1607, 111
        %v2679 = vpop.permute.xlu0 %2678
        %v2680 = vsel %vm1486, %v2649, %v2665
        %v2681 = vsel %vm1486, %v2651, %v2667
        %v2682 = vsel %vm1486, %v2653, %v2669
        %v2683 = vsel %vm1486, %v2655, %v2671
        %v2684 = vsel %vm1486, %v2657, %v2673
        %v2685 = vsel %vm1486, %v2659, %v2675
        %v2686 = vsel %vm1486, %v2661, %v2677
        %v2687 = vsel %vm1486, %v2663, %v2679
        %v2688 = vsel %vm1486, %v2665, %v2649
        %v2689 = vsel %vm1486, %v2667, %v2651
        %v2690 = vsel %vm1486, %v2669, %v2653
        %v2691 = vsel %vm1486, %v2671, %v2655
        %v2692 = vsel %vm1486, %v2673, %v2657
        %v2693 = vsel %vm1486, %v2675, %v2659
        %v2694 = vsel %vm1486, %v2677, %v2661
        %v2695 = vsel %vm1486, %v2679, %v2663
        %v2696 = vld [vmem:[#allocation9 + $0x400] sm:$0xff]
        %v2697 = vld [vmem:[#allocation9 + $0x408] sm:$0xff]
        %v2698 = vld [vmem:[#allocation9 + $0x410] sm:$0xff]
        %v2699 = vld [vmem:[#allocation9 + $0x418] sm:$0xff]
        %v2700 = vld [vmem:[#allocation9 + $0x420] sm:$0xff]
        %v2701 = vld [vmem:[#allocation9 + $0x428] sm:$0xff]
        %v2702 = vld [vmem:[#allocation9 + $0x430] sm:$0xff]
        %v2703 = vld [vmem:[#allocation9 + $0x438] sm:$0xff]
        %v2704 = vld [vmem:[#allocation9 + $0x440] sm:$0xff]
        %v2705 = vld [vmem:[#allocation9 + $0x448] sm:$0xff]
        %v2706 = vld [vmem:[#allocation9 + $0x450] sm:$0xff]
        %v2707 = vld [vmem:[#allocation9 + $0x458] sm:$0xff]
        %v2708 = vld [vmem:[#allocation9 + $0x460] sm:$0xff]
        %v2709 = vld [vmem:[#allocation9 + $0x468] sm:$0xff]
        %v2710 = vld [vmem:[#allocation9 + $0x470] sm:$0xff]
        %v2711 = vld [vmem:[#allocation9 + $0x478] sm:$0xff]
        %v2712 = vmul.f32 %v2680, %v2696
        %v2713 = vmul.f32 %v2688, %v2697
        %v2714 = vmul.f32 %v2681, %v2698
        %v2715 = vmul.f32 %v2689, %v2699
        %v2716 = vmul.f32 %v2682, %v2700
        %v2717 = vmul.f32 %v2690, %v2701
        %v2718 = vmul.f32 %v2683, %v2702
        %v2719 = vmul.f32 %v2691, %v2703
        %v2720 = vmul.f32 %v2684, %v2704
        %v2721 = vmul.f32 %v2692, %v2705
        %v2722 = vmul.f32 %v2685, %v2706
        %v2723 = vmul.f32 %v2693, %v2707
        %v2724 = vmul.f32 %v2686, %v2708
        %v2725 = vmul.f32 %v2694, %v2709
        %v2726 = vmul.f32 %v2687, %v2710
        %v2727 = vmul.f32 %v2695, %v2711
        %v2728 = vpack.c.bf16 %v2714, %v2712
        %v2729 = vpack.c.bf16 %v2715, %v2713
        %v2730 = vpack.c.bf16 %v2718, %v2716
        %v2731 = vpack.c.bf16 %v2719, %v2717
        %v2732 = vpack.c.bf16 %v2722, %v2720
        %v2733 = vpack.c.bf16 %v2723, %v2721
        %v2734 = vpack.c.bf16 %v2726, %v2724
        %v2735 = vpack.c.bf16 %v2727, %v2725
        %v2744 = vunpack.c.l.b16 %v2728
        %v2745 = vunpack.c.l.b16 %v2729
        %v2746 = vunpack.c.h.b16 %v2728
        %v2747 = vunpack.c.h.b16 %v2729
        %v2748 = vunpack.c.l.b16 %v2730
        %v2749 = vunpack.c.l.b16 %v2731
        %v2750 = vunpack.c.h.b16 %v2730
        %v2751 = vunpack.c.h.b16 %v2731
        %v2752 = vunpack.c.l.b16 %v2732
        %v2753 = vunpack.c.l.b16 %v2733
        %v2754 = vunpack.c.h.b16 %v2732
        %v2755 = vunpack.c.h.b16 %v2733
        %v2756 = vunpack.c.l.b16 %v2734
        %v2757 = vunpack.c.l.b16 %v2735
        %v2758 = vunpack.c.h.b16 %v2734
        %v2759 = vunpack.c.h.b16 %v2735
        %v2760 = vpack.c.b16 %v2745, %v2744
        %v2761 = vpack.c.b16 %v2747, %v2746
        %v2762 = vpack.c.b16 %v2749, %v2748
        %v2763 = vpack.c.b16 %v2751, %v2750
        %v2764 = vpack.c.b16 %v2753, %v2752
        %v2765 = vpack.c.b16 %v2755, %v2754
        %v2766 = vpack.c.b16 %v2757, %v2756
        %v2767 = vpack.c.b16 %v2759, %v2758
        %2776 = vst [vmem:[#allocation2 + $0x408] sm:$0xff] %v2760
        %2777 = vst [vmem:[#allocation2 + $0x418] sm:$0xff] %v2761
        %2778 = vst [vmem:[#allocation2 + $0x428] sm:$0xff] %v2762
        %2779 = vst [vmem:[#allocation2 + $0x438] sm:$0xff] %v2763
        %2780 = vst [vmem:[#allocation2 + $0x448] sm:$0xff] %v2764
        %2781 = vst [vmem:[#allocation2 + $0x458] sm:$0xff] %v2765
        %2782 = vst [vmem:[#allocation2 + $0x468] sm:$0xff] %v2766
        %2783 = vst [vmem:[#allocation2 + $0x478] sm:$0xff] %v2767
        %v2784 = vld [vmem:[%s1] sm:$0xff]
        %v2785 = vld [vmem:[%s1 + $0x8] sm:$0xff]
        %v2786 = vld [vmem:[%s1 + $0x10] sm:$0xf]
        %v2787 = vld [vmem:[%s1 + $0x14] sm:$0xff]
        %v2788 = vld [vmem:[%s1 + $0x1c] sm:$0xff]
        %v2789 = vld [vmem:[%s1 + $0x24] sm:$0xf]
        %v2790 = vld [vmem:[%s1 + $0x28] sm:$0xff]
        %v2791 = vld [vmem:[%s1 + $0x30] sm:$0xff]
        %v2792 = vld [vmem:[%s1 + $0x38] sm:$0xf]
        %v2793 = vld [vmem:[%s1 + $0x3c] sm:$0xff]
        %v2794 = vld [vmem:[%s1 + $0x44] sm:$0xff]
        %v2795 = vld [vmem:[%s1 + $0x4c] sm:$0xf]
        %v2796 = vld [vmem:[%s1 + $0x50] sm:$0xff]
        %v2797 = vld [vmem:[%s1 + $0x58] sm:$0xff]
        %v2798 = vld [vmem:[%s1 + $0x60] sm:$0xf]
        %v2799 = vld [vmem:[%s1 + $0x64] sm:$0xff]
        %v2800 = vld [vmem:[%s1 + $0x6c] sm:$0xff]
        %v2801 = vld [vmem:[%s1 + $0x74] sm:$0xf]
        %v2802 = vld [vmem:[%s1 + $0x78] sm:$0xff]
        %v2803 = vld [vmem:[%s1 + $0x80] sm:$0xff]
        %v2804 = vld [vmem:[%s1 + $0x88] sm:$0xf]
        %v2805 = vld [vmem:[%s1 + $0x8c] sm:$0xff]
        %v2806 = vld [vmem:[%s1 + $0x94] sm:$0xff]
        %v2807 = vld [vmem:[%s1 + $0x9c] sm:$0xf]
        %v2808 = vld [vmem:[#allocation2] sm:$0xff]
        %v2809 = vld [vmem:[#allocation2 + $0x8] sm:$0xff]
        %v2810 = vld [vmem:[#allocation2 + $0x10] sm:$0xff]
        %v2811 = vld [vmem:[#allocation2 + $0x18] sm:$0xff]
        %v2812 = vld [vmem:[#allocation2 + $0x20] sm:$0xff]
        %v2813 = vld [vmem:[#allocation2 + $0x28] sm:$0xff]
        %v2814 = vld [vmem:[#allocation2 + $0x30] sm:$0xff]
        %v2815 = vld [vmem:[#allocation2 + $0x38] sm:$0xff]
        %v2816 = vld [vmem:[#allocation2 + $0x40] sm:$0xff]
        %v2817 = vld [vmem:[#allocation2 + $0x48] sm:$0xff]
        %v2818 = vld [vmem:[#allocation2 + $0x50] sm:$0xff]
        %v2819 = vld [vmem:[#allocation2 + $0x58] sm:$0xff]
        %v2820 = vld [vmem:[#allocation2 + $0x60] sm:$0xff]
        %v2821 = vld [vmem:[#allocation2 + $0x68] sm:$0xff]
        %v2822 = vld [vmem:[#allocation2 + $0x70] sm:$0xff]
        %v2823 = vld [vmem:[#allocation2 + $0x78] sm:$0xff]
        %v2824 = vld [vmem:[#allocation2 + $0x80] sm:$0xff]
        %v2825 = vld [vmem:[#allocation2 + $0x88] sm:$0xff]
        %v2826 = vld [vmem:[#allocation2 + $0x90] sm:$0xff]
        %v2827 = vld [vmem:[#allocation2 + $0x98] sm:$0xff]
        %v2828 = vld [vmem:[#allocation2 + $0xa0] sm:$0xff]
        %v2829 = vld [vmem:[#allocation2 + $0xa8] sm:$0xff]
        %v2830 = vld [vmem:[#allocation2 + $0xb0] sm:$0xff]
        %v2831 = vld [vmem:[#allocation2 + $0xb8] sm:$0xff]
        %v2832 = vld [vmem:[#allocation2 + $0xc0] sm:$0xff]
        %v2833 = vld [vmem:[#allocation2 + $0xc8] sm:$0xff]
        %v2834 = vld [vmem:[#allocation2 + $0xd0] sm:$0xff]
        %v2835 = vld [vmem:[#allocation2 + $0xd8] sm:$0xff]
        %v2836 = vld [vmem:[#allocation2 + $0xe0] sm:$0xff]
        %v2837 = vld [vmem:[#allocation2 + $0xe8] sm:$0xff]
        %v2838 = vld [vmem:[#allocation2 + $0xf0] sm:$0xff]
        %v2839 = vld [vmem:[#allocation2 + $0xf8] sm:$0xff]
        %v2840 = vld [vmem:[#allocation2 + $0x100] sm:$0xff]
        %v2841 = vld [vmem:[#allocation2 + $0x108] sm:$0xff]
        %v2842 = vld [vmem:[#allocation2 + $0x110] sm:$0xff]
        %v2843 = vld [vmem:[#allocation2 + $0x118] sm:$0xff]
        %v2844 = vld [vmem:[#allocation2 + $0x120] sm:$0xff]
        %v2845 = vld [vmem:[#allocation2 + $0x128] sm:$0xff]
        %v2846 = vld [vmem:[#allocation2 + $0x130] sm:$0xff]
        %v2847 = vld [vmem:[#allocation2 + $0x138] sm:$0xff]
        %v2848 = vld [vmem:[#allocation2 + $0x140] sm:$0xff]
        %v2849 = vld [vmem:[#allocation2 + $0x148] sm:$0xff]
        %v2850 = vld [vmem:[#allocation2 + $0x150] sm:$0xff]
        %v2851 = vld [vmem:[#allocation2 + $0x158] sm:$0xff]
        %v2852 = vld [vmem:[#allocation2 + $0x160] sm:$0xff]
        %v2853 = vld [vmem:[#allocation2 + $0x168] sm:$0xff]
        %v2854 = vld [vmem:[#allocation2 + $0x170] sm:$0xff]
        %v2855 = vld [vmem:[#allocation2 + $0x178] sm:$0xff]
        %v2856 = vld [vmem:[#allocation2 + $0x180] sm:$0xff]
        %v2857 = vld [vmem:[#allocation2 + $0x188] sm:$0xff]
        %v2858 = vld [vmem:[#allocation2 + $0x190] sm:$0xff]
        %v2859 = vld [vmem:[#allocation2 + $0x198] sm:$0xff]
        %v2860 = vld [vmem:[#allocation2 + $0x1a0] sm:$0xff]
        %v2861 = vld [vmem:[#allocation2 + $0x1a8] sm:$0xff]
        %v2862 = vld [vmem:[#allocation2 + $0x1b0] sm:$0xff]
        %v2863 = vld [vmem:[#allocation2 + $0x1b8] sm:$0xff]
        %v2864 = vld [vmem:[#allocation2 + $0x1c0] sm:$0xff]
        %v2865 = vld [vmem:[#allocation2 + $0x1c8] sm:$0xff]
        %v2866 = vld [vmem:[#allocation2 + $0x1d0] sm:$0xff]
        %v2867 = vld [vmem:[#allocation2 + $0x1d8] sm:$0xff]
        %v2868 = vld [vmem:[#allocation2 + $0x1e0] sm:$0xff]
        %v2869 = vld [vmem:[#allocation2 + $0x1e8] sm:$0xff]
        %v2870 = vld [vmem:[#allocation2 + $0x1f0] sm:$0xff]
        %v2871 = vld [vmem:[#allocation2 + $0x1f8] sm:$0xff]
        %v2872 = vld [vmem:[#allocation2 + $0x200] sm:$0xff]
        %v2873 = vld [vmem:[#allocation2 + $0x208] sm:$0xff]
        %v2874 = vld [vmem:[#allocation2 + $0x210] sm:$0xff]
        %v2875 = vld [vmem:[#allocation2 + $0x218] sm:$0xff]
        %v2876 = vld [vmem:[#allocation2 + $0x220] sm:$0xff]
        %v2877 = vld [vmem:[#allocation2 + $0x228] sm:$0xff]
        %v2878 = vld [vmem:[#allocation2 + $0x230] sm:$0xff]
        %v2879 = vld [vmem:[#allocation2 + $0x238] sm:$0xff]
        %v2880 = vld [vmem:[#allocation2 + $0x240] sm:$0xff]
        %v2881 = vld [vmem:[#allocation2 + $0x248] sm:$0xff]
        %v2882 = vld [vmem:[#allocation2 + $0x250] sm:$0xff]
        %v2883 = vld [vmem:[#allocation2 + $0x258] sm:$0xff]
        %v2884 = vld [vmem:[#allocation2 + $0x260] sm:$0xff]
        %v2885 = vld [vmem:[#allocation2 + $0x268] sm:$0xff]
        %v2886 = vld [vmem:[#allocation2 + $0x270] sm:$0xff]
        %v2887 = vld [vmem:[#allocation2 + $0x278] sm:$0xff]
        %v2888 = vld [vmem:[#allocation2 + $0x280] sm:$0xff]
        %v2889 = vld [vmem:[#allocation2 + $0x288] sm:$0xff]
        %v2890 = vld [vmem:[#allocation2 + $0x290] sm:$0xff]
        %v2891 = vld [vmem:[#allocation2 + $0x298] sm:$0xff]
        %v2892 = vld [vmem:[#allocation2 + $0x2a0] sm:$0xff]
        %v2893 = vld [vmem:[#allocation2 + $0x2a8] sm:$0xff]
        %v2894 = vld [vmem:[#allocation2 + $0x2b0] sm:$0xff]
        %v2895 = vld [vmem:[#allocation2 + $0x2b8] sm:$0xff]
        %v2896 = vld [vmem:[#allocation2 + $0x2c0] sm:$0xff]
        %v2897 = vld [vmem:[#allocation2 + $0x2c8] sm:$0xff]
        %v2898 = vld [vmem:[#allocation2 + $0x2d0] sm:$0xff]
        %v2899 = vld [vmem:[#allocation2 + $0x2d8] sm:$0xff]
        %v2900 = vld [vmem:[#allocation2 + $0x2e0] sm:$0xff]
        %v2901 = vld [vmem:[#allocation2 + $0x2e8] sm:$0xff]
        %v2902 = vld [vmem:[#allocation2 + $0x2f0] sm:$0xff]
        %v2903 = vld [vmem:[#allocation2 + $0x2f8] sm:$0xff]
        %v2904 = vld [vmem:[#allocation2 + $0x300] sm:$0xff]
        %v2905 = vld [vmem:[#allocation2 + $0x308] sm:$0xff]
        %v2906 = vld [vmem:[#allocation2 + $0x310] sm:$0xff]
        %v2907 = vld [vmem:[#allocation2 + $0x318] sm:$0xff]
        %v2908 = vld [vmem:[#allocation2 + $0x320] sm:$0xff]
        %v2909 = vld [vmem:[#allocation2 + $0x328] sm:$0xff]
        %v2910 = vld [vmem:[#allocation2 + $0x330] sm:$0xff]
        %v2911 = vld [vmem:[#allocation2 + $0x338] sm:$0xff]
        %v2912 = vld [vmem:[#allocation2 + $0x340] sm:$0xff]
        %v2913 = vld [vmem:[#allocation2 + $0x348] sm:$0xff]
        %v2914 = vld [vmem:[#allocation2 + $0x350] sm:$0xff]
        %v2915 = vld [vmem:[#allocation2 + $0x358] sm:$0xff]
        %v2916 = vld [vmem:[#allocation2 + $0x360] sm:$0xff]
        %v2917 = vld [vmem:[#allocation2 + $0x368] sm:$0xff]
        %v2918 = vld [vmem:[#allocation2 + $0x370] sm:$0xff]
        %v2919 = vld [vmem:[#allocation2 + $0x378] sm:$0xff]
        %v2920 = vld [vmem:[#allocation2 + $0x380] sm:$0xff]
        %v2921 = vld [vmem:[#allocation2 + $0x388] sm:$0xff]
        %v2922 = vld [vmem:[#allocation2 + $0x390] sm:$0xff]
        %v2923 = vld [vmem:[#allocation2 + $0x398] sm:$0xff]
        %v2924 = vld [vmem:[#allocation2 + $0x3a0] sm:$0xff]
        %v2925 = vld [vmem:[#allocation2 + $0x3a8] sm:$0xff]
        %v2926 = vld [vmem:[#allocation2 + $0x3b0] sm:$0xff]
        %v2927 = vld [vmem:[#allocation2 + $0x3b8] sm:$0xff]
        %v2928 = vld [vmem:[#allocation2 + $0x3c0] sm:$0xff]
        %v2929 = vld [vmem:[#allocation2 + $0x3c8] sm:$0xff]
        %v2930 = vld [vmem:[#allocation2 + $0x3d0] sm:$0xff]
        %v2931 = vld [vmem:[#allocation2 + $0x3d8] sm:$0xff]
        %v2932 = vld [vmem:[#allocation2 + $0x3e0] sm:$0xff]
        %v2933 = vld [vmem:[#allocation2 + $0x3e8] sm:$0xff]
        %v2934 = vld [vmem:[#allocation2 + $0x3f0] sm:$0xff]
        %v2935 = vld [vmem:[#allocation2 + $0x3f8] sm:$0xff]
        %v2936 = vld [vmem:[#allocation2 + $0x400] sm:$0xff]
        %v2937 = vld [vmem:[#allocation2 + $0x408] sm:$0xff]
        %v2938 = vld [vmem:[#allocation2 + $0x410] sm:$0xff]
        %v2939 = vld [vmem:[#allocation2 + $0x418] sm:$0xff]
        %v2940 = vld [vmem:[#allocation2 + $0x420] sm:$0xff]
        %v2941 = vld [vmem:[#allocation2 + $0x428] sm:$0xff]
        %v2942 = vld [vmem:[#allocation2 + $0x430] sm:$0xff]
        %v2943 = vld [vmem:[#allocation2 + $0x438] sm:$0xff]
        %v2944 = vld [vmem:[#allocation2 + $0x440] sm:$0xff]
        %v2945 = vld [vmem:[#allocation2 + $0x448] sm:$0xff]
        %v2946 = vld [vmem:[#allocation2 + $0x450] sm:$0xff]
        %v2947 = vld [vmem:[#allocation2 + $0x458] sm:$0xff]
        %v2948 = vld [vmem:[#allocation2 + $0x460] sm:$0xff]
        %v2949 = vld [vmem:[#allocation2 + $0x468] sm:$0xff]
        %v2950 = vld [vmem:[#allocation2 + $0x470] sm:$0xff]
        %v2951 = vld [vmem:[#allocation2 + $0x478] sm:$0xff]
        %v2976 = vunpack.c.l.b16 %v2784
        %v2977 = vunpack.c.h.b16 %v2784
        %v2978 = vunpack.c.l.b16 %v2785
        %v2979 = vunpack.c.h.b16 %v2785
        %v2980 = vunpack.c.l.b16 %v2786
        %v2981 = vunpack.c.l.b16 %v2787
        %v2982 = vunpack.c.h.b16 %v2787
        %v2983 = vunpack.c.l.b16 %v2788
        %v2984 = vunpack.c.h.b16 %v2788
        %v2985 = vunpack.c.l.b16 %v2789
        %v2986 = vunpack.c.l.b16 %v2790
        %v2987 = vunpack.c.h.b16 %v2790
        %v2988 = vunpack.c.l.b16 %v2791
        %v2989 = vunpack.c.h.b16 %v2791
        %v2990 = vunpack.c.l.b16 %v2792
        %v2991 = vunpack.c.l.b16 %v2793
        %v2992 = vunpack.c.h.b16 %v2793
        %v2993 = vunpack.c.l.b16 %v2794
        %v2994 = vunpack.c.h.b16 %v2794
        %v2995 = vunpack.c.l.b16 %v2795
        %v2996 = vunpack.c.l.b16 %v2796
        %v2997 = vunpack.c.h.b16 %v2796
        %v2998 = vunpack.c.l.b16 %v2797
        %v2999 = vunpack.c.h.b16 %v2797
        %v3000 = vunpack.c.l.b16 %v2798
        %v3001 = vunpack.c.l.b16 %v2799
        %v3002 = vunpack.c.h.b16 %v2799
        %v3003 = vunpack.c.l.b16 %v2800
        %v3004 = vunpack.c.h.b16 %v2800
        %v3005 = vunpack.c.l.b16 %v2801
        %v3006 = vunpack.c.l.b16 %v2802
        %v3007 = vunpack.c.h.b16 %v2802
        %v3008 = vunpack.c.l.b16 %v2803
        %v3009 = vunpack.c.h.b16 %v2803
        %v3010 = vunpack.c.l.b16 %v2804
        %v3011 = vunpack.c.l.b16 %v2805
        %v3012 = vunpack.c.h.b16 %v2805
        %v3013 = vunpack.c.l.b16 %v2806
        %v3014 = vunpack.c.h.b16 %v2806
        %v3015 = vunpack.c.l.b16 %v2807
        %v3016 = vpack.c.b16 %v2981, %v2976
        %v3017 = vpack.c.b16 %v2982, %v2977
        %v3018 = vpack.c.b16 %v2983, %v2978
        %v3019 = vpack.c.b16 %v2984, %v2979
        %v3020 = vpack.c.b16 %v2985, %v2980
        %v3021 = vpack.c.b16 %v2991, %v2986
        %v3022 = vpack.c.b16 %v2992, %v2987
        %v3023 = vpack.c.b16 %v2993, %v2988
        %v3024 = vpack.c.b16 %v2994, %v2989
        %v3025 = vpack.c.b16 %v2995, %v2990
        %v3026 = vpack.c.b16 %v3001, %v2996
        %v3027 = vpack.c.b16 %v3002, %v2997
        %v3028 = vpack.c.b16 %v3003, %v2998
        %v3029 = vpack.c.b16 %v3004, %v2999
        %v3030 = vpack.c.b16 %v3005, %v3000
        %v3031 = vpack.c.b16 %v3011, %v3006
        %v3032 = vpack.c.b16 %v3012, %v3007
        %v3033 = vpack.c.b16 %v3013, %v3008
        %v3034 = vpack.c.b16 %v3014, %v3009
        %v3035 = vpack.c.b16 %v3015, %v3010
        %v3196 = vunpack.c.l.b16 %v2808
        %v3197 = vunpack.c.h.b16 %v2808
        %v3198 = vunpack.c.l.b16 %v2809
        %v3199 = vunpack.c.h.b16 %v2809
        %v3200 = vunpack.c.l.b16 %v2810
        %v3201 = vunpack.c.h.b16 %v2810
        %v3202 = vunpack.c.l.b16 %v2811
        %v3203 = vunpack.c.h.b16 %v2811
        %v3204 = vunpack.c.l.b16 %v2812
        %v3205 = vunpack.c.h.b16 %v2812
        %v3206 = vunpack.c.l.b16 %v2813
        %v3207 = vunpack.c.h.b16 %v2813
        %v3208 = vunpack.c.l.b16 %v2814
        %v3209 = vunpack.c.h.b16 %v2814
        %v3210 = vunpack.c.l.b16 %v2815
        %v3211 = vunpack.c.h.b16 %v2815
        %v3212 = vunpack.c.l.b16 %v2816
        %v3213 = vunpack.c.h.b16 %v2816
        %v3214 = vunpack.c.l.b16 %v2817
        %v3215 = vunpack.c.h.b16 %v2817
        %v3216 = vunpack.c.l.b16 %v2818
        %v3217 = vunpack.c.h.b16 %v2818
        %v3218 = vunpack.c.l.b16 %v2819
        %v3219 = vunpack.c.h.b16 %v2819
        %v3220 = vunpack.c.l.b16 %v2820
        %v3221 = vunpack.c.h.b16 %v2820
        %v3222 = vunpack.c.l.b16 %v2821
        %v3223 = vunpack.c.h.b16 %v2821
        %v3224 = vunpack.c.l.b16 %v2822
        %v3225 = vunpack.c.h.b16 %v2822
        %v3226 = vunpack.c.l.b16 %v2823
        %v3227 = vunpack.c.h.b16 %v2823
        %v3228 = vunpack.c.l.b16 %v2824
        %v3229 = vunpack.c.h.b16 %v2824
        %v3230 = vunpack.c.l.b16 %v2825
        %v3231 = vunpack.c.h.b16 %v2825
        %v3232 = vunpack.c.l.b16 %v2826
        %v3233 = vunpack.c.h.b16 %v2826
        %v3234 = vunpack.c.l.b16 %v2827
        %v3235 = vunpack.c.h.b16 %v2827
        %v3236 = vunpack.c.l.b16 %v2828
        %v3237 = vunpack.c.h.b16 %v2828
        %v3238 = vunpack.c.l.b16 %v2829
        %v3239 = vunpack.c.h.b16 %v2829
        %v3240 = vunpack.c.l.b16 %v2830
        %v3241 = vunpack.c.h.b16 %v2830
        %v3242 = vunpack.c.l.b16 %v2831
        %v3243 = vunpack.c.h.b16 %v2831
        %v3244 = vunpack.c.l.b16 %v2832
        %v3245 = vunpack.c.h.b16 %v2832
        %v3246 = vunpack.c.l.b16 %v2833
        %v3247 = vunpack.c.h.b16 %v2833
        %v3248 = vunpack.c.l.b16 %v2834
        %v3249 = vunpack.c.h.b16 %v2834
        %v3250 = vunpack.c.l.b16 %v2835
        %v3251 = vunpack.c.h.b16 %v2835
        %v3252 = vunpack.c.l.b16 %v2836
        %v3253 = vunpack.c.h.b16 %v2836
        %v3254 = vunpack.c.l.b16 %v2837
        %v3255 = vunpack.c.h.b16 %v2837
        %v3256 = vunpack.c.l.b16 %v2838
        %v3257 = vunpack.c.h.b16 %v2838
        %v3258 = vunpack.c.l.b16 %v2839
        %v3259 = vunpack.c.h.b16 %v2839
        %v3260 = vunpack.c.l.b16 %v2840
        %v3261 = vunpack.c.h.b16 %v2840
        %v3262 = vunpack.c.l.b16 %v2841
        %v3263 = vunpack.c.h.b16 %v2841
        %v3264 = vunpack.c.l.b16 %v2842
        %v3265 = vunpack.c.h.b16 %v2842
        %v3266 = vunpack.c.l.b16 %v2843
        %v3267 = vunpack.c.h.b16 %v2843
        %v3268 = vunpack.c.l.b16 %v2844
        %v3269 = vunpack.c.h.b16 %v2844
        %v3270 = vunpack.c.l.b16 %v2845
        %v3271 = vunpack.c.h.b16 %v2845
        %v3272 = vunpack.c.l.b16 %v2846
        %v3273 = vunpack.c.h.b16 %v2846
        %v3274 = vunpack.c.l.b16 %v2847
        %v3275 = vunpack.c.h.b16 %v2847
        %v3276 = vunpack.c.l.b16 %v2848
        %v3277 = vunpack.c.h.b16 %v2848
        %v3278 = vunpack.c.l.b16 %v2849
        %v3279 = vunpack.c.h.b16 %v2849
        %v3280 = vunpack.c.l.b16 %v2850
        %v3281 = vunpack.c.h.b16 %v2850
        %v3282 = vunpack.c.l.b16 %v2851
        %v3283 = vunpack.c.h.b16 %v2851
        %v3284 = vunpack.c.l.b16 %v2852
        %v3285 = vunpack.c.h.b16 %v2852
        %v3286 = vunpack.c.l.b16 %v2853
        %v3287 = vunpack.c.h.b16 %v2853
        %v3288 = vunpack.c.l.b16 %v2854
        %v3289 = vunpack.c.h.b16 %v2854
        %v3290 = vunpack.c.l.b16 %v2855
        %v3291 = vunpack.c.h.b16 %v2855
        %v3292 = vunpack.c.l.b16 %v2856
        %v3293 = vunpack.c.h.b16 %v2856
        %v3294 = vunpack.c.l.b16 %v2857
        %v3295 = vunpack.c.h.b16 %v2857
        %v3296 = vunpack.c.l.b16 %v2858
        %v3297 = vunpack.c.h.b16 %v2858
        %v3298 = vunpack.c.l.b16 %v2859
        %v3299 = vunpack.c.h.b16 %v2859
        %v3300 = vunpack.c.l.b16 %v2860
        %v3301 = vunpack.c.h.b16 %v2860
        %v3302 = vunpack.c.l.b16 %v2861
        %v3303 = vunpack.c.h.b16 %v2861
        %v3304 = vunpack.c.l.b16 %v2862
        %v3305 = vunpack.c.h.b16 %v2862
        %v3306 = vunpack.c.l.b16 %v2863
        %v3307 = vunpack.c.h.b16 %v2863
        %v3308 = vunpack.c.l.b16 %v2864
        %v3309 = vunpack.c.h.b16 %v2864
        %v3310 = vunpack.c.l.b16 %v2865
        %v3311 = vunpack.c.h.b16 %v2865
        %v3312 = vunpack.c.l.b16 %v2866
        %v3313 = vunpack.c.h.b16 %v2866
        %v3314 = vunpack.c.l.b16 %v2867
        %v3315 = vunpack.c.h.b16 %v2867
        %v3316 = vunpack.c.l.b16 %v2868
        %v3317 = vunpack.c.h.b16 %v2868
        %v3318 = vunpack.c.l.b16 %v2869
        %v3319 = vunpack.c.h.b16 %v2869
        %v3320 = vunpack.c.l.b16 %v2870
        %v3321 = vunpack.c.h.b16 %v2870
        %v3322 = vunpack.c.l.b16 %v2871
        %v3323 = vunpack.c.h.b16 %v2871
        %v3324 = vunpack.c.l.b16 %v2872
        %v3325 = vunpack.c.h.b16 %v2872
        %v3326 = vunpack.c.l.b16 %v2873
        %v3327 = vunpack.c.h.b16 %v2873
        %v3328 = vunpack.c.l.b16 %v2874
        %v3329 = vunpack.c.h.b16 %v2874
        %v3330 = vunpack.c.l.b16 %v2875
        %v3331 = vunpack.c.h.b16 %v2875
        %v3332 = vunpack.c.l.b16 %v2876
        %v3333 = vunpack.c.h.b16 %v2876
        %v3334 = vunpack.c.l.b16 %v2877
        %v3335 = vunpack.c.h.b16 %v2877
        %v3336 = vunpack.c.l.b16 %v2878
        %v3337 = vunpack.c.h.b16 %v2878
        %v3338 = vunpack.c.l.b16 %v2879
        %v3339 = vunpack.c.h.b16 %v2879
        %v3340 = vunpack.c.l.b16 %v2880
        %v3341 = vunpack.c.h.b16 %v2880
        %v3342 = vunpack.c.l.b16 %v2881
        %v3343 = vunpack.c.h.b16 %v2881
        %v3344 = vunpack.c.l.b16 %v2882
        %v3345 = vunpack.c.h.b16 %v2882
        %v3346 = vunpack.c.l.b16 %v2883
        %v3347 = vunpack.c.h.b16 %v2883
        %v3348 = vunpack.c.l.b16 %v2884
        %v3349 = vunpack.c.h.b16 %v2884
        %v3350 = vunpack.c.l.b16 %v2885
        %v3351 = vunpack.c.h.b16 %v2885
        %v3352 = vunpack.c.l.b16 %v2886
        %v3353 = vunpack.c.h.b16 %v2886
        %v3354 = vunpack.c.l.b16 %v2887
        %v3355 = vunpack.c.h.b16 %v2887
        %v3356 = vunpack.c.l.b16 %v2888
        %v3357 = vunpack.c.h.b16 %v2888
        %v3358 = vunpack.c.l.b16 %v2889
        %v3359 = vunpack.c.h.b16 %v2889
        %v3360 = vunpack.c.l.b16 %v2890
        %v3361 = vunpack.c.h.b16 %v2890
        %v3362 = vunpack.c.l.b16 %v2891
        %v3363 = vunpack.c.h.b16 %v2891
        %v3364 = vunpack.c.l.b16 %v2892
        %v3365 = vunpack.c.h.b16 %v2892
        %v3366 = vunpack.c.l.b16 %v2893
        %v3367 = vunpack.c.h.b16 %v2893
        %v3368 = vunpack.c.l.b16 %v2894
        %v3369 = vunpack.c.h.b16 %v2894
        %v3370 = vunpack.c.l.b16 %v2895
        %v3371 = vunpack.c.h.b16 %v2895
        %v3372 = vunpack.c.l.b16 %v2896
        %v3373 = vunpack.c.h.b16 %v2896
        %v3374 = vunpack.c.l.b16 %v2897
        %v3375 = vunpack.c.h.b16 %v2897
        %v3376 = vunpack.c.l.b16 %v2898
        %v3377 = vunpack.c.h.b16 %v2898
        %v3378 = vunpack.c.l.b16 %v2899
        %v3379 = vunpack.c.h.b16 %v2899
        %v3380 = vunpack.c.l.b16 %v2900
        %v3381 = vunpack.c.h.b16 %v2900
        %v3382 = vunpack.c.l.b16 %v2901
        %v3383 = vunpack.c.h.b16 %v2901
        %v3384 = vunpack.c.l.b16 %v2902
        %v3385 = vunpack.c.h.b16 %v2902
        %v3386 = vunpack.c.l.b16 %v2903
        %v3387 = vunpack.c.h.b16 %v2903
        %v3388 = vunpack.c.l.b16 %v2904
        %v3389 = vunpack.c.h.b16 %v2904
        %v3390 = vunpack.c.l.b16 %v2905
        %v3391 = vunpack.c.h.b16 %v2905
        %v3392 = vunpack.c.l.b16 %v2906
        %v3393 = vunpack.c.h.b16 %v2906
        %v3394 = vunpack.c.l.b16 %v2907
        %v3395 = vunpack.c.h.b16 %v2907
        %v3396 = vunpack.c.l.b16 %v2908
        %v3397 = vunpack.c.h.b16 %v2908
        %v3398 = vunpack.c.l.b16 %v2909
        %v3399 = vunpack.c.h.b16 %v2909
        %v3400 = vunpack.c.l.b16 %v2910
        %v3401 = vunpack.c.h.b16 %v2910
        %v3402 = vunpack.c.l.b16 %v2911
        %v3403 = vunpack.c.h.b16 %v2911
        %v3404 = vunpack.c.l.b16 %v2912
        %v3405 = vunpack.c.h.b16 %v2912
        %v3406 = vunpack.c.l.b16 %v2913
        %v3407 = vunpack.c.h.b16 %v2913
        %v3408 = vunpack.c.l.b16 %v2914
        %v3409 = vunpack.c.h.b16 %v2914
        %v3410 = vunpack.c.l.b16 %v2915
        %v3411 = vunpack.c.h.b16 %v2915
        %v3412 = vunpack.c.l.b16 %v2916
        %v3413 = vunpack.c.h.b16 %v2916
        %v3414 = vunpack.c.l.b16 %v2917
        %v3415 = vunpack.c.h.b16 %v2917
        %v3416 = vunpack.c.l.b16 %v2918
        %v3417 = vunpack.c.h.b16 %v2918
        %v3418 = vunpack.c.l.b16 %v2919
        %v3419 = vunpack.c.h.b16 %v2919
        %v3420 = vunpack.c.l.b16 %v2920
        %v3421 = vunpack.c.h.b16 %v2920
        %v3422 = vunpack.c.l.b16 %v2921
        %v3423 = vunpack.c.h.b16 %v2921
        %v3424 = vunpack.c.l.b16 %v2922
        %v3425 = vunpack.c.h.b16 %v2922
        %v3426 = vunpack.c.l.b16 %v2923
        %v3427 = vunpack.c.h.b16 %v2923
        %v3428 = vunpack.c.l.b16 %v2924
        %v3429 = vunpack.c.h.b16 %v2924
        %v3430 = vunpack.c.l.b16 %v2925
        %v3431 = vunpack.c.h.b16 %v2925
        %v3432 = vunpack.c.l.b16 %v2926
        %v3433 = vunpack.c.h.b16 %v2926
        %v3434 = vunpack.c.l.b16 %v2927
        %v3435 = vunpack.c.h.b16 %v2927
        %v3436 = vunpack.c.l.b16 %v2928
        %v3437 = vunpack.c.h.b16 %v2928
        %v3438 = vunpack.c.l.b16 %v2929
        %v3439 = vunpack.c.h.b16 %v2929
        %v3440 = vunpack.c.l.b16 %v2930
        %v3441 = vunpack.c.h.b16 %v2930
        %v3442 = vunpack.c.l.b16 %v2931
        %v3443 = vunpack.c.h.b16 %v2931
        %v3444 = vunpack.c.l.b16 %v2932
        %v3445 = vunpack.c.h.b16 %v2932
        %v3446 = vunpack.c.l.b16 %v2933
        %v3447 = vunpack.c.h.b16 %v2933
        %v3448 = vunpack.c.l.b16 %v2934
        %v3449 = vunpack.c.h.b16 %v2934
        %v3450 = vunpack.c.l.b16 %v2935
        %v3451 = vunpack.c.h.b16 %v2935
        %v3452 = vunpack.c.l.b16 %v2936
        %v3453 = vunpack.c.h.b16 %v2936
        %v3454 = vunpack.c.l.b16 %v2937
        %v3455 = vunpack.c.h.b16 %v2937
        %v3456 = vunpack.c.l.b16 %v2938
        %v3457 = vunpack.c.h.b16 %v2938
        %v3458 = vunpack.c.l.b16 %v2939
        %v3459 = vunpack.c.h.b16 %v2939
        %v3460 = vunpack.c.l.b16 %v2940
        %v3461 = vunpack.c.h.b16 %v2940
        %v3462 = vunpack.c.l.b16 %v2941
        %v3463 = vunpack.c.h.b16 %v2941
        %v3464 = vunpack.c.l.b16 %v2942
        %v3465 = vunpack.c.h.b16 %v2942
        %v3466 = vunpack.c.l.b16 %v2943
        %v3467 = vunpack.c.h.b16 %v2943
        %v3468 = vunpack.c.l.b16 %v2944
        %v3469 = vunpack.c.h.b16 %v2944
        %v3470 = vunpack.c.l.b16 %v2945
        %v3471 = vunpack.c.h.b16 %v2945
        %v3472 = vunpack.c.l.b16 %v2946
        %v3473 = vunpack.c.h.b16 %v2946
        %v3474 = vunpack.c.l.b16 %v2947
        %v3475 = vunpack.c.h.b16 %v2947
        %v3476 = vunpack.c.l.b16 %v2948
        %v3477 = vunpack.c.h.b16 %v2948
        %v3478 = vunpack.c.l.b16 %v2949
        %v3479 = vunpack.c.h.b16 %v2949
        %v3480 = vunpack.c.l.b16 %v2950
        %v3481 = vunpack.c.h.b16 %v2950
        %v3482 = vunpack.c.l.b16 %v2951
        %v3483 = vunpack.c.h.b16 %v2951
        %v3484 = vpack.c.b16 %v3200, %v3196
        %v3485 = vpack.c.b16 %v3201, %v3197
        %v3486 = vpack.c.b16 %v3202, %v3198
        %v3487 = vpack.c.b16 %v3203, %v3199
        %v3488 = vpack.c.b16 %v3208, %v3204
        %v3489 = vpack.c.b16 %v3209, %v3205
        %v3490 = vpack.c.b16 %v3210, %v3206
        %v3491 = vpack.c.b16 %v3211, %v3207
        %v3492 = vpack.c.b16 %v3216, %v3212
        %v3493 = vpack.c.b16 %v3217, %v3213
        %v3494 = vpack.c.b16 %v3218, %v3214
        %v3495 = vpack.c.b16 %v3219, %v3215
        %v3496 = vpack.c.b16 %v3224, %v3220
        %v3497 = vpack.c.b16 %v3225, %v3221
        %v3498 = vpack.c.b16 %v3226, %v3222
        %v3499 = vpack.c.b16 %v3227, %v3223
        %v3500 = vpack.c.b16 %v3232, %v3228
        %v3501 = vpack.c.b16 %v3233, %v3229
        %v3502 = vpack.c.b16 %v3234, %v3230
        %v3503 = vpack.c.b16 %v3235, %v3231
        %v3504 = vpack.c.b16 %v3240, %v3236
        %v3505 = vpack.c.b16 %v3241, %v3237
        %v3506 = vpack.c.b16 %v3242, %v3238
        %v3507 = vpack.c.b16 %v3243, %v3239
        %v3508 = vpack.c.b16 %v3248, %v3244
        %v3509 = vpack.c.b16 %v3249, %v3245
        %v3510 = vpack.c.b16 %v3250, %v3246
        %v3511 = vpack.c.b16 %v3251, %v3247
        %v3512 = vpack.c.b16 %v3256, %v3252
        %v3513 = vpack.c.b16 %v3257, %v3253
        %v3514 = vpack.c.b16 %v3258, %v3254
        %v3515 = vpack.c.b16 %v3259, %v3255
        %v3516 = vpack.c.b16 %v3264, %v3260
        %v3517 = vpack.c.b16 %v3265, %v3261
        %v3518 = vpack.c.b16 %v3266, %v3262
        %v3519 = vpack.c.b16 %v3267, %v3263
        %v3520 = vpack.c.b16 %v3272, %v3268
        %v3521 = vpack.c.b16 %v3273, %v3269
        %v3522 = vpack.c.b16 %v3274, %v3270
        %v3523 = vpack.c.b16 %v3275, %v3271
        %v3524 = vpack.c.b16 %v3280, %v3276
        %v3525 = vpack.c.b16 %v3281, %v3277
        %v3526 = vpack.c.b16 %v3282, %v3278
        %v3527 = vpack.c.b16 %v3283, %v3279
        %v3528 = vpack.c.b16 %v3288, %v3284
        %v3529 = vpack.c.b16 %v3289, %v3285
        %v3530 = vpack.c.b16 %v3290, %v3286
        %v3531 = vpack.c.b16 %v3291, %v3287
        %v3532 = vpack.c.b16 %v3296, %v3292
        %v3533 = vpack.c.b16 %v3297, %v3293
        %v3534 = vpack.c.b16 %v3298, %v3294
        %v3535 = vpack.c.b16 %v3299, %v3295
        %v3536 = vpack.c.b16 %v3304, %v3300
        %v3537 = vpack.c.b16 %v3305, %v3301
        %v3538 = vpack.c.b16 %v3306, %v3302
        %v3539 = vpack.c.b16 %v3307, %v3303
        %v3540 = vpack.c.b16 %v3312, %v3308
        %v3541 = vpack.c.b16 %v3313, %v3309
        %v3542 = vpack.c.b16 %v3314, %v3310
        %v3543 = vpack.c.b16 %v3315, %v3311
        %v3544 = vpack.c.b16 %v3320, %v3316
        %v3545 = vpack.c.b16 %v3321, %v3317
        %v3546 = vpack.c.b16 %v3322, %v3318
        %v3547 = vpack.c.b16 %v3323, %v3319
        %v3548 = vpack.c.b16 %v3328, %v3324
        %v3549 = vpack.c.b16 %v3329, %v3325
        %v3550 = vpack.c.b16 %v3330, %v3326
        %v3551 = vpack.c.b16 %v3331, %v3327
        %v3552 = vpack.c.b16 %v3336, %v3332
        %v3553 = vpack.c.b16 %v3337, %v3333
        %v3554 = vpack.c.b16 %v3338, %v3334
        %v3555 = vpack.c.b16 %v3339, %v3335
        %v3556 = vpack.c.b16 %v3344, %v3340
        %v3557 = vpack.c.b16 %v3345, %v3341
        %v3558 = vpack.c.b16 %v3346, %v3342
        %v3559 = vpack.c.b16 %v3347, %v3343
        %v3560 = vpack.c.b16 %v3352, %v3348
        %v3561 = vpack.c.b16 %v3353, %v3349
        %v3562 = vpack.c.b16 %v3354, %v3350
        %v3563 = vpack.c.b16 %v3355, %v3351
        %v3564 = vpack.c.b16 %v3360, %v3356
        %v3565 = vpack.c.b16 %v3361, %v3357
        %v3566 = vpack.c.b16 %v3362, %v3358
        %v3567 = vpack.c.b16 %v3363, %v3359
        %v3568 = vpack.c.b16 %v3368, %v3364
        %v3569 = vpack.c.b16 %v3369, %v3365
        %v3570 = vpack.c.b16 %v3370, %v3366
        %v3571 = vpack.c.b16 %v3371, %v3367
        %v3572 = vpack.c.b16 %v3376, %v3372
        %v3573 = vpack.c.b16 %v3377, %v3373
        %v3574 = vpack.c.b16 %v3378, %v3374
        %v3575 = vpack.c.b16 %v3379, %v3375
        %v3576 = vpack.c.b16 %v3384, %v3380
        %v3577 = vpack.c.b16 %v3385, %v3381
        %v3578 = vpack.c.b16 %v3386, %v3382
        %v3579 = vpack.c.b16 %v3387, %v3383
        %v3580 = vpack.c.b16 %v3392, %v3388
        %v3581 = vpack.c.b16 %v3393, %v3389
        %v3582 = vpack.c.b16 %v3394, %v3390
        %v3583 = vpack.c.b16 %v3395, %v3391
        %v3584 = vpack.c.b16 %v3400, %v3396
        %v3585 = vpack.c.b16 %v3401, %v3397
        %v3586 = vpack.c.b16 %v3402, %v3398
        %v3587 = vpack.c.b16 %v3403, %v3399
        %v3588 = vpack.c.b16 %v3408, %v3404
        %v3589 = vpack.c.b16 %v3409, %v3405
        %v3590 = vpack.c.b16 %v3410, %v3406
        %v3591 = vpack.c.b16 %v3411, %v3407
        %v3592 = vpack.c.b16 %v3416, %v3412
        %v3593 = vpack.c.b16 %v3417, %v3413
        %v3594 = vpack.c.b16 %v3418, %v3414
        %v3595 = vpack.c.b16 %v3419, %v3415
        %v3596 = vpack.c.b16 %v3424, %v3420
        %v3597 = vpack.c.b16 %v3425, %v3421
        %v3598 = vpack.c.b16 %v3426, %v3422
        %v3599 = vpack.c.b16 %v3427, %v3423
        %v3600 = vpack.c.b16 %v3432, %v3428
        %v3601 = vpack.c.b16 %v3433, %v3429
        %v3602 = vpack.c.b16 %v3434, %v3430
        %v3603 = vpack.c.b16 %v3435, %v3431
        %v3604 = vpack.c.b16 %v3440, %v3436
        %v3605 = vpack.c.b16 %v3441, %v3437
        %v3606 = vpack.c.b16 %v3442, %v3438
        %v3607 = vpack.c.b16 %v3443, %v3439
        %v3608 = vpack.c.b16 %v3448, %v3444
        %v3609 = vpack.c.b16 %v3449, %v3445
        %v3610 = vpack.c.b16 %v3450, %v3446
        %v3611 = vpack.c.b16 %v3451, %v3447
        %v3612 = vpack.c.b16 %v3456, %v3452
        %v3613 = vpack.c.b16 %v3457, %v3453
        %v3614 = vpack.c.b16 %v3458, %v3454
        %v3615 = vpack.c.b16 %v3459, %v3455
        %v3616 = vpack.c.b16 %v3464, %v3460
        %v3617 = vpack.c.b16 %v3465, %v3461
        %v3618 = vpack.c.b16 %v3466, %v3462
        %v3619 = vpack.c.b16 %v3467, %v3463
        %v3620 = vpack.c.b16 %v3472, %v3468
        %v3621 = vpack.c.b16 %v3473, %v3469
        %v3622 = vpack.c.b16 %v3474, %v3470
        %v3623 = vpack.c.b16 %v3475, %v3471
        %v3624 = vpack.c.b16 %v3480, %v3476
        %v3625 = vpack.c.b16 %v3481, %v3477
        %v3626 = vpack.c.b16 %v3482, %v3478
        %v3627 = vpack.c.b16 %v3483, %v3479
        %vm3772 = vcmask 523264
        %v3774 = vsel %vm3772, %v3020, 0
        %v3777 = vsel %vm3772, %v3025, 0
        %v3780 = vsel %vm3772, %v3030, 0
        %v3783 = vsel %vm3772, %v3035, 0
        %3785 = vmatprep.subr.bf16.mxu0 %v3513
        %3786 = vmatpush1.bf16.msra.mxu0 %v3512
        %3787 = vmatprep.subr.bf16.mxu0 %v3509
        %3788 = vmatpush1.bf16.msra.mxu0 %v3508
        %3789 = vmatprep.subr.bf16.mxu0 %v3505
        %3790 = vmatpush1.bf16.msra.mxu0 %v3504
        %3791 = vmatprep.subr.bf16.mxu0 %v3501
        %3792 = vmatpush1.bf16.msra.mxu0 %v3500
        %3793 = vmatprep.subr.bf16.mxu0 %v3497
        %3794 = vmatpush1.bf16.msra.mxu0 %v3496
        %3795 = vmatprep.subr.bf16.mxu0 %v3493
        %3796 = vmatpush1.bf16.msra.mxu0 %v3492
        %3797 = vmatprep.subr.bf16.mxu0 %v3489
        %3798 = vmatpush1.bf16.msra.mxu0 %v3488
        %3799 = vmatprep.subr.bf16.mxu0 %v3485
        %3800 = vmatpush1.bf16.msra.mxu0 %v3484
        %3801 = vmatprep.subr.bf16.mxu0 %v3545
        %3802 = vmatpush2.bf16.msra.mxu0 %v3544
        %3803 = vmatprep.subr.bf16.mxu0 %v3541
        %3804 = vmatpush2.bf16.msra.mxu0 %v3540
        %3805 = vmatprep.subr.bf16.mxu0 %v3537
        %3806 = vmatpush2.bf16.msra.mxu0 %v3536
        %3807 = vmatprep.subr.bf16.mxu0 %v3533
        %3808 = vmatpush2.bf16.msra.mxu0 %v3532
        %3809 = vmatprep.subr.bf16.mxu0 %v3529
        %3810 = vmatpush2.bf16.msra.mxu0 %v3528
        %3811 = vmatprep.subr.bf16.mxu0 %v3525
        %3812 = vmatpush2.bf16.msra.mxu0 %v3524
        %3813 = vmatprep.subr.bf16.mxu0 %v3521
        %3814 = vmatpush2.bf16.msra.mxu0 %v3520
        %3815 = vmatprep.subr.bf16.mxu0 %v3517
        %3816 = vmatpush2.bf16.msra.mxu0 %v3516
        %3817 = vmatprep.mubr.bf16.mxu0 %v3017
        %3818 = vmatmul.mubr.bf16.gmra.mxu0 %v3016
        %v3819 = vpop.f32.mrf.mxu0
        %v3820 = vadd.f32 0.0, %v3819
        %v3821 = vpop.f32.mrf.mxu0
        %v3822 = vadd.f32 0.0, %v3821
        %v3823 = vpop.f32.mrf.mxu0
        %v3824 = vadd.f32 0.0, %v3823
        %v3825 = vpop.f32.mrf.mxu0
        %v3826 = vadd.f32 0.0, %v3825
        %3827 = vmatprep.mubr.bf16.mxu0 %v3022
        %3828 = vmatmul.mubr.bf16.gmra.mxu0 %v3021
        %v3829 = vpop.f32.mrf.mxu0
        %v3830 = vadd.f32 0.0, %v3829
        %v3831 = vpop.f32.mrf.mxu0
        %v3832 = vadd.f32 0.0, %v3831
        %v3833 = vpop.f32.mrf.mxu0
        %v3834 = vadd.f32 0.0, %v3833
        %v3835 = vpop.f32.mrf.mxu0
        %v3836 = vadd.f32 0.0, %v3835
        %3837 = vmatprep.mubr.bf16.mxu0 %v3027
        %3838 = vmatmul.mubr.bf16.gmra.mxu0 %v3026
        %v3839 = vpop.f32.mrf.mxu0
        %v3840 = vadd.f32 0.0, %v3839
        %v3841 = vpop.f32.mrf.mxu0
        %v3842 = vadd.f32 0.0, %v3841
        %v3843 = vpop.f32.mrf.mxu0
        %v3844 = vadd.f32 0.0, %v3843
        %v3845 = vpop.f32.mrf.mxu0
        %v3846 = vadd.f32 0.0, %v3845
        %3847 = vmatprep.mubr.bf16.mxu0 %v3032
        %3848 = vmatmul.mubr.bf16.gmra.mxu0 %v3031
        %v3849 = vpop.f32.mrf.mxu0
        %v3850 = vadd.f32 0.0, %v3849
        %v3851 = vpop.f32.mrf.mxu0
        %v3852 = vadd.f32 0.0, %v3851
        %v3853 = vpop.f32.mrf.mxu0
        %v3854 = vadd.f32 0.0, %v3853
        %v3855 = vpop.f32.mrf.mxu0
        %v3856 = vadd.f32 0.0, %v3855
        %3857 = vdwg.mxu0
        %3858 = vmatprep.subr.bf16.mxu0 %v3577
        %3859 = vmatpush1.bf16.msra.mxu0 %v3576
        %3860 = vmatprep.subr.bf16.mxu0 %v3573
        %3861 = vmatpush1.bf16.msra.mxu0 %v3572
        %3862 = vmatprep.subr.bf16.mxu0 %v3569
        %3863 = vmatpush1.bf16.msra.mxu0 %v3568
        %3864 = vmatprep.subr.bf16.mxu0 %v3565
        %3865 = vmatpush1.bf16.msra.mxu0 %v3564
        %3866 = vmatprep.subr.bf16.mxu0 %v3561
        %3867 = vmatpush1.bf16.msra.mxu0 %v3560
        %3868 = vmatprep.subr.bf16.mxu0 %v3557
        %3869 = vmatpush1.bf16.msra.mxu0 %v3556
        %3870 = vmatprep.subr.bf16.mxu0 %v3553
        %3871 = vmatpush1.bf16.msra.mxu0 %v3552
        %3872 = vmatprep.subr.bf16.mxu0 %v3549
        %3873 = vmatpush1.bf16.msra.mxu0 %v3548
        %3874 = vmatprep.subr.bf16.mxu0 %v3609
        %3875 = vmatpush2.bf16.msra.mxu0 %v3608
        %3876 = vmatprep.subr.bf16.mxu0 %v3605
        %3877 = vmatpush2.bf16.msra.mxu0 %v3604
        %3878 = vmatprep.subr.bf16.mxu0 %v3601
        %3879 = vmatpush2.bf16.msra.mxu0 %v3600
        %3880 = vmatprep.subr.bf16.mxu0 %v3597
        %3881 = vmatpush2.bf16.msra.mxu0 %v3596
        %3882 = vmatprep.subr.bf16.mxu0 %v3593
        %3883 = vmatpush2.bf16.msra.mxu0 %v3592
        %3884 = vmatprep.subr.bf16.mxu0 %v3589
        %3885 = vmatpush2.bf16.msra.mxu0 %v3588
        %3886 = vmatprep.subr.bf16.mxu0 %v3585
        %3887 = vmatpush2.bf16.msra.mxu0 %v3584
        %3888 = vmatprep.subr.bf16.mxu0 %v3581
        %3889 = vmatpush2.bf16.msra.mxu0 %v3580
        %3890 = vmatprep.mubr.bf16.mxu0 %v3019
        %3891 = vmatmul.mubr.bf16.gmra.mxu0 %v3018
        %v3892 = vpop.f32.mrf.mxu0
        %v3893 = vadd.f32 %v3820, %v3892
        %v3894 = vpop.f32.mrf.mxu0
        %v3895 = vadd.f32 %v3822, %v3894
        %v3896 = vpop.f32.mrf.mxu0
        %v3897 = vadd.f32 %v3824, %v3896
        %v3898 = vpop.f32.mrf.mxu0
        %v3899 = vadd.f32 %v3826, %v3898
        %3900 = vmatprep.mubr.bf16.mxu0 %v3024
        %3901 = vmatmul.mubr.bf16.gmra.mxu0 %v3023
        %v3902 = vpop.f32.mrf.mxu0
        %v3903 = vadd.f32 %v3830, %v3902
        %v3904 = vpop.f32.mrf.mxu0
        %v3905 = vadd.f32 %v3832, %v3904
        %v3906 = vpop.f32.mrf.mxu0
        %v3907 = vadd.f32 %v3834, %v3906
        %v3908 = vpop.f32.mrf.mxu0
        %v3909 = vadd.f32 %v3836, %v3908
        %3910 = vmatprep.mubr.bf16.mxu0 %v3029
        %3911 = vmatmul.mubr.bf16.gmra.mxu0 %v3028
        %v3912 = vpop.f32.mrf.mxu0
        %v3913 = vadd.f32 %v3840, %v3912
        %v3914 = vpop.f32.mrf.mxu0
        %v3915 = vadd.f32 %v3842, %v3914
        %v3916 = vpop.f32.mrf.mxu0
        %v3917 = vadd.f32 %v3844, %v3916
        %v3918 = vpop.f32.mrf.mxu0
        %v3919 = vadd.f32 %v3846, %v3918
        %3920 = vmatprep.mubr.bf16.mxu0 %v3034
        %3921 = vmatmul.mubr.bf16.gmra.mxu0 %v3033
        %v3922 = vpop.f32.mrf.mxu0
        %v3923 = vadd.f32 %v3850, %v3922
        %v3924 = vpop.f32.mrf.mxu0
        %v3925 = vadd.f32 %v3852, %v3924
        %v3926 = vpop.f32.mrf.mxu0
        %v3927 = vadd.f32 %v3854, %v3926
        %v3928 = vpop.f32.mrf.mxu0
        %v3929 = vadd.f32 %v3856, %v3928
        %3930 = vdwg.mxu0
        %3931 = vmatprep.subr.bf16.mxu0 0
        %3932 = vmatpush1.bf16.msra.mxu0 0
        %3933 = vmatprep.subr.bf16.mxu0 0
        %3934 = vmatpush1.bf16.msra.mxu0 0
        %3935 = vmatprep.subr.bf16.mxu0 0
        %3936 = vmatpush1.bf16.msra.mxu0 0
        %3937 = vmatprep.subr.bf16.mxu0 0
        %3938 = vmatpush1.bf16.msra.mxu0 0
        %3939 = vmatprep.subr.bf16.mxu0 %v3625
        %3940 = vmatpush1.bf16.msra.mxu0 %v3624
        %3941 = vmatprep.subr.bf16.mxu0 %v3621
        %3942 = vmatpush1.bf16.msra.mxu0 %v3620
        %3943 = vmatprep.subr.bf16.mxu0 %v3617
        %3944 = vmatpush1.bf16.msra.mxu0 %v3616
        %3945 = vmatprep.subr.bf16.mxu0 %v3613
        %3946 = vmatpush1.bf16.msra.mxu0 %v3612
        %3947 = vmatprep.subr.bf16.mxu0 0
        %3948 = vmatpush2.bf16.msra.mxu0 0
        %3949 = vmatprep.subr.bf16.mxu0 0
        %3950 = vmatpush2.bf16.msra.mxu0 0
        %3951 = vmatprep.subr.bf16.mxu0 0
        %3952 = vmatpush2.bf16.msra.mxu0 0
        %3953 = vmatprep.subr.bf16.mxu0 0
        %3954 = vmatpush2.bf16.msra.mxu0 0
        %3955 = vmatprep.subr.bf16.mxu0 0
        %3956 = vmatpush2.bf16.msra.mxu0 0
        %3957 = vmatprep.subr.bf16.mxu0 0
        %3958 = vmatpush2.bf16.msra.mxu0 0
        %3959 = vmatprep.subr.bf16.mxu0 0
        %3960 = vmatpush2.bf16.msra.mxu0 0
        %3961 = vmatprep.subr.bf16.mxu0 0
        %3962 = vmatpush2.bf16.msra.mxu0 0
        %3963 = vmatprep.mubr.bf16.mxu0 0
        %3964 = vmatmul.mubr.bf16.gmra.mxu0 %v3774
        %v3965 = vpop.f32.mrf.mxu0
        %v3966 = vadd.f32 %v3893, %v3965
        %v3967 = vpop.f32.mrf.mxu0
        %v3968 = vadd.f32 %v3895, %v3967
        %v3969 = vpop.f32.mrf.mxu0
        %v3970 = vadd.f32 %v3897, %v3969
        %v3971 = vpop.f32.mrf.mxu0
        %v3972 = vadd.f32 %v3899, %v3971
        %3973 = vmatprep.mubr.bf16.mxu0 0
        %3974 = vmatmul.mubr.bf16.gmra.mxu0 %v3777
        %v3975 = vpop.f32.mrf.mxu0
        %v3976 = vadd.f32 %v3903, %v3975
        %v3977 = vpop.f32.mrf.mxu0
        %v3978 = vadd.f32 %v3905, %v3977
        %v3979 = vpop.f32.mrf.mxu0
        %v3980 = vadd.f32 %v3907, %v3979
        %v3981 = vpop.f32.mrf.mxu0
        %v3982 = vadd.f32 %v3909, %v3981
        %3983 = vmatprep.mubr.bf16.mxu0 0
        %3984 = vmatmul.mubr.bf16.gmra.mxu0 %v3780
        %v3985 = vpop.f32.mrf.mxu0
        %v3986 = vadd.f32 %v3913, %v3985
        %v3987 = vpop.f32.mrf.mxu0
        %v3988 = vadd.f32 %v3915, %v3987
        %v3989 = vpop.f32.mrf.mxu0
        %v3990 = vadd.f32 %v3917, %v3989
        %v3991 = vpop.f32.mrf.mxu0
        %v3992 = vadd.f32 %v3919, %v3991
        %3993 = vmatprep.mubr.bf16.mxu0 0
        %3994 = vmatmul.mubr.bf16.gmra.mxu0 %v3783
        %v3995 = vpop.f32.mrf.mxu0
        %v3996 = vadd.f32 %v3923, %v3995
        %v3997 = vpop.f32.mrf.mxu0
        %v3998 = vadd.f32 %v3925, %v3997
        %v3999 = vpop.f32.mrf.mxu0
        %v4000 = vadd.f32 %v3927, %v3999
        %v4001 = vpop.f32.mrf.mxu0
        %v4002 = vadd.f32 %v3929, %v4001
        %4003 = vdwg.mxu0
        %4004 = vmatprep.subr.bf16.mxu0 %v3515
        %4005 = vmatpush1.bf16.msra.mxu0 %v3514
        %4006 = vmatprep.subr.bf16.mxu0 %v3511
        %4007 = vmatpush1.bf16.msra.mxu0 %v3510
        %4008 = vmatprep.subr.bf16.mxu0 %v3507
        %4009 = vmatpush1.bf16.msra.mxu0 %v3506
        %4010 = vmatprep.subr.bf16.mxu0 %v3503
        %4011 = vmatpush1.bf16.msra.mxu0 %v3502
        %4012 = vmatprep.subr.bf16.mxu0 %v3499
        %4013 = vmatpush1.bf16.msra.mxu0 %v3498
        %4014 = vmatprep.subr.bf16.mxu0 %v3495
        %4015 = vmatpush1.bf16.msra.mxu0 %v3494
        %4016 = vmatprep.subr.bf16.mxu0 %v3491
        %4017 = vmatpush1.bf16.msra.mxu0 %v3490
        %4018 = vmatprep.subr.bf16.mxu0 %v3487
        %4019 = vmatpush1.bf16.msra.mxu0 %v3486
        %4020 = vmatprep.subr.bf16.mxu0 %v3547
        %4021 = vmatpush2.bf16.msra.mxu0 %v3546
        %4022 = vmatprep.subr.bf16.mxu0 %v3543
        %4023 = vmatpush2.bf16.msra.mxu0 %v3542
        %4024 = vmatprep.subr.bf16.mxu0 %v3539
        %4025 = vmatpush2.bf16.msra.mxu0 %v3538
        %4026 = vmatprep.subr.bf16.mxu0 %v3535
        %4027 = vmatpush2.bf16.msra.mxu0 %v3534
        %4028 = vmatprep.subr.bf16.mxu0 %v3531
        %4029 = vmatpush2.bf16.msra.mxu0 %v3530
        %4030 = vmatprep.subr.bf16.mxu0 %v3527
        %4031 = vmatpush2.bf16.msra.mxu0 %v3526
        %4032 = vmatprep.subr.bf16.mxu0 %v3523
        %4033 = vmatpush2.bf16.msra.mxu0 %v3522
        %4034 = vmatprep.subr.bf16.mxu0 %v3519
        %4035 = vmatpush2.bf16.msra.mxu0 %v3518
        %4036 = vmatprep.mubr.bf16.mxu0 %v3017
        %4037 = vmatmul.mubr.bf16.gmra.mxu0 %v3016
        %v4038 = vpop.f32.mrf.mxu0
        %v4039 = vadd.f32 0.0, %v4038
        %v4040 = vpop.f32.mrf.mxu0
        %v4041 = vadd.f32 0.0, %v4040
        %v4042 = vpop.f32.mrf.mxu0
        %v4043 = vadd.f32 0.0, %v4042
        %v4044 = vpop.f32.mrf.mxu0
        %v4045 = vadd.f32 0.0, %v4044
        %4046 = vmatprep.mubr.bf16.mxu0 %v3022
        %4047 = vmatmul.mubr.bf16.gmra.mxu0 %v3021
        %v4048 = vpop.f32.mrf.mxu0
        %v4049 = vadd.f32 0.0, %v4048
        %v4050 = vpop.f32.mrf.mxu0
        %v4051 = vadd.f32 0.0, %v4050
        %v4052 = vpop.f32.mrf.mxu0
        %v4053 = vadd.f32 0.0, %v4052
        %v4054 = vpop.f32.mrf.mxu0
        %v4055 = vadd.f32 0.0, %v4054
        %4056 = vmatprep.mubr.bf16.mxu0 %v3027
        %4057 = vmatmul.mubr.bf16.gmra.mxu0 %v3026
        %v4058 = vpop.f32.mrf.mxu0
        %v4059 = vadd.f32 0.0, %v4058
        %v4060 = vpop.f32.mrf.mxu0
        %v4061 = vadd.f32 0.0, %v4060
        %v4062 = vpop.f32.mrf.mxu0
        %v4063 = vadd.f32 0.0, %v4062
        %v4064 = vpop.f32.mrf.mxu0
        %v4065 = vadd.f32 0.0, %v4064
        %4066 = vmatprep.mubr.bf16.mxu0 %v3032
        %4067 = vmatmul.mubr.bf16.gmra.mxu0 %v3031
        %v4068 = vpop.f32.mrf.mxu0
        %v4069 = vadd.f32 0.0, %v4068
        %v4070 = vpop.f32.mrf.mxu0
        %v4071 = vadd.f32 0.0, %v4070
        %v4072 = vpop.f32.mrf.mxu0
        %v4073 = vadd.f32 0.0, %v4072
        %v4074 = vpop.f32.mrf.mxu0
        %v4075 = vadd.f32 0.0, %v4074
        %4076 = vdwg.mxu0
        %4077 = vmatprep.subr.bf16.mxu0 %v3579
        %4078 = vmatpush1.bf16.msra.mxu0 %v3578
        %4079 = vmatprep.subr.bf16.mxu0 %v3575
        %4080 = vmatpush1.bf16.msra.mxu0 %v3574
        %4081 = vmatprep.subr.bf16.mxu0 %v3571
        %4082 = vmatpush1.bf16.msra.mxu0 %v3570
        %4083 = vmatprep.subr.bf16.mxu0 %v3567
        %4084 = vmatpush1.bf16.msra.mxu0 %v3566
        %4085 = vmatprep.subr.bf16.mxu0 %v3563
        %4086 = vmatpush1.bf16.msra.mxu0 %v3562
        %4087 = vmatprep.subr.bf16.mxu0 %v3559
        %4088 = vmatpush1.bf16.msra.mxu0 %v3558
        %4089 = vmatprep.subr.bf16.mxu0 %v3555
        %4090 = vmatpush1.bf16.msra.mxu0 %v3554
        %4091 = vmatprep.subr.bf16.mxu0 %v3551
        %4092 = vmatpush1.bf16.msra.mxu0 %v3550
        %4093 = vmatprep.subr.bf16.mxu0 %v3611
        %4094 = vmatpush2.bf16.msra.mxu0 %v3610
        %4095 = vmatprep.subr.bf16.mxu0 %v3607
        %4096 = vmatpush2.bf16.msra.mxu0 %v3606
        %4097 = vmatprep.subr.bf16.mxu0 %v3603
        %4098 = vmatpush2.bf16.msra.mxu0 %v3602
        %4099 = vmatprep.subr.bf16.mxu0 %v3599
        %4100 = vmatpush2.bf16.msra.mxu0 %v3598
        %4101 = vmatprep.subr.bf16.mxu0 %v3595
        %4102 = vmatpush2.bf16.msra.mxu0 %v3594
        %4103 = vmatprep.subr.bf16.mxu0 %v3591
        %4104 = vmatpush2.bf16.msra.mxu0 %v3590
        %4105 = vmatprep.subr.bf16.mxu0 %v3587
        %4106 = vmatpush2.bf16.msra.mxu0 %v3586
        %4107 = vmatprep.subr.bf16.mxu0 %v3583
        %4108 = vmatpush2.bf16.msra.mxu0 %v3582
        %4109 = vmatprep.mubr.bf16.mxu0 %v3019
        %4110 = vmatmul.mubr.bf16.gmra.mxu0 %v3018
        %v4111 = vpop.f32.mrf.mxu0
        %v4112 = vadd.f32 %v4039, %v4111
        %v4113 = vpop.f32.mrf.mxu0
        %v4114 = vadd.f32 %v4041, %v4113
        %v4115 = vpop.f32.mrf.mxu0
        %v4116 = vadd.f32 %v4043, %v4115
        %v4117 = vpop.f32.mrf.mxu0
        %v4118 = vadd.f32 %v4045, %v4117
        %4119 = vmatprep.mubr.bf16.mxu0 %v3024
        %4120 = vmatmul.mubr.bf16.gmra.mxu0 %v3023
        %v4121 = vpop.f32.mrf.mxu0
        %v4122 = vadd.f32 %v4049, %v4121
        %v4123 = vpop.f32.mrf.mxu0
        %v4124 = vadd.f32 %v4051, %v4123
        %v4125 = vpop.f32.mrf.mxu0
        %v4126 = vadd.f32 %v4053, %v4125
        %v4127 = vpop.f32.mrf.mxu0
        %v4128 = vadd.f32 %v4055, %v4127
        %4129 = vmatprep.mubr.bf16.mxu0 %v3029
        %4130 = vmatmul.mubr.bf16.gmra.mxu0 %v3028
        %v4131 = vpop.f32.mrf.mxu0
        %v4132 = vadd.f32 %v4059, %v4131
        %v4133 = vpop.f32.mrf.mxu0
        %v4134 = vadd.f32 %v4061, %v4133
        %v4135 = vpop.f32.mrf.mxu0
        %v4136 = vadd.f32 %v4063, %v4135
        %v4137 = vpop.f32.mrf.mxu0
        %v4138 = vadd.f32 %v4065, %v4137
        %4139 = vmatprep.mubr.bf16.mxu0 %v3034
        %4140 = vmatmul.mubr.bf16.gmra.mxu0 %v3033
        %v4141 = vpop.f32.mrf.mxu0
        %v4142 = vadd.f32 %v4069, %v4141
        %v4143 = vpop.f32.mrf.mxu0
        %v4144 = vadd.f32 %v4071, %v4143
        %v4145 = vpop.f32.mrf.mxu0
        %v4146 = vadd.f32 %v4073, %v4145
        %v4147 = vpop.f32.mrf.mxu0
        %v4148 = vadd.f32 %v4075, %v4147
        %4149 = vdwg.mxu0
        %4150 = vmatprep.subr.bf16.mxu0 0
        %4151 = vmatpush1.bf16.msra.mxu0 0
        %4152 = vmatprep.subr.bf16.mxu0 0
        %4153 = vmatpush1.bf16.msra.mxu0 0
        %4154 = vmatprep.subr.bf16.mxu0 0
        %4155 = vmatpush1.bf16.msra.mxu0 0
        %4156 = vmatprep.subr.bf16.mxu0 0
        %4157 = vmatpush1.bf16.msra.mxu0 0
        %4158 = vmatprep.subr.bf16.mxu0 %v3627
        %4159 = vmatpush1.bf16.msra.mxu0 %v3626
        %4160 = vmatprep.subr.bf16.mxu0 %v3623
        %4161 = vmatpush1.bf16.msra.mxu0 %v3622
        %4162 = vmatprep.subr.bf16.mxu0 %v3619
        %4163 = vmatpush1.bf16.msra.mxu0 %v3618
        %4164 = vmatprep.subr.bf16.mxu0 %v3615
        %4165 = vmatpush1.bf16.msra.mxu0 %v3614
        %4166 = vmatprep.subr.bf16.mxu0 0
        %4167 = vmatpush2.bf16.msra.mxu0 0
        %4168 = vmatprep.subr.bf16.mxu0 0
        %4169 = vmatpush2.bf16.msra.mxu0 0
        %4170 = vmatprep.subr.bf16.mxu0 0
        %4171 = vmatpush2.bf16.msra.mxu0 0
        %4172 = vmatprep.subr.bf16.mxu0 0
        %4173 = vmatpush2.bf16.msra.mxu0 0
        %4174 = vmatprep.subr.bf16.mxu0 0
        %4175 = vmatpush2.bf16.msra.mxu0 0
        %4176 = vmatprep.subr.bf16.mxu0 0
        %4177 = vmatpush2.bf16.msra.mxu0 0
        %4178 = vmatprep.subr.bf16.mxu0 0
        %4179 = vmatpush2.bf16.msra.mxu0 0
        %4180 = vmatprep.subr.bf16.mxu0 0
        %4181 = vmatpush2.bf16.msra.mxu0 0
        %4182 = vmatprep.mubr.bf16.mxu0 0
        %4183 = vmatmul.mubr.bf16.gmra.mxu0 %v3774
        %v4184 = vpop.f32.mrf.mxu0
        %v4185 = vadd.f32 %v4112, %v4184
        %v4186 = vpop.f32.mrf.mxu0
        %v4187 = vadd.f32 %v4114, %v4186
        %v4188 = vpop.f32.mrf.mxu0
        %v4189 = vadd.f32 %v4116, %v4188
        %v4190 = vpop.f32.mrf.mxu0
        %v4191 = vadd.f32 %v4118, %v4190
        %4192 = vmatprep.mubr.bf16.mxu0 0
        %4193 = vmatmul.mubr.bf16.gmra.mxu0 %v3777
        %v4194 = vpop.f32.mrf.mxu0
        %v4195 = vadd.f32 %v4122, %v4194
        %v4196 = vpop.f32.mrf.mxu0
        %v4197 = vadd.f32 %v4124, %v4196
        %v4198 = vpop.f32.mrf.mxu0
        %v4199 = vadd.f32 %v4126, %v4198
        %v4200 = vpop.f32.mrf.mxu0
        %v4201 = vadd.f32 %v4128, %v4200
        %4202 = vmatprep.mubr.bf16.mxu0 0
        %4203 = vmatmul.mubr.bf16.gmra.mxu0 %v3780
        %v4204 = vpop.f32.mrf.mxu0
        %v4205 = vadd.f32 %v4132, %v4204
        %v4206 = vpop.f32.mrf.mxu0
        %v4207 = vadd.f32 %v4134, %v4206
        %v4208 = vpop.f32.mrf.mxu0
        %v4209 = vadd.f32 %v4136, %v4208
        %v4210 = vpop.f32.mrf.mxu0
        %v4211 = vadd.f32 %v4138, %v4210
        %4212 = vmatprep.mubr.bf16.mxu0 0
        %4213 = vmatmul.mubr.bf16.gmra.mxu0 %v3783
        %v4214 = vpop.f32.mrf.mxu0
        %v4215 = vadd.f32 %v4142, %v4214
        %v4216 = vpop.f32.mrf.mxu0
        %v4217 = vadd.f32 %v4144, %v4216
        %v4218 = vpop.f32.mrf.mxu0
        %v4219 = vadd.f32 %v4146, %v4218
        %v4220 = vpop.f32.mrf.mxu0
        %v4221 = vadd.f32 %v4148, %v4220
        %4222 = vdwg.mxu0
        %4223 = vst [vmem:[#allocation3] sm:$0xff] %v3966
        %4224 = vst [vmem:[#allocation3 + $0x8] sm:$0xff] %v3968
        %4225 = vst [vmem:[#allocation3 + $0x10] sm:$0xff] %v4185
        %4226 = vst [vmem:[#allocation3 + $0x18] sm:$0xff] %v4187
        %4227 = vst [vmem:[#allocation3 + $0x20] sm:$0xff] %v3970
        %4228 = vst [vmem:[#allocation3 + $0x28] sm:$0xff] %v3972
        %4229 = vst [vmem:[#allocation3 + $0x30] sm:$0xff] %v4189
        %4230 = vst [vmem:[#allocation3 + $0x38] sm:$0xff] %v4191
        %4231 = vst [vmem:[#allocation3 + $0x40] sm:$0xff] %v3976
        %4232 = vst [vmem:[#allocation3 + $0x48] sm:$0xff] %v3978
        %4233 = vst [vmem:[#allocation3 + $0x50] sm:$0xff] %v4195
        %4234 = vst [vmem:[#allocation3 + $0x58] sm:$0xff] %v4197
        %4235 = vst [vmem:[#allocation3 + $0x60] sm:$0xff] %v3980
        %4236 = vst [vmem:[#allocation3 + $0x68] sm:$0xff] %v3982
        %4237 = vst [vmem:[#allocation3 + $0x70] sm:$0xff] %v4199
        %4238 = vst [vmem:[#allocation3 + $0x78] sm:$0xff] %v4201
        %4239 = vst [vmem:[#allocation3 + $0x80] sm:$0xff] %v3986
        %4240 = vst [vmem:[#allocation3 + $0x88] sm:$0xff] %v3988
        %4241 = vst [vmem:[#allocation3 + $0x90] sm:$0xff] %v4205
        %4242 = vst [vmem:[#allocation3 + $0x98] sm:$0xff] %v4207
        %4243 = vst [vmem:[#allocation3 + $0xa0] sm:$0xff] %v3990
        %4244 = vst [vmem:[#allocation3 + $0xa8] sm:$0xff] %v3992
        %4245 = vst [vmem:[#allocation3 + $0xb0] sm:$0xff] %v4209
        %4246 = vst [vmem:[#allocation3 + $0xb8] sm:$0xff] %v4211
        %4247 = vst [vmem:[#allocation3 + $0xc0] sm:$0xff] %v3996
        %4248 = vst [vmem:[#allocation3 + $0xc8] sm:$0xff] %v3998
        %4249 = vst [vmem:[#allocation3 + $0xd0] sm:$0xff] %v4215
        %4250 = vst [vmem:[#allocation3 + $0xd8] sm:$0xff] %v4217
        %4251 = vst [vmem:[#allocation3 + $0xe0] sm:$0xff] %v4000
        %4252 = vst [vmem:[#allocation3 + $0xe8] sm:$0xff] %v4002
        %4253 = vst [vmem:[#allocation3 + $0xf0] sm:$0xff] %v4219
        %4254 = vst [vmem:[#allocation3 + $0xf8] sm:$0xff] %v4221
        %v4255 = vld [vmem:[#allocation3] sm:$0xff]
        %v4256 = vld [vmem:[#allocation3 + $0x8] sm:$0xff]
        %v4257 = vld [vmem:[#allocation3 + $0x20] sm:$0xff]
        %v4258 = vld [vmem:[#allocation3 + $0x28] sm:$0xff]
        %v4259 = vld [vmem:[#allocation3 + $0x40] sm:$0xff]
        %v4260 = vld [vmem:[#allocation3 + $0x48] sm:$0xff]
        %v4261 = vld [vmem:[#allocation3 + $0x60] sm:$0xff]
        %v4262 = vld [vmem:[#allocation3 + $0x68] sm:$0xff]
        %v4263 = vld [vmem:[#allocation3 + $0x80] sm:$0xff]
        %v4264 = vld [vmem:[#allocation3 + $0x88] sm:$0xff]
        %v4265 = vld [vmem:[#allocation3 + $0xa0] sm:$0xff]
        %v4266 = vld [vmem:[#allocation3 + $0xa8] sm:$0xff]
        %v4267 = vld [vmem:[#allocation3 + $0xc0] sm:$0xff]
        %v4268 = vld [vmem:[#allocation3 + $0xc8] sm:$0xff]
        %v4269 = vld [vmem:[#allocation3 + $0xe0] sm:$0xff]
        %v4270 = vld [vmem:[#allocation3 + $0xe8] sm:$0xff]
        %v4271 = vadd.f32 %v4255, %v4256
        %4272 = vadd.xlane.f32.xlu0 %v4271
        %v4273 = vpop.xlane.xlu0 %4272
        %v4274 = vadd.f32 %v4257, %v4258
        %4275 = vadd.xlane.f32.xlu0 %v4274
        %v4276 = vpop.xlane.xlu0 %4275
        %v4277 = vadd.f32 %v4259, %v4260
        %4278 = vadd.xlane.f32.xlu0 %v4277
        %v4279 = vpop.xlane.xlu0 %4278
        %v4280 = vadd.f32 %v4261, %v4262
        %4281 = vadd.xlane.f32.xlu0 %v4280
        %v4282 = vpop.xlane.xlu0 %4281
        %v4283 = vadd.f32 %v4263, %v4264
        %4284 = vadd.xlane.f32.xlu0 %v4283
        %v4285 = vpop.xlane.xlu0 %4284
        %v4286 = vadd.f32 %v4265, %v4266
        %4287 = vadd.xlane.f32.xlu0 %v4286
        %v4288 = vpop.xlane.xlu0 %4287
        %v4289 = vadd.f32 %v4267, %v4268
        %4290 = vadd.xlane.f32.xlu0 %v4289
        %v4291 = vpop.xlane.xlu0 %4290
        %v4292 = vadd.f32 %v4269, %v4270
        %4293 = vadd.xlane.f32.xlu0 %v4292
        %v4294 = vpop.xlane.xlu0 %4293
        %v4295 = vmul.f32 %v4273, 0.00390625
        %v4296 = vmul.f32 %v4276, 0.00390625
        %v4297 = vmul.f32 %v4279, 0.00390625
        %v4298 = vmul.f32 %v4282, 0.00390625
        %v4299 = vmul.f32 %v4285, 0.00390625
        %v4300 = vmul.f32 %v4288, 0.00390625
        %v4301 = vmul.f32 %v4291, 0.00390625
        %v4302 = vmul.f32 %v4294, 0.00390625
        %v4303 = vmul.f32 %v4255, %v4255
        %v4304 = vmul.f32 %v4256, %v4256
        %v4305 = vmul.f32 %v4257, %v4257
        %v4306 = vmul.f32 %v4258, %v4258
        %v4307 = vmul.f32 %v4259, %v4259
        %v4308 = vmul.f32 %v4260, %v4260
        %v4309 = vmul.f32 %v4261, %v4261
        %v4310 = vmul.f32 %v4262, %v4262
        %v4311 = vmul.f32 %v4263, %v4263
        %v4312 = vmul.f32 %v4264, %v4264
        %v4313 = vmul.f32 %v4265, %v4265
        %v4314 = vmul.f32 %v4266, %v4266
        %v4315 = vmul.f32 %v4267, %v4267
        %v4316 = vmul.f32 %v4268, %v4268
        %v4317 = vmul.f32 %v4269, %v4269
        %v4318 = vmul.f32 %v4270, %v4270
        %v4319 = vadd.f32 %v4303, %v4304
        %4320 = vadd.xlane.f32.xlu0 %v4319
        %v4321 = vpop.xlane.xlu0 %4320
        %v4322 = vadd.f32 %v4305, %v4306
        %4323 = vadd.xlane.f32.xlu0 %v4322
        %v4324 = vpop.xlane.xlu0 %4323
        %v4325 = vadd.f32 %v4307, %v4308
        %4326 = vadd.xlane.f32.xlu0 %v4325
        %v4327 = vpop.xlane.xlu0 %4326
        %v4328 = vadd.f32 %v4309, %v4310
        %4329 = vadd.xlane.f32.xlu0 %v4328
        %v4330 = vpop.xlane.xlu0 %4329
        %v4331 = vadd.f32 %v4311, %v4312
        %4332 = vadd.xlane.f32.xlu0 %v4331
        %v4333 = vpop.xlane.xlu0 %4332
        %v4334 = vadd.f32 %v4313, %v4314
        %4335 = vadd.xlane.f32.xlu0 %v4334
        %v4336 = vpop.xlane.xlu0 %4335
        %v4337 = vadd.f32 %v4315, %v4316
        %4338 = vadd.xlane.f32.xlu0 %v4337
        %v4339 = vpop.xlane.xlu0 %4338
        %v4340 = vadd.f32 %v4317, %v4318
        %4341 = vadd.xlane.f32.xlu0 %v4340
        %v4342 = vpop.xlane.xlu0 %4341
        %v4343 = vmul.f32 %v4321, 0.00390625
        %v4344 = vmul.f32 %v4324, 0.00390625
        %v4345 = vmul.f32 %v4327, 0.00390625
        %v4346 = vmul.f32 %v4330, 0.00390625
        %v4347 = vmul.f32 %v4333, 0.00390625
        %v4348 = vmul.f32 %v4336, 0.00390625
        %v4349 = vmul.f32 %v4339, 0.00390625
        %v4350 = vmul.f32 %v4342, 0.00390625
        %v4351 = vmul.f32 %v4295, %v4295
        %v4352 = vmul.f32 %v4296, %v4296
        %v4353 = vmul.f32 %v4297, %v4297
        %v4354 = vmul.f32 %v4298, %v4298
        %v4355 = vmul.f32 %v4299, %v4299
        %v4356 = vmul.f32 %v4300, %v4300
        %v4357 = vmul.f32 %v4301, %v4301
        %v4358 = vmul.f32 %v4302, %v4302
        %v4359 = vsub.f32 %v4343, %v4351
        %v4360 = vsub.f32 %v4344, %v4352
        %v4361 = vsub.f32 %v4345, %v4353
        %v4362 = vsub.f32 %v4346, %v4354
        %v4363 = vsub.f32 %v4347, %v4355
        %v4364 = vsub.f32 %v4348, %v4356
        %v4365 = vsub.f32 %v4349, %v4357
        %v4366 = vsub.f32 %v4350, %v4358
        %v4367 = vmax.f32 %v4359, 0.0
        %v4368 = vmax.f32 %v4360, 0.0
        %v4369 = vmax.f32 %v4361, 0.0
        %v4370 = vmax.f32 %v4362, 0.0
        %v4371 = vmax.f32 %v4363, 0.0
        %v4372 = vmax.f32 %v4364, 0.0
        %v4373 = vmax.f32 %v4365, 0.0
        %v4374 = vmax.f32 %v4366, 0.0
        %v4375 = vsub.f32 %v4255, %v4295
        %v4376 = vsub.f32 %v4256, %v4295
        %v4377 = vsub.f32 %v4257, %v4296
        %v4378 = vsub.f32 %v4258, %v4296
        %v4379 = vsub.f32 %v4259, %v4297
        %v4380 = vsub.f32 %v4260, %v4297
        %v4381 = vsub.f32 %v4261, %v4298
        %v4382 = vsub.f32 %v4262, %v4298
        %v4383 = vsub.f32 %v4263, %v4299
        %v4384 = vsub.f32 %v4264, %v4299
        %v4385 = vsub.f32 %v4265, %v4300
        %v4386 = vsub.f32 %v4266, %v4300
        %v4387 = vsub.f32 %v4267, %v4301
        %v4388 = vsub.f32 %v4268, %v4301
        %v4389 = vsub.f32 %v4269, %v4302
        %v4390 = vsub.f32 %v4270, %v4302
        %v4391 = vadd.f32 %v4367, 1e-05
        %v4392 = vadd.f32 %v4368, 1e-05
        %v4393 = vadd.f32 %v4369, 1e-05
        %v4394 = vadd.f32 %v4370, 1e-05
        %v4395 = vadd.f32 %v4371, 1e-05
        %v4396 = vadd.f32 %v4372, 1e-05
        %v4397 = vadd.f32 %v4373, 1e-05
        %v4398 = vadd.f32 %v4374, 1e-05
        %v4399 = vrsqrt.pop %v4391
        %v4400 = vrsqrt.pop %v4392
        %v4401 = vrsqrt.pop %v4393
        %v4402 = vrsqrt.pop %v4394
        %v4403 = vrsqrt.pop %v4395
        %v4404 = vrsqrt.pop %v4396
        %v4405 = vrsqrt.pop %v4397
        %v4406 = vrsqrt.pop %v4398
        %v4407 = vmul.f32 %v4375, %v4399
        %v4408 = vmul.f32 %v4376, %v4399
        %v4409 = vmul.f32 %v4377, %v4400
        %v4410 = vmul.f32 %v4378, %v4400
        %v4411 = vmul.f32 %v4379, %v4401
        %v4412 = vmul.f32 %v4380, %v4401
        %v4413 = vmul.f32 %v4381, %v4402
        %v4414 = vmul.f32 %v4382, %v4402
        %v4415 = vmul.f32 %v4383, %v4403
        %v4416 = vmul.f32 %v4384, %v4403
        %v4417 = vmul.f32 %v4385, %v4404
        %v4418 = vmul.f32 %v4386, %v4404
        %v4419 = vmul.f32 %v4387, %v4405
        %v4420 = vmul.f32 %v4388, %v4405
        %v4421 = vmul.f32 %v4389, %v4406
        %v4422 = vmul.f32 %v4390, %v4406
        %4424 = vset.pattern.permute.xlu0 0
        %4425 = vperm.xlu0 %4424, %v357
        %v4426 = vpop.permute.xlu0 %4425
        %4429 = vset.pattern.permute.xlu0 0
        %4430 = vperm.xlu0 %4429, %v358
        %v4431 = vpop.permute.xlu0 %4430
        %4434 = vset.pattern.permute.xlu0 0
        %4435 = vperm.xlu0 %4434, %v359
        %v4436 = vpop.permute.xlu0 %4435
        %4439 = vset.pattern.permute.xlu0 0
        %4440 = vperm.xlu0 %4439, %v360
        %v4441 = vpop.permute.xlu0 %4440
        %4444 = vset.pattern.permute.xlu0 0
        %4445 = vperm.xlu0 %4444, %v361
        %v4446 = vpop.permute.xlu0 %4445
        %4449 = vset.pattern.permute.xlu0 0
        %4450 = vperm.xlu0 %4449, %v362
        %v4451 = vpop.permute.xlu0 %4450
        %4454 = vset.pattern.permute.xlu0 0
        %4455 = vperm.xlu0 %4454, %v363
        %v4456 = vpop.permute.xlu0 %4455
        %4459 = vset.pattern.permute.xlu0 0
        %4460 = vperm.xlu0 %4459, %v364
        %v4461 = vpop.permute.xlu0 %4460
        %v4463 = vmul.f32 %v4407, %v4426
        %v4464 = vmul.f32 %v4408, %v4426
        %v4465 = vmul.f32 %v4409, %v4431
        %v4466 = vmul.f32 %v4410, %v4431
        %v4467 = vmul.f32 %v4411, %v4436
        %v4468 = vmul.f32 %v4412, %v4436
        %v4469 = vmul.f32 %v4413, %v4441
        %v4470 = vmul.f32 %v4414, %v4441
        %v4471 = vmul.f32 %v4415, %v4446
        %v4472 = vmul.f32 %v4416, %v4446
        %v4473 = vmul.f32 %v4417, %v4451
        %v4474 = vmul.f32 %v4418, %v4451
        %v4475 = vmul.f32 %v4419, %v4456
        %v4476 = vmul.f32 %v4420, %v4456
        %v4477 = vmul.f32 %v4421, %v4461
        %v4478 = vmul.f32 %v4422, %v4461
        %4480 = vset.pattern.permute.xlu0 0
        %4481 = vperm.xlu0 %4480, %v365
        %v4482 = vpop.permute.xlu0 %4481
        %4485 = vset.pattern.permute.xlu0 0
        %4486 = vperm.xlu0 %4485, %v366
        %v4487 = vpop.permute.xlu0 %4486
        %4490 = vset.pattern.permute.xlu0 0
        %4491 = vperm.xlu0 %4490, %v367
        %v4492 = vpop.permute.xlu0 %4491
        %4495 = vset.pattern.permute.xlu0 0
        %4496 = vperm.xlu0 %4495, %v368
        %v4497 = vpop.permute.xlu0 %4496
        %4500 = vset.pattern.permute.xlu0 0
        %4501 = vperm.xlu0 %4500, %v369
        %v4502 = vpop.permute.xlu0 %4501
        %4505 = vset.pattern.permute.xlu0 0
        %4506 = vperm.xlu0 %4505, %v370
        %v4507 = vpop.permute.xlu0 %4506
        %4510 = vset.pattern.permute.xlu0 0
        %4511 = vperm.xlu0 %4510, %v371
        %v4512 = vpop.permute.xlu0 %4511
        %4515 = vset.pattern.permute.xlu0 0
        %4516 = vperm.xlu0 %4515, %v372
        %v4517 = vpop.permute.xlu0 %4516
        %v4519 = vadd.f32 %v4463, %v4482
        %v4520 = vadd.f32 %v4464, %v4482
        %v4521 = vadd.f32 %v4465, %v4487
        %v4522 = vadd.f32 %v4466, %v4487
        %v4523 = vadd.f32 %v4467, %v4492
        %v4524 = vadd.f32 %v4468, %v4492
        %v4525 = vadd.f32 %v4469, %v4497
        %v4526 = vadd.f32 %v4470, %v4497
        %v4527 = vadd.f32 %v4471, %v4502
        %v4528 = vadd.f32 %v4472, %v4502
        %v4529 = vadd.f32 %v4473, %v4507
        %v4530 = vadd.f32 %v4474, %v4507
        %v4531 = vadd.f32 %v4475, %v4512
        %v4532 = vadd.f32 %v4476, %v4512
        %v4533 = vadd.f32 %v4477, %v4517
        %v4534 = vadd.f32 %v4478, %v4517
        %vm4535 = vcmp.ge.f32.partialorder %v4519, 0.0
        %vm4536 = vcmp.ge.f32.partialorder %v4520, 0.0
        %vm4537 = vcmp.ge.f32.partialorder %v4521, 0.0
        %vm4538 = vcmp.ge.f32.partialorder %v4522, 0.0
        %vm4539 = vcmp.ge.f32.partialorder %v4523, 0.0
        %vm4540 = vcmp.ge.f32.partialorder %v4524, 0.0
        %vm4541 = vcmp.ge.f32.partialorder %v4525, 0.0
        %vm4542 = vcmp.ge.f32.partialorder %v4526, 0.0
        %vm4543 = vcmp.ge.f32.partialorder %v4527, 0.0
        %vm4544 = vcmp.ge.f32.partialorder %v4528, 0.0
        %vm4545 = vcmp.ge.f32.partialorder %v4529, 0.0
        %vm4546 = vcmp.ge.f32.partialorder %v4530, 0.0
        %vm4547 = vcmp.ge.f32.partialorder %v4531, 0.0
        %vm4548 = vcmp.ge.f32.partialorder %v4532, 0.0
        %vm4549 = vcmp.ge.f32.partialorder %v4533, 0.0
        %vm4550 = vcmp.ge.f32.partialorder %v4534, 0.0
        %v4551 = vmul.f32 %v4519, 0.2
        %v4552 = vmul.f32 %v4520, 0.2
        %v4553 = vmul.f32 %v4521, 0.2
        %v4554 = vmul.f32 %v4522, 0.2
        %v4555 = vmul.f32 %v4523, 0.2
        %v4556 = vmul.f32 %v4524, 0.2
        %v4557 = vmul.f32 %v4525, 0.2
        %v4558 = vmul.f32 %v4526, 0.2
        %v4559 = vmul.f32 %v4527, 0.2
        %v4560 = vmul.f32 %v4528, 0.2
        %v4561 = vmul.f32 %v4529, 0.2
        %v4562 = vmul.f32 %v4530, 0.2
        %v4563 = vmul.f32 %v4531, 0.2
        %v4564 = vmul.f32 %v4532, 0.2
        %v4565 = vmul.f32 %v4533, 0.2
        %v4566 = vmul.f32 %v4534, 0.2
        %v4567 = vsel %vm4535, %v4519, %v4551
        %v4568 = vsel %vm4536, %v4520, %v4552
        %v4569 = vsel %vm4537, %v4521, %v4553
        %v4570 = vsel %vm4538, %v4522, %v4554
        %v4571 = vsel %vm4539, %v4523, %v4555
        %v4572 = vsel %vm4540, %v4524, %v4556
        %v4573 = vsel %vm4541, %v4525, %v4557
        %v4574 = vsel %vm4542, %v4526, %v4558
        %v4575 = vsel %vm4543, %v4527, %v4559
        %v4576 = vsel %vm4544, %v4528, %v4560
        %v4577 = vsel %vm4545, %v4529, %v4561
        %v4578 = vsel %vm4546, %v4530, %v4562
        %v4579 = vsel %vm4547, %v4531, %v4563
        %v4580 = vsel %vm4548, %v4532, %v4564
        %v4581 = vsel %vm4549, %v4533, %v4565
        %v4582 = vsel %vm4550, %v4534, %v4566
        %4583 = vrot.lane.b32.xlu0 %v4567, 17
        %v4584 = vpop.permute.xlu0 %4583
        %4585 = vrot.lane.b32.xlu0 %v4569, 17
        %v4586 = vpop.permute.xlu0 %4585
        %4587 = vrot.lane.b32.xlu0 %v4571, 17
        %v4588 = vpop.permute.xlu0 %4587
        %4589 = vrot.lane.b32.xlu0 %v4573, 17
        %v4590 = vpop.permute.xlu0 %4589
        %4591 = vrot.lane.b32.xlu0 %v4575, 17
        %v4592 = vpop.permute.xlu0 %4591
        %4593 = vrot.lane.b32.xlu0 %v4577, 17
        %v4594 = vpop.permute.xlu0 %4593
        %4595 = vrot.lane.b32.xlu0 %v4579, 17
        %v4596 = vpop.permute.xlu0 %4595
        %4597 = vrot.lane.b32.xlu0 %v4581, 17
        %v4598 = vpop.permute.xlu0 %4597
        %4599 = vrot.lane.b32.xlu0 %v4568, 17
        %v4600 = vpop.permute.xlu0 %4599
        %4601 = vrot.lane.b32.xlu0 %v4570, 17
        %v4602 = vpop.permute.xlu0 %4601
        %4603 = vrot.lane.b32.xlu0 %v4572, 17
        %v4604 = vpop.permute.xlu0 %4603
        %4605 = vrot.lane.b32.xlu0 %v4574, 17
        %v4606 = vpop.permute.xlu0 %4605
        %4607 = vrot.lane.b32.xlu0 %v4576, 17
        %v4608 = vpop.permute.xlu0 %4607
        %4609 = vrot.lane.b32.xlu0 %v4578, 17
        %v4610 = vpop.permute.xlu0 %4609
        %4611 = vrot.lane.b32.xlu0 %v4580, 17
        %v4612 = vpop.permute.xlu0 %4611
        %4613 = vrot.lane.b32.xlu0 %v4582, 17
        %v4614 = vpop.permute.xlu0 %4613
        %v4615 = vsel %vm439, %v4584, %v4600
        %v4616 = vsel %vm439, %v4586, %v4602
        %v4617 = vsel %vm439, %v4588, %v4604
        %v4618 = vsel %vm439, %v4590, %v4606
        %v4619 = vsel %vm439, %v4592, %v4608
        %v4620 = vsel %vm439, %v4594, %v4610
        %v4621 = vsel %vm439, %v4596, %v4612
        %v4622 = vsel %vm439, %v4598, %v4614
        %v4623 = vsel %vm439, %v4600, %v4584
        %v4624 = vsel %vm439, %v4602, %v4586
        %v4625 = vsel %vm439, %v4604, %v4588
        %v4626 = vsel %vm439, %v4606, %v4590
        %v4627 = vsel %vm439, %v4608, %v4592
        %v4628 = vsel %vm439, %v4610, %v4594
        %v4629 = vsel %vm439, %v4612, %v4596
        %v4630 = vsel %vm439, %v4614, %v4598
        %v4631 = vld [vmem:[#allocation9] sm:$0xff]
        %v4632 = vld [vmem:[#allocation9 + $0x8] sm:$0xff]
        %v4633 = vld [vmem:[#allocation9 + $0x10] sm:$0xff]
        %v4634 = vld [vmem:[#allocation9 + $0x18] sm:$0xff]
        %v4635 = vld [vmem:[#allocation9 + $0x20] sm:$0xff]
        %v4636 = vld [vmem:[#allocation9 + $0x28] sm:$0xff]
        %v4637 = vld [vmem:[#allocation9 + $0x30] sm:$0xff]
        %v4638 = vld [vmem:[#allocation9 + $0x38] sm:$0xff]
        %v4639 = vld [vmem:[#allocation9 + $0x40] sm:$0xff]
        %v4640 = vld [vmem:[#allocation9 + $0x48] sm:$0xff]
        %v4641 = vld [vmem:[#allocation9 + $0x50] sm:$0xff]
        %v4642 = vld [vmem:[#allocation9 + $0x58] sm:$0xff]
        %v4643 = vld [vmem:[#allocation9 + $0x60] sm:$0xff]
        %v4644 = vld [vmem:[#allocation9 + $0x68] sm:$0xff]
        %v4645 = vld [vmem:[#allocation9 + $0x70] sm:$0xff]
        %v4646 = vld [vmem:[#allocation9 + $0x78] sm:$0xff]
        %v4647 = vmul.f32 %v4623, %v4631
        %v4648 = vmul.f32 %v4615, %v4632
        %v4649 = vmul.f32 %v4624, %v4633
        %v4650 = vmul.f32 %v4616, %v4634
        %v4651 = vmul.f32 %v4625, %v4635
        %v4652 = vmul.f32 %v4617, %v4636
        %v4653 = vmul.f32 %v4626, %v4637
        %v4654 = vmul.f32 %v4618, %v4638
        %v4655 = vmul.f32 %v4627, %v4639
        %v4656 = vmul.f32 %v4619, %v4640
        %v4657 = vmul.f32 %v4628, %v4641
        %v4658 = vmul.f32 %v4620, %v4642
        %v4659 = vmul.f32 %v4629, %v4643
        %v4660 = vmul.f32 %v4621, %v4644
        %v4661 = vmul.f32 %v4630, %v4645
        %v4662 = vmul.f32 %v4622, %v4646
        %v4663 = vpack.c.bf16 %v4649, %v4647
        %v4664 = vpack.c.bf16 %v4650, %v4648
        %v4665 = vpack.c.bf16 %v4653, %v4651
        %v4666 = vpack.c.bf16 %v4654, %v4652
        %v4667 = vpack.c.bf16 %v4657, %v4655
        %v4668 = vpack.c.bf16 %v4658, %v4656
        %v4669 = vpack.c.bf16 %v4661, %v4659
        %v4670 = vpack.c.bf16 %v4662, %v4660
        %v4679 = vunpack.c.l.b16 %v4663
        %v4680 = vunpack.c.l.b16 %v4664
        %v4681 = vunpack.c.h.b16 %v4663
        %v4682 = vunpack.c.h.b16 %v4664
        %v4683 = vunpack.c.l.b16 %v4665
        %v4684 = vunpack.c.l.b16 %v4666
        %v4685 = vunpack.c.h.b16 %v4665
        %v4686 = vunpack.c.h.b16 %v4666
        %v4687 = vunpack.c.l.b16 %v4667
        %v4688 = vunpack.c.l.b16 %v4668
        %v4689 = vunpack.c.h.b16 %v4667
        %v4690 = vunpack.c.h.b16 %v4668
        %v4691 = vunpack.c.l.b16 %v4669
        %v4692 = vunpack.c.l.b16 %v4670
        %v4693 = vunpack.c.h.b16 %v4669
        %v4694 = vunpack.c.h.b16 %v4670
        %v4695 = vpack.c.b16 %v4680, %v4679
        %v4696 = vpack.c.b16 %v4682, %v4681
        %v4697 = vpack.c.b16 %v4684, %v4683
        %v4698 = vpack.c.b16 %v4686, %v4685
        %v4699 = vpack.c.b16 %v4688, %v4687
        %v4700 = vpack.c.b16 %v4690, %v4689
        %v4701 = vpack.c.b16 %v4692, %v4691
        %v4702 = vpack.c.b16 %v4694, %v4693
        %4711 = vst [vmem:[#allocation2] sm:$0xff] %v4695
        %4712 = vst [vmem:[#allocation2 + $0x10] sm:$0xff] %v4696
        %4713 = vst [vmem:[#allocation2 + $0x20] sm:$0xff] %v4697
        %4714 = vst [vmem:[#allocation2 + $0x30] sm:$0xff] %v4698
        %4715 = vst [vmem:[#allocation2 + $0x40] sm:$0xff] %v4699
        %4716 = vst [vmem:[#allocation2 + $0x50] sm:$0xff] %v4700
        %4717 = vst [vmem:[#allocation2 + $0x60] sm:$0xff] %v4701
        %4718 = vst [vmem:[#allocation2 + $0x70] sm:$0xff] %v4702
        %4719 = vrot.lane.b32.xlu0 %v4567, 16
        %v4720 = vpop.permute.xlu0 %4719
        %4721 = vrot.lane.b32.xlu0 %v4569, 16
        %v4722 = vpop.permute.xlu0 %4721
        %4723 = vrot.lane.b32.xlu0 %v4571, 16
        %v4724 = vpop.permute.xlu0 %4723
        %4725 = vrot.lane.b32.xlu0 %v4573, 16
        %v4726 = vpop.permute.xlu0 %4725
        %4727 = vrot.lane.b32.xlu0 %v4575, 16
        %v4728 = vpop.permute.xlu0 %4727
        %4729 = vrot.lane.b32.xlu0 %v4577, 16
        %v4730 = vpop.permute.xlu0 %4729
        %4731 = vrot.lane.b32.xlu0 %v4579, 16
        %v4732 = vpop.permute.xlu0 %4731
        %4733 = vrot.lane.b32.xlu0 %v4581, 16
        %v4734 = vpop.permute.xlu0 %4733
        %4735 = vrot.lane.b32.xlu0 %v4568, 16
        %v4736 = vpop.permute.xlu0 %4735
        %4737 = vrot.lane.b32.xlu0 %v4570, 16
        %v4738 = vpop.permute.xlu0 %4737
        %4739 = vrot.lane.b32.xlu0 %v4572, 16
        %v4740 = vpop.permute.xlu0 %4739
        %4741 = vrot.lane.b32.xlu0 %v4574, 16
        %v4742 = vpop.permute.xlu0 %4741
        %4743 = vrot.lane.b32.xlu0 %v4576, 16
        %v4744 = vpop.permute.xlu0 %4743
        %4745 = vrot.lane.b32.xlu0 %v4578, 16
        %v4746 = vpop.permute.xlu0 %4745
        %4747 = vrot.lane.b32.xlu0 %v4580, 16
        %v4748 = vpop.permute.xlu0 %4747
        %4749 = vrot.lane.b32.xlu0 %v4582, 16
        %v4750 = vpop.permute.xlu0 %4749
        %v4751 = vsel %vm576, %v4720, %v4736
        %v4752 = vsel %vm576, %v4722, %v4738
        %v4753 = vsel %vm576, %v4724, %v4740
        %v4754 = vsel %vm576, %v4726, %v4742
        %v4755 = vsel %vm576, %v4728, %v4744
        %v4756 = vsel %vm576, %v4730, %v4746
        %v4757 = vsel %vm576, %v4732, %v4748
        %v4758 = vsel %vm576, %v4734, %v4750
        %v4759 = vsel %vm576, %v4736, %v4720
        %v4760 = vsel %vm576, %v4738, %v4722
        %v4761 = vsel %vm576, %v4740, %v4724
        %v4762 = vsel %vm576, %v4742, %v4726
        %v4763 = vsel %vm576, %v4744, %v4728
        %v4764 = vsel %vm576, %v4746, %v4730
        %v4765 = vsel %vm576, %v4748, %v4732
        %v4766 = vsel %vm576, %v4750, %v4734
        %v4767 = vld [vmem:[#allocation9 + $0x80] sm:$0xff]
        %v4768 = vld [vmem:[#allocation9 + $0x88] sm:$0xff]
        %v4769 = vld [vmem:[#allocation9 + $0x90] sm:$0xff]
        %v4770 = vld [vmem:[#allocation9 + $0x98] sm:$0xff]
        %v4771 = vld [vmem:[#allocation9 + $0xa0] sm:$0xff]
        %v4772 = vld [vmem:[#allocation9 + $0xa8] sm:$0xff]
        %v4773 = vld [vmem:[#allocation9 + $0xb0] sm:$0xff]
        %v4774 = vld [vmem:[#allocation9 + $0xb8] sm:$0xff]
        %v4775 = vld [vmem:[#allocation9 + $0xc0] sm:$0xff]
        %v4776 = vld [vmem:[#allocation9 + $0xc8] sm:$0xff]
        %v4777 = vld [vmem:[#allocation9 + $0xd0] sm:$0xff]
        %v4778 = vld [vmem:[#allocation9 + $0xd8] sm:$0xff]
        %v4779 = vld [vmem:[#allocation9 + $0xe0] sm:$0xff]
        %v4780 = vld [vmem:[#allocation9 + $0xe8] sm:$0xff]
        %v4781 = vld [vmem:[#allocation9 + $0xf0] sm:$0xff]
        %v4782 = vld [vmem:[#allocation9 + $0xf8] sm:$0xff]
        %v4783 = vmul.f32 %v4759, %v4767
        %v4784 = vmul.f32 %v4751, %v4768
        %v4785 = vmul.f32 %v4760, %v4769
        %v4786 = vmul.f32 %v4752, %v4770
        %v4787 = vmul.f32 %v4761, %v4771
        %v4788 = vmul.f32 %v4753, %v4772
        %v4789 = vmul.f32 %v4762, %v4773
        %v4790 = vmul.f32 %v4754, %v4774
        %v4791 = vmul.f32 %v4763, %v4775
        %v4792 = vmul.f32 %v4755, %v4776
        %v4793 = vmul.f32 %v4764, %v4777
        %v4794 = vmul.f32 %v4756, %v4778
        %v4795 = vmul.f32 %v4765, %v4779
        %v4796 = vmul.f32 %v4757, %v4780
        %v4797 = vmul.f32 %v4766, %v4781
        %v4798 = vmul.f32 %v4758, %v4782
        %v4799 = vpack.c.bf16 %v4785, %v4783
        %v4800 = vpack.c.bf16 %v4786, %v4784
        %v4801 = vpack.c.bf16 %v4789, %v4787
        %v4802 = vpack.c.bf16 %v4790, %v4788
        %v4803 = vpack.c.bf16 %v4793, %v4791
        %v4804 = vpack.c.bf16 %v4794, %v4792
        %v4805 = vpack.c.bf16 %v4797, %v4795
        %v4806 = vpack.c.bf16 %v4798, %v4796
        %v4815 = vunpack.c.l.b16 %v4799
        %v4816 = vunpack.c.l.b16 %v4800
        %v4817 = vunpack.c.h.b16 %v4799
        %v4818 = vunpack.c.h.b16 %v4800
        %v4819 = vunpack.c.l.b16 %v4801
        %v4820 = vunpack.c.l.b16 %v4802
        %v4821 = vunpack.c.h.b16 %v4801
        %v4822 = vunpack.c.h.b16 %v4802
        %v4823 = vunpack.c.l.b16 %v4803
        %v4824 = vunpack.c.l.b16 %v4804
        %v4825 = vunpack.c.h.b16 %v4803
        %v4826 = vunpack.c.h.b16 %v4804
        %v4827 = vunpack.c.l.b16 %v4805
        %v4828 = vunpack.c.l.b16 %v4806
        %v4829 = vunpack.c.h.b16 %v4805
        %v4830 = vunpack.c.h.b16 %v4806
        %v4831 = vpack.c.b16 %v4816, %v4815
        %v4832 = vpack.c.b16 %v4818, %v4817
        %v4833 = vpack.c.b16 %v4820, %v4819
        %v4834 = vpack.c.b16 %v4822, %v4821
        %v4835 = vpack.c.b16 %v4824, %v4823
        %v4836 = vpack.c.b16 %v4826, %v4825
        %v4837 = vpack.c.b16 %v4828, %v4827
        %v4838 = vpack.c.b16 %v4830, %v4829
        %4847 = vst [vmem:[#allocation2 + $0x80] sm:$0xff] %v4831
        %4848 = vst [vmem:[#allocation2 + $0x90] sm:$0xff] %v4832
        %4849 = vst [vmem:[#allocation2 + $0xa0] sm:$0xff] %v4833
        %4850 = vst [vmem:[#allocation2 + $0xb0] sm:$0xff] %v4834
        %4851 = vst [vmem:[#allocation2 + $0xc0] sm:$0xff] %v4835
        %4852 = vst [vmem:[#allocation2 + $0xd0] sm:$0xff] %v4836
        %4853 = vst [vmem:[#allocation2 + $0xe0] sm:$0xff] %v4837
        %4854 = vst [vmem:[#allocation2 + $0xf0] sm:$0xff] %v4838
        %4855 = vrot.lane.b32.xlu0 %v4567, 15
        %v4856 = vpop.permute.xlu0 %4855
        %4857 = vrot.lane.b32.xlu0 %v4569, 15
        %v4858 = vpop.permute.xlu0 %4857
        %4859 = vrot.lane.b32.xlu0 %v4571, 15
        %v4860 = vpop.permute.xlu0 %4859
        %4861 = vrot.lane.b32.xlu0 %v4573, 15
        %v4862 = vpop.permute.xlu0 %4861
        %4863 = vrot.lane.b32.xlu0 %v4575, 15
        %v4864 = vpop.permute.xlu0 %4863
        %4865 = vrot.lane.b32.xlu0 %v4577, 15
        %v4866 = vpop.permute.xlu0 %4865
        %4867 = vrot.lane.b32.xlu0 %v4579, 15
        %v4868 = vpop.permute.xlu0 %4867
        %4869 = vrot.lane.b32.xlu0 %v4581, 15
        %v4870 = vpop.permute.xlu0 %4869
        %4871 = vrot.lane.b32.xlu0 %v4568, 15
        %v4872 = vpop.permute.xlu0 %4871
        %4873 = vrot.lane.b32.xlu0 %v4570, 15
        %v4874 = vpop.permute.xlu0 %4873
        %4875 = vrot.lane.b32.xlu0 %v4572, 15
        %v4876 = vpop.permute.xlu0 %4875
        %4877 = vrot.lane.b32.xlu0 %v4574, 15
        %v4878 = vpop.permute.xlu0 %4877
        %4879 = vrot.lane.b32.xlu0 %v4576, 15
        %v4880 = vpop.permute.xlu0 %4879
        %4881 = vrot.lane.b32.xlu0 %v4578, 15
        %v4882 = vpop.permute.xlu0 %4881
        %4883 = vrot.lane.b32.xlu0 %v4580, 15
        %v4884 = vpop.permute.xlu0 %4883
        %4885 = vrot.lane.b32.xlu0 %v4582, 15
        %v4886 = vpop.permute.xlu0 %4885
        %v4887 = vsel %vm713, %v4856, %v4872
        %v4888 = vsel %vm713, %v4858, %v4874
        %v4889 = vsel %vm713, %v4860, %v4876
        %v4890 = vsel %vm713, %v4862, %v4878
        %v4891 = vsel %vm713, %v4864, %v4880
        %v4892 = vsel %vm713, %v4866, %v4882
        %v4893 = vsel %vm713, %v4868, %v4884
        %v4894 = vsel %vm713, %v4870, %v4886
        %v4895 = vsel %vm713, %v4872, %v4856
        %v4896 = vsel %vm713, %v4874, %v4858
        %v4897 = vsel %vm713, %v4876, %v4860
        %v4898 = vsel %vm713, %v4878, %v4862
        %v4899 = vsel %vm713, %v4880, %v4864
        %v4900 = vsel %vm713, %v4882, %v4866
        %v4901 = vsel %vm713, %v4884, %v4868
        %v4902 = vsel %vm713, %v4886, %v4870
        %v4903 = vld [vmem:[#allocation9 + $0x100] sm:$0xff]
        %v4904 = vld [vmem:[#allocation9 + $0x108] sm:$0xff]
        %v4905 = vld [vmem:[#allocation9 + $0x110] sm:$0xff]
        %v4906 = vld [vmem:[#allocation9 + $0x118] sm:$0xff]
        %v4907 = vld [vmem:[#allocation9 + $0x120] sm:$0xff]
        %v4908 = vld [vmem:[#allocation9 + $0x128] sm:$0xff]
        %v4909 = vld [vmem:[#allocation9 + $0x130] sm:$0xff]
        %v4910 = vld [vmem:[#allocation9 + $0x138] sm:$0xff]
        %v4911 = vld [vmem:[#allocation9 + $0x140] sm:$0xff]
        %v4912 = vld [vmem:[#allocation9 + $0x148] sm:$0xff]
        %v4913 = vld [vmem:[#allocation9 + $0x150] sm:$0xff]
        %v4914 = vld [vmem:[#allocation9 + $0x158] sm:$0xff]
        %v4915 = vld [vmem:[#allocation9 + $0x160] sm:$0xff]
        %v4916 = vld [vmem:[#allocation9 + $0x168] sm:$0xff]
        %v4917 = vld [vmem:[#allocation9 + $0x170] sm:$0xff]
        %v4918 = vld [vmem:[#allocation9 + $0x178] sm:$0xff]
        %v4919 = vmul.f32 %v4895, %v4903
        %v4920 = vmul.f32 %v4887, %v4904
        %v4921 = vmul.f32 %v4896, %v4905
        %v4922 = vmul.f32 %v4888, %v4906
        %v4923 = vmul.f32 %v4897, %v4907
        %v4924 = vmul.f32 %v4889, %v4908
        %v4925 = vmul.f32 %v4898, %v4909
        %v4926 = vmul.f32 %v4890, %v4910
        %v4927 = vmul.f32 %v4899, %v4911
        %v4928 = vmul.f32 %v4891, %v4912
        %v4929 = vmul.f32 %v4900, %v4913
        %v4930 = vmul.f32 %v4892, %v4914
        %v4931 = vmul.f32 %v4901, %v4915
        %v4932 = vmul.f32 %v4893, %v4916
        %v4933 = vmul.f32 %v4902, %v4917
        %v4934 = vmul.f32 %v4894, %v4918
        %v4935 = vpack.c.bf16 %v4921, %v4919
        %v4936 = vpack.c.bf16 %v4922, %v4920
        %v4937 = vpack.c.bf16 %v4925, %v4923
        %v4938 = vpack.c.bf16 %v4926, %v4924
        %v4939 = vpack.c.bf16 %v4929, %v4927
        %v4940 = vpack.c.bf16 %v4930, %v4928
        %v4941 = vpack.c.bf16 %v4933, %v4931
        %v4942 = vpack.c.bf16 %v4934, %v4932
        %v4951 = vunpack.c.l.b16 %v4935
        %v4952 = vunpack.c.l.b16 %v4936
        %v4953 = vunpack.c.h.b16 %v4935
        %v4954 = vunpack.c.h.b16 %v4936
        %v4955 = vunpack.c.l.b16 %v4937
        %v4956 = vunpack.c.l.b16 %v4938
        %v4957 = vunpack.c.h.b16 %v4937
        %v4958 = vunpack.c.h.b16 %v4938
        %v4959 = vunpack.c.l.b16 %v4939
        %v4960 = vunpack.c.l.b16 %v4940
        %v4961 = vunpack.c.h.b16 %v4939
        %v4962 = vunpack.c.h.b16 %v4940
        %v4963 = vunpack.c.l.b16 %v4941
        %v4964 = vunpack.c.l.b16 %v4942
        %v4965 = vunpack.c.h.b16 %v4941
        %v4966 = vunpack.c.h.b16 %v4942
        %v4967 = vpack.c.b16 %v4952, %v4951
        %v4968 = vpack.c.b16 %v4954, %v4953
        %v4969 = vpack.c.b16 %v4956, %v4955
        %v4970 = vpack.c.b16 %v4958, %v4957
        %v4971 = vpack.c.b16 %v4960, %v4959
        %v4972 = vpack.c.b16 %v4962, %v4961
        %v4973 = vpack.c.b16 %v4964, %v4963
        %v4974 = vpack.c.b16 %v4966, %v4965
        %4983 = vst [vmem:[#allocation2 + $0x100] sm:$0xff] %v4967
        %4984 = vst [vmem:[#allocation2 + $0x110] sm:$0xff] %v4968
        %4985 = vst [vmem:[#allocation2 + $0x120] sm:$0xff] %v4969
        %4986 = vst [vmem:[#allocation2 + $0x130] sm:$0xff] %v4970
        %4987 = vst [vmem:[#allocation2 + $0x140] sm:$0xff] %v4971
        %4988 = vst [vmem:[#allocation2 + $0x150] sm:$0xff] %v4972
        %4989 = vst [vmem:[#allocation2 + $0x160] sm:$0xff] %v4973
        %4990 = vst [vmem:[#allocation2 + $0x170] sm:$0xff] %v4974
        %4991 = vrot.lane.b32.xlu0 %v4567, 1
        %v4992 = vpop.permute.xlu0 %4991
        %4993 = vrot.lane.b32.xlu0 %v4569, 1
        %v4994 = vpop.permute.xlu0 %4993
        %4995 = vrot.lane.b32.xlu0 %v4571, 1
        %v4996 = vpop.permute.xlu0 %4995
        %4997 = vrot.lane.b32.xlu0 %v4573, 1
        %v4998 = vpop.permute.xlu0 %4997
        %4999 = vrot.lane.b32.xlu0 %v4575, 1
        %v5000 = vpop.permute.xlu0 %4999
        %5001 = vrot.lane.b32.xlu0 %v4577, 1
        %v5002 = vpop.permute.xlu0 %5001
        %5003 = vrot.lane.b32.xlu0 %v4579, 1
        %v5004 = vpop.permute.xlu0 %5003
        %5005 = vrot.lane.b32.xlu0 %v4581, 1
        %v5006 = vpop.permute.xlu0 %5005
        %5007 = vrot.lane.b32.xlu0 %v4568, 1
        %v5008 = vpop.permute.xlu0 %5007
        %5009 = vrot.lane.b32.xlu0 %v4570, 1
        %v5010 = vpop.permute.xlu0 %5009
        %5011 = vrot.lane.b32.xlu0 %v4572, 1
        %v5012 = vpop.permute.xlu0 %5011
        %5013 = vrot.lane.b32.xlu0 %v4574, 1
        %v5014 = vpop.permute.xlu0 %5013
        %5015 = vrot.lane.b32.xlu0 %v4576, 1
        %v5016 = vpop.permute.xlu0 %5015
        %5017 = vrot.lane.b32.xlu0 %v4578, 1
        %v5018 = vpop.permute.xlu0 %5017
        %5019 = vrot.lane.b32.xlu0 %v4580, 1
        %v5020 = vpop.permute.xlu0 %5019
        %5021 = vrot.lane.b32.xlu0 %v4582, 1
        %v5022 = vpop.permute.xlu0 %5021
        %v5023 = vsel %vm850, %v4992, %v5008
        %v5024 = vsel %vm850, %v4994, %v5010
        %v5025 = vsel %vm850, %v4996, %v5012
        %v5026 = vsel %vm850, %v4998, %v5014
        %v5027 = vsel %vm850, %v5000, %v5016
        %v5028 = vsel %vm850, %v5002, %v5018
        %v5029 = vsel %vm850, %v5004, %v5020
        %v5030 = vsel %vm850, %v5006, %v5022
        %v5031 = vsel %vm850, %v5008, %v4992
        %v5032 = vsel %vm850, %v5010, %v4994
        %v5033 = vsel %vm850, %v5012, %v4996
        %v5034 = vsel %vm850, %v5014, %v4998
        %v5035 = vsel %vm850, %v5016, %v5000
        %v5036 = vsel %vm850, %v5018, %v5002
        %v5037 = vsel %vm850, %v5020, %v5004
        %v5038 = vsel %vm850, %v5022, %v5006
        %v5039 = vld [vmem:[#allocation9 + $0x180] sm:$0xff]
        %v5040 = vld [vmem:[#allocation9 + $0x188] sm:$0xff]
        %v5041 = vld [vmem:[#allocation9 + $0x190] sm:$0xff]
        %v5042 = vld [vmem:[#allocation9 + $0x198] sm:$0xff]
        %v5043 = vld [vmem:[#allocation9 + $0x1a0] sm:$0xff]
        %v5044 = vld [vmem:[#allocation9 + $0x1a8] sm:$0xff]
        %v5045 = vld [vmem:[#allocation9 + $0x1b0] sm:$0xff]
        %v5046 = vld [vmem:[#allocation9 + $0x1b8] sm:$0xff]
        %v5047 = vld [vmem:[#allocation9 + $0x1c0] sm:$0xff]
        %v5048 = vld [vmem:[#allocation9 + $0x1c8] sm:$0xff]
        %v5049 = vld [vmem:[#allocation9 + $0x1d0] sm:$0xff]
        %v5050 = vld [vmem:[#allocation9 + $0x1d8] sm:$0xff]
        %v5051 = vld [vmem:[#allocation9 + $0x1e0] sm:$0xff]
        %v5052 = vld [vmem:[#allocation9 + $0x1e8] sm:$0xff]
        %v5053 = vld [vmem:[#allocation9 + $0x1f0] sm:$0xff]
        %v5054 = vld [vmem:[#allocation9 + $0x1f8] sm:$0xff]
        %v5055 = vmul.f32 %v5031, %v5039
        %v5056 = vmul.f32 %v5023, %v5040
        %v5057 = vmul.f32 %v5032, %v5041
        %v5058 = vmul.f32 %v5024, %v5042
        %v5059 = vmul.f32 %v5033, %v5043
        %v5060 = vmul.f32 %v5025, %v5044
        %v5061 = vmul.f32 %v5034, %v5045
        %v5062 = vmul.f32 %v5026, %v5046
        %v5063 = vmul.f32 %v5035, %v5047
        %v5064 = vmul.f32 %v5027, %v5048
        %v5065 = vmul.f32 %v5036, %v5049
        %v5066 = vmul.f32 %v5028, %v5050
        %v5067 = vmul.f32 %v5037, %v5051
        %v5068 = vmul.f32 %v5029, %v5052
        %v5069 = vmul.f32 %v5038, %v5053
        %v5070 = vmul.f32 %v5030, %v5054
        %v5071 = vpack.c.bf16 %v5057, %v5055
        %v5072 = vpack.c.bf16 %v5058, %v5056
        %v5073 = vpack.c.bf16 %v5061, %v5059
        %v5074 = vpack.c.bf16 %v5062, %v5060
        %v5075 = vpack.c.bf16 %v5065, %v5063
        %v5076 = vpack.c.bf16 %v5066, %v5064
        %v5077 = vpack.c.bf16 %v5069, %v5067
        %v5078 = vpack.c.bf16 %v5070, %v5068
        %v5087 = vunpack.c.l.b16 %v5071
        %v5088 = vunpack.c.l.b16 %v5072
        %v5089 = vunpack.c.h.b16 %v5071
        %v5090 = vunpack.c.h.b16 %v5072
        %v5091 = vunpack.c.l.b16 %v5073
        %v5092 = vunpack.c.l.b16 %v5074
        %v5093 = vunpack.c.h.b16 %v5073
        %v5094 = vunpack.c.h.b16 %v5074
        %v5095 = vunpack.c.l.b16 %v5075
        %v5096 = vunpack.c.l.b16 %v5076
        %v5097 = vunpack.c.h.b16 %v5075
        %v5098 = vunpack.c.h.b16 %v5076
        %v5099 = vunpack.c.l.b16 %v5077
        %v5100 = vunpack.c.l.b16 %v5078
        %v5101 = vunpack.c.h.b16 %v5077
        %v5102 = vunpack.c.h.b16 %v5078
        %v5103 = vpack.c.b16 %v5088, %v5087
        %v5104 = vpack.c.b16 %v5090, %v5089
        %v5105 = vpack.c.b16 %v5092, %v5091
        %v5106 = vpack.c.b16 %v5094, %v5093
        %v5107 = vpack.c.b16 %v5096, %v5095
        %v5108 = vpack.c.b16 %v5098, %v5097
        %v5109 = vpack.c.b16 %v5100, %v5099
        %v5110 = vpack.c.b16 %v5102, %v5101
        %5119 = vst [vmem:[#allocation2 + $0x180] sm:$0xff] %v5103
        %5120 = vst [vmem:[#allocation2 + $0x190] sm:$0xff] %v5104
        %5121 = vst [vmem:[#allocation2 + $0x1a0] sm:$0xff] %v5105
        %5122 = vst [vmem:[#allocation2 + $0x1b0] sm:$0xff] %v5106
        %5123 = vst [vmem:[#allocation2 + $0x1c0] sm:$0xff] %v5107
        %5124 = vst [vmem:[#allocation2 + $0x1d0] sm:$0xff] %v5108
        %5125 = vst [vmem:[#allocation2 + $0x1e0] sm:$0xff] %v5109
        %5126 = vst [vmem:[#allocation2 + $0x1f0] sm:$0xff] %v5110
        %v5127 = vld [vmem:[#allocation9 + $0x200] sm:$0xff]
        %v5128 = vld [vmem:[#allocation9 + $0x208] sm:$0xff]
        %v5129 = vld [vmem:[#allocation9 + $0x210] sm:$0xff]
        %v5130 = vld [vmem:[#allocation9 + $0x218] sm:$0xff]
        %v5131 = vld [vmem:[#allocation9 + $0x220] sm:$0xff]
        %v5132 = vld [vmem:[#allocation9 + $0x228] sm:$0xff]
        %v5133 = vld [vmem:[#allocation9 + $0x230] sm:$0xff]
        %v5134 = vld [vmem:[#allocation9 + $0x238] sm:$0xff]
        %v5135 = vld [vmem:[#allocation9 + $0x240] sm:$0xff]
        %v5136 = vld [vmem:[#allocation9 + $0x248] sm:$0xff]
        %v5137 = vld [vmem:[#allocation9 + $0x250] sm:$0xff]
        %v5138 = vld [vmem:[#allocation9 + $0x258] sm:$0xff]
        %v5139 = vld [vmem:[#allocation9 + $0x260] sm:$0xff]
        %v5140 = vld [vmem:[#allocation9 + $0x268] sm:$0xff]
        %v5141 = vld [vmem:[#allocation9 + $0x270] sm:$0xff]
        %v5142 = vld [vmem:[#allocation9 + $0x278] sm:$0xff]
        %v5143 = vmul.f32 %v4567, %v5127
        %v5144 = vmul.f32 %v4568, %v5128
        %v5145 = vmul.f32 %v4569, %v5129
        %v5146 = vmul.f32 %v4570, %v5130
        %v5147 = vmul.f32 %v4571, %v5131
        %v5148 = vmul.f32 %v4572, %v5132
        %v5149 = vmul.f32 %v4573, %v5133
        %v5150 = vmul.f32 %v4574, %v5134
        %v5151 = vmul.f32 %v4575, %v5135
        %v5152 = vmul.f32 %v4576, %v5136
        %v5153 = vmul.f32 %v4577, %v5137
        %v5154 = vmul.f32 %v4578, %v5138
        %v5155 = vmul.f32 %v4579, %v5139
        %v5156 = vmul.f32 %v4580, %v5140
        %v5157 = vmul.f32 %v4581, %v5141
        %v5158 = vmul.f32 %v4582, %v5142
        %v5159 = vpack.c.bf16 %v5145, %v5143
        %v5160 = vpack.c.bf16 %v5146, %v5144
        %v5161 = vpack.c.bf16 %v5149, %v5147
        %v5162 = vpack.c.bf16 %v5150, %v5148
        %v5163 = vpack.c.bf16 %v5153, %v5151
        %v5164 = vpack.c.bf16 %v5154, %v5152
        %v5165 = vpack.c.bf16 %v5157, %v5155
        %v5166 = vpack.c.bf16 %v5158, %v5156
        %v5175 = vunpack.c.l.b16 %v5159
        %v5176 = vunpack.c.l.b16 %v5160
        %v5177 = vunpack.c.h.b16 %v5159
        %v5178 = vunpack.c.h.b16 %v5160
        %v5179 = vunpack.c.l.b16 %v5161
        %v5180 = vunpack.c.l.b16 %v5162
        %v5181 = vunpack.c.h.b16 %v5161
        %v5182 = vunpack.c.h.b16 %v5162
        %v5183 = vunpack.c.l.b16 %v5163
        %v5184 = vunpack.c.l.b16 %v5164
        %v5185 = vunpack.c.h.b16 %v5163
        %v5186 = vunpack.c.h.b16 %v5164
        %v5187 = vunpack.c.l.b16 %v5165
        %v5188 = vunpack.c.l.b16 %v5166
        %v5189 = vunpack.c.h.b16 %v5165
        %v5190 = vunpack.c.h.b16 %v5166
        %v5191 = vpack.c.b16 %v5176, %v5175
        %v5192 = vpack.c.b16 %v5178, %v5177
        %v5193 = vpack.c.b16 %v5180, %v5179
        %v5194 = vpack.c.b16 %v5182, %v5181
        %v5195 = vpack.c.b16 %v5184, %v5183
        %v5196 = vpack.c.b16 %v5186, %v5185
        %v5197 = vpack.c.b16 %v5188, %v5187
        %v5198 = vpack.c.b16 %v5190, %v5189
        %5207 = vst [vmem:[#allocation2 + $0x200] sm:$0xff] %v5191
        %5208 = vst [vmem:[#allocation2 + $0x210] sm:$0xff] %v5192
        %5209 = vst [vmem:[#allocation2 + $0x220] sm:$0xff] %v5193
        %5210 = vst [vmem:[#allocation2 + $0x230] sm:$0xff] %v5194
        %5211 = vst [vmem:[#allocation2 + $0x240] sm:$0xff] %v5195
        %5212 = vst [vmem:[#allocation2 + $0x250] sm:$0xff] %v5196
        %5213 = vst [vmem:[#allocation2 + $0x260] sm:$0xff] %v5197
        %5214 = vst [vmem:[#allocation2 + $0x270] sm:$0xff] %v5198
        %5215 = vrot.lane.b32.xlu0 %v4567, 127
        %v5216 = vpop.permute.xlu0 %5215
        %5217 = vrot.lane.b32.xlu0 %v4569, 127
        %v5218 = vpop.permute.xlu0 %5217
        %5219 = vrot.lane.b32.xlu0 %v4571, 127
        %v5220 = vpop.permute.xlu0 %5219
        %5221 = vrot.lane.b32.xlu0 %v4573, 127
        %v5222 = vpop.permute.xlu0 %5221
        %5223 = vrot.lane.b32.xlu0 %v4575, 127
        %v5224 = vpop.permute.xlu0 %5223
        %5225 = vrot.lane.b32.xlu0 %v4577, 127
        %v5226 = vpop.permute.xlu0 %5225
        %5227 = vrot.lane.b32.xlu0 %v4579, 127
        %v5228 = vpop.permute.xlu0 %5227
        %5229 = vrot.lane.b32.xlu0 %v4581, 127
        %v5230 = vpop.permute.xlu0 %5229
        %5231 = vrot.lane.b32.xlu0 %v4568, 127
        %v5232 = vpop.permute.xlu0 %5231
        %5233 = vrot.lane.b32.xlu0 %v4570, 127
        %v5234 = vpop.permute.xlu0 %5233
        %5235 = vrot.lane.b32.xlu0 %v4572, 127
        %v5236 = vpop.permute.xlu0 %5235
        %5237 = vrot.lane.b32.xlu0 %v4574, 127
        %v5238 = vpop.permute.xlu0 %5237
        %5239 = vrot.lane.b32.xlu0 %v4576, 127
        %v5240 = vpop.permute.xlu0 %5239
        %5241 = vrot.lane.b32.xlu0 %v4578, 127
        %v5242 = vpop.permute.xlu0 %5241
        %5243 = vrot.lane.b32.xlu0 %v4580, 127
        %v5244 = vpop.permute.xlu0 %5243
        %5245 = vrot.lane.b32.xlu0 %v4582, 127
        %v5246 = vpop.permute.xlu0 %5245
        %v5247 = vsel %vm1075, %v5216, %v5232
        %v5248 = vsel %vm1075, %v5218, %v5234
        %v5249 = vsel %vm1075, %v5220, %v5236
        %v5250 = vsel %vm1075, %v5222, %v5238
        %v5251 = vsel %vm1075, %v5224, %v5240
        %v5252 = vsel %vm1075, %v5226, %v5242
        %v5253 = vsel %vm1075, %v5228, %v5244
        %v5254 = vsel %vm1075, %v5230, %v5246
        %v5255 = vsel %vm1075, %v5232, %v5216
        %v5256 = vsel %vm1075, %v5234, %v5218
        %v5257 = vsel %vm1075, %v5236, %v5220
        %v5258 = vsel %vm1075, %v5238, %v5222
        %v5259 = vsel %vm1075, %v5240, %v5224
        %v5260 = vsel %vm1075, %v5242, %v5226
        %v5261 = vsel %vm1075, %v5244, %v5228
        %v5262 = vsel %vm1075, %v5246, %v5230
        %v5263 = vld [vmem:[#allocation9 + $0x280] sm:$0xff]
        %v5264 = vld [vmem:[#allocation9 + $0x288] sm:$0xff]
        %v5265 = vld [vmem:[#allocation9 + $0x290] sm:$0xff]
        %v5266 = vld [vmem:[#allocation9 + $0x298] sm:$0xff]
        %v5267 = vld [vmem:[#allocation9 + $0x2a0] sm:$0xff]
        %v5268 = vld [vmem:[#allocation9 + $0x2a8] sm:$0xff]
        %v5269 = vld [vmem:[#allocation9 + $0x2b0] sm:$0xff]
        %v5270 = vld [vmem:[#allocation9 + $0x2b8] sm:$0xff]
        %v5271 = vld [vmem:[#allocation9 + $0x2c0] sm:$0xff]
        %v5272 = vld [vmem:[#allocation9 + $0x2c8] sm:$0xff]
        %v5273 = vld [vmem:[#allocation9 + $0x2d0] sm:$0xff]
        %v5274 = vld [vmem:[#allocation9 + $0x2d8] sm:$0xff]
        %v5275 = vld [vmem:[#allocation9 + $0x2e0] sm:$0xff]
        %v5276 = vld [vmem:[#allocation9 + $0x2e8] sm:$0xff]
        %v5277 = vld [vmem:[#allocation9 + $0x2f0] sm:$0xff]
        %v5278 = vld [vmem:[#allocation9 + $0x2f8] sm:$0xff]
        %v5279 = vmul.f32 %v5247, %v5263
        %v5280 = vmul.f32 %v5255, %v5264
        %v5281 = vmul.f32 %v5248, %v5265
        %v5282 = vmul.f32 %v5256, %v5266
        %v5283 = vmul.f32 %v5249, %v5267
        %v5284 = vmul.f32 %v5257, %v5268
        %v5285 = vmul.f32 %v5250, %v5269
        %v5286 = vmul.f32 %v5258, %v5270
        %v5287 = vmul.f32 %v5251, %v5271
        %v5288 = vmul.f32 %v5259, %v5272
        %v5289 = vmul.f32 %v5252, %v5273
        %v5290 = vmul.f32 %v5260, %v5274
        %v5291 = vmul.f32 %v5253, %v5275
        %v5292 = vmul.f32 %v5261, %v5276
        %v5293 = vmul.f32 %v5254, %v5277
        %v5294 = vmul.f32 %v5262, %v5278
        %v5295 = vpack.c.bf16 %v5281, %v5279
        %v5296 = vpack.c.bf16 %v5282, %v5280
        %v5297 = vpack.c.bf16 %v5285, %v5283
        %v5298 = vpack.c.bf16 %v5286, %v5284
        %v5299 = vpack.c.bf16 %v5289, %v5287
        %v5300 = vpack.c.bf16 %v5290, %v5288
        %v5301 = vpack.c.bf16 %v5293, %v5291
        %v5302 = vpack.c.bf16 %v5294, %v5292
        %v5311 = vunpack.c.l.b16 %v5295
        %v5312 = vunpack.c.l.b16 %v5296
        %v5313 = vunpack.c.h.b16 %v5295
        %v5314 = vunpack.c.h.b16 %v5296
        %v5315 = vunpack.c.l.b16 %v5297
        %v5316 = vunpack.c.l.b16 %v5298
        %v5317 = vunpack.c.h.b16 %v5297
        %v5318 = vunpack.c.h.b16 %v5298
        %v5319 = vunpack.c.l.b16 %v5299
        %v5320 = vunpack.c.l.b16 %v5300
        %v5321 = vunpack.c.h.b16 %v5299
        %v5322 = vunpack.c.h.b16 %v5300
        %v5323 = vunpack.c.l.b16 %v5301
        %v5324 = vunpack.c.l.b16 %v5302
        %v5325 = vunpack.c.h.b16 %v5301
        %v5326 = vunpack.c.h.b16 %v5302
        %v5327 = vpack.c.b16 %v5312, %v5311
        %v5328 = vpack.c.b16 %v5314, %v5313
        %v5329 = vpack.c.b16 %v5316, %v5315
        %v5330 = vpack.c.b16 %v5318, %v5317
        %v5331 = vpack.c.b16 %v5320, %v5319
        %v5332 = vpack.c.b16 %v5322, %v5321
        %v5333 = vpack.c.b16 %v5324, %v5323
        %v5334 = vpack.c.b16 %v5326, %v5325
        %5343 = vst [vmem:[#allocation2 + $0x280] sm:$0xff] %v5327
        %5344 = vst [vmem:[#allocation2 + $0x290] sm:$0xff] %v5328
        %5345 = vst [vmem:[#allocation2 + $0x2a0] sm:$0xff] %v5329
        %5346 = vst [vmem:[#allocation2 + $0x2b0] sm:$0xff] %v5330
        %5347 = vst [vmem:[#allocation2 + $0x2c0] sm:$0xff] %v5331
        %5348 = vst [vmem:[#allocation2 + $0x2d0] sm:$0xff] %v5332
        %5349 = vst [vmem:[#allocation2 + $0x2e0] sm:$0xff] %v5333
        %5350 = vst [vmem:[#allocation2 + $0x2f0] sm:$0xff] %v5334
        %5351 = vrot.lane.b32.xlu0 %v4567, 113
        %v5352 = vpop.permute.xlu0 %5351
        %5353 = vrot.lane.b32.xlu0 %v4569, 113
        %v5354 = vpop.permute.xlu0 %5353
        %5355 = vrot.lane.b32.xlu0 %v4571, 113
        %v5356 = vpop.permute.xlu0 %5355
        %5357 = vrot.lane.b32.xlu0 %v4573, 113
        %v5358 = vpop.permute.xlu0 %5357
        %5359 = vrot.lane.b32.xlu0 %v4575, 113
        %v5360 = vpop.permute.xlu0 %5359
        %5361 = vrot.lane.b32.xlu0 %v4577, 113
        %v5362 = vpop.permute.xlu0 %5361
        %5363 = vrot.lane.b32.xlu0 %v4579, 113
        %v5364 = vpop.permute.xlu0 %5363
        %5365 = vrot.lane.b32.xlu0 %v4581, 113
        %v5366 = vpop.permute.xlu0 %5365
        %5367 = vrot.lane.b32.xlu0 %v4568, 113
        %v5368 = vpop.permute.xlu0 %5367
        %5369 = vrot.lane.b32.xlu0 %v4570, 113
        %v5370 = vpop.permute.xlu0 %5369
        %5371 = vrot.lane.b32.xlu0 %v4572, 113
        %v5372 = vpop.permute.xlu0 %5371
        %5373 = vrot.lane.b32.xlu0 %v4574, 113
        %v5374 = vpop.permute.xlu0 %5373
        %5375 = vrot.lane.b32.xlu0 %v4576, 113
        %v5376 = vpop.permute.xlu0 %5375
        %5377 = vrot.lane.b32.xlu0 %v4578, 113
        %v5378 = vpop.permute.xlu0 %5377
        %5379 = vrot.lane.b32.xlu0 %v4580, 113
        %v5380 = vpop.permute.xlu0 %5379
        %5381 = vrot.lane.b32.xlu0 %v4582, 113
        %v5382 = vpop.permute.xlu0 %5381
        %v5383 = vsel %vm1212, %v5352, %v5368
        %v5384 = vsel %vm1212, %v5354, %v5370
        %v5385 = vsel %vm1212, %v5356, %v5372
        %v5386 = vsel %vm1212, %v5358, %v5374
        %v5387 = vsel %vm1212, %v5360, %v5376
        %v5388 = vsel %vm1212, %v5362, %v5378
        %v5389 = vsel %vm1212, %v5364, %v5380
        %v5390 = vsel %vm1212, %v5366, %v5382
        %v5391 = vsel %vm1212, %v5368, %v5352
        %v5392 = vsel %vm1212, %v5370, %v5354
        %v5393 = vsel %vm1212, %v5372, %v5356
        %v5394 = vsel %vm1212, %v5374, %v5358
        %v5395 = vsel %vm1212, %v5376, %v5360
        %v5396 = vsel %vm1212, %v5378, %v5362
        %v5397 = vsel %vm1212, %v5380, %v5364
        %v5398 = vsel %vm1212, %v5382, %v5366
        %v5399 = vld [vmem:[#allocation9 + $0x300] sm:$0xff]
        %v5400 = vld [vmem:[#allocation9 + $0x308] sm:$0xff]
        %v5401 = vld [vmem:[#allocation9 + $0x310] sm:$0xff]
        %v5402 = vld [vmem:[#allocation9 + $0x318] sm:$0xff]
        %v5403 = vld [vmem:[#allocation9 + $0x320] sm:$0xff]
        %v5404 = vld [vmem:[#allocation9 + $0x328] sm:$0xff]
        %v5405 = vld [vmem:[#allocation9 + $0x330] sm:$0xff]
        %v5406 = vld [vmem:[#allocation9 + $0x338] sm:$0xff]
        %v5407 = vld [vmem:[#allocation9 + $0x340] sm:$0xff]
        %v5408 = vld [vmem:[#allocation9 + $0x348] sm:$0xff]
        %v5409 = vld [vmem:[#allocation9 + $0x350] sm:$0xff]
        %v5410 = vld [vmem:[#allocation9 + $0x358] sm:$0xff]
        %v5411 = vld [vmem:[#allocation9 + $0x360] sm:$0xff]
        %v5412 = vld [vmem:[#allocation9 + $0x368] sm:$0xff]
        %v5413 = vld [vmem:[#allocation9 + $0x370] sm:$0xff]
        %v5414 = vld [vmem:[#allocation9 + $0x378] sm:$0xff]
        %v5415 = vmul.f32 %v5383, %v5399
        %v5416 = vmul.f32 %v5391, %v5400
        %v5417 = vmul.f32 %v5384, %v5401
        %v5418 = vmul.f32 %v5392, %v5402
        %v5419 = vmul.f32 %v5385, %v5403
        %v5420 = vmul.f32 %v5393, %v5404
        %v5421 = vmul.f32 %v5386, %v5405
        %v5422 = vmul.f32 %v5394, %v5406
        %v5423 = vmul.f32 %v5387, %v5407
        %v5424 = vmul.f32 %v5395, %v5408
        %v5425 = vmul.f32 %v5388, %v5409
        %v5426 = vmul.f32 %v5396, %v5410
        %v5427 = vmul.f32 %v5389, %v5411
        %v5428 = vmul.f32 %v5397, %v5412
        %v5429 = vmul.f32 %v5390, %v5413
        %v5430 = vmul.f32 %v5398, %v5414
        %v5431 = vpack.c.bf16 %v5417, %v5415
        %v5432 = vpack.c.bf16 %v5418, %v5416
        %v5433 = vpack.c.bf16 %v5421, %v5419
        %v5434 = vpack.c.bf16 %v5422, %v5420
        %v5435 = vpack.c.bf16 %v5425, %v5423
        %v5436 = vpack.c.bf16 %v5426, %v5424
        %v5437 = vpack.c.bf16 %v5429, %v5427
        %v5438 = vpack.c.bf16 %v5430, %v5428
        %v5447 = vunpack.c.l.b16 %v5431
        %v5448 = vunpack.c.l.b16 %v5432
        %v5449 = vunpack.c.h.b16 %v5431
        %v5450 = vunpack.c.h.b16 %v5432
        %v5451 = vunpack.c.l.b16 %v5433
        %v5452 = vunpack.c.l.b16 %v5434
        %v5453 = vunpack.c.h.b16 %v5433
        %v5454 = vunpack.c.h.b16 %v5434
        %v5455 = vunpack.c.l.b16 %v5435
        %v5456 = vunpack.c.l.b16 %v5436
        %v5457 = vunpack.c.h.b16 %v5435
        %v5458 = vunpack.c.h.b16 %v5436
        %v5459 = vunpack.c.l.b16 %v5437
        %v5460 = vunpack.c.l.b16 %v5438
        %v5461 = vunpack.c.h.b16 %v5437
        %v5462 = vunpack.c.h.b16 %v5438
        %v5463 = vpack.c.b16 %v5448, %v5447
        %v5464 = vpack.c.b16 %v5450, %v5449
        %v5465 = vpack.c.b16 %v5452, %v5451
        %v5466 = vpack.c.b16 %v5454, %v5453
        %v5467 = vpack.c.b16 %v5456, %v5455
        %v5468 = vpack.c.b16 %v5458, %v5457
        %v5469 = vpack.c.b16 %v5460, %v5459
        %v5470 = vpack.c.b16 %v5462, %v5461
        %5479 = vst [vmem:[#allocation2 + $0x300] sm:$0xff] %v5463
        %5480 = vst [vmem:[#allocation2 + $0x310] sm:$0xff] %v5464
        %5481 = vst [vmem:[#allocation2 + $0x320] sm:$0xff] %v5465
        %5482 = vst [vmem:[#allocation2 + $0x330] sm:$0xff] %v5466
        %5483 = vst [vmem:[#allocation2 + $0x340] sm:$0xff] %v5467
        %5484 = vst [vmem:[#allocation2 + $0x350] sm:$0xff] %v5468
        %5485 = vst [vmem:[#allocation2 + $0x360] sm:$0xff] %v5469
        %5486 = vst [vmem:[#allocation2 + $0x370] sm:$0xff] %v5470
        %5487 = vrot.lane.b32.xlu0 %v4567, 112
        %v5488 = vpop.permute.xlu0 %5487
        %5489 = vrot.lane.b32.xlu0 %v4569, 112
        %v5490 = vpop.permute.xlu0 %5489
        %5491 = vrot.lane.b32.xlu0 %v4571, 112
        %v5492 = vpop.permute.xlu0 %5491
        %5493 = vrot.lane.b32.xlu0 %v4573, 112
        %v5494 = vpop.permute.xlu0 %5493
        %5495 = vrot.lane.b32.xlu0 %v4575, 112
        %v5496 = vpop.permute.xlu0 %5495
        %5497 = vrot.lane.b32.xlu0 %v4577, 112
        %v5498 = vpop.permute.xlu0 %5497
        %5499 = vrot.lane.b32.xlu0 %v4579, 112
        %v5500 = vpop.permute.xlu0 %5499
        %5501 = vrot.lane.b32.xlu0 %v4581, 112
        %v5502 = vpop.permute.xlu0 %5501
        %5503 = vrot.lane.b32.xlu0 %v4568, 112
        %v5504 = vpop.permute.xlu0 %5503
        %5505 = vrot.lane.b32.xlu0 %v4570, 112
        %v5506 = vpop.permute.xlu0 %5505
        %5507 = vrot.lane.b32.xlu0 %v4572, 112
        %v5508 = vpop.permute.xlu0 %5507
        %5509 = vrot.lane.b32.xlu0 %v4574, 112
        %v5510 = vpop.permute.xlu0 %5509
        %5511 = vrot.lane.b32.xlu0 %v4576, 112
        %v5512 = vpop.permute.xlu0 %5511
        %5513 = vrot.lane.b32.xlu0 %v4578, 112
        %v5514 = vpop.permute.xlu0 %5513
        %5515 = vrot.lane.b32.xlu0 %v4580, 112
        %v5516 = vpop.permute.xlu0 %5515
        %5517 = vrot.lane.b32.xlu0 %v4582, 112
        %v5518 = vpop.permute.xlu0 %5517
        %v5519 = vsel %vm1349, %v5488, %v5504
        %v5520 = vsel %vm1349, %v5490, %v5506
        %v5521 = vsel %vm1349, %v5492, %v5508
        %v5522 = vsel %vm1349, %v5494, %v5510
        %v5523 = vsel %vm1349, %v5496, %v5512
        %v5524 = vsel %vm1349, %v5498, %v5514
        %v5525 = vsel %vm1349, %v5500, %v5516
        %v5526 = vsel %vm1349, %v5502, %v5518
        %v5527 = vsel %vm1349, %v5504, %v5488
        %v5528 = vsel %vm1349, %v5506, %v5490
        %v5529 = vsel %vm1349, %v5508, %v5492
        %v5530 = vsel %vm1349, %v5510, %v5494
        %v5531 = vsel %vm1349, %v5512, %v5496
        %v5532 = vsel %vm1349, %v5514, %v5498
        %v5533 = vsel %vm1349, %v5516, %v5500
        %v5534 = vsel %vm1349, %v5518, %v5502
        %v5535 = vld [vmem:[#allocation9 + $0x380] sm:$0xff]
        %v5536 = vld [vmem:[#allocation9 + $0x388] sm:$0xff]
        %v5537 = vld [vmem:[#allocation9 + $0x390] sm:$0xff]
        %v5538 = vld [vmem:[#allocation9 + $0x398] sm:$0xff]
        %v5539 = vld [vmem:[#allocation9 + $0x3a0] sm:$0xff]
        %v5540 = vld [vmem:[#allocation9 + $0x3a8] sm:$0xff]
        %v5541 = vld [vmem:[#allocation9 + $0x3b0] sm:$0xff]
        %v5542 = vld [vmem:[#allocation9 + $0x3b8] sm:$0xff]
        %v5543 = vld [vmem:[#allocation9 + $0x3c0] sm:$0xff]
        %v5544 = vld [vmem:[#allocation9 + $0x3c8] sm:$0xff]
        %v5545 = vld [vmem:[#allocation9 + $0x3d0] sm:$0xff]
        %v5546 = vld [vmem:[#allocation9 + $0x3d8] sm:$0xff]
        %v5547 = vld [vmem:[#allocation9 + $0x3e0] sm:$0xff]
        %v5548 = vld [vmem:[#allocation9 + $0x3e8] sm:$0xff]
        %v5549 = vld [vmem:[#allocation9 + $0x3f0] sm:$0xff]
        %v5550 = vld [vmem:[#allocation9 + $0x3f8] sm:$0xff]
        %v5551 = vmul.f32 %v5519, %v5535
        %v5552 = vmul.f32 %v5527, %v5536
        %v5553 = vmul.f32 %v5520, %v5537
        %v5554 = vmul.f32 %v5528, %v5538
        %v5555 = vmul.f32 %v5521, %v5539
        %v5556 = vmul.f32 %v5529, %v5540
        %v5557 = vmul.f32 %v5522, %v5541
        %v5558 = vmul.f32 %v5530, %v5542
        %v5559 = vmul.f32 %v5523, %v5543
        %v5560 = vmul.f32 %v5531, %v5544
        %v5561 = vmul.f32 %v5524, %v5545
        %v5562 = vmul.f32 %v5532, %v5546
        %v5563 = vmul.f32 %v5525, %v5547
        %v5564 = vmul.f32 %v5533, %v5548
        %v5565 = vmul.f32 %v5526, %v5549
        %v5566 = vmul.f32 %v5534, %v5550
        %v5567 = vpack.c.bf16 %v5553, %v5551
        %v5568 = vpack.c.bf16 %v5554, %v5552
        %v5569 = vpack.c.bf16 %v5557, %v5555
        %v5570 = vpack.c.bf16 %v5558, %v5556
        %v5571 = vpack.c.bf16 %v5561, %v5559
        %v5572 = vpack.c.bf16 %v5562, %v5560
        %v5573 = vpack.c.bf16 %v5565, %v5563
        %v5574 = vpack.c.bf16 %v5566, %v5564
        %v5583 = vunpack.c.l.b16 %v5567
        %v5584 = vunpack.c.l.b16 %v5568
        %v5585 = vunpack.c.h.b16 %v5567
        %v5586 = vunpack.c.h.b16 %v5568
        %v5587 = vunpack.c.l.b16 %v5569
        %v5588 = vunpack.c.l.b16 %v5570
        %v5589 = vunpack.c.h.b16 %v5569
        %v5590 = vunpack.c.h.b16 %v5570
        %v5591 = vunpack.c.l.b16 %v5571
        %v5592 = vunpack.c.l.b16 %v5572
        %v5593 = vunpack.c.h.b16 %v5571
        %v5594 = vunpack.c.h.b16 %v5572
        %v5595 = vunpack.c.l.b16 %v5573
        %v5596 = vunpack.c.l.b16 %v5574
        %v5597 = vunpack.c.h.b16 %v5573
        %v5598 = vunpack.c.h.b16 %v5574
        %v5599 = vpack.c.b16 %v5584, %v5583
        %v5600 = vpack.c.b16 %v5586, %v5585
        %v5601 = vpack.c.b16 %v5588, %v5587
        %v5602 = vpack.c.b16 %v5590, %v5589
        %v5603 = vpack.c.b16 %v5592, %v5591
        %v5604 = vpack.c.b16 %v5594, %v5593
        %v5605 = vpack.c.b16 %v5596, %v5595
        %v5606 = vpack.c.b16 %v5598, %v5597
        %5615 = vst [vmem:[#allocation2 + $0x380] sm:$0xff] %v5599
        %5616 = vst [vmem:[#allocation2 + $0x390] sm:$0xff] %v5600
        %5617 = vst [vmem:[#allocation2 + $0x3a0] sm:$0xff] %v5601
        %5618 = vst [vmem:[#allocation2 + $0x3b0] sm:$0xff] %v5602
        %5619 = vst [vmem:[#allocation2 + $0x3c0] sm:$0xff] %v5603
        %5620 = vst [vmem:[#allocation2 + $0x3d0] sm:$0xff] %v5604
        %5621 = vst [vmem:[#allocation2 + $0x3e0] sm:$0xff] %v5605
        %5622 = vst [vmem:[#allocation2 + $0x3f0] sm:$0xff] %v5606
        %5623 = vrot.lane.b32.xlu0 %v4567, 111
        %v5624 = vpop.permute.xlu0 %5623
        %5625 = vrot.lane.b32.xlu0 %v4569, 111
        %v5626 = vpop.permute.xlu0 %5625
        %5627 = vrot.lane.b32.xlu0 %v4571, 111
        %v5628 = vpop.permute.xlu0 %5627
        %5629 = vrot.lane.b32.xlu0 %v4573, 111
        %v5630 = vpop.permute.xlu0 %5629
        %5631 = vrot.lane.b32.xlu0 %v4575, 111
        %v5632 = vpop.permute.xlu0 %5631
        %5633 = vrot.lane.b32.xlu0 %v4577, 111
        %v5634 = vpop.permute.xlu0 %5633
        %5635 = vrot.lane.b32.xlu0 %v4579, 111
        %v5636 = vpop.permute.xlu0 %5635
        %5637 = vrot.lane.b32.xlu0 %v4581, 111
        %v5638 = vpop.permute.xlu0 %5637
        %5639 = vrot.lane.b32.xlu0 %v4568, 111
        %v5640 = vpop.permute.xlu0 %5639
        %5641 = vrot.lane.b32.xlu0 %v4570, 111
        %v5642 = vpop.permute.xlu0 %5641
        %5643 = vrot.lane.b32.xlu0 %v4572, 111
        %v5644 = vpop.permute.xlu0 %5643
        %5645 = vrot.lane.b32.xlu0 %v4574, 111
        %v5646 = vpop.permute.xlu0 %5645
        %5647 = vrot.lane.b32.xlu0 %v4576, 111
        %v5648 = vpop.permute.xlu0 %5647
        %5649 = vrot.lane.b32.xlu0 %v4578, 111
        %v5650 = vpop.permute.xlu0 %5649
        %5651 = vrot.lane.b32.xlu0 %v4580, 111
        %v5652 = vpop.permute.xlu0 %5651
        %5653 = vrot.lane.b32.xlu0 %v4582, 111
        %v5654 = vpop.permute.xlu0 %5653
        %v5655 = vsel %vm1486, %v5624, %v5640
        %v5656 = vsel %vm1486, %v5626, %v5642
        %v5657 = vsel %vm1486, %v5628, %v5644
        %v5658 = vsel %vm1486, %v5630, %v5646
        %v5659 = vsel %vm1486, %v5632, %v5648
        %v5660 = vsel %vm1486, %v5634, %v5650
        %v5661 = vsel %vm1486, %v5636, %v5652
        %v5662 = vsel %vm1486, %v5638, %v5654
        %v5663 = vsel %vm1486, %v5640, %v5624
        %v5664 = vsel %vm1486, %v5642, %v5626
        %v5665 = vsel %vm1486, %v5644, %v5628
        %v5666 = vsel %vm1486, %v5646, %v5630
        %v5667 = vsel %vm1486, %v5648, %v5632
        %v5668 = vsel %vm1486, %v5650, %v5634
        %v5669 = vsel %vm1486, %v5652, %v5636
        %v5670 = vsel %vm1486, %v5654, %v5638
        %v5671 = vld [vmem:[#allocation9 + $0x400] sm:$0xff]
        %v5672 = vld [vmem:[#allocation9 + $0x408] sm:$0xff]
        %v5673 = vld [vmem:[#allocation9 + $0x410] sm:$0xff]
        %v5674 = vld [vmem:[#allocation9 + $0x418] sm:$0xff]
        %v5675 = vld [vmem:[#allocation9 + $0x420] sm:$0xff]
        %v5676 = vld [vmem:[#allocation9 + $0x428] sm:$0xff]
        %v5677 = vld [vmem:[#allocation9 + $0x430] sm:$0xff]
        %v5678 = vld [vmem:[#allocation9 + $0x438] sm:$0xff]
        %v5679 = vld [vmem:[#allocation9 + $0x440] sm:$0xff]
        %v5680 = vld [vmem:[#allocation9 + $0x448] sm:$0xff]
        %v5681 = vld [vmem:[#allocation9 + $0x450] sm:$0xff]
        %v5682 = vld [vmem:[#allocation9 + $0x458] sm:$0xff]
        %v5683 = vld [vmem:[#allocation9 + $0x460] sm:$0xff]
        %v5684 = vld [vmem:[#allocation9 + $0x468] sm:$0xff]
        %v5685 = vld [vmem:[#allocation9 + $0x470] sm:$0xff]
        %v5686 = vld [vmem:[#allocation9 + $0x478] sm:$0xff]
        %v5687 = vmul.f32 %v5655, %v5671
        %v5688 = vmul.f32 %v5663, %v5672
        %v5689 = vmul.f32 %v5656, %v5673
        %v5690 = vmul.f32 %v5664, %v5674
        %v5691 = vmul.f32 %v5657, %v5675
        %v5692 = vmul.f32 %v5665, %v5676
        %v5693 = vmul.f32 %v5658, %v5677
        %v5694 = vmul.f32 %v5666, %v5678
        %v5695 = vmul.f32 %v5659, %v5679
        %v5696 = vmul.f32 %v5667, %v5680
        %v5697 = vmul.f32 %v5660, %v5681
        %v5698 = vmul.f32 %v5668, %v5682
        %v5699 = vmul.f32 %v5661, %v5683
        %v5700 = vmul.f32 %v5669, %v5684
        %v5701 = vmul.f32 %v5662, %v5685
        %v5702 = vmul.f32 %v5670, %v5686
        %v5703 = vpack.c.bf16 %v5689, %v5687
        %v5704 = vpack.c.bf16 %v5690, %v5688
        %v5705 = vpack.c.bf16 %v5693, %v5691
        %v5706 = vpack.c.bf16 %v5694, %v5692
        %v5707 = vpack.c.bf16 %v5697, %v5695
        %v5708 = vpack.c.bf16 %v5698, %v5696
        %v5709 = vpack.c.bf16 %v5701, %v5699
        %v5710 = vpack.c.bf16 %v5702, %v5700
        %v5719 = vunpack.c.l.b16 %v5703
        %v5720 = vunpack.c.l.b16 %v5704
        %v5721 = vunpack.c.h.b16 %v5703
        %v5722 = vunpack.c.h.b16 %v5704
        %v5723 = vunpack.c.l.b16 %v5705
        %v5724 = vunpack.c.l.b16 %v5706
        %v5725 = vunpack.c.h.b16 %v5705
        %v5726 = vunpack.c.h.b16 %v5706
        %v5727 = vunpack.c.l.b16 %v5707
        %v5728 = vunpack.c.l.b16 %v5708
        %v5729 = vunpack.c.h.b16 %v5707
        %v5730 = vunpack.c.h.b16 %v5708
        %v5731 = vunpack.c.l.b16 %v5709
        %v5732 = vunpack.c.l.b16 %v5710
        %v5733 = vunpack.c.h.b16 %v5709
        %v5734 = vunpack.c.h.b16 %v5710
        %v5735 = vpack.c.b16 %v5720, %v5719
        %v5736 = vpack.c.b16 %v5722, %v5721
        %v5737 = vpack.c.b16 %v5724, %v5723
        %v5738 = vpack.c.b16 %v5726, %v5725
        %v5739 = vpack.c.b16 %v5728, %v5727
        %v5740 = vpack.c.b16 %v5730, %v5729
        %v5741 = vpack.c.b16 %v5732, %v5731
        %v5742 = vpack.c.b16 %v5734, %v5733
        %5751 = vst [vmem:[#allocation2 + $0x400] sm:$0xff] %v5735
        %5752 = vst [vmem:[#allocation2 + $0x410] sm:$0xff] %v5736
        %5753 = vst [vmem:[#allocation2 + $0x420] sm:$0xff] %v5737
        %5754 = vst [vmem:[#allocation2 + $0x430] sm:$0xff] %v5738
        %5755 = vst [vmem:[#allocation2 + $0x440] sm:$0xff] %v5739
        %5756 = vst [vmem:[#allocation2 + $0x450] sm:$0xff] %v5740
        %5757 = vst [vmem:[#allocation2 + $0x460] sm:$0xff] %v5741
        %5758 = vst [vmem:[#allocation2 + $0x470] sm:$0xff] %v5742
        %v5759 = vld [vmem:[#allocation3 + $0x10] sm:$0xff]
        %v5760 = vld [vmem:[#allocation3 + $0x18] sm:$0xff]
        %v5761 = vld [vmem:[#allocation3 + $0x30] sm:$0xff]
        %v5762 = vld [vmem:[#allocation3 + $0x38] sm:$0xff]
        %v5763 = vld [vmem:[#allocation3 + $0x50] sm:$0xff]
        %v5764 = vld [vmem:[#allocation3 + $0x58] sm:$0xff]
        %v5765 = vld [vmem:[#allocation3 + $0x70] sm:$0xff]
        %v5766 = vld [vmem:[#allocation3 + $0x78] sm:$0xff]
        %v5767 = vld [vmem:[#allocation3 + $0x90] sm:$0xff]
        %v5768 = vld [vmem:[#allocation3 + $0x98] sm:$0xff]
        %v5769 = vld [vmem:[#allocation3 + $0xb0] sm:$0xff]
        %v5770 = vld [vmem:[#allocation3 + $0xb8] sm:$0xff]
        %v5771 = vld [vmem:[#allocation3 + $0xd0] sm:$0xff]
        %v5772 = vld [vmem:[#allocation3 + $0xd8] sm:$0xff]
        %v5773 = vld [vmem:[#allocation3 + $0xf0] sm:$0xff]
        %v5774 = vld [vmem:[#allocation3 + $0xf8] sm:$0xff]
        %v5775 = vadd.f32 %v5759, %v5760
        %5776 = vadd.xlane.f32.xlu0 %v5775
        %v5777 = vpop.xlane.xlu0 %5776
        %v5778 = vadd.f32 %v5761, %v5762
        %5779 = vadd.xlane.f32.xlu0 %v5778
        %v5780 = vpop.xlane.xlu0 %5779
        %v5781 = vadd.f32 %v5763, %v5764
        %5782 = vadd.xlane.f32.xlu0 %v5781
        %v5783 = vpop.xlane.xlu0 %5782
        %v5784 = vadd.f32 %v5765, %v5766
        %5785 = vadd.xlane.f32.xlu0 %v5784
        %v5786 = vpop.xlane.xlu0 %5785
        %v5787 = vadd.f32 %v5767, %v5768
        %5788 = vadd.xlane.f32.xlu0 %v5787
        %v5789 = vpop.xlane.xlu0 %5788
        %v5790 = vadd.f32 %v5769, %v5770
        %5791 = vadd.xlane.f32.xlu0 %v5790
        %v5792 = vpop.xlane.xlu0 %5791
        %v5793 = vadd.f32 %v5771, %v5772
        %5794 = vadd.xlane.f32.xlu0 %v5793
        %v5795 = vpop.xlane.xlu0 %5794
        %v5796 = vadd.f32 %v5773, %v5774
        %5797 = vadd.xlane.f32.xlu0 %v5796
        %v5798 = vpop.xlane.xlu0 %5797
        %v5799 = vmul.f32 %v5777, 0.00390625
        %v5800 = vmul.f32 %v5780, 0.00390625
        %v5801 = vmul.f32 %v5783, 0.00390625
        %v5802 = vmul.f32 %v5786, 0.00390625
        %v5803 = vmul.f32 %v5789, 0.00390625
        %v5804 = vmul.f32 %v5792, 0.00390625
        %v5805 = vmul.f32 %v5795, 0.00390625
        %v5806 = vmul.f32 %v5798, 0.00390625
        %v5807 = vmul.f32 %v5759, %v5759
        %v5808 = vmul.f32 %v5760, %v5760
        %v5809 = vmul.f32 %v5761, %v5761
        %v5810 = vmul.f32 %v5762, %v5762
        %v5811 = vmul.f32 %v5763, %v5763
        %v5812 = vmul.f32 %v5764, %v5764
        %v5813 = vmul.f32 %v5765, %v5765
        %v5814 = vmul.f32 %v5766, %v5766
        %v5815 = vmul.f32 %v5767, %v5767
        %v5816 = vmul.f32 %v5768, %v5768
        %v5817 = vmul.f32 %v5769, %v5769
        %v5818 = vmul.f32 %v5770, %v5770
        %v5819 = vmul.f32 %v5771, %v5771
        %v5820 = vmul.f32 %v5772, %v5772
        %v5821 = vmul.f32 %v5773, %v5773
        %v5822 = vmul.f32 %v5774, %v5774
        %v5823 = vadd.f32 %v5807, %v5808
        %5824 = vadd.xlane.f32.xlu0 %v5823
        %v5825 = vpop.xlane.xlu0 %5824
        %v5826 = vadd.f32 %v5809, %v5810
        %5827 = vadd.xlane.f32.xlu0 %v5826
        %v5828 = vpop.xlane.xlu0 %5827
        %v5829 = vadd.f32 %v5811, %v5812
        %5830 = vadd.xlane.f32.xlu0 %v5829
        %v5831 = vpop.xlane.xlu0 %5830
        %v5832 = vadd.f32 %v5813, %v5814
        %5833 = vadd.xlane.f32.xlu0 %v5832
        %v5834 = vpop.xlane.xlu0 %5833
        %v5835 = vadd.f32 %v5815, %v5816
        %5836 = vadd.xlane.f32.xlu0 %v5835
        %v5837 = vpop.xlane.xlu0 %5836
        %v5838 = vadd.f32 %v5817, %v5818
        %5839 = vadd.xlane.f32.xlu0 %v5838
        %v5840 = vpop.xlane.xlu0 %5839
        %v5841 = vadd.f32 %v5819, %v5820
        %5842 = vadd.xlane.f32.xlu0 %v5841
        %v5843 = vpop.xlane.xlu0 %5842
        %v5844 = vadd.f32 %v5821, %v5822
        %5845 = vadd.xlane.f32.xlu0 %v5844
        %v5846 = vpop.xlane.xlu0 %5845
        %v5847 = vmul.f32 %v5825, 0.00390625
        %v5848 = vmul.f32 %v5828, 0.00390625
        %v5849 = vmul.f32 %v5831, 0.00390625
        %v5850 = vmul.f32 %v5834, 0.00390625
        %v5851 = vmul.f32 %v5837, 0.00390625
        %v5852 = vmul.f32 %v5840, 0.00390625
        %v5853 = vmul.f32 %v5843, 0.00390625
        %v5854 = vmul.f32 %v5846, 0.00390625
        %v5855 = vmul.f32 %v5799, %v5799
        %v5856 = vmul.f32 %v5800, %v5800
        %v5857 = vmul.f32 %v5801, %v5801
        %v5858 = vmul.f32 %v5802, %v5802
        %v5859 = vmul.f32 %v5803, %v5803
        %v5860 = vmul.f32 %v5804, %v5804
        %v5861 = vmul.f32 %v5805, %v5805
        %v5862 = vmul.f32 %v5806, %v5806
        %v5863 = vsub.f32 %v5847, %v5855
        %v5864 = vsub.f32 %v5848, %v5856
        %v5865 = vsub.f32 %v5849, %v5857
        %v5866 = vsub.f32 %v5850, %v5858
        %v5867 = vsub.f32 %v5851, %v5859
        %v5868 = vsub.f32 %v5852, %v5860
        %v5869 = vsub.f32 %v5853, %v5861
        %v5870 = vsub.f32 %v5854, %v5862
        %v5871 = vmax.f32 %v5863, 0.0
        %v5872 = vmax.f32 %v5864, 0.0
        %v5873 = vmax.f32 %v5865, 0.0
        %v5874 = vmax.f32 %v5866, 0.0
        %v5875 = vmax.f32 %v5867, 0.0
        %v5876 = vmax.f32 %v5868, 0.0
        %v5877 = vmax.f32 %v5869, 0.0
        %v5878 = vmax.f32 %v5870, 0.0
        %v5879 = vsub.f32 %v5759, %v5799
        %v5880 = vsub.f32 %v5760, %v5799
        %v5881 = vsub.f32 %v5761, %v5800
        %v5882 = vsub.f32 %v5762, %v5800
        %v5883 = vsub.f32 %v5763, %v5801
        %v5884 = vsub.f32 %v5764, %v5801
        %v5885 = vsub.f32 %v5765, %v5802
        %v5886 = vsub.f32 %v5766, %v5802
        %v5887 = vsub.f32 %v5767, %v5803
        %v5888 = vsub.f32 %v5768, %v5803
        %v5889 = vsub.f32 %v5769, %v5804
        %v5890 = vsub.f32 %v5770, %v5804
        %v5891 = vsub.f32 %v5771, %v5805
        %v5892 = vsub.f32 %v5772, %v5805
        %v5893 = vsub.f32 %v5773, %v5806
        %v5894 = vsub.f32 %v5774, %v5806
        %v5895 = vadd.f32 %v5871, 1e-05
        %v5896 = vadd.f32 %v5872, 1e-05
        %v5897 = vadd.f32 %v5873, 1e-05
        %v5898 = vadd.f32 %v5874, 1e-05
        %v5899 = vadd.f32 %v5875, 1e-05
        %v5900 = vadd.f32 %v5876, 1e-05
        %v5901 = vadd.f32 %v5877, 1e-05
        %v5902 = vadd.f32 %v5878, 1e-05
        %v5903 = vrsqrt.pop %v5895
        %v5904 = vrsqrt.pop %v5896
        %v5905 = vrsqrt.pop %v5897
        %v5906 = vrsqrt.pop %v5898
        %v5907 = vrsqrt.pop %v5899
        %v5908 = vrsqrt.pop %v5900
        %v5909 = vrsqrt.pop %v5901
        %v5910 = vrsqrt.pop %v5902
        %v5911 = vmul.f32 %v5879, %v5903
        %v5912 = vmul.f32 %v5880, %v5903
        %v5913 = vmul.f32 %v5881, %v5904
        %v5914 = vmul.f32 %v5882, %v5904
        %v5915 = vmul.f32 %v5883, %v5905
        %v5916 = vmul.f32 %v5884, %v5905
        %v5917 = vmul.f32 %v5885, %v5906
        %v5918 = vmul.f32 %v5886, %v5906
        %v5919 = vmul.f32 %v5887, %v5907
        %v5920 = vmul.f32 %v5888, %v5907
        %v5921 = vmul.f32 %v5889, %v5908
        %v5922 = vmul.f32 %v5890, %v5908
        %v5923 = vmul.f32 %v5891, %v5909
        %v5924 = vmul.f32 %v5892, %v5909
        %v5925 = vmul.f32 %v5893, %v5910
        %v5926 = vmul.f32 %v5894, %v5910
        %v5927 = vmul.f32 %v5911, %v4426
        %v5928 = vmul.f32 %v5912, %v4426
        %v5929 = vmul.f32 %v5913, %v4431
        %v5930 = vmul.f32 %v5914, %v4431
        %v5931 = vmul.f32 %v5915, %v4436
        %v5932 = vmul.f32 %v5916, %v4436
        %v5933 = vmul.f32 %v5917, %v4441
        %v5934 = vmul.f32 %v5918, %v4441
        %v5935 = vmul.f32 %v5919, %v4446
        %v5936 = vmul.f32 %v5920, %v4446
        %v5937 = vmul.f32 %v5921, %v4451
        %v5938 = vmul.f32 %v5922, %v4451
        %v5939 = vmul.f32 %v5923, %v4456
        %v5940 = vmul.f32 %v5924, %v4456
        %v5941 = vmul.f32 %v5925, %v4461
        %v5942 = vmul.f32 %v5926, %v4461
        %v5943 = vadd.f32 %v5927, %v4482
        %v5944 = vadd.f32 %v5928, %v4482
        %v5945 = vadd.f32 %v5929, %v4487
        %v5946 = vadd.f32 %v5930, %v4487
        %v5947 = vadd.f32 %v5931, %v4492
        %v5948 = vadd.f32 %v5932, %v4492
        %v5949 = vadd.f32 %v5933, %v4497
        %v5950 = vadd.f32 %v5934, %v4497
        %v5951 = vadd.f32 %v5935, %v4502
        %v5952 = vadd.f32 %v5936, %v4502
        %v5953 = vadd.f32 %v5937, %v4507
        %v5954 = vadd.f32 %v5938, %v4507
        %v5955 = vadd.f32 %v5939, %v4512
        %v5956 = vadd.f32 %v5940, %v4512
        %v5957 = vadd.f32 %v5941, %v4517
        %v5958 = vadd.f32 %v5942, %v4517
        %vm5959 = vcmp.ge.f32.partialorder %v5943, 0.0
        %vm5960 = vcmp.ge.f32.partialorder %v5944, 0.0
        %vm5961 = vcmp.ge.f32.partialorder %v5945, 0.0
        %vm5962 = vcmp.ge.f32.partialorder %v5946, 0.0
        %vm5963 = vcmp.ge.f32.partialorder %v5947, 0.0
        %vm5964 = vcmp.ge.f32.partialorder %v5948, 0.0
        %vm5965 = vcmp.ge.f32.partialorder %v5949, 0.0
        %vm5966 = vcmp.ge.f32.partialorder %v5950, 0.0
        %vm5967 = vcmp.ge.f32.partialorder %v5951, 0.0
        %vm5968 = vcmp.ge.f32.partialorder %v5952, 0.0
        %vm5969 = vcmp.ge.f32.partialorder %v5953, 0.0
        %vm5970 = vcmp.ge.f32.partialorder %v5954, 0.0
        %vm5971 = vcmp.ge.f32.partialorder %v5955, 0.0
        %vm5972 = vcmp.ge.f32.partialorder %v5956, 0.0
        %vm5973 = vcmp.ge.f32.partialorder %v5957, 0.0
        %vm5974 = vcmp.ge.f32.partialorder %v5958, 0.0
        %v5975 = vmul.f32 %v5943, 0.2
        %v5976 = vmul.f32 %v5944, 0.2
        %v5977 = vmul.f32 %v5945, 0.2
        %v5978 = vmul.f32 %v5946, 0.2
        %v5979 = vmul.f32 %v5947, 0.2
        %v5980 = vmul.f32 %v5948, 0.2
        %v5981 = vmul.f32 %v5949, 0.2
        %v5982 = vmul.f32 %v5950, 0.2
        %v5983 = vmul.f32 %v5951, 0.2
        %v5984 = vmul.f32 %v5952, 0.2
        %v5985 = vmul.f32 %v5953, 0.2
        %v5986 = vmul.f32 %v5954, 0.2
        %v5987 = vmul.f32 %v5955, 0.2
        %v5988 = vmul.f32 %v5956, 0.2
        %v5989 = vmul.f32 %v5957, 0.2
        %v5990 = vmul.f32 %v5958, 0.2
        %v5991 = vsel %vm5959, %v5943, %v5975
        %v5992 = vsel %vm5960, %v5944, %v5976
        %v5993 = vsel %vm5961, %v5945, %v5977
        %v5994 = vsel %vm5962, %v5946, %v5978
        %v5995 = vsel %vm5963, %v5947, %v5979
        %v5996 = vsel %vm5964, %v5948, %v5980
        %v5997 = vsel %vm5965, %v5949, %v5981
        %v5998 = vsel %vm5966, %v5950, %v5982
        %v5999 = vsel %vm5967, %v5951, %v5983
        %v6000 = vsel %vm5968, %v5952, %v5984
        %v6001 = vsel %vm5969, %v5953, %v5985
        %v6002 = vsel %vm5970, %v5954, %v5986
        %v6003 = vsel %vm5971, %v5955, %v5987
        %v6004 = vsel %vm5972, %v5956, %v5988
        %v6005 = vsel %vm5973, %v5957, %v5989
        %v6006 = vsel %vm5974, %v5958, %v5990
        %6007 = vrot.lane.b32.xlu0 %v5991, 17
        %v6008 = vpop.permute.xlu0 %6007
        %6009 = vrot.lane.b32.xlu0 %v5993, 17
        %v6010 = vpop.permute.xlu0 %6009
        %6011 = vrot.lane.b32.xlu0 %v5995, 17
        %v6012 = vpop.permute.xlu0 %6011
        %6013 = vrot.lane.b32.xlu0 %v5997, 17
        %v6014 = vpop.permute.xlu0 %6013
        %6015 = vrot.lane.b32.xlu0 %v5999, 17
        %v6016 = vpop.permute.xlu0 %6015
        %6017 = vrot.lane.b32.xlu0 %v6001, 17
        %v6018 = vpop.permute.xlu0 %6017
        %6019 = vrot.lane.b32.xlu0 %v6003, 17
        %v6020 = vpop.permute.xlu0 %6019
        %6021 = vrot.lane.b32.xlu0 %v6005, 17
        %v6022 = vpop.permute.xlu0 %6021
        %6023 = vrot.lane.b32.xlu0 %v5992, 17
        %v6024 = vpop.permute.xlu0 %6023
        %6025 = vrot.lane.b32.xlu0 %v5994, 17
        %v6026 = vpop.permute.xlu0 %6025
        %6027 = vrot.lane.b32.xlu0 %v5996, 17
        %v6028 = vpop.permute.xlu0 %6027
        %6029 = vrot.lane.b32.xlu0 %v5998, 17
        %v6030 = vpop.permute.xlu0 %6029
        %6031 = vrot.lane.b32.xlu0 %v6000, 17
        %v6032 = vpop.permute.xlu0 %6031
        %6033 = vrot.lane.b32.xlu0 %v6002, 17
        %v6034 = vpop.permute.xlu0 %6033
        %6035 = vrot.lane.b32.xlu0 %v6004, 17
        %v6036 = vpop.permute.xlu0 %6035
        %6037 = vrot.lane.b32.xlu0 %v6006, 17
        %v6038 = vpop.permute.xlu0 %6037
        %v6039 = vsel %vm439, %v6008, %v6024
        %v6040 = vsel %vm439, %v6010, %v6026
        %v6041 = vsel %vm439, %v6012, %v6028
        %v6042 = vsel %vm439, %v6014, %v6030
        %v6043 = vsel %vm439, %v6016, %v6032
        %v6044 = vsel %vm439, %v6018, %v6034
        %v6045 = vsel %vm439, %v6020, %v6036
        %v6046 = vsel %vm439, %v6022, %v6038
        %v6047 = vsel %vm439, %v6024, %v6008
        %v6048 = vsel %vm439, %v6026, %v6010
        %v6049 = vsel %vm439, %v6028, %v6012
        %v6050 = vsel %vm439, %v6030, %v6014
        %v6051 = vsel %vm439, %v6032, %v6016
        %v6052 = vsel %vm439, %v6034, %v6018
        %v6053 = vsel %vm439, %v6036, %v6020
        %v6054 = vsel %vm439, %v6038, %v6022
        %v6055 = vld [vmem:[#allocation9] sm:$0xff]
        %v6056 = vld [vmem:[#allocation9 + $0x8] sm:$0xff]
        %v6057 = vld [vmem:[#allocation9 + $0x10] sm:$0xff]
        %v6058 = vld [vmem:[#allocation9 + $0x18] sm:$0xff]
        %v6059 = vld [vmem:[#allocation9 + $0x20] sm:$0xff]
        %v6060 = vld [vmem:[#allocation9 + $0x28] sm:$0xff]
        %v6061 = vld [vmem:[#allocation9 + $0x30] sm:$0xff]
        %v6062 = vld [vmem:[#allocation9 + $0x38] sm:$0xff]
        %v6063 = vld [vmem:[#allocation9 + $0x40] sm:$0xff]
        %v6064 = vld [vmem:[#allocation9 + $0x48] sm:$0xff]
        %v6065 = vld [vmem:[#allocation9 + $0x50] sm:$0xff]
        %v6066 = vld [vmem:[#allocation9 + $0x58] sm:$0xff]
        %v6067 = vld [vmem:[#allocation9 + $0x60] sm:$0xff]
        %v6068 = vld [vmem:[#allocation9 + $0x68] sm:$0xff]
        %v6069 = vld [vmem:[#allocation9 + $0x70] sm:$0xff]
        %v6070 = vld [vmem:[#allocation9 + $0x78] sm:$0xff]
        %v6071 = vmul.f32 %v6047, %v6055
        %v6072 = vmul.f32 %v6039, %v6056
        %v6073 = vmul.f32 %v6048, %v6057
        %v6074 = vmul.f32 %v6040, %v6058
        %v6075 = vmul.f32 %v6049, %v6059
        %v6076 = vmul.f32 %v6041, %v6060
        %v6077 = vmul.f32 %v6050, %v6061
        %v6078 = vmul.f32 %v6042, %v6062
        %v6079 = vmul.f32 %v6051, %v6063
        %v6080 = vmul.f32 %v6043, %v6064
        %v6081 = vmul.f32 %v6052, %v6065
        %v6082 = vmul.f32 %v6044, %v6066
        %v6083 = vmul.f32 %v6053, %v6067
        %v6084 = vmul.f32 %v6045, %v6068
        %v6085 = vmul.f32 %v6054, %v6069
        %v6086 = vmul.f32 %v6046, %v6070
        %v6087 = vpack.c.bf16 %v6073, %v6071
        %v6088 = vpack.c.bf16 %v6074, %v6072
        %v6089 = vpack.c.bf16 %v6077, %v6075
        %v6090 = vpack.c.bf16 %v6078, %v6076
        %v6091 = vpack.c.bf16 %v6081, %v6079
        %v6092 = vpack.c.bf16 %v6082, %v6080
        %v6093 = vpack.c.bf16 %v6085, %v6083
        %v6094 = vpack.c.bf16 %v6086, %v6084
        %v6103 = vunpack.c.l.b16 %v6087
        %v6104 = vunpack.c.l.b16 %v6088
        %v6105 = vunpack.c.h.b16 %v6087
        %v6106 = vunpack.c.h.b16 %v6088
        %v6107 = vunpack.c.l.b16 %v6089
        %v6108 = vunpack.c.l.b16 %v6090
        %v6109 = vunpack.c.h.b16 %v6089
        %v6110 = vunpack.c.h.b16 %v6090
        %v6111 = vunpack.c.l.b16 %v6091
        %v6112 = vunpack.c.l.b16 %v6092
        %v6113 = vunpack.c.h.b16 %v6091
        %v6114 = vunpack.c.h.b16 %v6092
        %v6115 = vunpack.c.l.b16 %v6093
        %v6116 = vunpack.c.l.b16 %v6094
        %v6117 = vunpack.c.h.b16 %v6093
        %v6118 = vunpack.c.h.b16 %v6094
        %v6119 = vpack.c.b16 %v6104, %v6103
        %v6120 = vpack.c.b16 %v6106, %v6105
        %v6121 = vpack.c.b16 %v6108, %v6107
        %v6122 = vpack.c.b16 %v6110, %v6109
        %v6123 = vpack.c.b16 %v6112, %v6111
        %v6124 = vpack.c.b16 %v6114, %v6113
        %v6125 = vpack.c.b16 %v6116, %v6115
        %v6126 = vpack.c.b16 %v6118, %v6117
        %6135 = vst [vmem:[#allocation2 + $0x8] sm:$0xff] %v6119
        %6136 = vst [vmem:[#allocation2 + $0x18] sm:$0xff] %v6120
        %6137 = vst [vmem:[#allocation2 + $0x28] sm:$0xff] %v6121
        %6138 = vst [vmem:[#allocation2 + $0x38] sm:$0xff] %v6122
        %6139 = vst [vmem:[#allocation2 + $0x48] sm:$0xff] %v6123
        %6140 = vst [vmem:[#allocation2 + $0x58] sm:$0xff] %v6124
        %6141 = vst [vmem:[#allocation2 + $0x68] sm:$0xff] %v6125
        %6142 = vst [vmem:[#allocation2 + $0x78] sm:$0xff] %v6126
        %6143 = vrot.lane.b32.xlu0 %v5991, 16
        %v6144 = vpop.permute.xlu0 %6143
        %6145 = vrot.lane.b32.xlu0 %v5993, 16
        %v6146 = vpop.permute.xlu0 %6145
        %6147 = vrot.lane.b32.xlu0 %v5995, 16
        %v6148 = vpop.permute.xlu0 %6147
        %6149 = vrot.lane.b32.xlu0 %v5997, 16
        %v6150 = vpop.permute.xlu0 %6149
        %6151 = vrot.lane.b32.xlu0 %v5999, 16
        %v6152 = vpop.permute.xlu0 %6151
        %6153 = vrot.lane.b32.xlu0 %v6001, 16
        %v6154 = vpop.permute.xlu0 %6153
        %6155 = vrot.lane.b32.xlu0 %v6003, 16
        %v6156 = vpop.permute.xlu0 %6155
        %6157 = vrot.lane.b32.xlu0 %v6005, 16
        %v6158 = vpop.permute.xlu0 %6157
        %6159 = vrot.lane.b32.xlu0 %v5992, 16
        %v6160 = vpop.permute.xlu0 %6159
        %6161 = vrot.lane.b32.xlu0 %v5994, 16
        %v6162 = vpop.permute.xlu0 %6161
        %6163 = vrot.lane.b32.xlu0 %v5996, 16
        %v6164 = vpop.permute.xlu0 %6163
        %6165 = vrot.lane.b32.xlu0 %v5998, 16
        %v6166 = vpop.permute.xlu0 %6165
        %6167 = vrot.lane.b32.xlu0 %v6000, 16
        %v6168 = vpop.permute.xlu0 %6167
        %6169 = vrot.lane.b32.xlu0 %v6002, 16
        %v6170 = vpop.permute.xlu0 %6169
        %6171 = vrot.lane.b32.xlu0 %v6004, 16
        %v6172 = vpop.permute.xlu0 %6171
        %6173 = vrot.lane.b32.xlu0 %v6006, 16
        %v6174 = vpop.permute.xlu0 %6173
        %v6175 = vsel %vm576, %v6144, %v6160
        %v6176 = vsel %vm576, %v6146, %v6162
        %v6177 = vsel %vm576, %v6148, %v6164
        %v6178 = vsel %vm576, %v6150, %v6166
        %v6179 = vsel %vm576, %v6152, %v6168
        %v6180 = vsel %vm576, %v6154, %v6170
        %v6181 = vsel %vm576, %v6156, %v6172
        %v6182 = vsel %vm576, %v6158, %v6174
        %v6183 = vsel %vm576, %v6160, %v6144
        %v6184 = vsel %vm576, %v6162, %v6146
        %v6185 = vsel %vm576, %v6164, %v6148
        %v6186 = vsel %vm576, %v6166, %v6150
        %v6187 = vsel %vm576, %v6168, %v6152
        %v6188 = vsel %vm576, %v6170, %v6154
        %v6189 = vsel %vm576, %v6172, %v6156
        %v6190 = vsel %vm576, %v6174, %v6158
        %v6191 = vld [vmem:[#allocation9 + $0x80] sm:$0xff]
        %v6192 = vld [vmem:[#allocation9 + $0x88] sm:$0xff]
        %v6193 = vld [vmem:[#allocation9 + $0x90] sm:$0xff]
        %v6194 = vld [vmem:[#allocation9 + $0x98] sm:$0xff]
        %v6195 = vld [vmem:[#allocation9 + $0xa0] sm:$0xff]
        %v6196 = vld [vmem:[#allocation9 + $0xa8] sm:$0xff]
        %v6197 = vld [vmem:[#allocation9 + $0xb0] sm:$0xff]
        %v6198 = vld [vmem:[#allocation9 + $0xb8] sm:$0xff]
        %v6199 = vld [vmem:[#allocation9 + $0xc0] sm:$0xff]
        %v6200 = vld [vmem:[#allocation9 + $0xc8] sm:$0xff]
        %v6201 = vld [vmem:[#allocation9 + $0xd0] sm:$0xff]
        %v6202 = vld [vmem:[#allocation9 + $0xd8] sm:$0xff]
        %v6203 = vld [vmem:[#allocation9 + $0xe0] sm:$0xff]
        %v6204 = vld [vmem:[#allocation9 + $0xe8] sm:$0xff]
        %v6205 = vld [vmem:[#allocation9 + $0xf0] sm:$0xff]
        %v6206 = vld [vmem:[#allocation9 + $0xf8] sm:$0xff]
        %v6207 = vmul.f32 %v6183, %v6191
        %v6208 = vmul.f32 %v6175, %v6192
        %v6209 = vmul.f32 %v6184, %v6193
        %v6210 = vmul.f32 %v6176, %v6194
        %v6211 = vmul.f32 %v6185, %v6195
        %v6212 = vmul.f32 %v6177, %v6196
        %v6213 = vmul.f32 %v6186, %v6197
        %v6214 = vmul.f32 %v6178, %v6198
        %v6215 = vmul.f32 %v6187, %v6199
        %v6216 = vmul.f32 %v6179, %v6200
        %v6217 = vmul.f32 %v6188, %v6201
        %v6218 = vmul.f32 %v6180, %v6202
        %v6219 = vmul.f32 %v6189, %v6203
        %v6220 = vmul.f32 %v6181, %v6204
        %v6221 = vmul.f32 %v6190, %v6205
        %v6222 = vmul.f32 %v6182, %v6206
        %v6223 = vpack.c.bf16 %v6209, %v6207
        %v6224 = vpack.c.bf16 %v6210, %v6208
        %v6225 = vpack.c.bf16 %v6213, %v6211
        %v6226 = vpack.c.bf16 %v6214, %v6212
        %v6227 = vpack.c.bf16 %v6217, %v6215
        %v6228 = vpack.c.bf16 %v6218, %v6216
        %v6229 = vpack.c.bf16 %v6221, %v6219
        %v6230 = vpack.c.bf16 %v6222, %v6220
        %v6239 = vunpack.c.l.b16 %v6223
        %v6240 = vunpack.c.l.b16 %v6224
        %v6241 = vunpack.c.h.b16 %v6223
        %v6242 = vunpack.c.h.b16 %v6224
        %v6243 = vunpack.c.l.b16 %v6225
        %v6244 = vunpack.c.l.b16 %v6226
        %v6245 = vunpack.c.h.b16 %v6225
        %v6246 = vunpack.c.h.b16 %v6226
        %v6247 = vunpack.c.l.b16 %v6227
        %v6248 = vunpack.c.l.b16 %v6228
        %v6249 = vunpack.c.h.b16 %v6227
        %v6250 = vunpack.c.h.b16 %v6228
        %v6251 = vunpack.c.l.b16 %v6229
        %v6252 = vunpack.c.l.b16 %v6230
        %v6253 = vunpack.c.h.b16 %v6229
        %v6254 = vunpack.c.h.b16 %v6230
        %v6255 = vpack.c.b16 %v6240, %v6239
        %v6256 = vpack.c.b16 %v6242, %v6241
        %v6257 = vpack.c.b16 %v6244, %v6243
        %v6258 = vpack.c.b16 %v6246, %v6245
        %v6259 = vpack.c.b16 %v6248, %v6247
        %v6260 = vpack.c.b16 %v6250, %v6249
        %v6261 = vpack.c.b16 %v6252, %v6251
        %v6262 = vpack.c.b16 %v6254, %v6253
        %6271 = vst [vmem:[#allocation2 + $0x88] sm:$0xff] %v6255
        %6272 = vst [vmem:[#allocation2 + $0x98] sm:$0xff] %v6256
        %6273 = vst [vmem:[#allocation2 + $0xa8] sm:$0xff] %v6257
        %6274 = vst [vmem:[#allocation2 + $0xb8] sm:$0xff] %v6258
        %6275 = vst [vmem:[#allocation2 + $0xc8] sm:$0xff] %v6259
        %6276 = vst [vmem:[#allocation2 + $0xd8] sm:$0xff] %v6260
        %6277 = vst [vmem:[#allocation2 + $0xe8] sm:$0xff] %v6261
        %6278 = vst [vmem:[#allocation2 + $0xf8] sm:$0xff] %v6262
        %6279 = vrot.lane.b32.xlu0 %v5991, 15
        %v6280 = vpop.permute.xlu0 %6279
        %6281 = vrot.lane.b32.xlu0 %v5993, 15
        %v6282 = vpop.permute.xlu0 %6281
        %6283 = vrot.lane.b32.xlu0 %v5995, 15
        %v6284 = vpop.permute.xlu0 %6283
        %6285 = vrot.lane.b32.xlu0 %v5997, 15
        %v6286 = vpop.permute.xlu0 %6285
        %6287 = vrot.lane.b32.xlu0 %v5999, 15
        %v6288 = vpop.permute.xlu0 %6287
        %6289 = vrot.lane.b32.xlu0 %v6001, 15
        %v6290 = vpop.permute.xlu0 %6289
        %6291 = vrot.lane.b32.xlu0 %v6003, 15
        %v6292 = vpop.permute.xlu0 %6291
        %6293 = vrot.lane.b32.xlu0 %v6005, 15
        %v6294 = vpop.permute.xlu0 %6293
        %6295 = vrot.lane.b32.xlu0 %v5992, 15
        %v6296 = vpop.permute.xlu0 %6295
        %6297 = vrot.lane.b32.xlu0 %v5994, 15
        %v6298 = vpop.permute.xlu0 %6297
        %6299 = vrot.lane.b32.xlu0 %v5996, 15
        %v6300 = vpop.permute.xlu0 %6299
        %6301 = vrot.lane.b32.xlu0 %v5998, 15
        %v6302 = vpop.permute.xlu0 %6301
        %6303 = vrot.lane.b32.xlu0 %v6000, 15
        %v6304 = vpop.permute.xlu0 %6303
        %6305 = vrot.lane.b32.xlu0 %v6002, 15
        %v6306 = vpop.permute.xlu0 %6305
        %6307 = vrot.lane.b32.xlu0 %v6004, 15
        %v6308 = vpop.permute.xlu0 %6307
        %6309 = vrot.lane.b32.xlu0 %v6006, 15
        %v6310 = vpop.permute.xlu0 %6309
        %v6311 = vsel %vm713, %v6280, %v6296
        %v6312 = vsel %vm713, %v6282, %v6298
        %v6313 = vsel %vm713, %v6284, %v6300
        %v6314 = vsel %vm713, %v6286, %v6302
        %v6315 = vsel %vm713, %v6288, %v6304
        %v6316 = vsel %vm713, %v6290, %v6306
        %v6317 = vsel %vm713, %v6292, %v6308
        %v6318 = vsel %vm713, %v6294, %v6310
        %v6319 = vsel %vm713, %v6296, %v6280
        %v6320 = vsel %vm713, %v6298, %v6282
        %v6321 = vsel %vm713, %v6300, %v6284
        %v6322 = vsel %vm713, %v6302, %v6286
        %v6323 = vsel %vm713, %v6304, %v6288
        %v6324 = vsel %vm713, %v6306, %v6290
        %v6325 = vsel %vm713, %v6308, %v6292
        %v6326 = vsel %vm713, %v6310, %v6294
        %v6327 = vld [vmem:[#allocation9 + $0x100] sm:$0xff]
        %v6328 = vld [vmem:[#allocation9 + $0x108] sm:$0xff]
        %v6329 = vld [vmem:[#allocation9 + $0x110] sm:$0xff]
        %v6330 = vld [vmem:[#allocation9 + $0x118] sm:$0xff]
        %v6331 = vld [vmem:[#allocation9 + $0x120] sm:$0xff]
        %v6332 = vld [vmem:[#allocation9 + $0x128] sm:$0xff]
        %v6333 = vld [vmem:[#allocation9 + $0x130] sm:$0xff]
        %v6334 = vld [vmem:[#allocation9 + $0x138] sm:$0xff]
        %v6335 = vld [vmem:[#allocation9 + $0x140] sm:$0xff]
        %v6336 = vld [vmem:[#allocation9 + $0x148] sm:$0xff]
        %v6337 = vld [vmem:[#allocation9 + $0x150] sm:$0xff]
        %v6338 = vld [vmem:[#allocation9 + $0x158] sm:$0xff]
        %v6339 = vld [vmem:[#allocation9 + $0x160] sm:$0xff]
        %v6340 = vld [vmem:[#allocation9 + $0x168] sm:$0xff]
        %v6341 = vld [vmem:[#allocation9 + $0x170] sm:$0xff]
        %v6342 = vld [vmem:[#allocation9 + $0x178] sm:$0xff]
        %v6343 = vmul.f32 %v6319, %v6327
        %v6344 = vmul.f32 %v6311, %v6328
        %v6345 = vmul.f32 %v6320, %v6329
        %v6346 = vmul.f32 %v6312, %v6330
        %v6347 = vmul.f32 %v6321, %v6331
        %v6348 = vmul.f32 %v6313, %v6332
        %v6349 = vmul.f32 %v6322, %v6333
        %v6350 = vmul.f32 %v6314, %v6334
        %v6351 = vmul.f32 %v6323, %v6335
        %v6352 = vmul.f32 %v6315, %v6336
        %v6353 = vmul.f32 %v6324, %v6337
        %v6354 = vmul.f32 %v6316, %v6338
        %v6355 = vmul.f32 %v6325, %v6339
        %v6356 = vmul.f32 %v6317, %v6340
        %v6357 = vmul.f32 %v6326, %v6341
        %v6358 = vmul.f32 %v6318, %v6342
        %v6359 = vpack.c.bf16 %v6345, %v6343
        %v6360 = vpack.c.bf16 %v6346, %v6344
        %v6361 = vpack.c.bf16 %v6349, %v6347
        %v6362 = vpack.c.bf16 %v6350, %v6348
        %v6363 = vpack.c.bf16 %v6353, %v6351
        %v6364 = vpack.c.bf16 %v6354, %v6352
        %v6365 = vpack.c.bf16 %v6357, %v6355
        %v6366 = vpack.c.bf16 %v6358, %v6356
        %v6375 = vunpack.c.l.b16 %v6359
        %v6376 = vunpack.c.l.b16 %v6360
        %v6377 = vunpack.c.h.b16 %v6359
        %v6378 = vunpack.c.h.b16 %v6360
        %v6379 = vunpack.c.l.b16 %v6361
        %v6380 = vunpack.c.l.b16 %v6362
        %v6381 = vunpack.c.h.b16 %v6361
        %v6382 = vunpack.c.h.b16 %v6362
        %v6383 = vunpack.c.l.b16 %v6363
        %v6384 = vunpack.c.l.b16 %v6364
        %v6385 = vunpack.c.h.b16 %v6363
        %v6386 = vunpack.c.h.b16 %v6364
        %v6387 = vunpack.c.l.b16 %v6365
        %v6388 = vunpack.c.l.b16 %v6366
        %v6389 = vunpack.c.h.b16 %v6365
        %v6390 = vunpack.c.h.b16 %v6366
        %v6391 = vpack.c.b16 %v6376, %v6375
        %v6392 = vpack.c.b16 %v6378, %v6377
        %v6393 = vpack.c.b16 %v6380, %v6379
        %v6394 = vpack.c.b16 %v6382, %v6381
        %v6395 = vpack.c.b16 %v6384, %v6383
        %v6396 = vpack.c.b16 %v6386, %v6385
        %v6397 = vpack.c.b16 %v6388, %v6387
        %v6398 = vpack.c.b16 %v6390, %v6389
        %6407 = vst [vmem:[#allocation2 + $0x108] sm:$0xff] %v6391
        %6408 = vst [vmem:[#allocation2 + $0x118] sm:$0xff] %v6392
        %6409 = vst [vmem:[#allocation2 + $0x128] sm:$0xff] %v6393
        %6410 = vst [vmem:[#allocation2 + $0x138] sm:$0xff] %v6394
        %6411 = vst [vmem:[#allocation2 + $0x148] sm:$0xff] %v6395
        %6412 = vst [vmem:[#allocation2 + $0x158] sm:$0xff] %v6396
        %6413 = vst [vmem:[#allocation2 + $0x168] sm:$0xff] %v6397
        %6414 = vst [vmem:[#allocation2 + $0x178] sm:$0xff] %v6398
        %6415 = vrot.lane.b32.xlu0 %v5991, 1
        %v6416 = vpop.permute.xlu0 %6415
        %6417 = vrot.lane.b32.xlu0 %v5993, 1
        %v6418 = vpop.permute.xlu0 %6417
        %6419 = vrot.lane.b32.xlu0 %v5995, 1
        %v6420 = vpop.permute.xlu0 %6419
        %6421 = vrot.lane.b32.xlu0 %v5997, 1
        %v6422 = vpop.permute.xlu0 %6421
        %6423 = vrot.lane.b32.xlu0 %v5999, 1
        %v6424 = vpop.permute.xlu0 %6423
        %6425 = vrot.lane.b32.xlu0 %v6001, 1
        %v6426 = vpop.permute.xlu0 %6425
        %6427 = vrot.lane.b32.xlu0 %v6003, 1
        %v6428 = vpop.permute.xlu0 %6427
        %6429 = vrot.lane.b32.xlu0 %v6005, 1
        %v6430 = vpop.permute.xlu0 %6429
        %6431 = vrot.lane.b32.xlu0 %v5992, 1
        %v6432 = vpop.permute.xlu0 %6431
        %6433 = vrot.lane.b32.xlu0 %v5994, 1
        %v6434 = vpop.permute.xlu0 %6433
        %6435 = vrot.lane.b32.xlu0 %v5996, 1
        %v6436 = vpop.permute.xlu0 %6435
        %6437 = vrot.lane.b32.xlu0 %v5998, 1
        %v6438 = vpop.permute.xlu0 %6437
        %6439 = vrot.lane.b32.xlu0 %v6000, 1
        %v6440 = vpop.permute.xlu0 %6439
        %6441 = vrot.lane.b32.xlu0 %v6002, 1
        %v6442 = vpop.permute.xlu0 %6441
        %6443 = vrot.lane.b32.xlu0 %v6004, 1
        %v6444 = vpop.permute.xlu0 %6443
        %6445 = vrot.lane.b32.xlu0 %v6006, 1
        %v6446 = vpop.permute.xlu0 %6445
        %v6447 = vsel %vm850, %v6416, %v6432
        %v6448 = vsel %vm850, %v6418, %v6434
        %v6449 = vsel %vm850, %v6420, %v6436
        %v6450 = vsel %vm850, %v6422, %v6438
        %v6451 = vsel %vm850, %v6424, %v6440
        %v6452 = vsel %vm850, %v6426, %v6442
        %v6453 = vsel %vm850, %v6428, %v6444
        %v6454 = vsel %vm850, %v6430, %v6446
        %v6455 = vsel %vm850, %v6432, %v6416
        %v6456 = vsel %vm850, %v6434, %v6418
        %v6457 = vsel %vm850, %v6436, %v6420
        %v6458 = vsel %vm850, %v6438, %v6422
        %v6459 = vsel %vm850, %v6440, %v6424
        %v6460 = vsel %vm850, %v6442, %v6426
        %v6461 = vsel %vm850, %v6444, %v6428
        %v6462 = vsel %vm850, %v6446, %v6430
        %v6463 = vld [vmem:[#allocation9 + $0x180] sm:$0xff]
        %v6464 = vld [vmem:[#allocation9 + $0x188] sm:$0xff]
        %v6465 = vld [vmem:[#allocation9 + $0x190] sm:$0xff]
        %v6466 = vld [vmem:[#allocation9 + $0x198] sm:$0xff]
        %v6467 = vld [vmem:[#allocation9 + $0x1a0] sm:$0xff]
        %v6468 = vld [vmem:[#allocation9 + $0x1a8] sm:$0xff]
        %v6469 = vld [vmem:[#allocation9 + $0x1b0] sm:$0xff]
        %v6470 = vld [vmem:[#allocation9 + $0x1b8] sm:$0xff]
        %v6471 = vld [vmem:[#allocation9 + $0x1c0] sm:$0xff]
        %v6472 = vld [vmem:[#allocation9 + $0x1c8] sm:$0xff]
        %v6473 = vld [vmem:[#allocation9 + $0x1d0] sm:$0xff]
        %v6474 = vld [vmem:[#allocation9 + $0x1d8] sm:$0xff]
        %v6475 = vld [vmem:[#allocation9 + $0x1e0] sm:$0xff]
        %v6476 = vld [vmem:[#allocation9 + $0x1e8] sm:$0xff]
        %v6477 = vld [vmem:[#allocation9 + $0x1f0] sm:$0xff]
        %v6478 = vld [vmem:[#allocation9 + $0x1f8] sm:$0xff]
        %v6479 = vmul.f32 %v6455, %v6463
        %v6480 = vmul.f32 %v6447, %v6464
        %v6481 = vmul.f32 %v6456, %v6465
        %v6482 = vmul.f32 %v6448, %v6466
        %v6483 = vmul.f32 %v6457, %v6467
        %v6484 = vmul.f32 %v6449, %v6468
        %v6485 = vmul.f32 %v6458, %v6469
        %v6486 = vmul.f32 %v6450, %v6470
        %v6487 = vmul.f32 %v6459, %v6471
        %v6488 = vmul.f32 %v6451, %v6472
        %v6489 = vmul.f32 %v6460, %v6473
        %v6490 = vmul.f32 %v6452, %v6474
        %v6491 = vmul.f32 %v6461, %v6475
        %v6492 = vmul.f32 %v6453, %v6476
        %v6493 = vmul.f32 %v6462, %v6477
        %v6494 = vmul.f32 %v6454, %v6478
        %v6495 = vpack.c.bf16 %v6481, %v6479
        %v6496 = vpack.c.bf16 %v6482, %v6480
        %v6497 = vpack.c.bf16 %v6485, %v6483
        %v6498 = vpack.c.bf16 %v6486, %v6484
        %v6499 = vpack.c.bf16 %v6489, %v6487
        %v6500 = vpack.c.bf16 %v6490, %v6488
        %v6501 = vpack.c.bf16 %v6493, %v6491
        %v6502 = vpack.c.bf16 %v6494, %v6492
        %v6511 = vunpack.c.l.b16 %v6495
        %v6512 = vunpack.c.l.b16 %v6496
        %v6513 = vunpack.c.h.b16 %v6495
        %v6514 = vunpack.c.h.b16 %v6496
        %v6515 = vunpack.c.l.b16 %v6497
        %v6516 = vunpack.c.l.b16 %v6498
        %v6517 = vunpack.c.h.b16 %v6497
        %v6518 = vunpack.c.h.b16 %v6498
        %v6519 = vunpack.c.l.b16 %v6499
        %v6520 = vunpack.c.l.b16 %v6500
        %v6521 = vunpack.c.h.b16 %v6499
        %v6522 = vunpack.c.h.b16 %v6500
        %v6523 = vunpack.c.l.b16 %v6501
        %v6524 = vunpack.c.l.b16 %v6502
        %v6525 = vunpack.c.h.b16 %v6501
        %v6526 = vunpack.c.h.b16 %v6502
        %v6527 = vpack.c.b16 %v6512, %v6511
        %v6528 = vpack.c.b16 %v6514, %v6513
        %v6529 = vpack.c.b16 %v6516, %v6515
        %v6530 = vpack.c.b16 %v6518, %v6517
        %v6531 = vpack.c.b16 %v6520, %v6519
        %v6532 = vpack.c.b16 %v6522, %v6521
        %v6533 = vpack.c.b16 %v6524, %v6523
        %v6534 = vpack.c.b16 %v6526, %v6525
        %6543 = vst [vmem:[#allocation2 + $0x188] sm:$0xff] %v6527
        %6544 = vst [vmem:[#allocation2 + $0x198] sm:$0xff] %v6528
        %6545 = vst [vmem:[#allocation2 + $0x1a8] sm:$0xff] %v6529
        %6546 = vst [vmem:[#allocation2 + $0x1b8] sm:$0xff] %v6530
        %6547 = vst [vmem:[#allocation2 + $0x1c8] sm:$0xff] %v6531
        %6548 = vst [vmem:[#allocation2 + $0x1d8] sm:$0xff] %v6532
        %6549 = vst [vmem:[#allocation2 + $0x1e8] sm:$0xff] %v6533
        %6550 = vst [vmem:[#allocation2 + $0x1f8] sm:$0xff] %v6534
        %v6551 = vld [vmem:[#allocation9 + $0x200] sm:$0xff]
        %v6552 = vld [vmem:[#allocation9 + $0x208] sm:$0xff]
        %v6553 = vld [vmem:[#allocation9 + $0x210] sm:$0xff]
        %v6554 = vld [vmem:[#allocation9 + $0x218] sm:$0xff]
        %v6555 = vld [vmem:[#allocation9 + $0x220] sm:$0xff]
        %v6556 = vld [vmem:[#allocation9 + $0x228] sm:$0xff]
        %v6557 = vld [vmem:[#allocation9 + $0x230] sm:$0xff]
        %v6558 = vld [vmem:[#allocation9 + $0x238] sm:$0xff]
        %v6559 = vld [vmem:[#allocation9 + $0x240] sm:$0xff]
        %v6560 = vld [vmem:[#allocation9 + $0x248] sm:$0xff]
        %v6561 = vld [vmem:[#allocation9 + $0x250] sm:$0xff]
        %v6562 = vld [vmem:[#allocation9 + $0x258] sm:$0xff]
        %v6563 = vld [vmem:[#allocation9 + $0x260] sm:$0xff]
        %v6564 = vld [vmem:[#allocation9 + $0x268] sm:$0xff]
        %v6565 = vld [vmem:[#allocation9 + $0x270] sm:$0xff]
        %v6566 = vld [vmem:[#allocation9 + $0x278] sm:$0xff]
        %v6567 = vmul.f32 %v5991, %v6551
        %v6568 = vmul.f32 %v5992, %v6552
        %v6569 = vmul.f32 %v5993, %v6553
        %v6570 = vmul.f32 %v5994, %v6554
        %v6571 = vmul.f32 %v5995, %v6555
        %v6572 = vmul.f32 %v5996, %v6556
        %v6573 = vmul.f32 %v5997, %v6557
        %v6574 = vmul.f32 %v5998, %v6558
        %v6575 = vmul.f32 %v5999, %v6559
        %v6576 = vmul.f32 %v6000, %v6560
        %v6577 = vmul.f32 %v6001, %v6561
        %v6578 = vmul.f32 %v6002, %v6562
        %v6579 = vmul.f32 %v6003, %v6563
        %v6580 = vmul.f32 %v6004, %v6564
        %v6581 = vmul.f32 %v6005, %v6565
        %v6582 = vmul.f32 %v6006, %v6566
        %v6583 = vpack.c.bf16 %v6569, %v6567
        %v6584 = vpack.c.bf16 %v6570, %v6568
        %v6585 = vpack.c.bf16 %v6573, %v6571
        %v6586 = vpack.c.bf16 %v6574, %v6572
        %v6587 = vpack.c.bf16 %v6577, %v6575
        %v6588 = vpack.c.bf16 %v6578, %v6576
        %v6589 = vpack.c.bf16 %v6581, %v6579
        %v6590 = vpack.c.bf16 %v6582, %v6580
        %v6599 = vunpack.c.l.b16 %v6583
        %v6600 = vunpack.c.l.b16 %v6584
        %v6601 = vunpack.c.h.b16 %v6583
        %v6602 = vunpack.c.h.b16 %v6584
        %v6603 = vunpack.c.l.b16 %v6585
        %v6604 = vunpack.c.l.b16 %v6586
        %v6605 = vunpack.c.h.b16 %v6585
        %v6606 = vunpack.c.h.b16 %v6586
        %v6607 = vunpack.c.l.b16 %v6587
        %v6608 = vunpack.c.l.b16 %v6588
        %v6609 = vunpack.c.h.b16 %v6587
        %v6610 = vunpack.c.h.b16 %v6588
        %v6611 = vunpack.c.l.b16 %v6589
        %v6612 = vunpack.c.l.b16 %v6590
        %v6613 = vunpack.c.h.b16 %v6589
        %v6614 = vunpack.c.h.b16 %v6590
        %v6615 = vpack.c.b16 %v6600, %v6599
        %v6616 = vpack.c.b16 %v6602, %v6601
        %v6617 = vpack.c.b16 %v6604, %v6603
        %v6618 = vpack.c.b16 %v6606, %v6605
        %v6619 = vpack.c.b16 %v6608, %v6607
        %v6620 = vpack.c.b16 %v6610, %v6609
        %v6621 = vpack.c.b16 %v6612, %v6611
        %v6622 = vpack.c.b16 %v6614, %v6613
        %6631 = vst [vmem:[#allocation2 + $0x208] sm:$0xff] %v6615
        %6632 = vst [vmem:[#allocation2 + $0x218] sm:$0xff] %v6616
        %6633 = vst [vmem:[#allocation2 + $0x228] sm:$0xff] %v6617
        %6634 = vst [vmem:[#allocation2 + $0x238] sm:$0xff] %v6618
        %6635 = vst [vmem:[#allocation2 + $0x248] sm:$0xff] %v6619
        %6636 = vst [vmem:[#allocation2 + $0x258] sm:$0xff] %v6620
        %6637 = vst [vmem:[#allocation2 + $0x268] sm:$0xff] %v6621
        %6638 = vst [vmem:[#allocation2 + $0x278] sm:$0xff] %v6622
        %6639 = vrot.lane.b32.xlu0 %v5991, 127
        %v6640 = vpop.permute.xlu0 %6639
        %6641 = vrot.lane.b32.xlu0 %v5993, 127
        %v6642 = vpop.permute.xlu0 %6641
        %6643 = vrot.lane.b32.xlu0 %v5995, 127
        %v6644 = vpop.permute.xlu0 %6643
        %6645 = vrot.lane.b32.xlu0 %v5997, 127
        %v6646 = vpop.permute.xlu0 %6645
        %6647 = vrot.lane.b32.xlu0 %v5999, 127
        %v6648 = vpop.permute.xlu0 %6647
        %6649 = vrot.lane.b32.xlu0 %v6001, 127
        %v6650 = vpop.permute.xlu0 %6649
        %6651 = vrot.lane.b32.xlu0 %v6003, 127
        %v6652 = vpop.permute.xlu0 %6651
        %6653 = vrot.lane.b32.xlu0 %v6005, 127
        %v6654 = vpop.permute.xlu0 %6653
        %6655 = vrot.lane.b32.xlu0 %v5992, 127
        %v6656 = vpop.permute.xlu0 %6655
        %6657 = vrot.lane.b32.xlu0 %v5994, 127
        %v6658 = vpop.permute.xlu0 %6657
        %6659 = vrot.lane.b32.xlu0 %v5996, 127
        %v6660 = vpop.permute.xlu0 %6659
        %6661 = vrot.lane.b32.xlu0 %v5998, 127
        %v6662 = vpop.permute.xlu0 %6661
        %6663 = vrot.lane.b32.xlu0 %v6000, 127
        %v6664 = vpop.permute.xlu0 %6663
        %6665 = vrot.lane.b32.xlu0 %v6002, 127
        %v6666 = vpop.permute.xlu0 %6665
        %6667 = vrot.lane.b32.xlu0 %v6004, 127
        %v6668 = vpop.permute.xlu0 %6667
        %6669 = vrot.lane.b32.xlu0 %v6006, 127
        %v6670 = vpop.permute.xlu0 %6669
        %v6671 = vsel %vm1075, %v6640, %v6656
        %v6672 = vsel %vm1075, %v6642, %v6658
        %v6673 = vsel %vm1075, %v6644, %v6660
        %v6674 = vsel %vm1075, %v6646, %v6662
        %v6675 = vsel %vm1075, %v6648, %v6664
        %v6676 = vsel %vm1075, %v6650, %v6666
        %v6677 = vsel %vm1075, %v6652, %v6668
        %v6678 = vsel %vm1075, %v6654, %v6670
        %v6679 = vsel %vm1075, %v6656, %v6640
        %v6680 = vsel %vm1075, %v6658, %v6642
        %v6681 = vsel %vm1075, %v6660, %v6644
        %v6682 = vsel %vm1075, %v6662, %v6646
        %v6683 = vsel %vm1075, %v6664, %v6648
        %v6684 = vsel %vm1075, %v6666, %v6650
        %v6685 = vsel %vm1075, %v6668, %v6652
        %v6686 = vsel %vm1075, %v6670, %v6654
        %v6687 = vld [vmem:[#allocation9 + $0x280] sm:$0xff]
        %v6688 = vld [vmem:[#allocation9 + $0x288] sm:$0xff]
        %v6689 = vld [vmem:[#allocation9 + $0x290] sm:$0xff]
        %v6690 = vld [vmem:[#allocation9 + $0x298] sm:$0xff]
        %v6691 = vld [vmem:[#allocation9 + $0x2a0] sm:$0xff]
        %v6692 = vld [vmem:[#allocation9 + $0x2a8] sm:$0xff]
        %v6693 = vld [vmem:[#allocation9 + $0x2b0] sm:$0xff]
        %v6694 = vld [vmem:[#allocation9 + $0x2b8] sm:$0xff]
        %v6695 = vld [vmem:[#allocation9 + $0x2c0] sm:$0xff]
        %v6696 = vld [vmem:[#allocation9 + $0x2c8] sm:$0xff]
        %v6697 = vld [vmem:[#allocation9 + $0x2d0] sm:$0xff]
        %v6698 = vld [vmem:[#allocation9 + $0x2d8] sm:$0xff]
        %v6699 = vld [vmem:[#allocation9 + $0x2e0] sm:$0xff]
        %v6700 = vld [vmem:[#allocation9 + $0x2e8] sm:$0xff]
        %v6701 = vld [vmem:[#allocation9 + $0x2f0] sm:$0xff]
        %v6702 = vld [vmem:[#allocation9 + $0x2f8] sm:$0xff]
        %v6703 = vmul.f32 %v6671, %v6687
        %v6704 = vmul.f32 %v6679, %v6688
        %v6705 = vmul.f32 %v6672, %v6689
        %v6706 = vmul.f32 %v6680, %v6690
        %v6707 = vmul.f32 %v6673, %v6691
        %v6708 = vmul.f32 %v6681, %v6692
        %v6709 = vmul.f32 %v6674, %v6693
        %v6710 = vmul.f32 %v6682, %v6694
        %v6711 = vmul.f32 %v6675, %v6695
        %v6712 = vmul.f32 %v6683, %v6696
        %v6713 = vmul.f32 %v6676, %v6697
        %v6714 = vmul.f32 %v6684, %v6698
        %v6715 = vmul.f32 %v6677, %v6699
        %v6716 = vmul.f32 %v6685, %v6700
        %v6717 = vmul.f32 %v6678, %v6701
        %v6718 = vmul.f32 %v6686, %v6702
        %v6719 = vpack.c.bf16 %v6705, %v6703
        %v6720 = vpack.c.bf16 %v6706, %v6704
        %v6721 = vpack.c.bf16 %v6709, %v6707
        %v6722 = vpack.c.bf16 %v6710, %v6708
        %v6723 = vpack.c.bf16 %v6713, %v6711
        %v6724 = vpack.c.bf16 %v6714, %v6712
        %v6725 = vpack.c.bf16 %v6717, %v6715
        %v6726 = vpack.c.bf16 %v6718, %v6716
        %v6735 = vunpack.c.l.b16 %v6719
        %v6736 = vunpack.c.l.b16 %v6720
        %v6737 = vunpack.c.h.b16 %v6719
        %v6738 = vunpack.c.h.b16 %v6720
        %v6739 = vunpack.c.l.b16 %v6721
        %v6740 = vunpack.c.l.b16 %v6722
        %v6741 = vunpack.c.h.b16 %v6721
        %v6742 = vunpack.c.h.b16 %v6722
        %v6743 = vunpack.c.l.b16 %v6723
        %v6744 = vunpack.c.l.b16 %v6724
        %v6745 = vunpack.c.h.b16 %v6723
        %v6746 = vunpack.c.h.b16 %v6724
        %v6747 = vunpack.c.l.b16 %v6725
        %v6748 = vunpack.c.l.b16 %v6726
        %v6749 = vunpack.c.h.b16 %v6725
        %v6750 = vunpack.c.h.b16 %v6726
        %v6751 = vpack.c.b16 %v6736, %v6735
        %v6752 = vpack.c.b16 %v6738, %v6737
        %v6753 = vpack.c.b16 %v6740, %v6739
        %v6754 = vpack.c.b16 %v6742, %v6741
        %v6755 = vpack.c.b16 %v6744, %v6743
        %v6756 = vpack.c.b16 %v6746, %v6745
        %v6757 = vpack.c.b16 %v6748, %v6747
        %v6758 = vpack.c.b16 %v6750, %v6749
        %6767 = vst [vmem:[#allocation2 + $0x288] sm:$0xff] %v6751
        %6768 = vst [vmem:[#allocation2 + $0x298] sm:$0xff] %v6752
        %6769 = vst [vmem:[#allocation2 + $0x2a8] sm:$0xff] %v6753
        %6770 = vst [vmem:[#allocation2 + $0x2b8] sm:$0xff] %v6754
        %6771 = vst [vmem:[#allocation2 + $0x2c8] sm:$0xff] %v6755
        %6772 = vst [vmem:[#allocation2 + $0x2d8] sm:$0xff] %v6756
        %6773 = vst [vmem:[#allocation2 + $0x2e8] sm:$0xff] %v6757
        %6774 = vst [vmem:[#allocation2 + $0x2f8] sm:$0xff] %v6758
        %6775 = vrot.lane.b32.xlu0 %v5991, 113
        %v6776 = vpop.permute.xlu0 %6775
        %6777 = vrot.lane.b32.xlu0 %v5993, 113
        %v6778 = vpop.permute.xlu0 %6777
        %6779 = vrot.lane.b32.xlu0 %v5995, 113
        %v6780 = vpop.permute.xlu0 %6779
        %6781 = vrot.lane.b32.xlu0 %v5997, 113
        %v6782 = vpop.permute.xlu0 %6781
        %6783 = vrot.lane.b32.xlu0 %v5999, 113
        %v6784 = vpop.permute.xlu0 %6783
        %6785 = vrot.lane.b32.xlu0 %v6001, 113
        %v6786 = vpop.permute.xlu0 %6785
        %6787 = vrot.lane.b32.xlu0 %v6003, 113
        %v6788 = vpop.permute.xlu0 %6787
        %6789 = vrot.lane.b32.xlu0 %v6005, 113
        %v6790 = vpop.permute.xlu0 %6789
        %6791 = vrot.lane.b32.xlu0 %v5992, 113
        %v6792 = vpop.permute.xlu0 %6791
        %6793 = vrot.lane.b32.xlu0 %v5994, 113
        %v6794 = vpop.permute.xlu0 %6793
        %6795 = vrot.lane.b32.xlu0 %v5996, 113
        %v6796 = vpop.permute.xlu0 %6795
        %6797 = vrot.lane.b32.xlu0 %v5998, 113
        %v6798 = vpop.permute.xlu0 %6797
        %6799 = vrot.lane.b32.xlu0 %v6000, 113
        %v6800 = vpop.permute.xlu0 %6799
        %6801 = vrot.lane.b32.xlu0 %v6002, 113
        %v6802 = vpop.permute.xlu0 %6801
        %6803 = vrot.lane.b32.xlu0 %v6004, 113
        %v6804 = vpop.permute.xlu0 %6803
        %6805 = vrot.lane.b32.xlu0 %v6006, 113
        %v6806 = vpop.permute.xlu0 %6805
        %v6807 = vsel %vm1212, %v6776, %v6792
        %v6808 = vsel %vm1212, %v6778, %v6794
        %v6809 = vsel %vm1212, %v6780, %v6796
        %v6810 = vsel %vm1212, %v6782, %v6798
        %v6811 = vsel %vm1212, %v6784, %v6800
        %v6812 = vsel %vm1212, %v6786, %v6802
        %v6813 = vsel %vm1212, %v6788, %v6804
        %v6814 = vsel %vm1212, %v6790, %v6806
        %v6815 = vsel %vm1212, %v6792, %v6776
        %v6816 = vsel %vm1212, %v6794, %v6778
        %v6817 = vsel %vm1212, %v6796, %v6780
        %v6818 = vsel %vm1212, %v6798, %v6782
        %v6819 = vsel %vm1212, %v6800, %v6784
        %v6820 = vsel %vm1212, %v6802, %v6786
        %v6821 = vsel %vm1212, %v6804, %v6788
        %v6822 = vsel %vm1212, %v6806, %v6790
        %v6823 = vld [vmem:[#allocation9 + $0x300] sm:$0xff]
        %v6824 = vld [vmem:[#allocation9 + $0x308] sm:$0xff]
        %v6825 = vld [vmem:[#allocation9 + $0x310] sm:$0xff]
        %v6826 = vld [vmem:[#allocation9 + $0x318] sm:$0xff]
        %v6827 = vld [vmem:[#allocation9 + $0x320] sm:$0xff]
        %v6828 = vld [vmem:[#allocation9 + $0x328] sm:$0xff]
        %v6829 = vld [vmem:[#allocation9 + $0x330] sm:$0xff]
        %v6830 = vld [vmem:[#allocation9 + $0x338] sm:$0xff]
        %v6831 = vld [vmem:[#allocation9 + $0x340] sm:$0xff]
        %v6832 = vld [vmem:[#allocation9 + $0x348] sm:$0xff]
        %v6833 = vld [vmem:[#allocation9 + $0x350] sm:$0xff]
        %v6834 = vld [vmem:[#allocation9 + $0x358] sm:$0xff]
        %v6835 = vld [vmem:[#allocation9 + $0x360] sm:$0xff]
        %v6836 = vld [vmem:[#allocation9 + $0x368] sm:$0xff]
        %v6837 = vld [vmem:[#allocation9 + $0x370] sm:$0xff]
        %v6838 = vld [vmem:[#allocation9 + $0x378] sm:$0xff]
        %v6839 = vmul.f32 %v6807, %v6823
        %v6840 = vmul.f32 %v6815, %v6824
        %v6841 = vmul.f32 %v6808, %v6825
        %v6842 = vmul.f32 %v6816, %v6826
        %v6843 = vmul.f32 %v6809, %v6827
        %v6844 = vmul.f32 %v6817, %v6828
        %v6845 = vmul.f32 %v6810, %v6829
        %v6846 = vmul.f32 %v6818, %v6830
        %v6847 = vmul.f32 %v6811, %v6831
        %v6848 = vmul.f32 %v6819, %v6832
        %v6849 = vmul.f32 %v6812, %v6833
        %v6850 = vmul.f32 %v6820, %v6834
        %v6851 = vmul.f32 %v6813, %v6835
        %v6852 = vmul.f32 %v6821, %v6836
        %v6853 = vmul.f32 %v6814, %v6837
        %v6854 = vmul.f32 %v6822, %v6838
        %v6855 = vpack.c.bf16 %v6841, %v6839
        %v6856 = vpack.c.bf16 %v6842, %v6840
        %v6857 = vpack.c.bf16 %v6845, %v6843
        %v6858 = vpack.c.bf16 %v6846, %v6844
        %v6859 = vpack.c.bf16 %v6849, %v6847
        %v6860 = vpack.c.bf16 %v6850, %v6848
        %v6861 = vpack.c.bf16 %v6853, %v6851
        %v6862 = vpack.c.bf16 %v6854, %v6852
        %v6871 = vunpack.c.l.b16 %v6855
        %v6872 = vunpack.c.l.b16 %v6856
        %v6873 = vunpack.c.h.b16 %v6855
        %v6874 = vunpack.c.h.b16 %v6856
        %v6875 = vunpack.c.l.b16 %v6857
        %v6876 = vunpack.c.l.b16 %v6858
        %v6877 = vunpack.c.h.b16 %v6857
        %v6878 = vunpack.c.h.b16 %v6858
        %v6879 = vunpack.c.l.b16 %v6859
        %v6880 = vunpack.c.l.b16 %v6860
        %v6881 = vunpack.c.h.b16 %v6859
        %v6882 = vunpack.c.h.b16 %v6860
        %v6883 = vunpack.c.l.b16 %v6861
        %v6884 = vunpack.c.l.b16 %v6862
        %v6885 = vunpack.c.h.b16 %v6861
        %v6886 = vunpack.c.h.b16 %v6862
        %v6887 = vpack.c.b16 %v6872, %v6871
        %v6888 = vpack.c.b16 %v6874, %v6873
        %v6889 = vpack.c.b16 %v6876, %v6875
        %v6890 = vpack.c.b16 %v6878, %v6877
        %v6891 = vpack.c.b16 %v6880, %v6879
        %v6892 = vpack.c.b16 %v6882, %v6881
        %v6893 = vpack.c.b16 %v6884, %v6883
        %v6894 = vpack.c.b16 %v6886, %v6885
        %6903 = vst [vmem:[#allocation2 + $0x308] sm:$0xff] %v6887
        %6904 = vst [vmem:[#allocation2 + $0x318] sm:$0xff] %v6888
        %6905 = vst [vmem:[#allocation2 + $0x328] sm:$0xff] %v6889
        %6906 = vst [vmem:[#allocation2 + $0x338] sm:$0xff] %v6890
        %6907 = vst [vmem:[#allocation2 + $0x348] sm:$0xff] %v6891
        %6908 = vst [vmem:[#allocation2 + $0x358] sm:$0xff] %v6892
        %6909 = vst [vmem:[#allocation2 + $0x368] sm:$0xff] %v6893
        %6910 = vst [vmem:[#allocation2 + $0x378] sm:$0xff] %v6894
        %6911 = vrot.lane.b32.xlu0 %v5991, 112
        %v6912 = vpop.permute.xlu0 %6911
        %6913 = vrot.lane.b32.xlu0 %v5993, 112
        %v6914 = vpop.permute.xlu0 %6913
        %6915 = vrot.lane.b32.xlu0 %v5995, 112
        %v6916 = vpop.permute.xlu0 %6915
        %6917 = vrot.lane.b32.xlu0 %v5997, 112
        %v6918 = vpop.permute.xlu0 %6917
        %6919 = vrot.lane.b32.xlu0 %v5999, 112
        %v6920 = vpop.permute.xlu0 %6919
        %6921 = vrot.lane.b32.xlu0 %v6001, 112
        %v6922 = vpop.permute.xlu0 %6921
        %6923 = vrot.lane.b32.xlu0 %v6003, 112
        %v6924 = vpop.permute.xlu0 %6923
        %6925 = vrot.lane.b32.xlu0 %v6005, 112
        %v6926 = vpop.permute.xlu0 %6925
        %6927 = vrot.lane.b32.xlu0 %v5992, 112
        %v6928 = vpop.permute.xlu0 %6927
        %6929 = vrot.lane.b32.xlu0 %v5994, 112
        %v6930 = vpop.permute.xlu0 %6929
        %6931 = vrot.lane.b32.xlu0 %v5996, 112
        %v6932 = vpop.permute.xlu0 %6931
        %6933 = vrot.lane.b32.xlu0 %v5998, 112
        %v6934 = vpop.permute.xlu0 %6933
        %6935 = vrot.lane.b32.xlu0 %v6000, 112
        %v6936 = vpop.permute.xlu0 %6935
        %6937 = vrot.lane.b32.xlu0 %v6002, 112
        %v6938 = vpop.permute.xlu0 %6937
        %6939 = vrot.lane.b32.xlu0 %v6004, 112
        %v6940 = vpop.permute.xlu0 %6939
        %6941 = vrot.lane.b32.xlu0 %v6006, 112
        %v6942 = vpop.permute.xlu0 %6941
        %v6943 = vsel %vm1349, %v6912, %v6928
        %v6944 = vsel %vm1349, %v6914, %v6930
        %v6945 = vsel %vm1349, %v6916, %v6932
        %v6946 = vsel %vm1349, %v6918, %v6934
        %v6947 = vsel %vm1349, %v6920, %v6936
        %v6948 = vsel %vm1349, %v6922, %v6938
        %v6949 = vsel %vm1349, %v6924, %v6940
        %v6950 = vsel %vm1349, %v6926, %v6942
        %v6951 = vsel %vm1349, %v6928, %v6912
        %v6952 = vsel %vm1349, %v6930, %v6914
        %v6953 = vsel %vm1349, %v6932, %v6916
        %v6954 = vsel %vm1349, %v6934, %v6918
        %v6955 = vsel %vm1349, %v6936, %v6920
        %v6956 = vsel %vm1349, %v6938, %v6922
        %v6957 = vsel %vm1349, %v6940, %v6924
        %v6958 = vsel %vm1349, %v6942, %v6926
        %v6959 = vld [vmem:[#allocation9 + $0x380] sm:$0xff]
        %v6960 = vld [vmem:[#allocation9 + $0x388] sm:$0xff]
        %v6961 = vld [vmem:[#allocation9 + $0x390] sm:$0xff]
        %v6962 = vld [vmem:[#allocation9 + $0x398] sm:$0xff]
        %v6963 = vld [vmem:[#allocation9 + $0x3a0] sm:$0xff]
        %v6964 = vld [vmem:[#allocation9 + $0x3a8] sm:$0xff]
        %v6965 = vld [vmem:[#allocation9 + $0x3b0] sm:$0xff]
        %v6966 = vld [vmem:[#allocation9 + $0x3b8] sm:$0xff]
        %v6967 = vld [vmem:[#allocation9 + $0x3c0] sm:$0xff]
        %v6968 = vld [vmem:[#allocation9 + $0x3c8] sm:$0xff]
        %v6969 = vld [vmem:[#allocation9 + $0x3d0] sm:$0xff]
        %v6970 = vld [vmem:[#allocation9 + $0x3d8] sm:$0xff]
        %v6971 = vld [vmem:[#allocation9 + $0x3e0] sm:$0xff]
        %v6972 = vld [vmem:[#allocation9 + $0x3e8] sm:$0xff]
        %v6973 = vld [vmem:[#allocation9 + $0x3f0] sm:$0xff]
        %v6974 = vld [vmem:[#allocation9 + $0x3f8] sm:$0xff]
        %v6975 = vmul.f32 %v6943, %v6959
        %v6976 = vmul.f32 %v6951, %v6960
        %v6977 = vmul.f32 %v6944, %v6961
        %v6978 = vmul.f32 %v6952, %v6962
        %v6979 = vmul.f32 %v6945, %v6963
        %v6980 = vmul.f32 %v6953, %v6964
        %v6981 = vmul.f32 %v6946, %v6965
        %v6982 = vmul.f32 %v6954, %v6966
        %v6983 = vmul.f32 %v6947, %v6967
        %v6984 = vmul.f32 %v6955, %v6968
        %v6985 = vmul.f32 %v6948, %v6969
        %v6986 = vmul.f32 %v6956, %v6970
        %v6987 = vmul.f32 %v6949, %v6971
        %v6988 = vmul.f32 %v6957, %v6972
        %v6989 = vmul.f32 %v6950, %v6973
        %v6990 = vmul.f32 %v6958, %v6974
        %v6991 = vpack.c.bf16 %v6977, %v6975
        %v6992 = vpack.c.bf16 %v6978, %v6976
        %v6993 = vpack.c.bf16 %v6981, %v6979
        %v6994 = vpack.c.bf16 %v6982, %v6980
        %v6995 = vpack.c.bf16 %v6985, %v6983
        %v6996 = vpack.c.bf16 %v6986, %v6984
        %v6997 = vpack.c.bf16 %v6989, %v6987
        %v6998 = vpack.c.bf16 %v6990, %v6988
        %v7007 = vunpack.c.l.b16 %v6991
        %v7008 = vunpack.c.l.b16 %v6992
        %v7009 = vunpack.c.h.b16 %v6991
        %v7010 = vunpack.c.h.b16 %v6992
        %v7011 = vunpack.c.l.b16 %v6993
        %v7012 = vunpack.c.l.b16 %v6994
        %v7013 = vunpack.c.h.b16 %v6993
        %v7014 = vunpack.c.h.b16 %v6994
        %v7015 = vunpack.c.l.b16 %v6995
        %v7016 = vunpack.c.l.b16 %v6996
        %v7017 = vunpack.c.h.b16 %v6995
        %v7018 = vunpack.c.h.b16 %v6996
        %v7019 = vunpack.c.l.b16 %v6997
        %v7020 = vunpack.c.l.b16 %v6998
        %v7021 = vunpack.c.h.b16 %v6997
        %v7022 = vunpack.c.h.b16 %v6998
        %v7023 = vpack.c.b16 %v7008, %v7007
        %v7024 = vpack.c.b16 %v7010, %v7009
        %v7025 = vpack.c.b16 %v7012, %v7011
        %v7026 = vpack.c.b16 %v7014, %v7013
        %v7027 = vpack.c.b16 %v7016, %v7015
        %v7028 = vpack.c.b16 %v7018, %v7017
        %v7029 = vpack.c.b16 %v7020, %v7019
        %v7030 = vpack.c.b16 %v7022, %v7021
        %7039 = vst [vmem:[#allocation2 + $0x388] sm:$0xff] %v7023
        %7040 = vst [vmem:[#allocation2 + $0x398] sm:$0xff] %v7024
        %7041 = vst [vmem:[#allocation2 + $0x3a8] sm:$0xff] %v7025
        %7042 = vst [vmem:[#allocation2 + $0x3b8] sm:$0xff] %v7026
        %7043 = vst [vmem:[#allocation2 + $0x3c8] sm:$0xff] %v7027
        %7044 = vst [vmem:[#allocation2 + $0x3d8] sm:$0xff] %v7028
        %7045 = vst [vmem:[#allocation2 + $0x3e8] sm:$0xff] %v7029
        %7046 = vst [vmem:[#allocation2 + $0x3f8] sm:$0xff] %v7030
        %7047 = vrot.lane.b32.xlu0 %v5991, 111
        %v7048 = vpop.permute.xlu0 %7047
        %7049 = vrot.lane.b32.xlu0 %v5993, 111
        %v7050 = vpop.permute.xlu0 %7049
        %7051 = vrot.lane.b32.xlu0 %v5995, 111
        %v7052 = vpop.permute.xlu0 %7051
        %7053 = vrot.lane.b32.xlu0 %v5997, 111
        %v7054 = vpop.permute.xlu0 %7053
        %7055 = vrot.lane.b32.xlu0 %v5999, 111
        %v7056 = vpop.permute.xlu0 %7055
        %7057 = vrot.lane.b32.xlu0 %v6001, 111
        %v7058 = vpop.permute.xlu0 %7057
        %7059 = vrot.lane.b32.xlu0 %v6003, 111
        %v7060 = vpop.permute.xlu0 %7059
        %7061 = vrot.lane.b32.xlu0 %v6005, 111
        %v7062 = vpop.permute.xlu0 %7061
        %7063 = vrot.lane.b32.xlu0 %v5992, 111
        %v7064 = vpop.permute.xlu0 %7063
        %7065 = vrot.lane.b32.xlu0 %v5994, 111
        %v7066 = vpop.permute.xlu0 %7065
        %7067 = vrot.lane.b32.xlu0 %v5996, 111
        %v7068 = vpop.permute.xlu0 %7067
        %7069 = vrot.lane.b32.xlu0 %v5998, 111
        %v7070 = vpop.permute.xlu0 %7069
        %7071 = vrot.lane.b32.xlu0 %v6000, 111
        %v7072 = vpop.permute.xlu0 %7071
        %7073 = vrot.lane.b32.xlu0 %v6002, 111
        %v7074 = vpop.permute.xlu0 %7073
        %7075 = vrot.lane.b32.xlu0 %v6004, 111
        %v7076 = vpop.permute.xlu0 %7075
        %7077 = vrot.lane.b32.xlu0 %v6006, 111
        %v7078 = vpop.permute.xlu0 %7077
        %v7079 = vsel %vm1486, %v7048, %v7064
        %v7080 = vsel %vm1486, %v7050, %v7066
        %v7081 = vsel %vm1486, %v7052, %v7068
        %v7082 = vsel %vm1486, %v7054, %v7070
        %v7083 = vsel %vm1486, %v7056, %v7072
        %v7084 = vsel %vm1486, %v7058, %v7074
        %v7085 = vsel %vm1486, %v7060, %v7076
        %v7086 = vsel %vm1486, %v7062, %v7078
        %v7087 = vsel %vm1486, %v7064, %v7048
        %v7088 = vsel %vm1486, %v7066, %v7050
        %v7089 = vsel %vm1486, %v7068, %v7052
        %v7090 = vsel %vm1486, %v7070, %v7054
        %v7091 = vsel %vm1486, %v7072, %v7056
        %v7092 = vsel %vm1486, %v7074, %v7058
        %v7093 = vsel %vm1486, %v7076, %v7060
        %v7094 = vsel %vm1486, %v7078, %v7062
        %v7095 = vld [vmem:[#allocation9 + $0x400] sm:$0xff]
        %v7096 = vld [vmem:[#allocation9 + $0x408] sm:$0xff]
        %v7097 = vld [vmem:[#allocation9 + $0x410] sm:$0xff]
        %v7098 = vld [vmem:[#allocation9 + $0x418] sm:$0xff]
        %v7099 = vld [vmem:[#allocation9 + $0x420] sm:$0xff]
        %v7100 = vld [vmem:[#allocation9 + $0x428] sm:$0xff]
        %v7101 = vld [vmem:[#allocation9 + $0x430] sm:$0xff]
        %v7102 = vld [vmem:[#allocation9 + $0x438] sm:$0xff]
        %v7103 = vld [vmem:[#allocation9 + $0x440] sm:$0xff]
        %v7104 = vld [vmem:[#allocation9 + $0x448] sm:$0xff]
        %v7105 = vld [vmem:[#allocation9 + $0x450] sm:$0xff]
        %v7106 = vld [vmem:[#allocation9 + $0x458] sm:$0xff]
        %v7107 = vld [vmem:[#allocation9 + $0x460] sm:$0xff]
        %v7108 = vld [vmem:[#allocation9 + $0x468] sm:$0xff]
        %v7109 = vld [vmem:[#allocation9 + $0x470] sm:$0xff]
        %v7110 = vld [vmem:[#allocation9 + $0x478] sm:$0xff]
        %v7111 = vmul.f32 %v7079, %v7095
        %v7112 = vmul.f32 %v7087, %v7096
        %v7113 = vmul.f32 %v7080, %v7097
        %v7114 = vmul.f32 %v7088, %v7098
        %v7115 = vmul.f32 %v7081, %v7099
        %v7116 = vmul.f32 %v7089, %v7100
        %v7117 = vmul.f32 %v7082, %v7101
        %v7118 = vmul.f32 %v7090, %v7102
        %v7119 = vmul.f32 %v7083, %v7103
        %v7120 = vmul.f32 %v7091, %v7104
        %v7121 = vmul.f32 %v7084, %v7105
        %v7122 = vmul.f32 %v7092, %v7106
        %v7123 = vmul.f32 %v7085, %v7107
        %v7124 = vmul.f32 %v7093, %v7108
        %v7125 = vmul.f32 %v7086, %v7109
        %v7126 = vmul.f32 %v7094, %v7110
        %v7127 = vpack.c.bf16 %v7113, %v7111
        %v7128 = vpack.c.bf16 %v7114, %v7112
        %v7129 = vpack.c.bf16 %v7117, %v7115
        %v7130 = vpack.c.bf16 %v7118, %v7116
        %v7131 = vpack.c.bf16 %v7121, %v7119
        %v7132 = vpack.c.bf16 %v7122, %v7120
        %v7133 = vpack.c.bf16 %v7125, %v7123
        %v7134 = vpack.c.bf16 %v7126, %v7124
        %v7143 = vunpack.c.l.b16 %v7127
        %v7144 = vunpack.c.l.b16 %v7128
        %v7145 = vunpack.c.h.b16 %v7127
        %v7146 = vunpack.c.h.b16 %v7128
        %v7147 = vunpack.c.l.b16 %v7129
        %v7148 = vunpack.c.l.b16 %v7130
        %v7149 = vunpack.c.h.b16 %v7129
        %v7150 = vunpack.c.h.b16 %v7130
        %v7151 = vunpack.c.l.b16 %v7131
        %v7152 = vunpack.c.l.b16 %v7132
        %v7153 = vunpack.c.h.b16 %v7131
        %v7154 = vunpack.c.h.b16 %v7132
        %v7155 = vunpack.c.l.b16 %v7133
        %v7156 = vunpack.c.l.b16 %v7134
        %v7157 = vunpack.c.h.b16 %v7133
        %v7158 = vunpack.c.h.b16 %v7134
        %v7159 = vpack.c.b16 %v7144, %v7143
        %v7160 = vpack.c.b16 %v7146, %v7145
        %v7161 = vpack.c.b16 %v7148, %v7147
        %v7162 = vpack.c.b16 %v7150, %v7149
        %v7163 = vpack.c.b16 %v7152, %v7151
        %v7164 = vpack.c.b16 %v7154, %v7153
        %v7165 = vpack.c.b16 %v7156, %v7155
        %v7166 = vpack.c.b16 %v7158, %v7157
        %7175 = vst [vmem:[#allocation2 + $0x408] sm:$0xff] %v7159
        %7176 = vst [vmem:[#allocation2 + $0x418] sm:$0xff] %v7160
        %7177 = vst [vmem:[#allocation2 + $0x428] sm:$0xff] %v7161
        %7178 = vst [vmem:[#allocation2 + $0x438] sm:$0xff] %v7162
        %7179 = vst [vmem:[#allocation2 + $0x448] sm:$0xff] %v7163
        %7180 = vst [vmem:[#allocation2 + $0x458] sm:$0xff] %v7164
        %7181 = vst [vmem:[#allocation2 + $0x468] sm:$0xff] %v7165
        %7182 = vst [vmem:[#allocation2 + $0x478] sm:$0xff] %v7166
        %v7183 = vld [vmem:[#allocation7] sm:$0xff]
        %v7184 = vld [vmem:[#allocation7 + $0x8] sm:$0xff]
        %v7185 = vld [vmem:[#allocation7 + $0x10] sm:$0xf]
        %v7186 = vld [vmem:[#allocation7 + $0x14] sm:$0xff]
        %v7187 = vld [vmem:[#allocation7 + $0x1c] sm:$0xff]
        %v7188 = vld [vmem:[#allocation7 + $0x24] sm:$0xf]
        %v7189 = vld [vmem:[#allocation7 + $0x28] sm:$0xff]
        %v7190 = vld [vmem:[#allocation7 + $0x30] sm:$0xff]
        %v7191 = vld [vmem:[#allocation7 + $0x38] sm:$0xf]
        %v7192 = vld [vmem:[#allocation7 + $0x3c] sm:$0xff]
        %v7193 = vld [vmem:[#allocation7 + $0x44] sm:$0xff]
        %v7194 = vld [vmem:[#allocation7 + $0x4c] sm:$0xf]
        %v7195 = vld [vmem:[#allocation7 + $0x50] sm:$0xff]
        %v7196 = vld [vmem:[#allocation7 + $0x58] sm:$0xff]
        %v7197 = vld [vmem:[#allocation7 + $0x60] sm:$0xf]
        %v7198 = vld [vmem:[#allocation7 + $0x64] sm:$0xff]
        %v7199 = vld [vmem:[#allocation7 + $0x6c] sm:$0xff]
        %v7200 = vld [vmem:[#allocation7 + $0x74] sm:$0xf]
        %v7201 = vld [vmem:[#allocation7 + $0x78] sm:$0xff]
        %v7202 = vld [vmem:[#allocation7 + $0x80] sm:$0xff]
        %v7203 = vld [vmem:[#allocation7 + $0x88] sm:$0xf]
        %v7204 = vld [vmem:[#allocation7 + $0x8c] sm:$0xff]
        %v7205 = vld [vmem:[#allocation7 + $0x94] sm:$0xff]
        %v7206 = vld [vmem:[#allocation7 + $0x9c] sm:$0xf]
        %v7207 = vld [vmem:[#allocation2] sm:$0xff]
        %v7208 = vld [vmem:[#allocation2 + $0x8] sm:$0xff]
        %v7209 = vld [vmem:[#allocation2 + $0x10] sm:$0xff]
        %v7210 = vld [vmem:[#allocation2 + $0x18] sm:$0xff]
        %v7211 = vld [vmem:[#allocation2 + $0x20] sm:$0xff]
        %v7212 = vld [vmem:[#allocation2 + $0x28] sm:$0xff]
        %v7213 = vld [vmem:[#allocation2 + $0x30] sm:$0xff]
        %v7214 = vld [vmem:[#allocation2 + $0x38] sm:$0xff]
        %v7215 = vld [vmem:[#allocation2 + $0x40] sm:$0xff]
        %v7216 = vld [vmem:[#allocation2 + $0x48] sm:$0xff]
        %v7217 = vld [vmem:[#allocation2 + $0x50] sm:$0xff]
        %v7218 = vld [vmem:[#allocation2 + $0x58] sm:$0xff]
        %v7219 = vld [vmem:[#allocation2 + $0x60] sm:$0xff]
        %v7220 = vld [vmem:[#allocation2 + $0x68] sm:$0xff]
        %v7221 = vld [vmem:[#allocation2 + $0x70] sm:$0xff]
        %v7222 = vld [vmem:[#allocation2 + $0x78] sm:$0xff]
        %v7223 = vld [vmem:[#allocation2 + $0x80] sm:$0xff]
        %v7224 = vld [vmem:[#allocation2 + $0x88] sm:$0xff]
        %v7225 = vld [vmem:[#allocation2 + $0x90] sm:$0xff]
        %v7226 = vld [vmem:[#allocation2 + $0x98] sm:$0xff]
        %v7227 = vld [vmem:[#allocation2 + $0xa0] sm:$0xff]
        %v7228 = vld [vmem:[#allocation2 + $0xa8] sm:$0xff]
        %v7229 = vld [vmem:[#allocation2 + $0xb0] sm:$0xff]
        %v7230 = vld [vmem:[#allocation2 + $0xb8] sm:$0xff]
        %v7231 = vld [vmem:[#allocation2 + $0xc0] sm:$0xff]
        %v7232 = vld [vmem:[#allocation2 + $0xc8] sm:$0xff]
        %v7233 = vld [vmem:[#allocation2 + $0xd0] sm:$0xff]
        %v7234 = vld [vmem:[#allocation2 + $0xd8] sm:$0xff]
        %v7235 = vld [vmem:[#allocation2 + $0xe0] sm:$0xff]
        %v7236 = vld [vmem:[#allocation2 + $0xe8] sm:$0xff]
        %v7237 = vld [vmem:[#allocation2 + $0xf0] sm:$0xff]
        %v7238 = vld [vmem:[#allocation2 + $0xf8] sm:$0xff]
        %v7239 = vld [vmem:[#allocation2 + $0x100] sm:$0xff]
        %v7240 = vld [vmem:[#allocation2 + $0x108] sm:$0xff]
        %v7241 = vld [vmem:[#allocation2 + $0x110] sm:$0xff]
        %v7242 = vld [vmem:[#allocation2 + $0x118] sm:$0xff]
        %v7243 = vld [vmem:[#allocation2 + $0x120] sm:$0xff]
        %v7244 = vld [vmem:[#allocation2 + $0x128] sm:$0xff]
        %v7245 = vld [vmem:[#allocation2 + $0x130] sm:$0xff]
        %v7246 = vld [vmem:[#allocation2 + $0x138] sm:$0xff]
        %v7247 = vld [vmem:[#allocation2 + $0x140] sm:$0xff]
        %v7248 = vld [vmem:[#allocation2 + $0x148] sm:$0xff]
        %v7249 = vld [vmem:[#allocation2 + $0x150] sm:$0xff]
        %v7250 = vld [vmem:[#allocation2 + $0x158] sm:$0xff]
        %v7251 = vld [vmem:[#allocation2 + $0x160] sm:$0xff]
        %v7252 = vld [vmem:[#allocation2 + $0x168] sm:$0xff]
        %v7253 = vld [vmem:[#allocation2 + $0x170] sm:$0xff]
        %v7254 = vld [vmem:[#allocation2 + $0x178] sm:$0xff]
        %v7255 = vld [vmem:[#allocation2 + $0x180] sm:$0xff]
        %v7256 = vld [vmem:[#allocation2 + $0x188] sm:$0xff]
        %v7257 = vld [vmem:[#allocation2 + $0x190] sm:$0xff]
        %v7258 = vld [vmem:[#allocation2 + $0x198] sm:$0xff]
        %v7259 = vld [vmem:[#allocation2 + $0x1a0] sm:$0xff]
        %v7260 = vld [vmem:[#allocation2 + $0x1a8] sm:$0xff]
        %v7261 = vld [vmem:[#allocation2 + $0x1b0] sm:$0xff]
        %v7262 = vld [vmem:[#allocation2 + $0x1b8] sm:$0xff]
        %v7263 = vld [vmem:[#allocation2 + $0x1c0] sm:$0xff]
        %v7264 = vld [vmem:[#allocation2 + $0x1c8] sm:$0xff]
        %v7265 = vld [vmem:[#allocation2 + $0x1d0] sm:$0xff]
        %v7266 = vld [vmem:[#allocation2 + $0x1d8] sm:$0xff]
        %v7267 = vld [vmem:[#allocation2 + $0x1e0] sm:$0xff]
        %v7268 = vld [vmem:[#allocation2 + $0x1e8] sm:$0xff]
        %v7269 = vld [vmem:[#allocation2 + $0x1f0] sm:$0xff]
        %v7270 = vld [vmem:[#allocation2 + $0x1f8] sm:$0xff]
        %v7271 = vld [vmem:[#allocation2 + $0x200] sm:$0xff]
        %v7272 = vld [vmem:[#allocation2 + $0x208] sm:$0xff]
        %v7273 = vld [vmem:[#allocation2 + $0x210] sm:$0xff]
        %v7274 = vld [vmem:[#allocation2 + $0x218] sm:$0xff]
        %v7275 = vld [vmem:[#allocation2 + $0x220] sm:$0xff]
        %v7276 = vld [vmem:[#allocation2 + $0x228] sm:$0xff]
        %v7277 = vld [vmem:[#allocation2 + $0x230] sm:$0xff]
        %v7278 = vld [vmem:[#allocation2 + $0x238] sm:$0xff]
        %v7279 = vld [vmem:[#allocation2 + $0x240] sm:$0xff]
        %v7280 = vld [vmem:[#allocation2 + $0x248] sm:$0xff]
        %v7281 = vld [vmem:[#allocation2 + $0x250] sm:$0xff]
        %v7282 = vld [vmem:[#allocation2 + $0x258] sm:$0xff]
        %v7283 = vld [vmem:[#allocation2 + $0x260] sm:$0xff]
        %v7284 = vld [vmem:[#allocation2 + $0x268] sm:$0xff]
        %v7285 = vld [vmem:[#allocation2 + $0x270] sm:$0xff]
        %v7286 = vld [vmem:[#allocation2 + $0x278] sm:$0xff]
        %v7287 = vld [vmem:[#allocation2 + $0x280] sm:$0xff]
        %v7288 = vld [vmem:[#allocation2 + $0x288] sm:$0xff]
        %v7289 = vld [vmem:[#allocation2 + $0x290] sm:$0xff]
        %v7290 = vld [vmem:[#allocation2 + $0x298] sm:$0xff]
        %v7291 = vld [vmem:[#allocation2 + $0x2a0] sm:$0xff]
        %v7292 = vld [vmem:[#allocation2 + $0x2a8] sm:$0xff]
        %v7293 = vld [vmem:[#allocation2 + $0x2b0] sm:$0xff]
        %v7294 = vld [vmem:[#allocation2 + $0x2b8] sm:$0xff]
        %v7295 = vld [vmem:[#allocation2 + $0x2c0] sm:$0xff]
        %v7296 = vld [vmem:[#allocation2 + $0x2c8] sm:$0xff]
        %v7297 = vld [vmem:[#allocation2 + $0x2d0] sm:$0xff]
        %v7298 = vld [vmem:[#allocation2 + $0x2d8] sm:$0xff]
        %v7299 = vld [vmem:[#allocation2 + $0x2e0] sm:$0xff]
        %v7300 = vld [vmem:[#allocation2 + $0x2e8] sm:$0xff]
        %v7301 = vld [vmem:[#allocation2 + $0x2f0] sm:$0xff]
        %v7302 = vld [vmem:[#allocation2 + $0x2f8] sm:$0xff]
        %v7303 = vld [vmem:[#allocation2 + $0x300] sm:$0xff]
        %v7304 = vld [vmem:[#allocation2 + $0x308] sm:$0xff]
        %v7305 = vld [vmem:[#allocation2 + $0x310] sm:$0xff]
        %v7306 = vld [vmem:[#allocation2 + $0x318] sm:$0xff]
        %v7307 = vld [vmem:[#allocation2 + $0x320] sm:$0xff]
        %v7308 = vld [vmem:[#allocation2 + $0x328] sm:$0xff]
        %v7309 = vld [vmem:[#allocation2 + $0x330] sm:$0xff]
        %v7310 = vld [vmem:[#allocation2 + $0x338] sm:$0xff]
        %v7311 = vld [vmem:[#allocation2 + $0x340] sm:$0xff]
        %v7312 = vld [vmem:[#allocation2 + $0x348] sm:$0xff]
        %v7313 = vld [vmem:[#allocation2 + $0x350] sm:$0xff]
        %v7314 = vld [vmem:[#allocation2 + $0x358] sm:$0xff]
        %v7315 = vld [vmem:[#allocation2 + $0x360] sm:$0xff]
        %v7316 = vld [vmem:[#allocation2 + $0x368] sm:$0xff]
        %v7317 = vld [vmem:[#allocation2 + $0x370] sm:$0xff]
        %v7318 = vld [vmem:[#allocation2 + $0x378] sm:$0xff]
        %v7319 = vld [vmem:[#allocation2 + $0x380] sm:$0xff]
        %v7320 = vld [vmem:[#allocation2 + $0x388] sm:$0xff]
        %v7321 = vld [vmem:[#allocation2 + $0x390] sm:$0xff]
        %v7322 = vld [vmem:[#allocation2 + $0x398] sm:$0xff]
        %v7323 = vld [vmem:[#allocation2 + $0x3a0] sm:$0xff]
        %v7324 = vld [vmem:[#allocation2 + $0x3a8] sm:$0xff]
        %v7325 = vld [vmem:[#allocation2 + $0x3b0] sm:$0xff]
        %v7326 = vld [vmem:[#allocation2 + $0x3b8] sm:$0xff]
        %v7327 = vld [vmem:[#allocation2 + $0x3c0] sm:$0xff]
        %v7328 = vld [vmem:[#allocation2 + $0x3c8] sm:$0xff]
        %v7329 = vld [vmem:[#allocation2 + $0x3d0] sm:$0xff]
        %v7330 = vld [vmem:[#allocation2 + $0x3d8] sm:$0xff]
        %v7331 = vld [vmem:[#allocation2 + $0x3e0] sm:$0xff]
        %v7332 = vld [vmem:[#allocation2 + $0x3e8] sm:$0xff]
        %v7333 = vld [vmem:[#allocation2 + $0x3f0] sm:$0xff]
        %v7334 = vld [vmem:[#allocation2 + $0x3f8] sm:$0xff]
        %v7335 = vld [vmem:[#allocation2 + $0x400] sm:$0xff]
        %v7336 = vld [vmem:[#allocation2 + $0x408] sm:$0xff]
        %v7337 = vld [vmem:[#allocation2 + $0x410] sm:$0xff]
        %v7338 = vld [vmem:[#allocation2 + $0x418] sm:$0xff]
        %v7339 = vld [vmem:[#allocation2 + $0x420] sm:$0xff]
        %v7340 = vld [vmem:[#allocation2 + $0x428] sm:$0xff]
        %v7341 = vld [vmem:[#allocation2 + $0x430] sm:$0xff]
        %v7342 = vld [vmem:[#allocation2 + $0x438] sm:$0xff]
        %v7343 = vld [vmem:[#allocation2 + $0x440] sm:$0xff]
        %v7344 = vld [vmem:[#allocation2 + $0x448] sm:$0xff]
        %v7345 = vld [vmem:[#allocation2 + $0x450] sm:$0xff]
        %v7346 = vld [vmem:[#allocation2 + $0x458] sm:$0xff]
        %v7347 = vld [vmem:[#allocation2 + $0x460] sm:$0xff]
        %v7348 = vld [vmem:[#allocation2 + $0x468] sm:$0xff]
        %v7349 = vld [vmem:[#allocation2 + $0x470] sm:$0xff]
        %v7350 = vld [vmem:[#allocation2 + $0x478] sm:$0xff]
        %v7375 = vunpack.c.l.b16 %v7183
        %v7376 = vunpack.c.h.b16 %v7183
        %v7377 = vunpack.c.l.b16 %v7184
        %v7378 = vunpack.c.h.b16 %v7184
        %v7379 = vunpack.c.l.b16 %v7185
        %v7380 = vunpack.c.l.b16 %v7186
        %v7381 = vunpack.c.h.b16 %v7186
        %v7382 = vunpack.c.l.b16 %v7187
        %v7383 = vunpack.c.h.b16 %v7187
        %v7384 = vunpack.c.l.b16 %v7188
        %v7385 = vunpack.c.l.b16 %v7189
        %v7386 = vunpack.c.h.b16 %v7189
        %v7387 = vunpack.c.l.b16 %v7190
        %v7388 = vunpack.c.h.b16 %v7190
        %v7389 = vunpack.c.l.b16 %v7191
        %v7390 = vunpack.c.l.b16 %v7192
        %v7391 = vunpack.c.h.b16 %v7192
        %v7392 = vunpack.c.l.b16 %v7193
        %v7393 = vunpack.c.h.b16 %v7193
        %v7394 = vunpack.c.l.b16 %v7194
        %v7395 = vunpack.c.l.b16 %v7195
        %v7396 = vunpack.c.h.b16 %v7195
        %v7397 = vunpack.c.l.b16 %v7196
        %v7398 = vunpack.c.h.b16 %v7196
        %v7399 = vunpack.c.l.b16 %v7197
        %v7400 = vunpack.c.l.b16 %v7198
        %v7401 = vunpack.c.h.b16 %v7198
        %v7402 = vunpack.c.l.b16 %v7199
        %v7403 = vunpack.c.h.b16 %v7199
        %v7404 = vunpack.c.l.b16 %v7200
        %v7405 = vunpack.c.l.b16 %v7201
        %v7406 = vunpack.c.h.b16 %v7201
        %v7407 = vunpack.c.l.b16 %v7202
        %v7408 = vunpack.c.h.b16 %v7202
        %v7409 = vunpack.c.l.b16 %v7203
        %v7410 = vunpack.c.l.b16 %v7204
        %v7411 = vunpack.c.h.b16 %v7204
        %v7412 = vunpack.c.l.b16 %v7205
        %v7413 = vunpack.c.h.b16 %v7205
        %v7414 = vunpack.c.l.b16 %v7206
        %v7415 = vpack.c.b16 %v7380, %v7375
        %v7416 = vpack.c.b16 %v7381, %v7376
        %v7417 = vpack.c.b16 %v7382, %v7377
        %v7418 = vpack.c.b16 %v7383, %v7378
        %v7419 = vpack.c.b16 %v7384, %v7379
        %v7420 = vpack.c.b16 %v7390, %v7385
        %v7421 = vpack.c.b16 %v7391, %v7386
        %v7422 = vpack.c.b16 %v7392, %v7387
        %v7423 = vpack.c.b16 %v7393, %v7388
        %v7424 = vpack.c.b16 %v7394, %v7389
        %v7425 = vpack.c.b16 %v7400, %v7395
        %v7426 = vpack.c.b16 %v7401, %v7396
        %v7427 = vpack.c.b16 %v7402, %v7397
        %v7428 = vpack.c.b16 %v7403, %v7398
        %v7429 = vpack.c.b16 %v7404, %v7399
        %v7430 = vpack.c.b16 %v7410, %v7405
        %v7431 = vpack.c.b16 %v7411, %v7406
        %v7432 = vpack.c.b16 %v7412, %v7407
        %v7433 = vpack.c.b16 %v7413, %v7408
        %v7434 = vpack.c.b16 %v7414, %v7409
        %v7595 = vunpack.c.l.b16 %v7207
        %v7596 = vunpack.c.h.b16 %v7207
        %v7597 = vunpack.c.l.b16 %v7208
        %v7598 = vunpack.c.h.b16 %v7208
        %v7599 = vunpack.c.l.b16 %v7209
        %v7600 = vunpack.c.h.b16 %v7209
        %v7601 = vunpack.c.l.b16 %v7210
        %v7602 = vunpack.c.h.b16 %v7210
        %v7603 = vunpack.c.l.b16 %v7211
        %v7604 = vunpack.c.h.b16 %v7211
        %v7605 = vunpack.c.l.b16 %v7212
        %v7606 = vunpack.c.h.b16 %v7212
        %v7607 = vunpack.c.l.b16 %v7213
        %v7608 = vunpack.c.h.b16 %v7213
        %v7609 = vunpack.c.l.b16 %v7214
        %v7610 = vunpack.c.h.b16 %v7214
        %v7611 = vunpack.c.l.b16 %v7215
        %v7612 = vunpack.c.h.b16 %v7215
        %v7613 = vunpack.c.l.b16 %v7216
        %v7614 = vunpack.c.h.b16 %v7216
        %v7615 = vunpack.c.l.b16 %v7217
        %v7616 = vunpack.c.h.b16 %v7217
        %v7617 = vunpack.c.l.b16 %v7218
        %v7618 = vunpack.c.h.b16 %v7218
        %v7619 = vunpack.c.l.b16 %v7219
        %v7620 = vunpack.c.h.b16 %v7219
        %v7621 = vunpack.c.l.b16 %v7220
        %v7622 = vunpack.c.h.b16 %v7220
        %v7623 = vunpack.c.l.b16 %v7221
        %v7624 = vunpack.c.h.b16 %v7221
        %v7625 = vunpack.c.l.b16 %v7222
        %v7626 = vunpack.c.h.b16 %v7222
        %v7627 = vunpack.c.l.b16 %v7223
        %v7628 = vunpack.c.h.b16 %v7223
        %v7629 = vunpack.c.l.b16 %v7224
        %v7630 = vunpack.c.h.b16 %v7224
        %v7631 = vunpack.c.l.b16 %v7225
        %v7632 = vunpack.c.h.b16 %v7225
        %v7633 = vunpack.c.l.b16 %v7226
        %v7634 = vunpack.c.h.b16 %v7226
        %v7635 = vunpack.c.l.b16 %v7227
        %v7636 = vunpack.c.h.b16 %v7227
        %v7637 = vunpack.c.l.b16 %v7228
        %v7638 = vunpack.c.h.b16 %v7228
        %v7639 = vunpack.c.l.b16 %v7229
        %v7640 = vunpack.c.h.b16 %v7229
        %v7641 = vunpack.c.l.b16 %v7230
        %v7642 = vunpack.c.h.b16 %v7230
        %v7643 = vunpack.c.l.b16 %v7231
        %v7644 = vunpack.c.h.b16 %v7231
        %v7645 = vunpack.c.l.b16 %v7232
        %v7646 = vunpack.c.h.b16 %v7232
        %v7647 = vunpack.c.l.b16 %v7233
        %v7648 = vunpack.c.h.b16 %v7233
        %v7649 = vunpack.c.l.b16 %v7234
        %v7650 = vunpack.c.h.b16 %v7234
        %v7651 = vunpack.c.l.b16 %v7235
        %v7652 = vunpack.c.h.b16 %v7235
        %v7653 = vunpack.c.l.b16 %v7236
        %v7654 = vunpack.c.h.b16 %v7236
        %v7655 = vunpack.c.l.b16 %v7237
        %v7656 = vunpack.c.h.b16 %v7237
        %v7657 = vunpack.c.l.b16 %v7238
        %v7658 = vunpack.c.h.b16 %v7238
        %v7659 = vunpack.c.l.b16 %v7239
        %v7660 = vunpack.c.h.b16 %v7239
        %v7661 = vunpack.c.l.b16 %v7240
        %v7662 = vunpack.c.h.b16 %v7240
        %v7663 = vunpack.c.l.b16 %v7241
        %v7664 = vunpack.c.h.b16 %v7241
        %v7665 = vunpack.c.l.b16 %v7242
        %v7666 = vunpack.c.h.b16 %v7242
        %v7667 = vunpack.c.l.b16 %v7243
        %v7668 = vunpack.c.h.b16 %v7243
        %v7669 = vunpack.c.l.b16 %v7244
        %v7670 = vunpack.c.h.b16 %v7244
        %v7671 = vunpack.c.l.b16 %v7245
        %v7672 = vunpack.c.h.b16 %v7245
        %v7673 = vunpack.c.l.b16 %v7246
        %v7674 = vunpack.c.h.b16 %v7246
        %v7675 = vunpack.c.l.b16 %v7247
        %v7676 = vunpack.c.h.b16 %v7247
        %v7677 = vunpack.c.l.b16 %v7248
        %v7678 = vunpack.c.h.b16 %v7248
        %v7679 = vunpack.c.l.b16 %v7249
        %v7680 = vunpack.c.h.b16 %v7249
        %v7681 = vunpack.c.l.b16 %v7250
        %v7682 = vunpack.c.h.b16 %v7250
        %v7683 = vunpack.c.l.b16 %v7251
        %v7684 = vunpack.c.h.b16 %v7251
        %v7685 = vunpack.c.l.b16 %v7252
        %v7686 = vunpack.c.h.b16 %v7252
        %v7687 = vunpack.c.l.b16 %v7253
        %v7688 = vunpack.c.h.b16 %v7253
        %v7689 = vunpack.c.l.b16 %v7254
        %v7690 = vunpack.c.h.b16 %v7254
        %v7691 = vunpack.c.l.b16 %v7255
        %v7692 = vunpack.c.h.b16 %v7255
        %v7693 = vunpack.c.l.b16 %v7256
        %v7694 = vunpack.c.h.b16 %v7256
        %v7695 = vunpack.c.l.b16 %v7257
        %v7696 = vunpack.c.h.b16 %v7257
        %v7697 = vunpack.c.l.b16 %v7258
        %v7698 = vunpack.c.h.b16 %v7258
        %v7699 = vunpack.c.l.b16 %v7259
        %v7700 = vunpack.c.h.b16 %v7259
        %v7701 = vunpack.c.l.b16 %v7260
        %v7702 = vunpack.c.h.b16 %v7260
        %v7703 = vunpack.c.l.b16 %v7261
        %v7704 = vunpack.c.h.b16 %v7261
        %v7705 = vunpack.c.l.b16 %v7262
        %v7706 = vunpack.c.h.b16 %v7262
        %v7707 = vunpack.c.l.b16 %v7263
        %v7708 = vunpack.c.h.b16 %v7263
        %v7709 = vunpack.c.l.b16 %v7264
        %v7710 = vunpack.c.h.b16 %v7264
        %v7711 = vunpack.c.l.b16 %v7265
        %v7712 = vunpack.c.h.b16 %v7265
        %v7713 = vunpack.c.l.b16 %v7266
        %v7714 = vunpack.c.h.b16 %v7266
        %v7715 = vunpack.c.l.b16 %v7267
        %v7716 = vunpack.c.h.b16 %v7267
        %v7717 = vunpack.c.l.b16 %v7268
        %v7718 = vunpack.c.h.b16 %v7268
        %v7719 = vunpack.c.l.b16 %v7269
        %v7720 = vunpack.c.h.b16 %v7269
        %v7721 = vunpack.c.l.b16 %v7270
        %v7722 = vunpack.c.h.b16 %v7270
        %v7723 = vunpack.c.l.b16 %v7271
        %v7724 = vunpack.c.h.b16 %v7271
        %v7725 = vunpack.c.l.b16 %v7272
        %v7726 = vunpack.c.h.b16 %v7272
        %v7727 = vunpack.c.l.b16 %v7273
        %v7728 = vunpack.c.h.b16 %v7273
        %v7729 = vunpack.c.l.b16 %v7274
        %v7730 = vunpack.c.h.b16 %v7274
        %v7731 = vunpack.c.l.b16 %v7275
        %v7732 = vunpack.c.h.b16 %v7275
        %v7733 = vunpack.c.l.b16 %v7276
        %v7734 = vunpack.c.h.b16 %v7276
        %v7735 = vunpack.c.l.b16 %v7277
        %v7736 = vunpack.c.h.b16 %v7277
        %v7737 = vunpack.c.l.b16 %v7278
        %v7738 = vunpack.c.h.b16 %v7278
        %v7739 = vunpack.c.l.b16 %v7279
        %v7740 = vunpack.c.h.b16 %v7279
        %v7741 = vunpack.c.l.b16 %v7280
        %v7742 = vunpack.c.h.b16 %v7280
        %v7743 = vunpack.c.l.b16 %v7281
        %v7744 = vunpack.c.h.b16 %v7281
        %v7745 = vunpack.c.l.b16 %v7282
        %v7746 = vunpack.c.h.b16 %v7282
        %v7747 = vunpack.c.l.b16 %v7283
        %v7748 = vunpack.c.h.b16 %v7283
        %v7749 = vunpack.c.l.b16 %v7284
        %v7750 = vunpack.c.h.b16 %v7284
        %v7751 = vunpack.c.l.b16 %v7285
        %v7752 = vunpack.c.h.b16 %v7285
        %v7753 = vunpack.c.l.b16 %v7286
        %v7754 = vunpack.c.h.b16 %v7286
        %v7755 = vunpack.c.l.b16 %v7287
        %v7756 = vunpack.c.h.b16 %v7287
        %v7757 = vunpack.c.l.b16 %v7288
        %v7758 = vunpack.c.h.b16 %v7288
        %v7759 = vunpack.c.l.b16 %v7289
        %v7760 = vunpack.c.h.b16 %v7289
        %v7761 = vunpack.c.l.b16 %v7290
        %v7762 = vunpack.c.h.b16 %v7290
        %v7763 = vunpack.c.l.b16 %v7291
        %v7764 = vunpack.c.h.b16 %v7291
        %v7765 = vunpack.c.l.b16 %v7292
        %v7766 = vunpack.c.h.b16 %v7292
        %v7767 = vunpack.c.l.b16 %v7293
        %v7768 = vunpack.c.h.b16 %v7293
        %v7769 = vunpack.c.l.b16 %v7294
        %v7770 = vunpack.c.h.b16 %v7294
        %v7771 = vunpack.c.l.b16 %v7295
        %v7772 = vunpack.c.h.b16 %v7295
        %v7773 = vunpack.c.l.b16 %v7296
        %v7774 = vunpack.c.h.b16 %v7296
        %v7775 = vunpack.c.l.b16 %v7297
        %v7776 = vunpack.c.h.b16 %v7297
        %v7777 = vunpack.c.l.b16 %v7298
        %v7778 = vunpack.c.h.b16 %v7298
        %v7779 = vunpack.c.l.b16 %v7299
        %v7780 = vunpack.c.h.b16 %v7299
        %v7781 = vunpack.c.l.b16 %v7300
        %v7782 = vunpack.c.h.b16 %v7300
        %v7783 = vunpack.c.l.b16 %v7301
        %v7784 = vunpack.c.h.b16 %v7301
        %v7785 = vunpack.c.l.b16 %v7302
        %v7786 = vunpack.c.h.b16 %v7302
        %v7787 = vunpack.c.l.b16 %v7303
        %v7788 = vunpack.c.h.b16 %v7303
        %v7789 = vunpack.c.l.b16 %v7304
        %v7790 = vunpack.c.h.b16 %v7304
        %v7791 = vunpack.c.l.b16 %v7305
        %v7792 = vunpack.c.h.b16 %v7305
        %v7793 = vunpack.c.l.b16 %v7306
        %v7794 = vunpack.c.h.b16 %v7306
        %v7795 = vunpack.c.l.b16 %v7307
        %v7796 = vunpack.c.h.b16 %v7307
        %v7797 = vunpack.c.l.b16 %v7308
        %v7798 = vunpack.c.h.b16 %v7308
        %v7799 = vunpack.c.l.b16 %v7309
        %v7800 = vunpack.c.h.b16 %v7309
        %v7801 = vunpack.c.l.b16 %v7310
        %v7802 = vunpack.c.h.b16 %v7310
        %v7803 = vunpack.c.l.b16 %v7311
        %v7804 = vunpack.c.h.b16 %v7311
        %v7805 = vunpack.c.l.b16 %v7312
        %v7806 = vunpack.c.h.b16 %v7312
        %v7807 = vunpack.c.l.b16 %v7313
        %v7808 = vunpack.c.h.b16 %v7313
        %v7809 = vunpack.c.l.b16 %v7314
        %v7810 = vunpack.c.h.b16 %v7314
        %v7811 = vunpack.c.l.b16 %v7315
        %v7812 = vunpack.c.h.b16 %v7315
        %v7813 = vunpack.c.l.b16 %v7316
        %v7814 = vunpack.c.h.b16 %v7316
        %v7815 = vunpack.c.l.b16 %v7317
        %v7816 = vunpack.c.h.b16 %v7317
        %v7817 = vunpack.c.l.b16 %v7318
        %v7818 = vunpack.c.h.b16 %v7318
        %v7819 = vunpack.c.l.b16 %v7319
        %v7820 = vunpack.c.h.b16 %v7319
        %v7821 = vunpack.c.l.b16 %v7320
        %v7822 = vunpack.c.h.b16 %v7320
        %v7823 = vunpack.c.l.b16 %v7321
        %v7824 = vunpack.c.h.b16 %v7321
        %v7825 = vunpack.c.l.b16 %v7322
        %v7826 = vunpack.c.h.b16 %v7322
        %v7827 = vunpack.c.l.b16 %v7323
        %v7828 = vunpack.c.h.b16 %v7323
        %v7829 = vunpack.c.l.b16 %v7324
        %v7830 = vunpack.c.h.b16 %v7324
        %v7831 = vunpack.c.l.b16 %v7325
        %v7832 = vunpack.c.h.b16 %v7325
        %v7833 = vunpack.c.l.b16 %v7326
        %v7834 = vunpack.c.h.b16 %v7326
        %v7835 = vunpack.c.l.b16 %v7327
        %v7836 = vunpack.c.h.b16 %v7327
        %v7837 = vunpack.c.l.b16 %v7328
        %v7838 = vunpack.c.h.b16 %v7328
        %v7839 = vunpack.c.l.b16 %v7329
        %v7840 = vunpack.c.h.b16 %v7329
        %v7841 = vunpack.c.l.b16 %v7330
        %v7842 = vunpack.c.h.b16 %v7330
        %v7843 = vunpack.c.l.b16 %v7331
        %v7844 = vunpack.c.h.b16 %v7331
        %v7845 = vunpack.c.l.b16 %v7332
        %v7846 = vunpack.c.h.b16 %v7332
        %v7847 = vunpack.c.l.b16 %v7333
        %v7848 = vunpack.c.h.b16 %v7333
        %v7849 = vunpack.c.l.b16 %v7334
        %v7850 = vunpack.c.h.b16 %v7334
        %v7851 = vunpack.c.l.b16 %v7335
        %v7852 = vunpack.c.h.b16 %v7335
        %v7853 = vunpack.c.l.b16 %v7336
        %v7854 = vunpack.c.h.b16 %v7336
        %v7855 = vunpack.c.l.b16 %v7337
        %v7856 = vunpack.c.h.b16 %v7337
        %v7857 = vunpack.c.l.b16 %v7338
        %v7858 = vunpack.c.h.b16 %v7338
        %v7859 = vunpack.c.l.b16 %v7339
        %v7860 = vunpack.c.h.b16 %v7339
        %v7861 = vunpack.c.l.b16 %v7340
        %v7862 = vunpack.c.h.b16 %v7340
        %v7863 = vunpack.c.l.b16 %v7341
        %v7864 = vunpack.c.h.b16 %v7341
        %v7865 = vunpack.c.l.b16 %v7342
        %v7866 = vunpack.c.h.b16 %v7342
        %v7867 = vunpack.c.l.b16 %v7343
        %v7868 = vunpack.c.h.b16 %v7343
        %v7869 = vunpack.c.l.b16 %v7344
        %v7870 = vunpack.c.h.b16 %v7344
        %v7871 = vunpack.c.l.b16 %v7345
        %v7872 = vunpack.c.h.b16 %v7345
        %v7873 = vunpack.c.l.b16 %v7346
        %v7874 = vunpack.c.h.b16 %v7346
        %v7875 = vunpack.c.l.b16 %v7347
        %v7876 = vunpack.c.h.b16 %v7347
        %v7877 = vunpack.c.l.b16 %v7348
        %v7878 = vunpack.c.h.b16 %v7348
        %v7879 = vunpack.c.l.b16 %v7349
        %v7880 = vunpack.c.h.b16 %v7349
        %v7881 = vunpack.c.l.b16 %v7350
        %v7882 = vunpack.c.h.b16 %v7350
        %v7883 = vpack.c.b16 %v7599, %v7595
        %v7884 = vpack.c.b16 %v7600, %v7596
        %v7885 = vpack.c.b16 %v7601, %v7597
        %v7886 = vpack.c.b16 %v7602, %v7598
        %v7887 = vpack.c.b16 %v7607, %v7603
        %v7888 = vpack.c.b16 %v7608, %v7604
        %v7889 = vpack.c.b16 %v7609, %v7605
        %v7890 = vpack.c.b16 %v7610, %v7606
        %v7891 = vpack.c.b16 %v7615, %v7611
        %v7892 = vpack.c.b16 %v7616, %v7612
        %v7893 = vpack.c.b16 %v7617, %v7613
        %v7894 = vpack.c.b16 %v7618, %v7614
        %v7895 = vpack.c.b16 %v7623, %v7619
        %v7896 = vpack.c.b16 %v7624, %v7620
        %v7897 = vpack.c.b16 %v7625, %v7621
        %v7898 = vpack.c.b16 %v7626, %v7622
        %v7899 = vpack.c.b16 %v7631, %v7627
        %v7900 = vpack.c.b16 %v7632, %v7628
        %v7901 = vpack.c.b16 %v7633, %v7629
        %v7902 = vpack.c.b16 %v7634, %v7630
        %v7903 = vpack.c.b16 %v7639, %v7635
        %v7904 = vpack.c.b16 %v7640, %v7636
        %v7905 = vpack.c.b16 %v7641, %v7637
        %v7906 = vpack.c.b16 %v7642, %v7638
        %v7907 = vpack.c.b16 %v7647, %v7643
        %v7908 = vpack.c.b16 %v7648, %v7644
        %v7909 = vpack.c.b16 %v7649, %v7645
        %v7910 = vpack.c.b16 %v7650, %v7646
        %v7911 = vpack.c.b16 %v7655, %v7651
        %v7912 = vpack.c.b16 %v7656, %v7652
        %v7913 = vpack.c.b16 %v7657, %v7653
        %v7914 = vpack.c.b16 %v7658, %v7654
        %v7915 = vpack.c.b16 %v7663, %v7659
        %v7916 = vpack.c.b16 %v7664, %v7660
        %v7917 = vpack.c.b16 %v7665, %v7661
        %v7918 = vpack.c.b16 %v7666, %v7662
        %v7919 = vpack.c.b16 %v7671, %v7667
        %v7920 = vpack.c.b16 %v7672, %v7668
        %v7921 = vpack.c.b16 %v7673, %v7669
        %v7922 = vpack.c.b16 %v7674, %v7670
        %v7923 = vpack.c.b16 %v7679, %v7675
        %v7924 = vpack.c.b16 %v7680, %v7676
        %v7925 = vpack.c.b16 %v7681, %v7677
        %v7926 = vpack.c.b16 %v7682, %v7678
        %v7927 = vpack.c.b16 %v7687, %v7683
        %v7928 = vpack.c.b16 %v7688, %v7684
        %v7929 = vpack.c.b16 %v7689, %v7685
        %v7930 = vpack.c.b16 %v7690, %v7686
        %v7931 = vpack.c.b16 %v7695, %v7691
        %v7932 = vpack.c.b16 %v7696, %v7692
        %v7933 = vpack.c.b16 %v7697, %v7693
        %v7934 = vpack.c.b16 %v7698, %v7694
        %v7935 = vpack.c.b16 %v7703, %v7699
        %v7936 = vpack.c.b16 %v7704, %v7700
        %v7937 = vpack.c.b16 %v7705, %v7701
        %v7938 = vpack.c.b16 %v7706, %v7702
        %v7939 = vpack.c.b16 %v7711, %v7707
        %v7940 = vpack.c.b16 %v7712, %v7708
        %v7941 = vpack.c.b16 %v7713, %v7709
        %v7942 = vpack.c.b16 %v7714, %v7710
        %v7943 = vpack.c.b16 %v7719, %v7715
        %v7944 = vpack.c.b16 %v7720, %v7716
        %v7945 = vpack.c.b16 %v7721, %v7717
        %v7946 = vpack.c.b16 %v7722, %v7718
        %v7947 = vpack.c.b16 %v7727, %v7723
        %v7948 = vpack.c.b16 %v7728, %v7724
        %v7949 = vpack.c.b16 %v7729, %v7725
        %v7950 = vpack.c.b16 %v7730, %v7726
        %v7951 = vpack.c.b16 %v7735, %v7731
        %v7952 = vpack.c.b16 %v7736, %v7732
        %v7953 = vpack.c.b16 %v7737, %v7733
        %v7954 = vpack.c.b16 %v7738, %v7734
        %v7955 = vpack.c.b16 %v7743, %v7739
        %v7956 = vpack.c.b16 %v7744, %v7740
        %v7957 = vpack.c.b16 %v7745, %v7741
        %v7958 = vpack.c.b16 %v7746, %v7742
        %v7959 = vpack.c.b16 %v7751, %v7747
        %v7960 = vpack.c.b16 %v7752, %v7748
        %v7961 = vpack.c.b16 %v7753, %v7749
        %v7962 = vpack.c.b16 %v7754, %v7750
        %v7963 = vpack.c.b16 %v7759, %v7755
        %v7964 = vpack.c.b16 %v7760, %v7756
        %v7965 = vpack.c.b16 %v7761, %v7757
        %v7966 = vpack.c.b16 %v7762, %v7758
        %v7967 = vpack.c.b16 %v7767, %v7763
        %v7968 = vpack.c.b16 %v7768, %v7764
        %v7969 = vpack.c.b16 %v7769, %v7765
        %v7970 = vpack.c.b16 %v7770, %v7766
        %v7971 = vpack.c.b16 %v7775, %v7771
        %v7972 = vpack.c.b16 %v7776, %v7772
        %v7973 = vpack.c.b16 %v7777, %v7773
        %v7974 = vpack.c.b16 %v7778, %v7774
        %v7975 = vpack.c.b16 %v7783, %v7779
        %v7976 = vpack.c.b16 %v7784, %v7780
        %v7977 = vpack.c.b16 %v7785, %v7781
        %v7978 = vpack.c.b16 %v7786, %v7782
        %v7979 = vpack.c.b16 %v7791, %v7787
        %v7980 = vpack.c.b16 %v7792, %v7788
        %v7981 = vpack.c.b16 %v7793, %v7789
        %v7982 = vpack.c.b16 %v7794, %v7790
        %v7983 = vpack.c.b16 %v7799, %v7795
        %v7984 = vpack.c.b16 %v7800, %v7796
        %v7985 = vpack.c.b16 %v7801, %v7797
        %v7986 = vpack.c.b16 %v7802, %v7798
        %v7987 = vpack.c.b16 %v7807, %v7803
        %v7988 = vpack.c.b16 %v7808, %v7804
        %v7989 = vpack.c.b16 %v7809, %v7805
        %v7990 = vpack.c.b16 %v7810, %v7806
        %v7991 = vpack.c.b16 %v7815, %v7811
        %v7992 = vpack.c.b16 %v7816, %v7812
        %v7993 = vpack.c.b16 %v7817, %v7813
        %v7994 = vpack.c.b16 %v7818, %v7814
        %v7995 = vpack.c.b16 %v7823, %v7819
        %v7996 = vpack.c.b16 %v7824, %v7820
        %v7997 = vpack.c.b16 %v7825, %v7821
        %v7998 = vpack.c.b16 %v7826, %v7822
        %v7999 = vpack.c.b16 %v7831, %v7827
        %v8000 = vpack.c.b16 %v7832, %v7828
        %v8001 = vpack.c.b16 %v7833, %v7829
        %v8002 = vpack.c.b16 %v7834, %v7830
        %v8003 = vpack.c.b16 %v7839, %v7835
        %v8004 = vpack.c.b16 %v7840, %v7836
        %v8005 = vpack.c.b16 %v7841, %v7837
        %v8006 = vpack.c.b16 %v7842, %v7838
        %v8007 = vpack.c.b16 %v7847, %v7843
        %v8008 = vpack.c.b16 %v7848, %v7844
        %v8009 = vpack.c.b16 %v7849, %v7845
        %v8010 = vpack.c.b16 %v7850, %v7846
        %v8011 = vpack.c.b16 %v7855, %v7851
        %v8012 = vpack.c.b16 %v7856, %v7852
        %v8013 = vpack.c.b16 %v7857, %v7853
        %v8014 = vpack.c.b16 %v7858, %v7854
        %v8015 = vpack.c.b16 %v7863, %v7859
        %v8016 = vpack.c.b16 %v7864, %v7860
        %v8017 = vpack.c.b16 %v7865, %v7861
        %v8018 = vpack.c.b16 %v7866, %v7862
        %v8019 = vpack.c.b16 %v7871, %v7867
        %v8020 = vpack.c.b16 %v7872, %v7868
        %v8021 = vpack.c.b16 %v7873, %v7869
        %v8022 = vpack.c.b16 %v7874, %v7870
        %v8023 = vpack.c.b16 %v7879, %v7875
        %v8024 = vpack.c.b16 %v7880, %v7876
        %v8025 = vpack.c.b16 %v7881, %v7877
        %v8026 = vpack.c.b16 %v7882, %v7878
        %v8172 = vsel %vm3772, %v7419, 0
        %v8175 = vsel %vm3772, %v7424, 0
        %v8178 = vsel %vm3772, %v7429, 0
        %v8181 = vsel %vm3772, %v7434, 0
        %8183 = vmatprep.subr.bf16.mxu0 %v7912
        %8184 = vmatpush1.bf16.msra.mxu0 %v7911
        %8185 = vmatprep.subr.bf16.mxu0 %v7908
        %8186 = vmatpush1.bf16.msra.mxu0 %v7907
        %8187 = vmatprep.subr.bf16.mxu0 %v7904
        %8188 = vmatpush1.bf16.msra.mxu0 %v7903
        %8189 = vmatprep.subr.bf16.mxu0 %v7900
        %8190 = vmatpush1.bf16.msra.mxu0 %v7899
        %8191 = vmatprep.subr.bf16.mxu0 %v7896
        %8192 = vmatpush1.bf16.msra.mxu0 %v7895
        %8193 = vmatprep.subr.bf16.mxu0 %v7892
        %8194 = vmatpush1.bf16.msra.mxu0 %v7891
        %8195 = vmatprep.subr.bf16.mxu0 %v7888
        %8196 = vmatpush1.bf16.msra.mxu0 %v7887
        %8197 = vmatprep.subr.bf16.mxu0 %v7884
        %8198 = vmatpush1.bf16.msra.mxu0 %v7883
        %8199 = vmatprep.subr.bf16.mxu0 %v7944
        %8200 = vmatpush2.bf16.msra.mxu0 %v7943
        %8201 = vmatprep.subr.bf16.mxu0 %v7940
        %8202 = vmatpush2.bf16.msra.mxu0 %v7939
        %8203 = vmatprep.subr.bf16.mxu0 %v7936
        %8204 = vmatpush2.bf16.msra.mxu0 %v7935
        %8205 = vmatprep.subr.bf16.mxu0 %v7932
        %8206 = vmatpush2.bf16.msra.mxu0 %v7931
        %8207 = vmatprep.subr.bf16.mxu0 %v7928
        %8208 = vmatpush2.bf16.msra.mxu0 %v7927
        %8209 = vmatprep.subr.bf16.mxu0 %v7924
        %8210 = vmatpush2.bf16.msra.mxu0 %v7923
        %8211 = vmatprep.subr.bf16.mxu0 %v7920
        %8212 = vmatpush2.bf16.msra.mxu0 %v7919
        %8213 = vmatprep.subr.bf16.mxu0 %v7916
        %8214 = vmatpush2.bf16.msra.mxu0 %v7915
        %8215 = vmatprep.mubr.bf16.mxu0 %v7416
        %8216 = vmatmul.mubr.bf16.gmra.mxu0 %v7415
        %v8217 = vpop.f32.mrf.mxu0
        %v8218 = vadd.f32 0.0, %v8217
        %v8219 = vpop.f32.mrf.mxu0
        %v8220 = vadd.f32 0.0, %v8219
        %v8221 = vpop.f32.mrf.mxu0
        %v8222 = vadd.f32 0.0, %v8221
        %v8223 = vpop.f32.mrf.mxu0
        %v8224 = vadd.f32 0.0, %v8223
        %8225 = vmatprep.mubr.bf16.mxu0 %v7421
        %8226 = vmatmul.mubr.bf16.gmra.mxu0 %v7420
        %v8227 = vpop.f32.mrf.mxu0
        %v8228 = vadd.f32 0.0, %v8227
        %v8229 = vpop.f32.mrf.mxu0
        %v8230 = vadd.f32 0.0, %v8229
        %v8231 = vpop.f32.mrf.mxu0
        %v8232 = vadd.f32 0.0, %v8231
        %v8233 = vpop.f32.mrf.mxu0
        %v8234 = vadd.f32 0.0, %v8233
        %8235 = vmatprep.mubr.bf16.mxu0 %v7426
        %8236 = vmatmul.mubr.bf16.gmra.mxu0 %v7425
        %v8237 = vpop.f32.mrf.mxu0
        %v8238 = vadd.f32 0.0, %v8237
        %v8239 = vpop.f32.mrf.mxu0
        %v8240 = vadd.f32 0.0, %v8239
        %v8241 = vpop.f32.mrf.mxu0
        %v8242 = vadd.f32 0.0, %v8241
        %v8243 = vpop.f32.mrf.mxu0
        %v8244 = vadd.f32 0.0, %v8243
        %8245 = vmatprep.mubr.bf16.mxu0 %v7431
        %8246 = vmatmul.mubr.bf16.gmra.mxu0 %v7430
        %v8247 = vpop.f32.mrf.mxu0
        %v8248 = vadd.f32 0.0, %v8247
        %v8249 = vpop.f32.mrf.mxu0
        %v8250 = vadd.f32 0.0, %v8249
        %v8251 = vpop.f32.mrf.mxu0
        %v8252 = vadd.f32 0.0, %v8251
        %v8253 = vpop.f32.mrf.mxu0
        %v8254 = vadd.f32 0.0, %v8253
        %8255 = vdwg.mxu0
        %8256 = vmatprep.subr.bf16.mxu0 %v7976
        %8257 = vmatpush1.bf16.msra.mxu0 %v7975
        %8258 = vmatprep.subr.bf16.mxu0 %v7972
        %8259 = vmatpush1.bf16.msra.mxu0 %v7971
        %8260 = vmatprep.subr.bf16.mxu0 %v7968
        %8261 = vmatpush1.bf16.msra.mxu0 %v7967
        %8262 = vmatprep.subr.bf16.mxu0 %v7964
        %8263 = vmatpush1.bf16.msra.mxu0 %v7963
        %8264 = vmatprep.subr.bf16.mxu0 %v7960
        %8265 = vmatpush1.bf16.msra.mxu0 %v7959
        %8266 = vmatprep.subr.bf16.mxu0 %v7956
        %8267 = vmatpush1.bf16.msra.mxu0 %v7955
        %8268 = vmatprep.subr.bf16.mxu0 %v7952
        %8269 = vmatpush1.bf16.msra.mxu0 %v7951
        %8270 = vmatprep.subr.bf16.mxu0 %v7948
        %8271 = vmatpush1.bf16.msra.mxu0 %v7947
        %8272 = vmatprep.subr.bf16.mxu0 %v8008
        %8273 = vmatpush2.bf16.msra.mxu0 %v8007
        %8274 = vmatprep.subr.bf16.mxu0 %v8004
        %8275 = vmatpush2.bf16.msra.mxu0 %v8003
        %8276 = vmatprep.subr.bf16.mxu0 %v8000
        %8277 = vmatpush2.bf16.msra.mxu0 %v7999
        %8278 = vmatprep.subr.bf16.mxu0 %v7996
        %8279 = vmatpush2.bf16.msra.mxu0 %v7995
        %8280 = vmatprep.subr.bf16.mxu0 %v7992
        %8281 = vmatpush2.bf16.msra.mxu0 %v7991
        %8282 = vmatprep.subr.bf16.mxu0 %v7988
        %8283 = vmatpush2.bf16.msra.mxu0 %v7987
        %8284 = vmatprep.subr.bf16.mxu0 %v7984
        %8285 = vmatpush2.bf16.msra.mxu0 %v7983
        %8286 = vmatprep.subr.bf16.mxu0 %v7980
        %8287 = vmatpush2.bf16.msra.mxu0 %v7979
        %8288 = vmatprep.mubr.bf16.mxu0 %v7418
        %8289 = vmatmul.mubr.bf16.gmra.mxu0 %v7417
        %v8290 = vpop.f32.mrf.mxu0
        %v8291 = vadd.f32 %v8218, %v8290
        %v8292 = vpop.f32.mrf.mxu0
        %v8293 = vadd.f32 %v8220, %v8292
        %v8294 = vpop.f32.mrf.mxu0
        %v8295 = vadd.f32 %v8222, %v8294
        %v8296 = vpop.f32.mrf.mxu0
        %v8297 = vadd.f32 %v8224, %v8296
        %8298 = vmatprep.mubr.bf16.mxu0 %v7423
        %8299 = vmatmul.mubr.bf16.gmra.mxu0 %v7422
        %v8300 = vpop.f32.mrf.mxu0
        %v8301 = vadd.f32 %v8228, %v8300
        %v8302 = vpop.f32.mrf.mxu0
        %v8303 = vadd.f32 %v8230, %v8302
        %v8304 = vpop.f32.mrf.mxu0
        %v8305 = vadd.f32 %v8232, %v8304
        %v8306 = vpop.f32.mrf.mxu0
        %v8307 = vadd.f32 %v8234, %v8306
        %8308 = vmatprep.mubr.bf16.mxu0 %v7428
        %8309 = vmatmul.mubr.bf16.gmra.mxu0 %v7427
        %v8310 = vpop.f32.mrf.mxu0
        %v8311 = vadd.f32 %v8238, %v8310
        %v8312 = vpop.f32.mrf.mxu0
        %v8313 = vadd.f32 %v8240, %v8312
        %v8314 = vpop.f32.mrf.mxu0
        %v8315 = vadd.f32 %v8242, %v8314
        %v8316 = vpop.f32.mrf.mxu0
        %v8317 = vadd.f32 %v8244, %v8316
        %8318 = vmatprep.mubr.bf16.mxu0 %v7433
        %8319 = vmatmul.mubr.bf16.gmra.mxu0 %v7432
        %v8320 = vpop.f32.mrf.mxu0
        %v8321 = vadd.f32 %v8248, %v8320
        %v8322 = vpop.f32.mrf.mxu0
        %v8323 = vadd.f32 %v8250, %v8322
        %v8324 = vpop.f32.mrf.mxu0
        %v8325 = vadd.f32 %v8252, %v8324
        %v8326 = vpop.f32.mrf.mxu0
        %v8327 = vadd.f32 %v8254, %v8326
        %8328 = vdwg.mxu0
        %8329 = vmatprep.subr.bf16.mxu0 0
        %8330 = vmatpush1.bf16.msra.mxu0 0
        %8331 = vmatprep.subr.bf16.mxu0 0
        %8332 = vmatpush1.bf16.msra.mxu0 0
        %8333 = vmatprep.subr.bf16.mxu0 0
        %8334 = vmatpush1.bf16.msra.mxu0 0
        %8335 = vmatprep.subr.bf16.mxu0 0
        %8336 = vmatpush1.bf16.msra.mxu0 0
        %8337 = vmatprep.subr.bf16.mxu0 %v8024
        %8338 = vmatpush1.bf16.msra.mxu0 %v8023
        %8339 = vmatprep.subr.bf16.mxu0 %v8020
        %8340 = vmatpush1.bf16.msra.mxu0 %v8019
        %8341 = vmatprep.subr.bf16.mxu0 %v8016
        %8342 = vmatpush1.bf16.msra.mxu0 %v8015
        %8343 = vmatprep.subr.bf16.mxu0 %v8012
        %8344 = vmatpush1.bf16.msra.mxu0 %v8011
        %8345 = vmatprep.subr.bf16.mxu0 0
        %8346 = vmatpush2.bf16.msra.mxu0 0
        %8347 = vmatprep.subr.bf16.mxu0 0
        %8348 = vmatpush2.bf16.msra.mxu0 0
        %8349 = vmatprep.subr.bf16.mxu0 0
        %8350 = vmatpush2.bf16.msra.mxu0 0
        %8351 = vmatprep.subr.bf16.mxu0 0
        %8352 = vmatpush2.bf16.msra.mxu0 0
        %8353 = vmatprep.subr.bf16.mxu0 0
        %8354 = vmatpush2.bf16.msra.mxu0 0
        %8355 = vmatprep.subr.bf16.mxu0 0
        %8356 = vmatpush2.bf16.msra.mxu0 0
        %8357 = vmatprep.subr.bf16.mxu0 0
        %8358 = vmatpush2.bf16.msra.mxu0 0
        %8359 = vmatprep.subr.bf16.mxu0 0
        %8360 = vmatpush2.bf16.msra.mxu0 0
        %8361 = vmatprep.mubr.bf16.mxu0 0
        %8362 = vmatmul.mubr.bf16.gmra.mxu0 %v8172
        %v8363 = vpop.f32.mrf.mxu0
        %v8364 = vadd.f32 %v8291, %v8363
        %v8365 = vpop.f32.mrf.mxu0
        %v8366 = vadd.f32 %v8293, %v8365
        %v8367 = vpop.f32.mrf.mxu0
        %v8368 = vadd.f32 %v8295, %v8367
        %v8369 = vpop.f32.mrf.mxu0
        %v8370 = vadd.f32 %v8297, %v8369
        %8371 = vmatprep.mubr.bf16.mxu0 0
        %8372 = vmatmul.mubr.bf16.gmra.mxu0 %v8175
        %v8373 = vpop.f32.mrf.mxu0
        %v8374 = vadd.f32 %v8301, %v8373
        %v8375 = vpop.f32.mrf.mxu0
        %v8376 = vadd.f32 %v8303, %v8375
        %v8377 = vpop.f32.mrf.mxu0
        %v8378 = vadd.f32 %v8305, %v8377
        %v8379 = vpop.f32.mrf.mxu0
        %v8380 = vadd.f32 %v8307, %v8379
        %8381 = vmatprep.mubr.bf16.mxu0 0
        %8382 = vmatmul.mubr.bf16.gmra.mxu0 %v8178
        %v8383 = vpop.f32.mrf.mxu0
        %v8384 = vadd.f32 %v8311, %v8383
        %v8385 = vpop.f32.mrf.mxu0
        %v8386 = vadd.f32 %v8313, %v8385
        %v8387 = vpop.f32.mrf.mxu0
        %v8388 = vadd.f32 %v8315, %v8387
        %v8389 = vpop.f32.mrf.mxu0
        %v8390 = vadd.f32 %v8317, %v8389
        %8391 = vmatprep.mubr.bf16.mxu0 0
        %8392 = vmatmul.mubr.bf16.gmra.mxu0 %v8181
        %v8393 = vpop.f32.mrf.mxu0
        %v8394 = vadd.f32 %v8321, %v8393
        %v8395 = vpop.f32.mrf.mxu0
        %v8396 = vadd.f32 %v8323, %v8395
        %v8397 = vpop.f32.mrf.mxu0
        %v8398 = vadd.f32 %v8325, %v8397
        %v8399 = vpop.f32.mrf.mxu0
        %v8400 = vadd.f32 %v8327, %v8399
        %8401 = vdwg.mxu0
        %8402 = vmatprep.subr.bf16.mxu0 %v7914
        %8403 = vmatpush1.bf16.msra.mxu0 %v7913
        %8404 = vmatprep.subr.bf16.mxu0 %v7910
        %8405 = vmatpush1.bf16.msra.mxu0 %v7909
        %8406 = vmatprep.subr.bf16.mxu0 %v7906
        %8407 = vmatpush1.bf16.msra.mxu0 %v7905
        %8408 = vmatprep.subr.bf16.mxu0 %v7902
        %8409 = vmatpush1.bf16.msra.mxu0 %v7901
        %8410 = vmatprep.subr.bf16.mxu0 %v7898
        %8411 = vmatpush1.bf16.msra.mxu0 %v7897
        %8412 = vmatprep.subr.bf16.mxu0 %v7894
        %8413 = vmatpush1.bf16.msra.mxu0 %v7893
        %8414 = vmatprep.subr.bf16.mxu0 %v7890
        %8415 = vmatpush1.bf16.msra.mxu0 %v7889
        %8416 = vmatprep.subr.bf16.mxu0 %v7886
        %8417 = vmatpush1.bf16.msra.mxu0 %v7885
        %8418 = vmatprep.subr.bf16.mxu0 %v7946
        %8419 = vmatpush2.bf16.msra.mxu0 %v7945
        %8420 = vmatprep.subr.bf16.mxu0 %v7942
        %8421 = vmatpush2.bf16.msra.mxu0 %v7941
        %8422 = vmatprep.subr.bf16.mxu0 %v7938
        %8423 = vmatpush2.bf16.msra.mxu0 %v7937
        %8424 = vmatprep.subr.bf16.mxu0 %v7934
        %8425 = vmatpush2.bf16.msra.mxu0 %v7933
        %8426 = vmatprep.subr.bf16.mxu0 %v7930
        %8427 = vmatpush2.bf16.msra.mxu0 %v7929
        %8428 = vmatprep.subr.bf16.mxu0 %v7926
        %8429 = vmatpush2.bf16.msra.mxu0 %v7925
        %8430 = vmatprep.subr.bf16.mxu0 %v7922
        %8431 = vmatpush2.bf16.msra.mxu0 %v7921
        %8432 = vmatprep.subr.bf16.mxu0 %v7918
        %8433 = vmatpush2.bf16.msra.mxu0 %v7917
        %8434 = vmatprep.mubr.bf16.mxu0 %v7416
        %8435 = vmatmul.mubr.bf16.gmra.mxu0 %v7415
        %v8436 = vpop.f32.mrf.mxu0
        %v8437 = vadd.f32 0.0, %v8436
        %v8438 = vpop.f32.mrf.mxu0
        %v8439 = vadd.f32 0.0, %v8438
        %v8440 = vpop.f32.mrf.mxu0
        %v8441 = vadd.f32 0.0, %v8440
        %v8442 = vpop.f32.mrf.mxu0
        %v8443 = vadd.f32 0.0, %v8442
        %8444 = vmatprep.mubr.bf16.mxu0 %v7421
        %8445 = vmatmul.mubr.bf16.gmra.mxu0 %v7420
        %v8446 = vpop.f32.mrf.mxu0
        %v8447 = vadd.f32 0.0, %v8446
        %v8448 = vpop.f32.mrf.mxu0
        %v8449 = vadd.f32 0.0, %v8448
        %v8450 = vpop.f32.mrf.mxu0
        %v8451 = vadd.f32 0.0, %v8450
        %v8452 = vpop.f32.mrf.mxu0
        %v8453 = vadd.f32 0.0, %v8452
        %8454 = vmatprep.mubr.bf16.mxu0 %v7426
        %8455 = vmatmul.mubr.bf16.gmra.mxu0 %v7425
        %v8456 = vpop.f32.mrf.mxu0
        %v8457 = vadd.f32 0.0, %v8456
        %v8458 = vpop.f32.mrf.mxu0
        %v8459 = vadd.f32 0.0, %v8458
        %v8460 = vpop.f32.mrf.mxu0
        %v8461 = vadd.f32 0.0, %v8460
        %v8462 = vpop.f32.mrf.mxu0
        %v8463 = vadd.f32 0.0, %v8462
        %8464 = vmatprep.mubr.bf16.mxu0 %v7431
        %8465 = vmatmul.mubr.bf16.gmra.mxu0 %v7430
        %v8466 = vpop.f32.mrf.mxu0
        %v8467 = vadd.f32 0.0, %v8466
        %v8468 = vpop.f32.mrf.mxu0
        %v8469 = vadd.f32 0.0, %v8468
        %v8470 = vpop.f32.mrf.mxu0
        %v8471 = vadd.f32 0.0, %v8470
        %v8472 = vpop.f32.mrf.mxu0
        %v8473 = vadd.f32 0.0, %v8472
        %8474 = vdwg.mxu0
        %8475 = vmatprep.subr.bf16.mxu0 %v7978
        %8476 = vmatpush1.bf16.msra.mxu0 %v7977
        %8477 = vmatprep.subr.bf16.mxu0 %v7974
        %8478 = vmatpush1.bf16.msra.mxu0 %v7973
        %8479 = vmatprep.subr.bf16.mxu0 %v7970
        %8480 = vmatpush1.bf16.msra.mxu0 %v7969
        %8481 = vmatprep.subr.bf16.mxu0 %v7966
        %8482 = vmatpush1.bf16.msra.mxu0 %v7965
        %8483 = vmatprep.subr.bf16.mxu0 %v7962
        %8484 = vmatpush1.bf16.msra.mxu0 %v7961
        %8485 = vmatprep.subr.bf16.mxu0 %v7958
        %8486 = vmatpush1.bf16.msra.mxu0 %v7957
        %8487 = vmatprep.subr.bf16.mxu0 %v7954
        %8488 = vmatpush1.bf16.msra.mxu0 %v7953
        %8489 = vmatprep.subr.bf16.mxu0 %v7950
        %8490 = vmatpush1.bf16.msra.mxu0 %v7949
        %8491 = vmatprep.subr.bf16.mxu0 %v8010
        %8492 = vmatpush2.bf16.msra.mxu0 %v8009
        %8493 = vmatprep.subr.bf16.mxu0 %v8006
        %8494 = vmatpush2.bf16.msra.mxu0 %v8005
        %8495 = vmatprep.subr.bf16.mxu0 %v8002
        %8496 = vmatpush2.bf16.msra.mxu0 %v8001
        %8497 = vmatprep.subr.bf16.mxu0 %v7998
        %8498 = vmatpush2.bf16.msra.mxu0 %v7997
        %8499 = vmatprep.subr.bf16.mxu0 %v7994
        %8500 = vmatpush2.bf16.msra.mxu0 %v7993
        %8501 = vmatprep.subr.bf16.mxu0 %v7990
        %8502 = vmatpush2.bf16.msra.mxu0 %v7989
        %8503 = vmatprep.subr.bf16.mxu0 %v7986
        %8504 = vmatpush2.bf16.msra.mxu0 %v7985
        %8505 = vmatprep.subr.bf16.mxu0 %v7982
        %8506 = vmatpush2.bf16.msra.mxu0 %v7981
        %8507 = vmatprep.mubr.bf16.mxu0 %v7418
        %8508 = vmatmul.mubr.bf16.gmra.mxu0 %v7417
        %v8509 = vpop.f32.mrf.mxu0
        %v8510 = vadd.f32 %v8437, %v8509
        %v8511 = vpop.f32.mrf.mxu0
        %v8512 = vadd.f32 %v8439, %v8511
        %v8513 = vpop.f32.mrf.mxu0
        %v8514 = vadd.f32 %v8441, %v8513
        %v8515 = vpop.f32.mrf.mxu0
        %v8516 = vadd.f32 %v8443, %v8515
        %8517 = vmatprep.mubr.bf16.mxu0 %v7423
        %8518 = vmatmul.mubr.bf16.gmra.mxu0 %v7422
        %v8519 = vpop.f32.mrf.mxu0
        %v8520 = vadd.f32 %v8447, %v8519
        %v8521 = vpop.f32.mrf.mxu0
        %v8522 = vadd.f32 %v8449, %v8521
        %v8523 = vpop.f32.mrf.mxu0
        %v8524 = vadd.f32 %v8451, %v8523
        %v8525 = vpop.f32.mrf.mxu0
        %v8526 = vadd.f32 %v8453, %v8525
        %8527 = vmatprep.mubr.bf16.mxu0 %v7428
        %8528 = vmatmul.mubr.bf16.gmra.mxu0 %v7427
        %v8529 = vpop.f32.mrf.mxu0
        %v8530 = vadd.f32 %v8457, %v8529
        %v8531 = vpop.f32.mrf.mxu0
        %v8532 = vadd.f32 %v8459, %v8531
        %v8533 = vpop.f32.mrf.mxu0
        %v8534 = vadd.f32 %v8461, %v8533
        %v8535 = vpop.f32.mrf.mxu0
        %v8536 = vadd.f32 %v8463, %v8535
        %8537 = vmatprep.mubr.bf16.mxu0 %v7433
        %8538 = vmatmul.mubr.bf16.gmra.mxu0 %v7432
        %v8539 = vpop.f32.mrf.mxu0
        %v8540 = vadd.f32 %v8467, %v8539
        %v8541 = vpop.f32.mrf.mxu0
        %v8542 = vadd.f32 %v8469, %v8541
        %v8543 = vpop.f32.mrf.mxu0
        %v8544 = vadd.f32 %v8471, %v8543
        %v8545 = vpop.f32.mrf.mxu0
        %v8546 = vadd.f32 %v8473, %v8545
        %8547 = vdwg.mxu0
        %8548 = vmatprep.subr.bf16.mxu0 0
        %8549 = vmatpush1.bf16.msra.mxu0 0
        %8550 = vmatprep.subr.bf16.mxu0 0
        %8551 = vmatpush1.bf16.msra.mxu0 0
        %8552 = vmatprep.subr.bf16.mxu0 0
        %8553 = vmatpush1.bf16.msra.mxu0 0
        %8554 = vmatprep.subr.bf16.mxu0 0
        %8555 = vmatpush1.bf16.msra.mxu0 0
        %8556 = vmatprep.subr.bf16.mxu0 %v8026
        %8557 = vmatpush1.bf16.msra.mxu0 %v8025
        %8558 = vmatprep.subr.bf16.mxu0 %v8022
        %8559 = vmatpush1.bf16.msra.mxu0 %v8021
        %8560 = vmatprep.subr.bf16.mxu0 %v8018
        %8561 = vmatpush1.bf16.msra.mxu0 %v8017
        %8562 = vmatprep.subr.bf16.mxu0 %v8014
        %8563 = vmatpush1.bf16.msra.mxu0 %v8013
        %8564 = vmatprep.subr.bf16.mxu0 0
        %8565 = vmatpush2.bf16.msra.mxu0 0
        %8566 = vmatprep.subr.bf16.mxu0 0
        %8567 = vmatpush2.bf16.msra.mxu0 0
        %8568 = vmatprep.subr.bf16.mxu0 0
        %8569 = vmatpush2.bf16.msra.mxu0 0
        %8570 = vmatprep.subr.bf16.mxu0 0
        %8571 = vmatpush2.bf16.msra.mxu0 0
        %8572 = vmatprep.subr.bf16.mxu0 0
        %8573 = vmatpush2.bf16.msra.mxu0 0
        %8574 = vmatprep.subr.bf16.mxu0 0
        %8575 = vmatpush2.bf16.msra.mxu0 0
        %8576 = vmatprep.subr.bf16.mxu0 0
        %8577 = vmatpush2.bf16.msra.mxu0 0
        %8578 = vmatprep.subr.bf16.mxu0 0
        %8579 = vmatpush2.bf16.msra.mxu0 0
        %8580 = vmatprep.mubr.bf16.mxu0 0
        %8581 = vmatmul.mubr.bf16.gmra.mxu0 %v8172
        %v8582 = vpop.f32.mrf.mxu0
        %v8583 = vadd.f32 %v8510, %v8582
        %v8584 = vpop.f32.mrf.mxu0
        %v8585 = vadd.f32 %v8512, %v8584
        %v8586 = vpop.f32.mrf.mxu0
        %v8587 = vadd.f32 %v8514, %v8586
        %v8588 = vpop.f32.mrf.mxu0
        %v8589 = vadd.f32 %v8516, %v8588
        %8590 = vmatprep.mubr.bf16.mxu0 0
        %8591 = vmatmul.mubr.bf16.gmra.mxu0 %v8175
        %v8592 = vpop.f32.mrf.mxu0
        %v8593 = vadd.f32 %v8520, %v8592
        %v8594 = vpop.f32.mrf.mxu0
        %v8595 = vadd.f32 %v8522, %v8594
        %v8596 = vpop.f32.mrf.mxu0
        %v8597 = vadd.f32 %v8524, %v8596
        %v8598 = vpop.f32.mrf.mxu0
        %v8599 = vadd.f32 %v8526, %v8598
        %8600 = vmatprep.mubr.bf16.mxu0 0
        %8601 = vmatmul.mubr.bf16.gmra.mxu0 %v8178
        %v8602 = vpop.f32.mrf.mxu0
        %v8603 = vadd.f32 %v8530, %v8602
        %v8604 = vpop.f32.mrf.mxu0
        %v8605 = vadd.f32 %v8532, %v8604
        %v8606 = vpop.f32.mrf.mxu0
        %v8607 = vadd.f32 %v8534, %v8606
        %v8608 = vpop.f32.mrf.mxu0
        %v8609 = vadd.f32 %v8536, %v8608
        %8610 = vmatprep.mubr.bf16.mxu0 0
        %8611 = vmatmul.mubr.bf16.gmra.mxu0 %v8181
        %v8612 = vpop.f32.mrf.mxu0
        %v8613 = vadd.f32 %v8540, %v8612
        %v8614 = vpop.f32.mrf.mxu0
        %v8615 = vadd.f32 %v8542, %v8614
        %v8616 = vpop.f32.mrf.mxu0
        %v8617 = vadd.f32 %v8544, %v8616
        %v8618 = vpop.f32.mrf.mxu0
        %v8619 = vadd.f32 %v8546, %v8618
        %8620 = vdwg.mxu0
        %8621 = vst [vmem:[#allocation3] sm:$0xff] %v8364
        %8622 = vst [vmem:[#allocation3 + $0x8] sm:$0xff] %v8366
        %8623 = vst [vmem:[#allocation3 + $0x10] sm:$0xff] %v8583
        %8624 = vst [vmem:[#allocation3 + $0x18] sm:$0xff] %v8585
        %8625 = vst [vmem:[#allocation3 + $0x20] sm:$0xff] %v8368
        %8626 = vst [vmem:[#allocation3 + $0x28] sm:$0xff] %v8370
        %8627 = vst [vmem:[#allocation3 + $0x30] sm:$0xff] %v8587
        %8628 = vst [vmem:[#allocation3 + $0x38] sm:$0xff] %v8589
        %8629 = vst [vmem:[#allocation3 + $0x40] sm:$0xff] %v8374
        %8630 = vst [vmem:[#allocation3 + $0x48] sm:$0xff] %v8376
        %8631 = vst [vmem:[#allocation3 + $0x50] sm:$0xff] %v8593
        %8632 = vst [vmem:[#allocation3 + $0x58] sm:$0xff] %v8595
        %8633 = vst [vmem:[#allocation3 + $0x60] sm:$0xff] %v8378
        %8634 = vst [vmem:[#allocation3 + $0x68] sm:$0xff] %v8380
        %8635 = vst [vmem:[#allocation3 + $0x70] sm:$0xff] %v8597
        %8636 = vst [vmem:[#allocation3 + $0x78] sm:$0xff] %v8599
        %8637 = vst [vmem:[#allocation3 + $0x80] sm:$0xff] %v8384
        %8638 = vst [vmem:[#allocation3 + $0x88] sm:$0xff] %v8386
        %8639 = vst [vmem:[#allocation3 + $0x90] sm:$0xff] %v8603
        %8640 = vst [vmem:[#allocation3 + $0x98] sm:$0xff] %v8605
        %8641 = vst [vmem:[#allocation3 + $0xa0] sm:$0xff] %v8388
        %8642 = vst [vmem:[#allocation3 + $0xa8] sm:$0xff] %v8390
        %8643 = vst [vmem:[#allocation3 + $0xb0] sm:$0xff] %v8607
        %8644 = vst [vmem:[#allocation3 + $0xb8] sm:$0xff] %v8609
        %8645 = vst [vmem:[#allocation3 + $0xc0] sm:$0xff] %v8394
        %8646 = vst [vmem:[#allocation3 + $0xc8] sm:$0xff] %v8396
        %8647 = vst [vmem:[#allocation3 + $0xd0] sm:$0xff] %v8613
        %8648 = vst [vmem:[#allocation3 + $0xd8] sm:$0xff] %v8615
        %8649 = vst [vmem:[#allocation3 + $0xe0] sm:$0xff] %v8398
        %8650 = vst [vmem:[#allocation3 + $0xe8] sm:$0xff] %v8400
        %8651 = vst [vmem:[#allocation3 + $0xf0] sm:$0xff] %v8617
        %8652 = vst [vmem:[#allocation3 + $0xf8] sm:$0xff] %v8619
        %v8653 = vld [vmem:[#allocation3] sm:$0xff]
        %v8654 = vld [vmem:[#allocation3 + $0x8] sm:$0xff]
        %v8655 = vld [vmem:[#allocation3 + $0x20] sm:$0xff]
        %v8656 = vld [vmem:[#allocation3 + $0x28] sm:$0xff]
        %v8657 = vld [vmem:[#allocation3 + $0x40] sm:$0xff]
        %v8658 = vld [vmem:[#allocation3 + $0x48] sm:$0xff]
        %v8659 = vld [vmem:[#allocation3 + $0x60] sm:$0xff]
        %v8660 = vld [vmem:[#allocation3 + $0x68] sm:$0xff]
        %v8661 = vld [vmem:[#allocation3 + $0x80] sm:$0xff]
        %v8662 = vld [vmem:[#allocation3 + $0x88] sm:$0xff]
        %v8663 = vld [vmem:[#allocation3 + $0xa0] sm:$0xff]
        %v8664 = vld [vmem:[#allocation3 + $0xa8] sm:$0xff]
        %v8665 = vld [vmem:[#allocation3 + $0xc0] sm:$0xff]
        %v8666 = vld [vmem:[#allocation3 + $0xc8] sm:$0xff]
        %v8667 = vld [vmem:[#allocation3 + $0xe0] sm:$0xff]
        %v8668 = vld [vmem:[#allocation3 + $0xe8] sm:$0xff]
        %v8669 = vadd.f32 %v8653, %v8654
        %8670 = vadd.xlane.f32.xlu0 %v8669
        %v8671 = vpop.xlane.xlu0 %8670
        %v8672 = vadd.f32 %v8655, %v8656
        %8673 = vadd.xlane.f32.xlu0 %v8672
        %v8674 = vpop.xlane.xlu0 %8673
        %v8675 = vadd.f32 %v8657, %v8658
        %8676 = vadd.xlane.f32.xlu0 %v8675
        %v8677 = vpop.xlane.xlu0 %8676
        %v8678 = vadd.f32 %v8659, %v8660
        %8679 = vadd.xlane.f32.xlu0 %v8678
        %v8680 = vpop.xlane.xlu0 %8679
        %v8681 = vadd.f32 %v8661, %v8662
        %8682 = vadd.xlane.f32.xlu0 %v8681
        %v8683 = vpop.xlane.xlu0 %8682
        %v8684 = vadd.f32 %v8663, %v8664
        %8685 = vadd.xlane.f32.xlu0 %v8684
        %v8686 = vpop.xlane.xlu0 %8685
        %v8687 = vadd.f32 %v8665, %v8666
        %8688 = vadd.xlane.f32.xlu0 %v8687
        %v8689 = vpop.xlane.xlu0 %8688
        %v8690 = vadd.f32 %v8667, %v8668
        %8691 = vadd.xlane.f32.xlu0 %v8690
        %v8692 = vpop.xlane.xlu0 %8691
        %v8693 = vmul.f32 %v8671, 0.00390625
        %v8694 = vmul.f32 %v8674, 0.00390625
        %v8695 = vmul.f32 %v8677, 0.00390625
        %v8696 = vmul.f32 %v8680, 0.00390625
        %v8697 = vmul.f32 %v8683, 0.00390625
        %v8698 = vmul.f32 %v8686, 0.00390625
        %v8699 = vmul.f32 %v8689, 0.00390625
        %v8700 = vmul.f32 %v8692, 0.00390625
        %v8701 = vmul.f32 %v8653, %v8653
        %v8702 = vmul.f32 %v8654, %v8654
        %v8703 = vmul.f32 %v8655, %v8655
        %v8704 = vmul.f32 %v8656, %v8656
        %v8705 = vmul.f32 %v8657, %v8657
        %v8706 = vmul.f32 %v8658, %v8658
        %v8707 = vmul.f32 %v8659, %v8659
        %v8708 = vmul.f32 %v8660, %v8660
        %v8709 = vmul.f32 %v8661, %v8661
        %v8710 = vmul.f32 %v8662, %v8662
        %v8711 = vmul.f32 %v8663, %v8663
        %v8712 = vmul.f32 %v8664, %v8664
        %v8713 = vmul.f32 %v8665, %v8665
        %v8714 = vmul.f32 %v8666, %v8666
        %v8715 = vmul.f32 %v8667, %v8667
        %v8716 = vmul.f32 %v8668, %v8668
        %v8717 = vadd.f32 %v8701, %v8702
        %8718 = vadd.xlane.f32.xlu0 %v8717
        %v8719 = vpop.xlane.xlu0 %8718
        %v8720 = vadd.f32 %v8703, %v8704
        %8721 = vadd.xlane.f32.xlu0 %v8720
        %v8722 = vpop.xlane.xlu0 %8721
        %v8723 = vadd.f32 %v8705, %v8706
        %8724 = vadd.xlane.f32.xlu0 %v8723
        %v8725 = vpop.xlane.xlu0 %8724
        %v8726 = vadd.f32 %v8707, %v8708
        %8727 = vadd.xlane.f32.xlu0 %v8726
        %v8728 = vpop.xlane.xlu0 %8727
        %v8729 = vadd.f32 %v8709, %v8710
        %8730 = vadd.xlane.f32.xlu0 %v8729
        %v8731 = vpop.xlane.xlu0 %8730
        %v8732 = vadd.f32 %v8711, %v8712
        %8733 = vadd.xlane.f32.xlu0 %v8732
        %v8734 = vpop.xlane.xlu0 %8733
        %v8735 = vadd.f32 %v8713, %v8714
        %8736 = vadd.xlane.f32.xlu0 %v8735
        %v8737 = vpop.xlane.xlu0 %8736
        %v8738 = vadd.f32 %v8715, %v8716
        %8739 = vadd.xlane.f32.xlu0 %v8738
        %v8740 = vpop.xlane.xlu0 %8739
        %v8741 = vmul.f32 %v8719, 0.00390625
        %v8742 = vmul.f32 %v8722, 0.00390625
        %v8743 = vmul.f32 %v8725, 0.00390625
        %v8744 = vmul.f32 %v8728, 0.00390625
        %v8745 = vmul.f32 %v8731, 0.00390625
        %v8746 = vmul.f32 %v8734, 0.00390625
        %v8747 = vmul.f32 %v8737, 0.00390625
        %v8748 = vmul.f32 %v8740, 0.00390625
        %v8749 = vmul.f32 %v8693, %v8693
        %v8750 = vmul.f32 %v8694, %v8694
        %v8751 = vmul.f32 %v8695, %v8695
        %v8752 = vmul.f32 %v8696, %v8696
        %v8753 = vmul.f32 %v8697, %v8697
        %v8754 = vmul.f32 %v8698, %v8698
        %v8755 = vmul.f32 %v8699, %v8699
        %v8756 = vmul.f32 %v8700, %v8700
        %v8757 = vsub.f32 %v8741, %v8749
        %v8758 = vsub.f32 %v8742, %v8750
        %v8759 = vsub.f32 %v8743, %v8751
        %v8760 = vsub.f32 %v8744, %v8752
        %v8761 = vsub.f32 %v8745, %v8753
        %v8762 = vsub.f32 %v8746, %v8754
        %v8763 = vsub.f32 %v8747, %v8755
        %v8764 = vsub.f32 %v8748, %v8756
        %v8765 = vmax.f32 %v8757, 0.0
        %v8766 = vmax.f32 %v8758, 0.0
        %v8767 = vmax.f32 %v8759, 0.0
        %v8768 = vmax.f32 %v8760, 0.0
        %v8769 = vmax.f32 %v8761, 0.0
        %v8770 = vmax.f32 %v8762, 0.0
        %v8771 = vmax.f32 %v8763, 0.0
        %v8772 = vmax.f32 %v8764, 0.0
        %v8773 = vsub.f32 %v8653, %v8693
        %v8774 = vsub.f32 %v8654, %v8693
        %v8775 = vsub.f32 %v8655, %v8694
        %v8776 = vsub.f32 %v8656, %v8694
        %v8777 = vsub.f32 %v8657, %v8695
        %v8778 = vsub.f32 %v8658, %v8695
        %v8779 = vsub.f32 %v8659, %v8696
        %v8780 = vsub.f32 %v8660, %v8696
        %v8781 = vsub.f32 %v8661, %v8697
        %v8782 = vsub.f32 %v8662, %v8697
        %v8783 = vsub.f32 %v8663, %v8698
        %v8784 = vsub.f32 %v8664, %v8698
        %v8785 = vsub.f32 %v8665, %v8699
        %v8786 = vsub.f32 %v8666, %v8699
        %v8787 = vsub.f32 %v8667, %v8700
        %v8788 = vsub.f32 %v8668, %v8700
        %v8789 = vadd.f32 %v8765, 1e-05
        %v8790 = vadd.f32 %v8766, 1e-05
        %v8791 = vadd.f32 %v8767, 1e-05
        %v8792 = vadd.f32 %v8768, 1e-05
        %v8793 = vadd.f32 %v8769, 1e-05
        %v8794 = vadd.f32 %v8770, 1e-05
        %v8795 = vadd.f32 %v8771, 1e-05
        %v8796 = vadd.f32 %v8772, 1e-05
        %v8797 = vrsqrt.pop %v8789
        %v8798 = vrsqrt.pop %v8790
        %v8799 = vrsqrt.pop %v8791
        %v8800 = vrsqrt.pop %v8792
        %v8801 = vrsqrt.pop %v8793
        %v8802 = vrsqrt.pop %v8794
        %v8803 = vrsqrt.pop %v8795
        %v8804 = vrsqrt.pop %v8796
        %v8805 = vmul.f32 %v8773, %v8797
        %v8806 = vmul.f32 %v8774, %v8797
        %v8807 = vmul.f32 %v8775, %v8798
        %v8808 = vmul.f32 %v8776, %v8798
        %v8809 = vmul.f32 %v8777, %v8799
        %v8810 = vmul.f32 %v8778, %v8799
        %v8811 = vmul.f32 %v8779, %v8800
        %v8812 = vmul.f32 %v8780, %v8800
        %v8813 = vmul.f32 %v8781, %v8801
        %v8814 = vmul.f32 %v8782, %v8801
        %v8815 = vmul.f32 %v8783, %v8802
        %v8816 = vmul.f32 %v8784, %v8802
        %v8817 = vmul.f32 %v8785, %v8803
        %v8818 = vmul.f32 %v8786, %v8803
        %v8819 = vmul.f32 %v8787, %v8804
        %v8820 = vmul.f32 %v8788, %v8804
        %8822 = vset.pattern.permute.xlu0 0
        %8823 = vperm.xlu0 %8822, %v373
        %v8824 = vpop.permute.xlu0 %8823
        %8827 = vset.pattern.permute.xlu0 0
        %8828 = vperm.xlu0 %8827, %v374
        %v8829 = vpop.permute.xlu0 %8828
        %8832 = vset.pattern.permute.xlu0 0
        %8833 = vperm.xlu0 %8832, %v375
        %v8834 = vpop.permute.xlu0 %8833
        %8837 = vset.pattern.permute.xlu0 0
        %8838 = vperm.xlu0 %8837, %v376
        %v8839 = vpop.permute.xlu0 %8838
        %8842 = vset.pattern.permute.xlu0 0
        %8843 = vperm.xlu0 %8842, %v377
        %v8844 = vpop.permute.xlu0 %8843
        %8847 = vset.pattern.permute.xlu0 0
        %8848 = vperm.xlu0 %8847, %v378
        %v8849 = vpop.permute.xlu0 %8848
        %8852 = vset.pattern.permute.xlu0 0
        %8853 = vperm.xlu0 %8852, %v379
        %v8854 = vpop.permute.xlu0 %8853
        %8857 = vset.pattern.permute.xlu0 0
        %8858 = vperm.xlu0 %8857, %v380
        %v8859 = vpop.permute.xlu0 %8858
        %v8861 = vmul.f32 %v8805, %v8824
        %v8862 = vmul.f32 %v8806, %v8824
        %v8863 = vmul.f32 %v8807, %v8829
        %v8864 = vmul.f32 %v8808, %v8829
        %v8865 = vmul.f32 %v8809, %v8834
        %v8866 = vmul.f32 %v8810, %v8834
        %v8867 = vmul.f32 %v8811, %v8839
        %v8868 = vmul.f32 %v8812, %v8839
        %v8869 = vmul.f32 %v8813, %v8844
        %v8870 = vmul.f32 %v8814, %v8844
        %v8871 = vmul.f32 %v8815, %v8849
        %v8872 = vmul.f32 %v8816, %v8849
        %v8873 = vmul.f32 %v8817, %v8854
        %v8874 = vmul.f32 %v8818, %v8854
        %v8875 = vmul.f32 %v8819, %v8859
        %v8876 = vmul.f32 %v8820, %v8859
        %8878 = vset.pattern.permute.xlu0 0
        %8879 = vperm.xlu0 %8878, %v381
        %v8880 = vpop.permute.xlu0 %8879
        %8883 = vset.pattern.permute.xlu0 0
        %8884 = vperm.xlu0 %8883, %v382
        %v8885 = vpop.permute.xlu0 %8884
        %8888 = vset.pattern.permute.xlu0 0
        %8889 = vperm.xlu0 %8888, %v383
        %v8890 = vpop.permute.xlu0 %8889
        %8893 = vset.pattern.permute.xlu0 0
        %8894 = vperm.xlu0 %8893, %v384
        %v8895 = vpop.permute.xlu0 %8894
        %8898 = vset.pattern.permute.xlu0 0
        %8899 = vperm.xlu0 %8898, %v385
        %v8900 = vpop.permute.xlu0 %8899
        %8903 = vset.pattern.permute.xlu0 0
        %8904 = vperm.xlu0 %8903, %v386
        %v8905 = vpop.permute.xlu0 %8904
        %8908 = vset.pattern.permute.xlu0 0
        %8909 = vperm.xlu0 %8908, %v387
        %v8910 = vpop.permute.xlu0 %8909
        %8913 = vset.pattern.permute.xlu0 0
        %8914 = vperm.xlu0 %8913, %v388
        %v8915 = vpop.permute.xlu0 %8914
        %v8917 = vadd.f32 %v8861, %v8880
        %v8918 = vadd.f32 %v8862, %v8880
        %v8919 = vadd.f32 %v8863, %v8885
        %v8920 = vadd.f32 %v8864, %v8885
        %v8921 = vadd.f32 %v8865, %v8890
        %v8922 = vadd.f32 %v8866, %v8890
        %v8923 = vadd.f32 %v8867, %v8895
        %v8924 = vadd.f32 %v8868, %v8895
        %v8925 = vadd.f32 %v8869, %v8900
        %v8926 = vadd.f32 %v8870, %v8900
        %v8927 = vadd.f32 %v8871, %v8905
        %v8928 = vadd.f32 %v8872, %v8905
        %v8929 = vadd.f32 %v8873, %v8910
        %v8930 = vadd.f32 %v8874, %v8910
        %v8931 = vadd.f32 %v8875, %v8915
        %v8932 = vadd.f32 %v8876, %v8915
        %v8933 = vld [vmem:[%s313] sm:$0xff]
        %v8934 = vld [vmem:[%s313 + $0x8] sm:$0xff]
        %v8935 = vld [vmem:[%s313 + $0x10] sm:$0xff]
        %v8936 = vld [vmem:[%s313 + $0x18] sm:$0xff]
        %v8937 = vld [vmem:[%s313 + $0x20] sm:$0xff]
        %v8938 = vld [vmem:[%s313 + $0x28] sm:$0xff]
        %v8939 = vld [vmem:[%s313 + $0x30] sm:$0xff]
        %v8940 = vld [vmem:[%s313 + $0x38] sm:$0xff]
        %v8941 = vld [vmem:[%s313 + $0x40] sm:$0xff]
        %v8942 = vld [vmem:[%s313 + $0x48] sm:$0xff]
        %v8943 = vld [vmem:[%s313 + $0x50] sm:$0xff]
        %v8944 = vld [vmem:[%s313 + $0x58] sm:$0xff]
        %v8945 = vld [vmem:[%s313 + $0x60] sm:$0xff]
        %v8946 = vld [vmem:[%s313 + $0x68] sm:$0xff]
        %v8947 = vld [vmem:[%s313 + $0x70] sm:$0xff]
        %v8948 = vld [vmem:[%s313 + $0x78] sm:$0xff]
        %v8949 = vadd.f32 %v8917, %v8933
        %v8950 = vadd.f32 %v8918, %v8934
        %v8951 = vadd.f32 %v8919, %v8935
        %v8952 = vadd.f32 %v8920, %v8936
        %v8953 = vadd.f32 %v8921, %v8937
        %v8954 = vadd.f32 %v8922, %v8938
        %v8955 = vadd.f32 %v8923, %v8939
        %v8956 = vadd.f32 %v8924, %v8940
        %v8957 = vadd.f32 %v8925, %v8941
        %v8958 = vadd.f32 %v8926, %v8942
        %v8959 = vadd.f32 %v8927, %v8943
        %v8960 = vadd.f32 %v8928, %v8944
        %v8961 = vadd.f32 %v8929, %v8945
        %v8962 = vadd.f32 %v8930, %v8946
        %v8963 = vadd.f32 %v8931, %v8947
        %v8964 = vadd.f32 %v8932, %v8948
        %8965 = vst [vmem:[%s353] sm:$0xff] %v8949
        %8966 = vst [vmem:[%s353 + $0x8] sm:$0xff] %v8950
        %8967 = vst [vmem:[%s353 + $0x10] sm:$0xff] %v8951
        %8968 = vst [vmem:[%s353 + $0x18] sm:$0xff] %v8952
        %8969 = vst [vmem:[%s353 + $0x20] sm:$0xff] %v8953
        %8970 = vst [vmem:[%s353 + $0x28] sm:$0xff] %v8954
        %8971 = vst [vmem:[%s353 + $0x30] sm:$0xff] %v8955
        %8972 = vst [vmem:[%s353 + $0x38] sm:$0xff] %v8956
        %8973 = vst [vmem:[%s353 + $0x40] sm:$0xff] %v8957
        %8974 = vst [vmem:[%s353 + $0x48] sm:$0xff] %v8958
        %8975 = vst [vmem:[%s353 + $0x50] sm:$0xff] %v8959
        %8976 = vst [vmem:[%s353 + $0x58] sm:$0xff] %v8960
        %8977 = vst [vmem:[%s353 + $0x60] sm:$0xff] %v8961
        %8978 = vst [vmem:[%s353 + $0x68] sm:$0xff] %v8962
        %8979 = vst [vmem:[%s353 + $0x70] sm:$0xff] %v8963
        %8980 = vst [vmem:[%s353 + $0x78] sm:$0xff] %v8964
        %v8981 = vld [vmem:[#allocation3 + $0x10] sm:$0xff]
        %v8982 = vld [vmem:[#allocation3 + $0x18] sm:$0xff]
        %v8983 = vld [vmem:[#allocation3 + $0x30] sm:$0xff]
        %v8984 = vld [vmem:[#allocation3 + $0x38] sm:$0xff]
        %v8985 = vld [vmem:[#allocation3 + $0x50] sm:$0xff]
        %v8986 = vld [vmem:[#allocation3 + $0x58] sm:$0xff]
        %v8987 = vld [vmem:[#allocation3 + $0x70] sm:$0xff]
        %v8988 = vld [vmem:[#allocation3 + $0x78] sm:$0xff]
        %v8989 = vld [vmem:[#allocation3 + $0x90] sm:$0xff]
        %v8990 = vld [vmem:[#allocation3 + $0x98] sm:$0xff]
        %v8991 = vld [vmem:[#allocation3 + $0xb0] sm:$0xff]
        %v8992 = vld [vmem:[#allocation3 + $0xb8] sm:$0xff]
        %v8993 = vld [vmem:[#allocation3 + $0xd0] sm:$0xff]
        %v8994 = vld [vmem:[#allocation3 + $0xd8] sm:$0xff]
        %v8995 = vld [vmem:[#allocation3 + $0xf0] sm:$0xff]
        %v8996 = vld [vmem:[#allocation3 + $0xf8] sm:$0xff]
        %v8997 = vadd.f32 %v8981, %v8982
        %8998 = vadd.xlane.f32.xlu0 %v8997
        %v8999 = vpop.xlane.xlu0 %8998
        %v9000 = vadd.f32 %v8983, %v8984
        %9001 = vadd.xlane.f32.xlu0 %v9000
        %v9002 = vpop.xlane.xlu0 %9001
        %v9003 = vadd.f32 %v8985, %v8986
        %9004 = vadd.xlane.f32.xlu0 %v9003
        %v9005 = vpop.xlane.xlu0 %9004
        %v9006 = vadd.f32 %v8987, %v8988
        %9007 = vadd.xlane.f32.xlu0 %v9006
        %v9008 = vpop.xlane.xlu0 %9007
        %v9009 = vadd.f32 %v8989, %v8990
        %9010 = vadd.xlane.f32.xlu0 %v9009
        %v9011 = vpop.xlane.xlu0 %9010
        %v9012 = vadd.f32 %v8991, %v8992
        %9013 = vadd.xlane.f32.xlu0 %v9012
        %v9014 = vpop.xlane.xlu0 %9013
        %v9015 = vadd.f32 %v8993, %v8994
        %9016 = vadd.xlane.f32.xlu0 %v9015
        %v9017 = vpop.xlane.xlu0 %9016
        %v9018 = vadd.f32 %v8995, %v8996
        %9019 = vadd.xlane.f32.xlu0 %v9018
        %v9020 = vpop.xlane.xlu0 %9019
        %v9021 = vmul.f32 %v8999, 0.00390625
        %v9022 = vmul.f32 %v9002, 0.00390625
        %v9023 = vmul.f32 %v9005, 0.00390625
        %v9024 = vmul.f32 %v9008, 0.00390625
        %v9025 = vmul.f32 %v9011, 0.00390625
        %v9026 = vmul.f32 %v9014, 0.00390625
        %v9027 = vmul.f32 %v9017, 0.00390625
        %v9028 = vmul.f32 %v9020, 0.00390625
        %v9029 = vmul.f32 %v8981, %v8981
        %v9030 = vmul.f32 %v8982, %v8982
        %v9031 = vmul.f32 %v8983, %v8983
        %v9032 = vmul.f32 %v8984, %v8984
        %v9033 = vmul.f32 %v8985, %v8985
        %v9034 = vmul.f32 %v8986, %v8986
        %v9035 = vmul.f32 %v8987, %v8987
        %v9036 = vmul.f32 %v8988, %v8988
        %v9037 = vmul.f32 %v8989, %v8989
        %v9038 = vmul.f32 %v8990, %v8990
        %v9039 = vmul.f32 %v8991, %v8991
        %v9040 = vmul.f32 %v8992, %v8992
        %v9041 = vmul.f32 %v8993, %v8993
        %v9042 = vmul.f32 %v8994, %v8994
        %v9043 = vmul.f32 %v8995, %v8995
        %v9044 = vmul.f32 %v8996, %v8996
        %v9045 = vadd.f32 %v9029, %v9030
        %9046 = vadd.xlane.f32.xlu0 %v9045
        %v9047 = vpop.xlane.xlu0 %9046
        %v9048 = vadd.f32 %v9031, %v9032
        %9049 = vadd.xlane.f32.xlu0 %v9048
        %v9050 = vpop.xlane.xlu0 %9049
        %v9051 = vadd.f32 %v9033, %v9034
        %9052 = vadd.xlane.f32.xlu0 %v9051
        %v9053 = vpop.xlane.xlu0 %9052
        %v9054 = vadd.f32 %v9035, %v9036
        %9055 = vadd.xlane.f32.xlu0 %v9054
        %v9056 = vpop.xlane.xlu0 %9055
        %v9057 = vadd.f32 %v9037, %v9038
        %9058 = vadd.xlane.f32.xlu0 %v9057
        %v9059 = vpop.xlane.xlu0 %9058
        %v9060 = vadd.f32 %v9039, %v9040
        %9061 = vadd.xlane.f32.xlu0 %v9060
        %v9062 = vpop.xlane.xlu0 %9061
        %v9063 = vadd.f32 %v9041, %v9042
        %9064 = vadd.xlane.f32.xlu0 %v9063
        %v9065 = vpop.xlane.xlu0 %9064
        %v9066 = vadd.f32 %v9043, %v9044
        %9067 = vadd.xlane.f32.xlu0 %v9066
        %v9068 = vpop.xlane.xlu0 %9067
        %v9069 = vmul.f32 %v9047, 0.00390625
        %v9070 = vmul.f32 %v9050, 0.00390625
        %v9071 = vmul.f32 %v9053, 0.00390625
        %v9072 = vmul.f32 %v9056, 0.00390625
        %v9073 = vmul.f32 %v9059, 0.00390625
        %v9074 = vmul.f32 %v9062, 0.00390625
        %v9075 = vmul.f32 %v9065, 0.00390625
        %v9076 = vmul.f32 %v9068, 0.00390625
        %v9077 = vmul.f32 %v9021, %v9021
        %v9078 = vmul.f32 %v9022, %v9022
        %v9079 = vmul.f32 %v9023, %v9023
        %v9080 = vmul.f32 %v9024, %v9024
        %v9081 = vmul.f32 %v9025, %v9025
        %v9082 = vmul.f32 %v9026, %v9026
        %v9083 = vmul.f32 %v9027, %v9027
        %v9084 = vmul.f32 %v9028, %v9028
        %v9085 = vsub.f32 %v9069, %v9077
        %v9086 = vsub.f32 %v9070, %v9078
        %v9087 = vsub.f32 %v9071, %v9079
        %v9088 = vsub.f32 %v9072, %v9080
        %v9089 = vsub.f32 %v9073, %v9081
        %v9090 = vsub.f32 %v9074, %v9082
        %v9091 = vsub.f32 %v9075, %v9083
        %v9092 = vsub.f32 %v9076, %v9084
        %v9093 = vmax.f32 %v9085, 0.0
        %v9094 = vmax.f32 %v9086, 0.0
        %v9095 = vmax.f32 %v9087, 0.0
        %v9096 = vmax.f32 %v9088, 0.0
        %v9097 = vmax.f32 %v9089, 0.0
        %v9098 = vmax.f32 %v9090, 0.0
        %v9099 = vmax.f32 %v9091, 0.0
        %v9100 = vmax.f32 %v9092, 0.0
        %v9101 = vsub.f32 %v8981, %v9021
        %v9102 = vsub.f32 %v8982, %v9021
        %v9103 = vsub.f32 %v8983, %v9022
        %v9104 = vsub.f32 %v8984, %v9022
        %v9105 = vsub.f32 %v8985, %v9023
        %v9106 = vsub.f32 %v8986, %v9023
        %v9107 = vsub.f32 %v8987, %v9024
        %v9108 = vsub.f32 %v8988, %v9024
        %v9109 = vsub.f32 %v8989, %v9025
        %v9110 = vsub.f32 %v8990, %v9025
        %v9111 = vsub.f32 %v8991, %v9026
        %v9112 = vsub.f32 %v8992, %v9026
        %v9113 = vsub.f32 %v8993, %v9027
        %v9114 = vsub.f32 %v8994, %v9027
        %v9115 = vsub.f32 %v8995, %v9028
        %v9116 = vsub.f32 %v8996, %v9028
        %v9117 = vadd.f32 %v9093, 1e-05
        %v9118 = vadd.f32 %v9094, 1e-05
        %v9119 = vadd.f32 %v9095, 1e-05
        %v9120 = vadd.f32 %v9096, 1e-05
        %v9121 = vadd.f32 %v9097, 1e-05
        %v9122 = vadd.f32 %v9098, 1e-05
        %v9123 = vadd.f32 %v9099, 1e-05
        %v9124 = vadd.f32 %v9100, 1e-05
        %v9125 = vrsqrt.pop %v9117
        %v9126 = vrsqrt.pop %v9118
        %v9127 = vrsqrt.pop %v9119
        %v9128 = vrsqrt.pop %v9120
        %v9129 = vrsqrt.pop %v9121
        %v9130 = vrsqrt.pop %v9122
        %v9131 = vrsqrt.pop %v9123
        %v9132 = vrsqrt.pop %v9124
        %v9133 = vmul.f32 %v9101, %v9125
        %v9134 = vmul.f32 %v9102, %v9125
        %v9135 = vmul.f32 %v9103, %v9126
        %v9136 = vmul.f32 %v9104, %v9126
        %v9137 = vmul.f32 %v9105, %v9127
        %v9138 = vmul.f32 %v9106, %v9127
        %v9139 = vmul.f32 %v9107, %v9128
        %v9140 = vmul.f32 %v9108, %v9128
        %v9141 = vmul.f32 %v9109, %v9129
        %v9142 = vmul.f32 %v9110, %v9129
        %v9143 = vmul.f32 %v9111, %v9130
        %v9144 = vmul.f32 %v9112, %v9130
        %v9145 = vmul.f32 %v9113, %v9131
        %v9146 = vmul.f32 %v9114, %v9131
        %v9147 = vmul.f32 %v9115, %v9132
        %v9148 = vmul.f32 %v9116, %v9132
        %v9149 = vmul.f32 %v9133, %v8824
        %v9150 = vmul.f32 %v9134, %v8824
        %v9151 = vmul.f32 %v9135, %v8829
        %v9152 = vmul.f32 %v9136, %v8829
        %v9153 = vmul.f32 %v9137, %v8834
        %v9154 = vmul.f32 %v9138, %v8834
        %v9155 = vmul.f32 %v9139, %v8839
        %v9156 = vmul.f32 %v9140, %v8839
        %v9157 = vmul.f32 %v9141, %v8844
        %v9158 = vmul.f32 %v9142, %v8844
        %v9159 = vmul.f32 %v9143, %v8849
        %v9160 = vmul.f32 %v9144, %v8849
        %v9161 = vmul.f32 %v9145, %v8854
        %v9162 = vmul.f32 %v9146, %v8854
        %v9163 = vmul.f32 %v9147, %v8859
        %v9164 = vmul.f32 %v9148, %v8859
        %v9165 = vadd.f32 %v9149, %v8880
        %v9166 = vadd.f32 %v9150, %v8880
        %v9167 = vadd.f32 %v9151, %v8885
        %v9168 = vadd.f32 %v9152, %v8885
        %v9169 = vadd.f32 %v9153, %v8890
        %v9170 = vadd.f32 %v9154, %v8890
        %v9171 = vadd.f32 %v9155, %v8895
        %v9172 = vadd.f32 %v9156, %v8895
        %v9173 = vadd.f32 %v9157, %v8900
        %v9174 = vadd.f32 %v9158, %v8900
        %v9175 = vadd.f32 %v9159, %v8905
        %v9176 = vadd.f32 %v9160, %v8905
        %v9177 = vadd.f32 %v9161, %v8910
        %v9178 = vadd.f32 %v9162, %v8910
        %v9179 = vadd.f32 %v9163, %v8915
        %v9180 = vadd.f32 %v9164, %v8915
        %v9181 = vld [vmem:[%s1591] sm:$0xff]
        %v9182 = vld [vmem:[%s1591 + $0x8] sm:$0xff]
        %v9183 = vld [vmem:[%s1591 + $0x10] sm:$0xff]
        %v9184 = vld [vmem:[%s1591 + $0x18] sm:$0xff]
        %v9185 = vld [vmem:[%s1591 + $0x20] sm:$0xff]
        %v9186 = vld [vmem:[%s1591 + $0x28] sm:$0xff]
        %v9187 = vld [vmem:[%s1591 + $0x30] sm:$0xff]
        %v9188 = vld [vmem:[%s1591 + $0x38] sm:$0xff]
        %v9189 = vld [vmem:[%s1591 + $0x40] sm:$0xff]
        %v9190 = vld [vmem:[%s1591 + $0x48] sm:$0xff]
        %v9191 = vld [vmem:[%s1591 + $0x50] sm:$0xff]
        %v9192 = vld [vmem:[%s1591 + $0x58] sm:$0xff]
        %v9193 = vld [vmem:[%s1591 + $0x60] sm:$0xff]
        %v9194 = vld [vmem:[%s1591 + $0x68] sm:$0xff]
        %v9195 = vld [vmem:[%s1591 + $0x70] sm:$0xff]
        %v9196 = vld [vmem:[%s1591 + $0x78] sm:$0xff]
        %v9197 = vadd.f32 %v9165, %v9181
        %v9198 = vadd.f32 %v9166, %v9182
        %v9199 = vadd.f32 %v9167, %v9183
        %v9200 = vadd.f32 %v9168, %v9184
        %v9201 = vadd.f32 %v9169, %v9185
        %v9202 = vadd.f32 %v9170, %v9186
        %v9203 = vadd.f32 %v9171, %v9187
        %v9204 = vadd.f32 %v9172, %v9188
        %v9205 = vadd.f32 %v9173, %v9189
        %v9206 = vadd.f32 %v9174, %v9190
        %v9207 = vadd.f32 %v9175, %v9191
        %v9208 = vadd.f32 %v9176, %v9192
        %v9209 = vadd.f32 %v9177, %v9193
        %v9210 = vadd.f32 %v9178, %v9194
        %v9211 = vadd.f32 %v9179, %v9195
        %v9212 = vadd.f32 %v9180, %v9196
        %s9213 = scalar_lea.vmem %s353, 128 [#allocation10]
        %9214 = vst [vmem:[%s9213] sm:$0xff] %v9197
        %9215 = vst [vmem:[%s9213 + $0x8] sm:$0xff] %v9198
        %9216 = vst [vmem:[%s9213 + $0x10] sm:$0xff] %v9199
        %9217 = vst [vmem:[%s9213 + $0x18] sm:$0xff] %v9200
        %9218 = vst [vmem:[%s9213 + $0x20] sm:$0xff] %v9201
        %9219 = vst [vmem:[%s9213 + $0x28] sm:$0xff] %v9202
        %9220 = vst [vmem:[%s9213 + $0x30] sm:$0xff] %v9203
        %9221 = vst [vmem:[%s9213 + $0x38] sm:$0xff] %v9204
        %9222 = vst [vmem:[%s9213 + $0x40] sm:$0xff] %v9205
        %9223 = vst [vmem:[%s9213 + $0x48] sm:$0xff] %v9206
        %9224 = vst [vmem:[%s9213 + $0x50] sm:$0xff] %v9207
        %9225 = vst [vmem:[%s9213 + $0x58] sm:$0xff] %v9208
        %9226 = vst [vmem:[%s9213 + $0x60] sm:$0xff] %v9209
        %9227 = vst [vmem:[%s9213 + $0x68] sm:$0xff] %v9210
        %9228 = vst [vmem:[%s9213 + $0x70] sm:$0xff] %v9211
        %9229 = vst [vmem:[%s9213 + $0x78] sm:$0xff] %v9212
        %s9230 = sand.u32 %s207, 1
        %s9231 = scalar_lea.sflag [#allocation6], %s9230
        %s9232 = sand.u32 %s207, 1
        %s9233 = smul.addr %s9232, 256
        %s9234 = scalar_lea.vmem [#allocation10], %s9233
        // Predicated region
        $region65: #{tpu_custom_call.1} parent=51 // pred_check
          %p9235 = pneg %p217
        $region66: #{tpu_custom_call.1} parent=51 // pred_check_branch
          %9237 = sbr.rel (%p9235) target = $region68
        $region67: #{tpu_custom_call.1} parent=51 // pred_region
          %s9238 = smul.u32 2, %s26
          %s9240 = ssub.s32 4096, 4096
          %9241 = vsyncadd %s9231, %s9240
          %s9242 = smul.addr %s9238, 16
          %s9243 = smul.addr %s9242, 128
          %s9244 = scalar_lea.hbm %s8, %s9243
          %s9245 = sshll.u32 %s9234, 4
          %s9246 = int_to_ptr.vmem [resolvable:$true] %s9245
          %9251 = dma.vmem_to_hbm [thread:$0]  %s9246, 4096, %s9244, %s9231, 256, 256, 16
        $region68: #{tpu_custom_call.1} parent=51 // pred_fallthru
          _
      $region52: #{tpu_custom_call.1} parent=5 // pred_fallthru
        _
      %p9252 = scmp.le.s32.totalorder 2, %s21
      // Predicated region
      $region69: #{tpu_custom_call.1} parent=5 // pred_check
        %p9253 = pneg %p9252
      $region70: #{tpu_custom_call.1} parent=5 // pred_check_branch
        %9255 = sbr.rel (%p9253) target = $region72
      $region71: #{tpu_custom_call.1} parent=5 // pred_region
        %s9256 = ssub.s32 %s21, 2
        // Predicated region
        $region73: #{tpu_custom_call.1} parent=71 // pred_check
          %p9257 = pneg %p223
        $region74: #{tpu_custom_call.1} parent=71 // pred_check_branch
          %9259 = sbr.rel (%p9257) target = $region76
        $region75: #{tpu_custom_call.1} parent=71 // pred_region
          %s9260 = sand.u32 %s208, 1
          %s9261 = scalar_lea.sflag [#allocation6], %s9260
          %s9262 = sand.u32 %s208, 1
          %s9263 = smul.addr %s9262, 256
          %s9264 = scalar_lea.vmem [#allocation10], %s9263
          %9265 = dma.done %s9261, 4096
        $region76: #{tpu_custom_call.1} parent=71 // pred_fallthru
          _
      $region72: #{tpu_custom_call.1} parent=5 // pred_fallthru
        _
    $region6: #{tpu_custom_call.1} parent=1 // loop_footer
      %s25 = sadd.s32 1, %s21
    $region7: #{tpu_custom_call.1} parent=1 // loop_footer_branch
      %20 = sbr.rel target = $region3
    $region8: #{tpu_custom_call.1} parent=1 // loop_exit
      _
    %9266 = vsyncpa [#allocation5], 1
    %s9267 = scalar_lea.sflag [#allocation5], 1
    %9268 = vsyncpa %s9267, 1
    %9269 = vsyncpa [#allocation8], 1
    %9270 = vsyncpa [#allocation6], 1
    %s9271 = scalar_lea.sflag [#allocation6], 1
    %9272 = vsyncpa %s9271, 1

</llo_original>
